<compile_context>
chip_gen: v5e
topology: v5e:2x2
jax: 0.10.0
libtpu: 0.0.40
codegen_flags: <defaults>
</compile_context>

<pallas_src>
import functools

import jax
import jax.numpy as jnp
from jax.experimental import pallas as pl
from jax.experimental.pallas import tpu as pltpu

HIDDEN = (1024, 512, 256, 128)


def generator_mlp_kernel(
    x_ref,
    w1_ref, b1_ref,
    w2_ref, b2_ref,
    w3_ref, b3_ref,
    w4_ref, b4_ref,
    w5_ref, b5_ref,
    out_ref,
    *,
    tanh_dtype,
):
    """Fused 5-layer MLP on one (TM, K) batch tile.

    (linear -> leaky_relu(0.2)) x4 -> linear -> tanh.
    bf16 operands feed the MXU, accumulation/bias/leaky_relu happen in f32,
    and the activation handed to the next layer is cast to bf16 exactly once.
    Dropout layers are eval-mode identities.
    """

    def layer(h_bf16, w_ref, b_ref):
        y = jnp.dot(h_bf16, w_ref[...], preferred_element_type=jnp.float32)
        y = y + b_ref[...]                       # (1, N) f32 bias broadcast
        # leaky_relu(0.2): max(y, 0.2*y) == where(y > 0, y, 0.2*y) for slope < 1.
        return jnp.maximum(y, 0.2 * y).astype(jnp.bfloat16)

    h = layer(x_ref[...], w1_ref, b1_ref)        # fc1 (+eval-mode drop1)
    h = layer(h, w2_ref, b2_ref)                 # fc2 (+drop2)
    h = layer(h, w3_ref, b3_ref)                 # fc3 (+drop3)
    h = layer(h, w4_ref, b4_ref)                 # fc4 (+drop4)
    y = jnp.dot(h, w5_ref[...], preferred_element_type=jnp.float32) + b5_ref[...]
    # tanh in bf16 where the EUP supports it (v6e/v7x); f32 on v5e.
    out_ref[...] = jnp.tanh(y.astype(tanh_dtype)).astype(out_ref.dtype)


def _device_kind():
    try:
        return jax.devices()[0].device_kind.lower().replace(" ", "")
    except Exception:  # pragma: no cover - defensive
        return ""


def _round_up(x, m):
    return ((x + m - 1) // m) * m


def _choose_batch_tile(B):
    """Pick (TM, B_pad, num_tiles, is_v5) for the 1-D batch grid."""
    kind = _device_kind()
    is_v5 = "v5" in kind
    is_v7 = ("v7" in kind) or ("tpu7" in kind)
    tm_target = 128 if is_v5 else 256            # MXU rows: 4x128^2 vs 2x256^2
    B8 = max(8, _round_up(B, 8))
    if is_v7 and B >= 32:
        # v7x has 2 TensorCores; guarantee >= 2 "parallel" grid steps so both
        # get work (a single-tile grid leaves one core idle).
        TM = min(tm_target, _round_up((B8 + 1) // 2, 8))
    else:
        TM = min(tm_target, B8)
    B_pad = _round_up(B8, TM)
    return TM, B_pad, B_pad // TM, is_v5


def _build_pallas_call(TM, num_tiles, k_pad, out_dim, w_shapes, b_shapes,
                       tanh_dtype, single_buffer_params):
    x_spec = pl.BlockSpec((TM, k_pad), lambda i: (i, 0))
    out_spec = pl.BlockSpec((TM, out_dim), lambda i: (i, 0))

    param_specs = []
    for shp in [s for pair in zip(w_shapes, b_shapes) for s in pair]:
        if single_buffer_params:
            # Constant index_map -> grid-invariant operand; one VMEM buffer is
            # enough (saves the second copy default double-buffering allocates).
            spec = pl.BlockSpec(shp, lambda i: (0, 0),
                                pipeline_mode=pl.Buffered(1))
        else:
            spec = pl.BlockSpec(shp, lambda i: (0, 0))
        param_specs.append(spec)

    dims = [k_pad, *HIDDEN, out_dim]
    B_pad = TM * num_tiles
    flops = 2 * B_pad * sum(dims[i] * dims[i + 1] for i in range(5))
    weight_bytes = sum(a * b * 2 for a, b in w_shapes)       # bf16, read once
    bias_bytes = sum(a * b * 4 for a, b in b_shapes)         # f32, read once
    cost = pl.CostEstimate(
        flops=flops,
        transcendentals=B_pad * out_dim,                     # tanh
        bytes_accessed=(weight_bytes + bias_bytes
                        + B_pad * k_pad * 2                  # bf16 x read
                        + B_pad * out_dim * 2),              # bf16 out write
    )

    return pl.pallas_call(
        functools.partial(generator_mlp_kernel, tanh_dtype=tanh_dtype),
        out_shape=jax.ShapeDtypeStruct((B_pad, out_dim), jnp.bfloat16),
        grid=(num_tiles,),
        in_specs=[x_spec] + param_specs,
        out_specs=out_spec,
        cost_estimate=cost,
        compiler_params=pltpu.CompilerParams(
            dimension_semantics=("parallel",),   # megacore / v7x 2-TC sharding
            vmem_limit_bytes=48 * 1024 * 1024,   # < v7x's 64 MiB physical VMEM
        ),
    )


def generator_gan_forward(x, params, nc):
    """x: (B, ...) -> (B, nc, 64, 64) bf16, mirroring GeneratorGAN.forward.

    Output is bf16 (the kernel is HBM-write bound); cast to f32 downstream only
    if a consumer truly needs it.
    """
    B = x.shape[0]
    x2d = x.reshape(B, -1).astype(jnp.bfloat16)              # x.view(B, -1)
    in_dim = x2d.shape[1]

    (w1, b1), (w2, b2), (w3, b3), (w4, b4), (w5, b5) = params
    out_dim = w5.shape[1]
    assert out_dim == nc * 64 * 64, "fc5 output must equal nc*64*64"

    # Pad the fc1 contraction dim to a lane-aligned multiple of 128.
    k_pad = max(128, _round_up(in_dim, 128))
    if k_pad != in_dim:
        x2d = jnp.pad(x2d, ((0, 0), (0, k_pad - in_dim)))
        w1 = jnp.pad(w1, ((0, k_pad - in_dim), (0, 0)))

    TM, B_pad, num_tiles, is_v5 = _choose_batch_tile(B)
    if B_pad != B:
        x2d = jnp.pad(x2d, ((0, B_pad - B), (0, 0)))

    # bf16 weights (MXU rate + half HBM bytes), f32 biases.
    ws = [w.astype(jnp.bfloat16) for w in (w1, w2, w3, w4, w5)]
    bs = [b.astype(jnp.float32) for b in (b1, b2, b3, b4, b5)]
    flat_params = [t for pair in zip(ws, bs) for t in pair]

    tanh_dtype = jnp.float32 if is_v5 else jnp.bfloat16      # v5e EUP: no bf16

    out = None
    for single_buffer in (True, False):
        try:
            call = _build_pallas_call(
                TM, num_tiles, k_pad, out_dim,
                [w.shape for w in ws], [b.shape for b in bs],
                tanh_dtype, single_buffer)
            out = jax.block_until_ready(call(x2d, *flat_params))
            break
        except Exception:
            # If this jax build does not honor pipeline_mode=pl.Buffered(1) on
            # pallas_call BlockSpecs, fall back to default double-buffering.
            if not single_buffer:
                raise

    return out[:B].reshape(B, nc, 64, 64)


def init_params(key, input_dim, output_dim):
    """Deterministic init matching nn.Linear shapes.

    Weights stored as (in_features, out_features) so the kernel does h @ W.
    Biases stored as (1, out_features) for clean 2-D broadcast on TPU.
    """
    dims = [input_dim, *HIDDEN, output_dim]
    params = []
    for i in range(5):
        fan_in, fan_out = dims[i], dims[i + 1]
        key, kw, kb = jax.random.split(key, 3)
        bound = 1.0 / (fan_in ** 0.5)
        w = jax.random.uniform(
            kw, (fan_in, fan_out), jnp.float32, minval=-bound, maxval=bound)
        b = jax.random.uniform(
            kb, (1, fan_out), jnp.float32, minval=-bound, maxval=bound)
        params.append((w, b))
    return params


def reference_forward(x, params, nc, tanh_dtype):
    """Plain-JAX reference mirroring the kernel's dtype choices (bf16 weights /
    activations / output, f32 accumulation) so the comparison isolates kernel
    bugs rather than quantization differences."""
    B = x.shape[0]
    h = x.reshape(B, -1).astype(jnp.bfloat16)
    for i in range(4):
        w, b = params[i]
        y = jnp.dot(h, w.astype(jnp.bfloat16),
                    preferred_element_type=jnp.float32) + b.astype(jnp.float32)
        h = jnp.maximum(y, 0.2 * y).astype(jnp.bfloat16)
    w, b = params[4]
    y = jnp.dot(h, w.astype(jnp.bfloat16),
                preferred_element_type=jnp.float32) + b.astype(jnp.float32)
    y = jnp.tanh(y.astype(tanh_dtype)).astype(jnp.bfloat16)
    return y.reshape(B, nc, 64, 64)


if __name__ == "__main__":
    key = jax.random.PRNGKey(0)
    k_x, k_p = jax.random.split(key)

    # Small, module-consistent shapes: latent input=100, nc=1 -> output=1*64*64.
    batch = 2
    input_dim = 100
    nc = 1
    output_dim = nc * 64 * 64

    x = jax.random.normal(k_x, (batch, input_dim), dtype=jnp.float32)
    params = init_params(k_p, input_dim, output_dim)

    out = generator_gan_forward(x, params, nc)
    out = jax.block_until_ready(out)

    assert out.shape == (batch, nc, 64, 64), out.shape
    assert out.dtype == jnp.bfloat16, out.dtype

    is_v5 = "v5" in _device_kind()
    ref = reference_forward(
        x, params, nc, jnp.float32 if is_v5 else jnp.bfloat16)
    err = float(jnp.max(jnp.abs(out.astype(jnp.float32)
                                - ref.astype(jnp.float32))))
    assert err < 2e-2, f"max abs error {err}"

    print("KERNEL_OK")
</pallas_src>

<mosaic_0001>
module attributes {stable_mosaic.version = 11 : i64} {
  func.func @generator_mlp_kernel(%arg0: i32, %arg1: memref<8x128xbf16, #tpu.memory_space<vmem>>, %arg2: memref<128x1024xbf16, #tpu.memory_space<vmem>>, %arg3: memref<1x1024xf32, #tpu.memory_space<vmem>>, %arg4: memref<1024x512xbf16, #tpu.memory_space<vmem>>, %arg5: memref<1x512xf32, #tpu.memory_space<vmem>>, %arg6: memref<512x256xbf16, #tpu.memory_space<vmem>>, %arg7: memref<1x256xf32, #tpu.memory_space<vmem>>, %arg8: memref<256x128xbf16, #tpu.memory_space<vmem>>, %arg9: memref<1x128xf32, #tpu.memory_space<vmem>>, %arg10: memref<128x4096xbf16, #tpu.memory_space<vmem>>, %arg11: memref<1x4096xf32, #tpu.memory_space<vmem>>, %arg12: memref<8x4096xbf16, #tpu.memory_space<vmem>>) attributes {dimension_semantics = [#tpu.dimension_semantics<parallel>], iteration_bounds = array<i64: 1>, scalar_prefetch = 0 : i64, scratch_operands = 0 : i64, tpu.core_type = #tpu.core_type<tc>, window_params = [{transform_indices = @transform_0, window_bounds = array<i64: 8, 128>}, {pipeline_mode = #tpu.pipeline_mode<synchronous>, transform_indices = @transform_1, window_bounds = array<i64: 128, 1024>}, {pipeline_mode = #tpu.pipeline_mode<synchronous>, transform_indices = @transform_2, window_bounds = array<i64: 1, 1024>}, {pipeline_mode = #tpu.pipeline_mode<synchronous>, transform_indices = @transform_3, window_bounds = array<i64: 1024, 512>}, {pipeline_mode = #tpu.pipeline_mode<synchronous>, transform_indices = @transform_4, window_bounds = array<i64: 1, 512>}, {pipeline_mode = #tpu.pipeline_mode<synchronous>, transform_indices = @transform_5, window_bounds = array<i64: 512, 256>}, {pipeline_mode = #tpu.pipeline_mode<synchronous>, transform_indices = @transform_6, window_bounds = array<i64: 1, 256>}, {pipeline_mode = #tpu.pipeline_mode<synchronous>, transform_indices = @transform_7, window_bounds = array<i64: 256, 128>}, {pipeline_mode = #tpu.pipeline_mode<synchronous>, transform_indices = @transform_8, window_bounds = array<i64: 1, 128>}, {pipeline_mode = #tpu.pipeline_mode<synchronous>, transform_indices = @transform_9, window_bounds = array<i64: 128, 4096>}, {pipeline_mode = #tpu.pipeline_mode<synchronous>, transform_indices = @transform_10, window_bounds = array<i64: 1, 4096>}, {transform_indices = @transform_11, window_bounds = array<i64: 8, 4096>}]} {
    %c0 = arith.constant 0 : index
    %c0_0 = arith.constant 0 : index
    %0 = vector.load %arg1[%c0, %c0_0] : memref<8x128xbf16, #tpu.memory_space<vmem>>, vector<8x128xbf16>
    %c0_1 = arith.constant 0 : index
    %c0_2 = arith.constant 0 : index
    %1 = vector.load %arg2[%c0_1, %c0_2] : memref<128x1024xbf16, #tpu.memory_space<vmem>>, vector<128x1024xbf16>
    %cst = arith.constant dense<0.000000e+00> : vector<8x1024xf32>
    %2 = tpu.matmul %0, %1, %cst {dimension_numbers = #tpu.dot_dimension_numbers<[1], [0], [0], [1], [0, 0, 1, 1], [], []>} : vector<8x128xbf16>, vector<128x1024xbf16>, vector<8x1024xf32> -> vector<8x1024xf32>
    %c0_3 = arith.constant 0 : index
    %c0_4 = arith.constant 0 : index
    %3 = vector.load %arg3[%c0_3, %c0_4] : memref<1x1024xf32, #tpu.memory_space<vmem>>, vector<1x1024xf32>
    %4 = vector.broadcast %3 : vector<1x1024xf32> to vector<8x1024xf32>
    %5 = arith.addf %2, %4 : vector<8x1024xf32>
    %cst_5 = arith.constant 2.000000e-01 : f32
    %6 = vector.broadcast %cst_5 : f32 to vector<8x1024xf32>
    %7 = arith.mulf %6, %5 : vector<8x1024xf32>
    %8 = arith.maximumf %5, %7 : vector<8x1024xf32>
    %9 = arith.truncf %8 : vector<8x1024xf32> to vector<8x1024xbf16>
    %c0_6 = arith.constant 0 : index
    %c0_7 = arith.constant 0 : index
    %10 = vector.load %arg4[%c0_6, %c0_7] : memref<1024x512xbf16, #tpu.memory_space<vmem>>, vector<1024x512xbf16>
    %cst_8 = arith.constant dense<0.000000e+00> : vector<8x512xf32>
    %11 = tpu.matmul %9, %10, %cst_8 {dimension_numbers = #tpu.dot_dimension_numbers<[1], [0], [0], [1], [0, 0, 1, 1], [], []>} : vector<8x1024xbf16>, vector<1024x512xbf16>, vector<8x512xf32> -> vector<8x512xf32>
    %c0_9 = arith.constant 0 : index
    %c0_10 = arith.constant 0 : index
    %12 = vector.load %arg5[%c0_9, %c0_10] : memref<1x512xf32, #tpu.memory_space<vmem>>, vector<1x512xf32>
    %13 = vector.broadcast %12 : vector<1x512xf32> to vector<8x512xf32>
    %14 = arith.addf %11, %13 : vector<8x512xf32>
    %cst_11 = arith.constant 2.000000e-01 : f32
    %15 = vector.broadcast %cst_11 : f32 to vector<8x512xf32>
    %16 = arith.mulf %15, %14 : vector<8x512xf32>
    %17 = arith.maximumf %14, %16 : vector<8x512xf32>
    %18 = arith.truncf %17 : vector<8x512xf32> to vector<8x512xbf16>
    %c0_12 = arith.constant 0 : index
    %c0_13 = arith.constant 0 : index
    %19 = vector.load %arg6[%c0_12, %c0_13] : memref<512x256xbf16, #tpu.memory_space<vmem>>, vector<512x256xbf16>
    %cst_14 = arith.constant dense<0.000000e+00> : vector<8x256xf32>
    %20 = tpu.matmul %18, %19, %cst_14 {dimension_numbers = #tpu.dot_dimension_numbers<[1], [0], [0], [1], [0, 0, 1, 1], [], []>} : vector<8x512xbf16>, vector<512x256xbf16>, vector<8x256xf32> -> vector<8x256xf32>
    %c0_15 = arith.constant 0 : index
    %c0_16 = arith.constant 0 : index
    %21 = vector.load %arg7[%c0_15, %c0_16] : memref<1x256xf32, #tpu.memory_space<vmem>>, vector<1x256xf32>
    %22 = vector.broadcast %21 : vector<1x256xf32> to vector<8x256xf32>
    %23 = arith.addf %20, %22 : vector<8x256xf32>
    %cst_17 = arith.constant 2.000000e-01 : f32
    %24 = vector.broadcast %cst_17 : f32 to vector<8x256xf32>
    %25 = arith.mulf %24, %23 : vector<8x256xf32>
    %26 = arith.maximumf %23, %25 : vector<8x256xf32>
    %27 = arith.truncf %26 : vector<8x256xf32> to vector<8x256xbf16>
    %c0_18 = arith.constant 0 : index
    %c0_19 = arith.constant 0 : index
    %28 = vector.load %arg8[%c0_18, %c0_19] : memref<256x128xbf16, #tpu.memory_space<vmem>>, vector<256x128xbf16>
    %cst_20 = arith.constant dense<0.000000e+00> : vector<8x128xf32>
    %29 = tpu.matmul %27, %28, %cst_20 {dimension_numbers = #tpu.dot_dimension_numbers<[1], [0], [0], [1], [0, 0, 1, 1], [], []>} : vector<8x256xbf16>, vector<256x128xbf16>, vector<8x128xf32> -> vector<8x128xf32>
    %c0_21 = arith.constant 0 : index
    %c0_22 = arith.constant 0 : index
    %30 = vector.load %arg9[%c0_21, %c0_22] : memref<1x128xf32, #tpu.memory_space<vmem>>, vector<1x128xf32>
    %31 = vector.broadcast %30 : vector<1x128xf32> to vector<8x128xf32>
    %32 = arith.addf %29, %31 : vector<8x128xf32>
    %cst_23 = arith.constant 2.000000e-01 : f32
    %33 = vector.broadcast %cst_23 : f32 to vector<8x128xf32>
    %34 = arith.mulf %33, %32 : vector<8x128xf32>
    %35 = arith.maximumf %32, %34 : vector<8x128xf32>
    %36 = arith.truncf %35 : vector<8x128xf32> to vector<8x128xbf16>
    %c0_24 = arith.constant 0 : index
    %c0_25 = arith.constant 0 : index
    %37 = vector.load %arg10[%c0_24, %c0_25] : memref<128x4096xbf16, #tpu.memory_space<vmem>>, vector<128x4096xbf16>
    %cst_26 = arith.constant dense<0.000000e+00> : vector<8x4096xf32>
    %38 = tpu.matmul %36, %37, %cst_26 {dimension_numbers = #tpu.dot_dimension_numbers<[1], [0], [0], [1], [0, 0, 1, 1], [], []>} : vector<8x128xbf16>, vector<128x4096xbf16>, vector<8x4096xf32> -> vector<8x4096xf32>
    %c0_27 = arith.constant 0 : index
    %c0_28 = arith.constant 0 : index
    %39 = vector.load %arg11[%c0_27, %c0_28] : memref<1x4096xf32, #tpu.memory_space<vmem>>, vector<1x4096xf32>
    %40 = vector.broadcast %39 : vector<1x4096xf32> to vector<8x4096xf32>
    %41 = arith.addf %38, %40 : vector<8x4096xf32>
    %42 = arith.truncf %41 : vector<8x4096xf32> to vector<8x4096xbf16>
    %43 = math.tanh %42 : vector<8x4096xbf16>
    %c0_29 = arith.constant 0 : index
    %c0_30 = arith.constant 0 : index
    %44 = vector.load %arg12[%c0_29, %c0_30] : memref<8x4096xbf16, #tpu.memory_space<vmem>>, vector<8x4096xbf16>
    tpu.vector_store %arg12[%c0_29, %c0_30], %43 {strides = array<i32>} : memref<8x4096xbf16, #tpu.memory_space<vmem>>, vector<8x4096xbf16>,
    return
  }
  func.func @transform_0(%arg0: i32) -> (i32, i32) {
    %c0_i32 = arith.constant 0 : i32
    %c0_i32_0 = arith.constant 0 : i32
    return %arg0, %c0_i32 : i32, i32
  }
  func.func @transform_1(%arg0: i32) -> (i32, i32) {
    %c0_i32 = arith.constant 0 : i32
    %c0_i32_0 = arith.constant 0 : i32
    %c0_i32_1 = arith.constant 0 : i32
    return %c0_i32, %c0_i32_0 : i32, i32
  }
  func.func @transform_2(%arg0: i32) -> (i32, i32) {
    %c0_i32 = arith.constant 0 : i32
    %c0_i32_0 = arith.constant 0 : i32
    %c0_i32_1 = arith.constant 0 : i32
    return %c0_i32, %c0_i32_0 : i32, i32
  }
  func.func @transform_3(%arg0: i32) -> (i32, i32) {
    %c0_i32 = arith.constant 0 : i32
    %c0_i32_0 = arith.constant 0 : i32
    %c0_i32_1 = arith.constant 0 : i32
    return %c0_i32, %c0_i32_0 : i32, i32
  }
  func.func @transform_4(%arg0: i32) -> (i32, i32) {
    %c0_i32 = arith.constant 0 : i32
    %c0_i32_0 = arith.constant 0 : i32
    %c0_i32_1 = arith.constant 0 : i32
    return %c0_i32, %c0_i32_0 : i32, i32
  }
  func.func @transform_5(%arg0: i32) -> (i32, i32) {
    %c0_i32 = arith.constant 0 : i32
    %c0_i32_0 = arith.constant 0 : i32
    %c0_i32_1 = arith.constant 0 : i32
    return %c0_i32, %c0_i32_0 : i32, i32
  }
  func.func @transform_6(%arg0: i32) -> (i32, i32) {
    %c0_i32 = arith.constant 0 : i32
    %c0_i32_0 = arith.constant 0 : i32
    %c0_i32_1 = arith.constant 0 : i32
    return %c0_i32, %c0_i32_0 : i32, i32
  }
  func.func @transform_7(%arg0: i32) -> (i32, i32) {
    %c0_i32 = arith.constant 0 : i32
    %c0_i32_0 = arith.constant 0 : i32
    %c0_i32_1 = arith.constant 0 : i32
    return %c0_i32, %c0_i32_0 : i32, i32
  }
  func.func @transform_8(%arg0: i32) -> (i32, i32) {
    %c0_i32 = arith.constant 0 : i32
    %c0_i32_0 = arith.constant 0 : i32
    %c0_i32_1 = arith.constant 0 : i32
    return %c0_i32, %c0_i32_0 : i32, i32
  }
  func.func @transform_9(%arg0: i32) -> (i32, i32) {
    %c0_i32 = arith.constant 0 : i32
    %c0_i32_0 = arith.constant 0 : i32
    %c0_i32_1 = arith.constant 0 : i32
    return %c0_i32, %c0_i32_0 : i32, i32
  }
  func.func @transform_10(%arg0: i32) -> (i32, i32) {
    %c0_i32 = arith.constant 0 : i32
    %c0_i32_0 = arith.constant 0 : i32
    %c0_i32_1 = arith.constant 0 : i32
    return %c0_i32, %c0_i32_0 : i32, i32
  }
  func.func @transform_11(%arg0: i32) -> (i32, i32) {
    %c0_i32 = arith.constant 0 : i32
    %c0_i32_0 = arith.constant 0 : i32
    return %arg0, %c0_i32 : i32, i32
  }
}

module attributes {stable_mosaic.version = 11 : i64} {
  func.func @generator_mlp_kernel(%arg0: i32, %arg1: memref<8x128xbf16, #tpu.memory_space<vmem>>, %arg2: memref<128x1024xbf16, #tpu.memory_space<vmem>>, %arg3: memref<1x1024xf32, #tpu.memory_space<vmem>>, %arg4: memref<1024x512xbf16, #tpu.memory_space<vmem>>, %arg5: memref<1x512xf32, #tpu.memory_space<vmem>>, %arg6: memref<512x256xbf16, #tpu.memory_space<vmem>>, %arg7: memref<1x256xf32, #tpu.memory_space<vmem>>, %arg8: memref<256x128xbf16, #tpu.memory_space<vmem>>, %arg9: memref<1x128xf32, #tpu.memory_space<vmem>>, %arg10: memref<128x4096xbf16, #tpu.memory_space<vmem>>, %arg11: memref<1x4096xf32, #tpu.memory_space<vmem>>, %arg12: memref<8x4096xbf16, #tpu.memory_space<vmem>>) attributes {dimension_semantics = [#tpu.dimension_semantics<parallel>], iteration_bounds = array<i64: 1>, scalar_prefetch = 0 : i64, scratch_operands = 0 : i64, tpu.core_type = #tpu.core_type<tc>, window_params = [{transform_indices = @transform_0, window_bounds = array<i64: 8, 128>}, {pipeline_mode = #tpu.pipeline_mode<synchronous>, transform_indices = @transform_1, window_bounds = array<i64: 128, 1024>}, {pipeline_mode = #tpu.pipeline_mode<synchronous>, transform_indices = @transform_2, window_bounds = array<i64: 1, 1024>}, {pipeline_mode = #tpu.pipeline_mode<synchronous>, transform_indices = @transform_3, window_bounds = array<i64: 1024, 512>}, {pipeline_mode = #tpu.pipeline_mode<synchronous>, transform_indices = @transform_4, window_bounds = array<i64: 1, 512>}, {pipeline_mode = #tpu.pipeline_mode<synchronous>, transform_indices = @transform_5, window_bounds = array<i64: 512, 256>}, {pipeline_mode = #tpu.pipeline_mode<synchronous>, transform_indices = @transform_6, window_bounds = array<i64: 1, 256>}, {pipeline_mode = #tpu.pipeline_mode<synchronous>, transform_indices = @transform_7, window_bounds = array<i64: 256, 128>}, {pipeline_mode = #tpu.pipeline_mode<synchronous>, transform_indices = @transform_8, window_bounds = array<i64: 1, 128>}, {pipeline_mode = #tpu.pipeline_mode<synchronous>, transform_indices = @transform_9, window_bounds = array<i64: 128, 4096>}, {pipeline_mode = #tpu.pipeline_mode<synchronous>, transform_indices = @transform_10, window_bounds = array<i64: 1, 4096>}, {transform_indices = @transform_11, window_bounds = array<i64: 8, 4096>}]} {
    %c0 = arith.constant 0 : index
    %c0_0 = arith.constant 0 : index
    %0 = vector.load %arg1[%c0, %c0_0] : memref<8x128xbf16, #tpu.memory_space<vmem>>, vector<8x128xbf16>
    %c0_1 = arith.constant 0 : index
    %c0_2 = arith.constant 0 : index
    %1 = vector.load %arg2[%c0_1, %c0_2] : memref<128x1024xbf16, #tpu.memory_space<vmem>>, vector<128x1024xbf16>
    %cst = arith.constant dense<0.000000e+00> : vector<8x1024xf32>
    %2 = tpu.matmul %0, %1, %cst {dimension_numbers = #tpu.dot_dimension_numbers<[1], [0], [0], [1], [0, 0, 1, 1], [], []>} : vector<8x128xbf16>, vector<128x1024xbf16>, vector<8x1024xf32> -> vector<8x1024xf32>
    %c0_3 = arith.constant 0 : index
    %c0_4 = arith.constant 0 : index
    %3 = vector.load %arg3[%c0_3, %c0_4] : memref<1x1024xf32, #tpu.memory_space<vmem>>, vector<1x1024xf32>
    %4 = vector.broadcast %3 : vector<1x1024xf32> to vector<8x1024xf32>
    %5 = arith.addf %2, %4 : vector<8x1024xf32>
    %cst_5 = arith.constant 2.000000e-01 : f32
    %6 = vector.broadcast %cst_5 : f32 to vector<8x1024xf32>
    %7 = arith.mulf %6, %5 : vector<8x1024xf32>
    %8 = arith.maximumf %5, %7 : vector<8x1024xf32>
    %9 = arith.truncf %8 : vector<8x1024xf32> to vector<8x1024xbf16>
    %c0_6 = arith.constant 0 : index
    %c0_7 = arith.constant 0 : index
    %10 = vector.load %arg4[%c0_6, %c0_7] : memref<1024x512xbf16, #tpu.memory_space<vmem>>, vector<1024x512xbf16>
    %cst_8 = arith.constant dense<0.000000e+00> : vector<8x512xf32>
    %11 = tpu.matmul %9, %10, %cst_8 {dimension_numbers = #tpu.dot_dimension_numbers<[1], [0], [0], [1], [0, 0, 1, 1], [], []>} : vector<8x1024xbf16>, vector<1024x512xbf16>, vector<8x512xf32> -> vector<8x512xf32>
    %c0_9 = arith.constant 0 : index
    %c0_10 = arith.constant 0 : index
    %12 = vector.load %arg5[%c0_9, %c0_10] : memref<1x512xf32, #tpu.memory_space<vmem>>, vector<1x512xf32>
    %13 = vector.broadcast %12 : vector<1x512xf32> to vector<8x512xf32>
    %14 = arith.addf %11, %13 : vector<8x512xf32>
    %cst_11 = arith.constant 2.000000e-01 : f32
    %15 = vector.broadcast %cst_11 : f32 to vector<8x512xf32>
    %16 = arith.mulf %15, %14 : vector<8x512xf32>
    %17 = arith.maximumf %14, %16 : vector<8x512xf32>
    %18 = arith.truncf %17 : vector<8x512xf32> to vector<8x512xbf16>
    %c0_12 = arith.constant 0 : index
    %c0_13 = arith.constant 0 : index
    %19 = vector.load %arg6[%c0_12, %c0_13] : memref<512x256xbf16, #tpu.memory_space<vmem>>, vector<512x256xbf16>
    %cst_14 = arith.constant dense<0.000000e+00> : vector<8x256xf32>
    %20 = tpu.matmul %18, %19, %cst_14 {dimension_numbers = #tpu.dot_dimension_numbers<[1], [0], [0], [1], [0, 0, 1, 1], [], []>} : vector<8x512xbf16>, vector<512x256xbf16>, vector<8x256xf32> -> vector<8x256xf32>
    %c0_15 = arith.constant 0 : index
    %c0_16 = arith.constant 0 : index
    %21 = vector.load %arg7[%c0_15, %c0_16] : memref<1x256xf32, #tpu.memory_space<vmem>>, vector<1x256xf32>
    %22 = vector.broadcast %21 : vector<1x256xf32> to vector<8x256xf32>
    %23 = arith.addf %20, %22 : vector<8x256xf32>
    %cst_17 = arith.constant 2.000000e-01 : f32
    %24 = vector.broadcast %cst_17 : f32 to vector<8x256xf32>
    %25 = arith.mulf %24, %23 : vector<8x256xf32>
    %26 = arith.maximumf %23, %25 : vector<8x256xf32>
    %27 = arith.truncf %26 : vector<8x256xf32> to vector<8x256xbf16>
    %c0_18 = arith.constant 0 : index
    %c0_19 = arith.constant 0 : index
    %28 = vector.load %arg8[%c0_18, %c0_19] : memref<256x128xbf16, #tpu.memory_space<vmem>>, vector<256x128xbf16>
    %cst_20 = arith.constant dense<0.000000e+00> : vector<8x128xf32>
    %29 = tpu.matmul %27, %28, %cst_20 {dimension_numbers = #tpu.dot_dimension_numbers<[1], [0], [0], [1], [0, 0, 1, 1], [], []>} : vector<8x256xbf16>, vector<256x128xbf16>, vector<8x128xf32> -> vector<8x128xf32>
    %c0_21 = arith.constant 0 : index
    %c0_22 = arith.constant 0 : index
    %30 = vector.load %arg9[%c0_21, %c0_22] : memref<1x128xf32, #tpu.memory_space<vmem>>, vector<1x128xf32>
    %31 = vector.broadcast %30 : vector<1x128xf32> to vector<8x128xf32>
    %32 = arith.addf %29, %31 : vector<8x128xf32>
    %cst_23 = arith.constant 2.000000e-01 : f32
    %33 = vector.broadcast %cst_23 : f32 to vector<8x128xf32>
    %34 = arith.mulf %33, %32 : vector<8x128xf32>
    %35 = arith.maximumf %32, %34 : vector<8x128xf32>
    %36 = arith.truncf %35 : vector<8x128xf32> to vector<8x128xbf16>
    %c0_24 = arith.constant 0 : index
    %c0_25 = arith.constant 0 : index
    %37 = vector.load %arg10[%c0_24, %c0_25] : memref<128x4096xbf16, #tpu.memory_space<vmem>>, vector<128x4096xbf16>
    %cst_26 = arith.constant dense<0.000000e+00> : vector<8x4096xf32>
    %38 = tpu.matmul %36, %37, %cst_26 {dimension_numbers = #tpu.dot_dimension_numbers<[1], [0], [0], [1], [0, 0, 1, 1], [], []>} : vector<8x128xbf16>, vector<128x4096xbf16>, vector<8x4096xf32> -> vector<8x4096xf32>
    %c0_27 = arith.constant 0 : index
    %c0_28 = arith.constant 0 : index
    %39 = vector.load %arg11[%c0_27, %c0_28] : memref<1x4096xf32, #tpu.memory_space<vmem>>, vector<1x4096xf32>
    %40 = vector.broadcast %39 : vector<1x4096xf32> to vector<8x4096xf32>
    %41 = arith.addf %38, %40 : vector<8x4096xf32>
    %42 = arith.truncf %41 : vector<8x4096xf32> to vector<8x4096xbf16>
    %43 = math.tanh %42 : vector<8x4096xbf16>
    %c0_29 = arith.constant 0 : index
    %c0_30 = arith.constant 0 : index
    %44 = vector.load %arg12[%c0_29, %c0_30] : memref<8x4096xbf16, #tpu.memory_space<vmem>>, vector<8x4096xbf16>
    tpu.vector_store %arg12[%c0_29, %c0_30], %43 {strides = array<i32>} : memref<8x4096xbf16, #tpu.memory_space<vmem>>, vector<8x4096xbf16>,
    return
  }
  func.func @transform_0(%arg0: i32) -> (i32, i32) {
    %c0_i32 = arith.constant 0 : i32
    %c0_i32_0 = arith.constant 0 : i32
    return %arg0, %c0_i32 : i32, i32
  }
  func.func @transform_1(%arg0: i32) -> (i32, i32) {
    %c0_i32 = arith.constant 0 : i32
    %c0_i32_0 = arith.constant 0 : i32
    %c0_i32_1 = arith.constant 0 : i32
    return %c0_i32, %c0_i32_0 : i32, i32
  }
  func.func @transform_2(%arg0: i32) -> (i32, i32) {
    %c0_i32 = arith.constant 0 : i32
    %c0_i32_0 = arith.constant 0 : i32
    %c0_i32_1 = arith.constant 0 : i32
    return %c0_i32, %c0_i32_0 : i32, i32
  }
  func.func @transform_3(%arg0: i32) -> (i32, i32) {
    %c0_i32 = arith.constant 0 : i32
    %c0_i32_0 = arith.constant 0 : i32
    %c0_i32_1 = arith.constant 0 : i32
    return %c0_i32, %c0_i32_0 : i32, i32
  }
  func.func @transform_4(%arg0: i32) -> (i32, i32) {
    %c0_i32 = arith.constant 0 : i32
    %c0_i32_0 = arith.constant 0 : i32
    %c0_i32_1 = arith.constant 0 : i32
    return %c0_i32, %c0_i32_0 : i32, i32
  }
  func.func @transform_5(%arg0: i32) -> (i32, i32) {
    %c0_i32 = arith.constant 0 : i32
    %c0_i32_0 = arith.constant 0 : i32
    %c0_i32_1 = arith.constant 0 : i32
    return %c0_i32, %c0_i32_0 : i32, i32
  }
  func.func @transform_6(%arg0: i32) -> (i32, i32) {
    %c0_i32 = arith.constant 0 : i32
    %c0_i32_0 = arith.constant 0 : i32
    %c0_i32_1 = arith.constant 0 : i32
    return %c0_i32, %c0_i32_0 : i32, i32
  }
  func.func @transform_7(%arg0: i32) -> (i32, i32) {
    %c0_i32 = arith.constant 0 : i32
    %c0_i32_0 = arith.constant 0 : i32
    %c0_i32_1 = arith.constant 0 : i32
    return %c0_i32, %c0_i32_0 : i32, i32
  }
  func.func @transform_8(%arg0: i32) -> (i32, i32) {
    %c0_i32 = arith.constant 0 : i32
    %c0_i32_0 = arith.constant 0 : i32
    %c0_i32_1 = arith.constant 0 : i32
    return %c0_i32, %c0_i32_0 : i32, i32
  }
  func.func @transform_9(%arg0: i32) -> (i32, i32) {
    %c0_i32 = arith.constant 0 : i32
    %c0_i32_0 = arith.constant 0 : i32
    %c0_i32_1 = arith.constant 0 : i32
    return %c0_i32, %c0_i32_0 : i32, i32
  }
  func.func @transform_10(%arg0: i32) -> (i32, i32) {
    %c0_i32 = arith.constant 0 : i32
    %c0_i32_0 = arith.constant 0 : i32
    %c0_i32_1 = arith.constant 0 : i32
    return %c0_i32, %c0_i32_0 : i32, i32
  }
  func.func @transform_11(%arg0: i32) -> (i32, i32) {
    %c0_i32 = arith.constant 0 : i32
    %c0_i32_0 = arith.constant 0 : i32
    return %arg0, %c0_i32 : i32, i32
  }
}

</mosaic_0001>

<llo_original>
// kernel: tpu_custom_call.1
$region0: #{tpu_custom_call.1}
  #allocation0 [shape = 'u32[]', space=smem, size = 0x4, offset = 0x4, fixed_abs, tag = 'smem constant byte address 0x4 - core index']
  #allocation1 [shape = 'u32[72,128]{1,0:T(1,128)}', space=vmem, size = 0x9000, scoped, tag = 'internal scratch']
  %s0 = inlined_call_operand.hbm [shape: bf16[8,128], index: 0, kind: input, shape index: {}]
  %s1 = inlined_call_operand.hbm [shape: bf16[128,1024], index: 1, kind: input, shape index: {}]
  %s2 = inlined_call_operand.hbm [shape: f32[1,1024], index: 2, kind: input, shape index: {}]
  %s3 = inlined_call_operand.hbm [shape: bf16[1024,512], index: 3, kind: input, shape index: {}]
  %s4 = inlined_call_operand.hbm [shape: f32[1,512], index: 4, kind: input, shape index: {}]
  %s5 = inlined_call_operand.hbm [shape: bf16[512,256], index: 5, kind: input, shape index: {}]
  %s6 = inlined_call_operand.vmem [shape: f32[1,256], index: 6, kind: input, shape index: {}]
  %s7 = inlined_call_operand.hbm [shape: bf16[256,128], index: 7, kind: input, shape index: {}]
  %s8 = inlined_call_operand.vmem [shape: f32[1,128], index: 8, kind: input, shape index: {}]
  %s9 = inlined_call_operand.hbm [shape: bf16[128,4096], index: 9, kind: input, shape index: {}]
  %s10 = inlined_call_operand.hbm [shape: f32[1,4096], index: 10, kind: input, shape index: {}]
  %s11 = inlined_call_operand.hbm [shape: bf16[8,4096], index: 11, kind: output, shape index: {}]
  %s12 = sld [smem:[#allocation0]]
  $region90: #{tpu_custom_call.1} parent=0
    _
  %s14 = ssub.s32 1, %s12
  %s15 = scalar_select 0, %s14, %s12
  $region1: #{tpu_custom_call.1} parent=0
    #allocation2 [shape = 'u8[2048]{0}', space=vmem, size = 0x800, scoped, tag = 'input window, operand 0, single buffered']
    #allocation3 [shape = 's32[1]{0}', space=sflag, size = 0x4, scoped, tag = 'scoped memory for tpu_custom_call.1']
    #allocation4 [shape = 's32[1]{0}', space=sflag, size = 0x4, scoped, tag = 'scoped memory for tpu_custom_call.1']
    #allocation5 [shape = 'u8[262144]{0}', space=vmem, size = 0x40000, scoped, tag = 'input window, operand 1, single buffered']
    #allocation6 [shape = 's32[1]{0}', space=sflag, size = 0x4, scoped, tag = 'scoped memory for tpu_custom_call.1']
    #allocation7 [shape = 'u8[4096]{0}', space=vmem, size = 0x1000, scoped, tag = 'input window, operand 2, single buffered']
    #allocation8 [shape = 'u8[1048576]{0}', space=vmem, size = 0x100000, scoped, tag = 'input window, operand 3, single buffered']
    #allocation9 [shape = 's32[1]{0}', space=sflag, size = 0x4, scoped, tag = 'scoped memory for tpu_custom_call.1']
    #allocation10 [shape = 'u8[2048]{0}', space=vmem, size = 0x800, scoped, tag = 'input window, operand 4, single buffered']
    #allocation11 [shape = 'u8[262144]{0}', space=vmem, size = 0x40000, scoped, tag = 'input window, operand 5, single buffered']
    #allocation12 [shape = 's32[1]{0}', space=sflag, size = 0x4, scoped, tag = 'scoped memory for tpu_custom_call.1']
    #allocation13 [shape = 'u8[65536]{0}', space=vmem, size = 0x10000, scoped, tag = 'input window, operand 7, single buffered']
    #allocation14 [shape = 'u8[1048576]{0}', space=vmem, size = 0x100000, scoped, tag = 'input window, operand 9, single buffered']
    #allocation15 [shape = 's32[1]{0}', space=sflag, size = 0x4, scoped, tag = 'scoped memory for tpu_custom_call.1']
    #allocation16 [shape = 'u8[16384]{0}', space=vmem, size = 0x4000, scoped, tag = 'input window, operand 10, single buffered']
    #allocation17 [shape = 'u8[65536]{0}', space=vmem, size = 0x10000, scoped, tag = 'output window, operand 0, single buffered']
    %16 = vsyncpa [#allocation3], 0
    %17 = vsyncpa [#allocation6], 0
    %18 = vsyncpa [#allocation9], 0
    %19 = vsyncpa [#allocation12], 0
    %20 = vsyncpa [#allocation15], 0
    %21 = vsyncpa [#allocation4], 0
    // Predicated region
    $region2: #{tpu_custom_call.1} parent=1 // pred_check
      _
    $region3: #{tpu_custom_call.1} parent=1 // pred_check_branch
      %23 = sbr.rel (0) target = $region5
    $region4: #{tpu_custom_call.1} parent=1 // pred_region
      %25 = vsyncadd [#allocation3], 0
      %s27 = sshll.u32 %s0, 4
      %s28 = int_to_ptr.hbm [resolvable:$true] %s27
      %s29 = sshll.u32 [#allocation2], 4
      %s30 = int_to_ptr.vmem [resolvable:$true] %s29
      %32 = dma.hbm_to_vmem [thread:$0]  %s28, 64, %s30, [#allocation3]
    $region5: #{tpu_custom_call.1} parent=1 // pred_fallthru
      _
    // Predicated region
    $region6: #{tpu_custom_call.1} parent=1 // pred_check
      _
    $region7: #{tpu_custom_call.1} parent=1 // pred_check_branch
      %34 = sbr.rel (0) target = $region9
    $region8: #{tpu_custom_call.1} parent=1 // pred_region
      %36 = vsyncadd [#allocation6], 0
      %s37 = sshll.u32 %s1, 4
      %s38 = int_to_ptr.hbm [resolvable:$true] %s37
      %s39 = sshll.u32 [#allocation5], 4
      %s40 = int_to_ptr.vmem [resolvable:$true] %s39
      %45 = dma.hbm_to_vmem [thread:$0]  %s38, 8192, %s40, [#allocation6], 512, 512, 32
    $region9: #{tpu_custom_call.1} parent=1 // pred_fallthru
      _
    // Predicated region
    $region10: #{tpu_custom_call.1} parent=1 // pred_check
      _
    $region11: #{tpu_custom_call.1} parent=1 // pred_check_branch
      %47 = sbr.rel (0) target = $region13
    $region12: #{tpu_custom_call.1} parent=1 // pred_region
      %49 = vsyncadd [#allocation6], 0
      %s51 = sshll.u32 %s2, 4
      %s52 = int_to_ptr.hbm [resolvable:$true] %s51
      %s53 = sshll.u32 [#allocation7], 4
      %s54 = int_to_ptr.vmem [resolvable:$true] %s53
      %56 = dma.hbm_to_vmem [thread:$0]  %s52, 128, %s54, [#allocation6]
    $region13: #{tpu_custom_call.1} parent=1 // pred_fallthru
      _
    // Predicated region
    $region14: #{tpu_custom_call.1} parent=1 // pred_check
      _
    $region15: #{tpu_custom_call.1} parent=1 // pred_check_branch
      %58 = sbr.rel (0) target = $region17
    $region16: #{tpu_custom_call.1} parent=1 // pred_region
      %60 = vsyncadd [#allocation9], 0
      %s61 = sshll.u32 %s3, 4
      %s62 = int_to_ptr.hbm [resolvable:$true] %s61
      %s63 = sshll.u32 [#allocation8], 4
      %s64 = int_to_ptr.vmem [resolvable:$true] %s63
      %69 = dma.hbm_to_vmem [thread:$0]  %s62, 32768, %s64, [#allocation9], 256, 256, 16
    $region17: #{tpu_custom_call.1} parent=1 // pred_fallthru
      _
    // Predicated region
    $region18: #{tpu_custom_call.1} parent=1 // pred_check
      _
    $region19: #{tpu_custom_call.1} parent=1 // pred_check_branch
      %71 = sbr.rel (0) target = $region21
    $region20: #{tpu_custom_call.1} parent=1 // pred_region
      %73 = vsyncadd [#allocation9], 0
      %s75 = sshll.u32 %s4, 4
      %s76 = int_to_ptr.hbm [resolvable:$true] %s75
      %s77 = sshll.u32 [#allocation10], 4
      %s78 = int_to_ptr.vmem [resolvable:$true] %s77
      %80 = dma.hbm_to_vmem [thread:$0]  %s76, 64, %s78, [#allocation9]
    $region21: #{tpu_custom_call.1} parent=1 // pred_fallthru
      _
    // Predicated region
    $region22: #{tpu_custom_call.1} parent=1 // pred_check
      _
    $region23: #{tpu_custom_call.1} parent=1 // pred_check_branch
      %82 = sbr.rel (0) target = $region25
    $region24: #{tpu_custom_call.1} parent=1 // pred_region
      %84 = vsyncadd [#allocation12], 0
      %s85 = sshll.u32 %s5, 4
      %s86 = int_to_ptr.hbm [resolvable:$true] %s85
      %s87 = sshll.u32 [#allocation11], 4
      %s88 = int_to_ptr.vmem [resolvable:$true] %s87
      %93 = dma.hbm_to_vmem [thread:$0]  %s86, 8192, %s88, [#allocation12], 128, 128, 8
    $region25: #{tpu_custom_call.1} parent=1 // pred_fallthru
      _
    // Predicated region
    $region26: #{tpu_custom_call.1} parent=1 // pred_check
      _
    $region27: #{tpu_custom_call.1} parent=1 // pred_check_branch
      %95 = sbr.rel (0) target = $region29
    $region28: #{tpu_custom_call.1} parent=1 // pred_region
      _
    $region29: #{tpu_custom_call.1} parent=1 // pred_fallthru
      _
    // Predicated region
    $region30: #{tpu_custom_call.1} parent=1 // pred_check
      _
    $region31: #{tpu_custom_call.1} parent=1 // pred_check_branch
      %97 = sbr.rel (0) target = $region33
    $region32: #{tpu_custom_call.1} parent=1 // pred_region
      %99 = vsyncadd [#allocation12], 0
      %s100 = sshll.u32 %s7, 4
      %s101 = int_to_ptr.hbm [resolvable:$true] %s100
      %s102 = sshll.u32 [#allocation13], 4
      %s103 = int_to_ptr.vmem [resolvable:$true] %s102
      %108 = dma.hbm_to_vmem [thread:$0]  %s101, 2048, %s103, [#allocation12], 64, 64, 4
    $region33: #{tpu_custom_call.1} parent=1 // pred_fallthru
      _
    // Predicated region
    $region34: #{tpu_custom_call.1} parent=1 // pred_check
      _
    $region35: #{tpu_custom_call.1} parent=1 // pred_check_branch
      %110 = sbr.rel (0) target = $region37
    $region36: #{tpu_custom_call.1} parent=1 // pred_region
      _
    $region37: #{tpu_custom_call.1} parent=1 // pred_fallthru
      _
    // Predicated region
    $region38: #{tpu_custom_call.1} parent=1 // pred_check
      _
    $region39: #{tpu_custom_call.1} parent=1 // pred_check_branch
      %112 = sbr.rel (0) target = $region41
    $region40: #{tpu_custom_call.1} parent=1 // pred_region
      %114 = vsyncadd [#allocation15], 0
      %s115 = sshll.u32 %s9, 4
      %s116 = int_to_ptr.hbm [resolvable:$true] %s115
      %s117 = sshll.u32 [#allocation14], 4
      %s118 = int_to_ptr.vmem [resolvable:$true] %s117
      %123 = dma.hbm_to_vmem [thread:$0]  %s116, 32768, %s118, [#allocation15], 2048, 2048, 128
    $region41: #{tpu_custom_call.1} parent=1 // pred_fallthru
      _
    // Predicated region
    $region42: #{tpu_custom_call.1} parent=1 // pred_check
      _
    $region43: #{tpu_custom_call.1} parent=1 // pred_check_branch
      %125 = sbr.rel (0) target = $region45
    $region44: #{tpu_custom_call.1} parent=1 // pred_region
      %127 = vsyncadd [#allocation15], 0
      %s129 = sshll.u32 %s10, 4
      %s130 = int_to_ptr.hbm [resolvable:$true] %s129
      %s131 = sshll.u32 [#allocation16], 4
      %s132 = int_to_ptr.vmem [resolvable:$true] %s131
      %134 = dma.hbm_to_vmem [thread:$0]  %s130, 512, %s132, [#allocation15]
    $region45: #{tpu_custom_call.1} parent=1 // pred_fallthru
      _
    // Predicated region
    $region46: #{tpu_custom_call.1} parent=1 // pred_check
      _
    $region47: #{tpu_custom_call.1} parent=1 // pred_check_branch
      %136 = sbr.rel (0) target = $region49
    $region48: #{tpu_custom_call.1} parent=1 // pred_region
      %138 = dma.done [#allocation3], 64
    $region49: #{tpu_custom_call.1} parent=1 // pred_fallthru
      _
    // Predicated region
    $region50: #{tpu_custom_call.1} parent=1 // pred_check
      _
    $region51: #{tpu_custom_call.1} parent=1 // pred_check_branch
      %140 = sbr.rel (0) target = $region53
    $region52: #{tpu_custom_call.1} parent=1 // pred_region
      %142 = dma.done [#allocation6], 8192
    $region53: #{tpu_custom_call.1} parent=1 // pred_fallthru
      _
    // Predicated region
    $region54: #{tpu_custom_call.1} parent=1 // pred_check
      _
    $region55: #{tpu_custom_call.1} parent=1 // pred_check_branch
      %144 = sbr.rel (0) target = $region57
    $region56: #{tpu_custom_call.1} parent=1 // pred_region
      %146 = dma.done [#allocation6], 128
    $region57: #{tpu_custom_call.1} parent=1 // pred_fallthru
      _
    // Predicated region
    $region58: #{tpu_custom_call.1} parent=1 // pred_check
      _
    $region59: #{tpu_custom_call.1} parent=1 // pred_check_branch
      %148 = sbr.rel (0) target = $region61
    $region60: #{tpu_custom_call.1} parent=1 // pred_region
      %150 = dma.done [#allocation9], 32768
    $region61: #{tpu_custom_call.1} parent=1 // pred_fallthru
      _
    // Predicated region
    $region62: #{tpu_custom_call.1} parent=1 // pred_check
      _
    $region63: #{tpu_custom_call.1} parent=1 // pred_check_branch
      %152 = sbr.rel (0) target = $region65
    $region64: #{tpu_custom_call.1} parent=1 // pred_region
      %154 = dma.done [#allocation9], 64
    $region65: #{tpu_custom_call.1} parent=1 // pred_fallthru
      _
    // Predicated region
    $region66: #{tpu_custom_call.1} parent=1 // pred_check
      _
    $region67: #{tpu_custom_call.1} parent=1 // pred_check_branch
      %156 = sbr.rel (0) target = $region69
    $region68: #{tpu_custom_call.1} parent=1 // pred_region
      %158 = dma.done [#allocation12], 8192
    $region69: #{tpu_custom_call.1} parent=1 // pred_fallthru
      _
    // Predicated region
    $region70: #{tpu_custom_call.1} parent=1 // pred_check
      _
    $region71: #{tpu_custom_call.1} parent=1 // pred_check_branch
      %160 = sbr.rel (0) target = $region73
    $region72: #{tpu_custom_call.1} parent=1 // pred_region
      %162 = dma.done [#allocation12], 2048
    $region73: #{tpu_custom_call.1} parent=1 // pred_fallthru
      _
    // Predicated region
    $region74: #{tpu_custom_call.1} parent=1 // pred_check
      _
    $region75: #{tpu_custom_call.1} parent=1 // pred_check_branch
      %164 = sbr.rel (0) target = $region77
    $region76: #{tpu_custom_call.1} parent=1 // pred_region
      %166 = dma.done [#allocation15], 32768
    $region77: #{tpu_custom_call.1} parent=1 // pred_fallthru
      _
    // Predicated region
    $region78: #{tpu_custom_call.1} parent=1 // pred_check
      _
    $region79: #{tpu_custom_call.1} parent=1 // pred_check_branch
      %168 = sbr.rel (0) target = $region81
    $region80: #{tpu_custom_call.1} parent=1 // pred_region
      %170 = dma.done [#allocation15], 512
    $region81: #{tpu_custom_call.1} parent=1 // pred_fallthru
      _
    %v171 = vld [vmem:[#allocation2] sm:$0xf]
    %v172 = vld [vmem:[#allocation5] sm:$0xff]
    %v173 = vld [vmem:[#allocation5 + $0x8] sm:$0xff]
    %v174 = vld [vmem:[#allocation5 + $0x10] sm:$0xff]
    %v175 = vld [vmem:[#allocation5 + $0x18] sm:$0xff]
    %v176 = vld [vmem:[#allocation5 + $0x20] sm:$0xff]
    %v177 = vld [vmem:[#allocation5 + $0x28] sm:$0xff]
    %v178 = vld [vmem:[#allocation5 + $0x30] sm:$0xff]
    %v179 = vld [vmem:[#allocation5 + $0x38] sm:$0xff]
    %v180 = vld [vmem:[#allocation5 + $0x40] sm:$0xff]
    %v181 = vld [vmem:[#allocation5 + $0x48] sm:$0xff]
    %v182 = vld [vmem:[#allocation5 + $0x50] sm:$0xff]
    %v183 = vld [vmem:[#allocation5 + $0x58] sm:$0xff]
    %v184 = vld [vmem:[#allocation5 + $0x60] sm:$0xff]
    %v185 = vld [vmem:[#allocation5 + $0x68] sm:$0xff]
    %v186 = vld [vmem:[#allocation5 + $0x70] sm:$0xff]
    %v187 = vld [vmem:[#allocation5 + $0x78] sm:$0xff]
    %v188 = vld [vmem:[#allocation5 + $0x80] sm:$0xff]
    %v189 = vld [vmem:[#allocation5 + $0x88] sm:$0xff]
    %v190 = vld [vmem:[#allocation5 + $0x90] sm:$0xff]
    %v191 = vld [vmem:[#allocation5 + $0x98] sm:$0xff]
    %v192 = vld [vmem:[#allocation5 + $0xa0] sm:$0xff]
    %v193 = vld [vmem:[#allocation5 + $0xa8] sm:$0xff]
    %v194 = vld [vmem:[#allocation5 + $0xb0] sm:$0xff]
    %v195 = vld [vmem:[#allocation5 + $0xb8] sm:$0xff]
    %v196 = vld [vmem:[#allocation5 + $0xc0] sm:$0xff]
    %v197 = vld [vmem:[#allocation5 + $0xc8] sm:$0xff]
    %v198 = vld [vmem:[#allocation5 + $0xd0] sm:$0xff]
    %v199 = vld [vmem:[#allocation5 + $0xd8] sm:$0xff]
    %v200 = vld [vmem:[#allocation5 + $0xe0] sm:$0xff]
    %v201 = vld [vmem:[#allocation5 + $0xe8] sm:$0xff]
    %v202 = vld [vmem:[#allocation5 + $0xf0] sm:$0xff]
    %v203 = vld [vmem:[#allocation5 + $0xf8] sm:$0xff]
    %v204 = vld [vmem:[#allocation5 + $0x100] sm:$0xff]
    %v205 = vld [vmem:[#allocation5 + $0x108] sm:$0xff]
    %v206 = vld [vmem:[#allocation5 + $0x110] sm:$0xff]
    %v207 = vld [vmem:[#allocation5 + $0x118] sm:$0xff]
    %v208 = vld [vmem:[#allocation5 + $0x120] sm:$0xff]
    %v209 = vld [vmem:[#allocation5 + $0x128] sm:$0xff]
    %v210 = vld [vmem:[#allocation5 + $0x130] sm:$0xff]
    %v211 = vld [vmem:[#allocation5 + $0x138] sm:$0xff]
    %v212 = vld [vmem:[#allocation5 + $0x140] sm:$0xff]
    %v213 = vld [vmem:[#allocation5 + $0x148] sm:$0xff]
    %v214 = vld [vmem:[#allocation5 + $0x150] sm:$0xff]
    %v215 = vld [vmem:[#allocation5 + $0x158] sm:$0xff]
    %v216 = vld [vmem:[#allocation5 + $0x160] sm:$0xff]
    %v217 = vld [vmem:[#allocation5 + $0x168] sm:$0xff]
    %v218 = vld [vmem:[#allocation5 + $0x170] sm:$0xff]
    %v219 = vld [vmem:[#allocation5 + $0x178] sm:$0xff]
    %v220 = vld [vmem:[#allocation5 + $0x180] sm:$0xff]
    %v221 = vld [vmem:[#allocation5 + $0x188] sm:$0xff]
    %v222 = vld [vmem:[#allocation5 + $0x190] sm:$0xff]
    %v223 = vld [vmem:[#allocation5 + $0x198] sm:$0xff]
    %v224 = vld [vmem:[#allocation5 + $0x1a0] sm:$0xff]
    %v225 = vld [vmem:[#allocation5 + $0x1a8] sm:$0xff]
    %v226 = vld [vmem:[#allocation5 + $0x1b0] sm:$0xff]
    %v227 = vld [vmem:[#allocation5 + $0x1b8] sm:$0xff]
    %v228 = vld [vmem:[#allocation5 + $0x1c0] sm:$0xff]
    %v229 = vld [vmem:[#allocation5 + $0x1c8] sm:$0xff]
    %v230 = vld [vmem:[#allocation5 + $0x1d0] sm:$0xff]
    %v231 = vld [vmem:[#allocation5 + $0x1d8] sm:$0xff]
    %v232 = vld [vmem:[#allocation5 + $0x1e0] sm:$0xff]
    %v233 = vld [vmem:[#allocation5 + $0x1e8] sm:$0xff]
    %v234 = vld [vmem:[#allocation5 + $0x1f0] sm:$0xff]
    %v235 = vld [vmem:[#allocation5 + $0x1f8] sm:$0xff]
    %v236 = vld [vmem:[#allocation7] sm:$0xff]
    %v238 = vperm.slane %v236, 0
    %v239 = vperm.slane %v236, 1
    %v240 = vperm.slane %v236, 2
    %v241 = vperm.slane %v236, 3
    %v242 = vperm.slane %v236, 4
    %v243 = vperm.slane %v236, 5
    %v244 = vperm.slane %v236, 6
    %v245 = vperm.slane %v236, 7
    %v318 = vunpack.c.l.b16 %v172
    %v319 = vunpack.c.h.b16 %v172
    %v320 = vunpack.c.l.b16 %v173
    %v321 = vunpack.c.h.b16 %v173
    %v322 = vunpack.c.l.b16 %v174
    %v323 = vunpack.c.h.b16 %v174
    %v324 = vunpack.c.l.b16 %v175
    %v325 = vunpack.c.h.b16 %v175
    %v326 = vunpack.c.l.b16 %v176
    %v327 = vunpack.c.h.b16 %v176
    %v328 = vunpack.c.l.b16 %v177
    %v329 = vunpack.c.h.b16 %v177
    %v330 = vunpack.c.l.b16 %v178
    %v331 = vunpack.c.h.b16 %v178
    %v332 = vunpack.c.l.b16 %v179
    %v333 = vunpack.c.h.b16 %v179
    %v334 = vunpack.c.l.b16 %v180
    %v335 = vunpack.c.h.b16 %v180
    %v336 = vunpack.c.l.b16 %v181
    %v337 = vunpack.c.h.b16 %v181
    %v338 = vunpack.c.l.b16 %v182
    %v339 = vunpack.c.h.b16 %v182
    %v340 = vunpack.c.l.b16 %v183
    %v341 = vunpack.c.h.b16 %v183
    %v342 = vunpack.c.l.b16 %v184
    %v343 = vunpack.c.h.b16 %v184
    %v344 = vunpack.c.l.b16 %v185
    %v345 = vunpack.c.h.b16 %v185
    %v346 = vunpack.c.l.b16 %v186
    %v347 = vunpack.c.h.b16 %v186
    %v348 = vunpack.c.l.b16 %v187
    %v349 = vunpack.c.h.b16 %v187
    %v350 = vunpack.c.l.b16 %v188
    %v351 = vunpack.c.h.b16 %v188
    %v352 = vunpack.c.l.b16 %v189
    %v353 = vunpack.c.h.b16 %v189
    %v354 = vunpack.c.l.b16 %v190
    %v355 = vunpack.c.h.b16 %v190
    %v356 = vunpack.c.l.b16 %v191
    %v357 = vunpack.c.h.b16 %v191
    %v358 = vunpack.c.l.b16 %v192
    %v359 = vunpack.c.h.b16 %v192
    %v360 = vunpack.c.l.b16 %v193
    %v361 = vunpack.c.h.b16 %v193
    %v362 = vunpack.c.l.b16 %v194
    %v363 = vunpack.c.h.b16 %v194
    %v364 = vunpack.c.l.b16 %v195
    %v365 = vunpack.c.h.b16 %v195
    %v366 = vunpack.c.l.b16 %v196
    %v367 = vunpack.c.h.b16 %v196
    %v368 = vunpack.c.l.b16 %v197
    %v369 = vunpack.c.h.b16 %v197
    %v370 = vunpack.c.l.b16 %v198
    %v371 = vunpack.c.h.b16 %v198
    %v372 = vunpack.c.l.b16 %v199
    %v373 = vunpack.c.h.b16 %v199
    %v374 = vunpack.c.l.b16 %v200
    %v375 = vunpack.c.h.b16 %v200
    %v376 = vunpack.c.l.b16 %v201
    %v377 = vunpack.c.h.b16 %v201
    %v378 = vunpack.c.l.b16 %v202
    %v379 = vunpack.c.h.b16 %v202
    %v380 = vunpack.c.l.b16 %v203
    %v381 = vunpack.c.h.b16 %v203
    %v382 = vunpack.c.l.b16 %v204
    %v383 = vunpack.c.h.b16 %v204
    %v384 = vunpack.c.l.b16 %v205
    %v385 = vunpack.c.h.b16 %v205
    %v386 = vunpack.c.l.b16 %v206
    %v387 = vunpack.c.h.b16 %v206
    %v388 = vunpack.c.l.b16 %v207
    %v389 = vunpack.c.h.b16 %v207
    %v390 = vunpack.c.l.b16 %v208
    %v391 = vunpack.c.h.b16 %v208
    %v392 = vunpack.c.l.b16 %v209
    %v393 = vunpack.c.h.b16 %v209
    %v394 = vunpack.c.l.b16 %v210
    %v395 = vunpack.c.h.b16 %v210
    %v396 = vunpack.c.l.b16 %v211
    %v397 = vunpack.c.h.b16 %v211
    %v398 = vunpack.c.l.b16 %v212
    %v399 = vunpack.c.h.b16 %v212
    %v400 = vunpack.c.l.b16 %v213
    %v401 = vunpack.c.h.b16 %v213
    %v402 = vunpack.c.l.b16 %v214
    %v403 = vunpack.c.h.b16 %v214
    %v404 = vunpack.c.l.b16 %v215
    %v405 = vunpack.c.h.b16 %v215
    %v406 = vunpack.c.l.b16 %v216
    %v407 = vunpack.c.h.b16 %v216
    %v408 = vunpack.c.l.b16 %v217
    %v409 = vunpack.c.h.b16 %v217
    %v410 = vunpack.c.l.b16 %v218
    %v411 = vunpack.c.h.b16 %v218
    %v412 = vunpack.c.l.b16 %v219
    %v413 = vunpack.c.h.b16 %v219
    %v414 = vunpack.c.l.b16 %v220
    %v415 = vunpack.c.h.b16 %v220
    %v416 = vunpack.c.l.b16 %v221
    %v417 = vunpack.c.h.b16 %v221
    %v418 = vunpack.c.l.b16 %v222
    %v419 = vunpack.c.h.b16 %v222
    %v420 = vunpack.c.l.b16 %v223
    %v421 = vunpack.c.h.b16 %v223
    %v422 = vunpack.c.l.b16 %v224
    %v423 = vunpack.c.h.b16 %v224
    %v424 = vunpack.c.l.b16 %v225
    %v425 = vunpack.c.h.b16 %v225
    %v426 = vunpack.c.l.b16 %v226
    %v427 = vunpack.c.h.b16 %v226
    %v428 = vunpack.c.l.b16 %v227
    %v429 = vunpack.c.h.b16 %v227
    %v430 = vunpack.c.l.b16 %v228
    %v431 = vunpack.c.h.b16 %v228
    %v432 = vunpack.c.l.b16 %v229
    %v433 = vunpack.c.h.b16 %v229
    %v434 = vunpack.c.l.b16 %v230
    %v435 = vunpack.c.h.b16 %v230
    %v436 = vunpack.c.l.b16 %v231
    %v437 = vunpack.c.h.b16 %v231
    %v438 = vunpack.c.l.b16 %v232
    %v439 = vunpack.c.h.b16 %v232
    %v440 = vunpack.c.l.b16 %v233
    %v441 = vunpack.c.h.b16 %v233
    %v442 = vunpack.c.l.b16 %v234
    %v443 = vunpack.c.h.b16 %v234
    %v444 = vunpack.c.l.b16 %v235
    %v445 = vunpack.c.h.b16 %v235
    %v446 = vpack.c.b16 %v326, %v318
    %v447 = vpack.c.b16 %v327, %v319
    %v448 = vpack.c.b16 %v328, %v320
    %v449 = vpack.c.b16 %v329, %v321
    %v450 = vpack.c.b16 %v330, %v322
    %v451 = vpack.c.b16 %v331, %v323
    %v452 = vpack.c.b16 %v332, %v324
    %v453 = vpack.c.b16 %v333, %v325
    %v454 = vpack.c.b16 %v342, %v334
    %v455 = vpack.c.b16 %v343, %v335
    %v456 = vpack.c.b16 %v344, %v336
    %v457 = vpack.c.b16 %v345, %v337
    %v458 = vpack.c.b16 %v346, %v338
    %v459 = vpack.c.b16 %v347, %v339
    %v460 = vpack.c.b16 %v348, %v340
    %v461 = vpack.c.b16 %v349, %v341
    %v462 = vpack.c.b16 %v358, %v350
    %v463 = vpack.c.b16 %v359, %v351
    %v464 = vpack.c.b16 %v360, %v352
    %v465 = vpack.c.b16 %v361, %v353
    %v466 = vpack.c.b16 %v362, %v354
    %v467 = vpack.c.b16 %v363, %v355
    %v468 = vpack.c.b16 %v364, %v356
    %v469 = vpack.c.b16 %v365, %v357
    %v470 = vpack.c.b16 %v374, %v366
    %v471 = vpack.c.b16 %v375, %v367
    %v472 = vpack.c.b16 %v376, %v368
    %v473 = vpack.c.b16 %v377, %v369
    %v474 = vpack.c.b16 %v378, %v370
    %v475 = vpack.c.b16 %v379, %v371
    %v476 = vpack.c.b16 %v380, %v372
    %v477 = vpack.c.b16 %v381, %v373
    %v478 = vpack.c.b16 %v390, %v382
    %v479 = vpack.c.b16 %v391, %v383
    %v480 = vpack.c.b16 %v392, %v384
    %v481 = vpack.c.b16 %v393, %v385
    %v482 = vpack.c.b16 %v394, %v386
    %v483 = vpack.c.b16 %v395, %v387
    %v484 = vpack.c.b16 %v396, %v388
    %v485 = vpack.c.b16 %v397, %v389
    %v486 = vpack.c.b16 %v406, %v398
    %v487 = vpack.c.b16 %v407, %v399
    %v488 = vpack.c.b16 %v408, %v400
    %v489 = vpack.c.b16 %v409, %v401
    %v490 = vpack.c.b16 %v410, %v402
    %v491 = vpack.c.b16 %v411, %v403
    %v492 = vpack.c.b16 %v412, %v404
    %v493 = vpack.c.b16 %v413, %v405
    %v494 = vpack.c.b16 %v422, %v414
    %v495 = vpack.c.b16 %v423, %v415
    %v496 = vpack.c.b16 %v424, %v416
    %v497 = vpack.c.b16 %v425, %v417
    %v498 = vpack.c.b16 %v426, %v418
    %v499 = vpack.c.b16 %v427, %v419
    %v500 = vpack.c.b16 %v428, %v420
    %v501 = vpack.c.b16 %v429, %v421
    %v502 = vpack.c.b16 %v438, %v430
    %v503 = vpack.c.b16 %v439, %v431
    %v504 = vpack.c.b16 %v440, %v432
    %v505 = vpack.c.b16 %v441, %v433
    %v506 = vpack.c.b16 %v442, %v434
    %v507 = vpack.c.b16 %v443, %v435
    %v508 = vpack.c.b16 %v444, %v436
    %v509 = vpack.c.b16 %v445, %v437
    %574 = vmatpush.bf16.msra.mxu0 %v502
    %575 = vmatpush.bf16.msra.mxu0 %v494
    %576 = vmatpush.bf16.msra.mxu0 %v486
    %577 = vmatpush.bf16.msra.mxu0 %v478
    %578 = vmatpush.bf16.msra.mxu0 %v470
    %579 = vmatpush.bf16.msra.mxu0 %v462
    %580 = vmatpush.bf16.msra.mxu0 %v454
    %581 = vmatpush.bf16.msra.mxu0 %v446
    %582 = vmatmul.bf16.gmra.mxu0 %v171
    %v583 = vpop.f32.mrf.mxu0
    %v584 = vadd.f32 %v238, %v583
    %v585 = vpop.f32.mrf.mxu0
    %586 = vdwg.mxu0
    %587 = vmatpush.bf16.msra.mxu0 %v503
    %588 = vmatpush.bf16.msra.mxu0 %v495
    %589 = vmatpush.bf16.msra.mxu0 %v487
    %590 = vmatpush.bf16.msra.mxu0 %v479
    %591 = vmatpush.bf16.msra.mxu0 %v471
    %592 = vmatpush.bf16.msra.mxu0 %v463
    %593 = vmatpush.bf16.msra.mxu0 %v455
    %594 = vmatpush.bf16.msra.mxu0 %v447
    %595 = vmatmul.bf16.gmra.mxu0 %v171
    %v596 = vpop.f32.mrf.mxu0
    %v597 = vadd.f32 %v239, %v596
    %v598 = vpop.f32.mrf.mxu0
    %599 = vdwg.mxu0
    %600 = vmatpush.bf16.msra.mxu0 %v504
    %601 = vmatpush.bf16.msra.mxu0 %v496
    %602 = vmatpush.bf16.msra.mxu0 %v488
    %603 = vmatpush.bf16.msra.mxu0 %v480
    %604 = vmatpush.bf16.msra.mxu0 %v472
    %605 = vmatpush.bf16.msra.mxu0 %v464
    %606 = vmatpush.bf16.msra.mxu0 %v456
    %607 = vmatpush.bf16.msra.mxu0 %v448
    %608 = vmatmul.bf16.gmra.mxu0 %v171
    %v609 = vpop.f32.mrf.mxu0
    %v610 = vadd.f32 %v240, %v609
    %v611 = vpop.f32.mrf.mxu0
    %612 = vdwg.mxu0
    %613 = vmatpush.bf16.msra.mxu0 %v505
    %614 = vmatpush.bf16.msra.mxu0 %v497
    %615 = vmatpush.bf16.msra.mxu0 %v489
    %616 = vmatpush.bf16.msra.mxu0 %v481
    %617 = vmatpush.bf16.msra.mxu0 %v473
    %618 = vmatpush.bf16.msra.mxu0 %v465
    %619 = vmatpush.bf16.msra.mxu0 %v457
    %620 = vmatpush.bf16.msra.mxu0 %v449
    %621 = vmatmul.bf16.gmra.mxu0 %v171
    %v622 = vpop.f32.mrf.mxu0
    %v623 = vadd.f32 %v241, %v622
    %v624 = vpop.f32.mrf.mxu0
    %625 = vdwg.mxu0
    %626 = vmatpush.bf16.msra.mxu0 %v506
    %627 = vmatpush.bf16.msra.mxu0 %v498
    %628 = vmatpush.bf16.msra.mxu0 %v490
    %629 = vmatpush.bf16.msra.mxu0 %v482
    %630 = vmatpush.bf16.msra.mxu0 %v474
    %631 = vmatpush.bf16.msra.mxu0 %v466
    %632 = vmatpush.bf16.msra.mxu0 %v458
    %633 = vmatpush.bf16.msra.mxu0 %v450
    %634 = vmatmul.bf16.gmra.mxu0 %v171
    %v635 = vpop.f32.mrf.mxu0
    %v636 = vadd.f32 %v242, %v635
    %v637 = vpop.f32.mrf.mxu0
    %638 = vdwg.mxu0
    %639 = vmatpush.bf16.msra.mxu0 %v507
    %640 = vmatpush.bf16.msra.mxu0 %v499
    %641 = vmatpush.bf16.msra.mxu0 %v491
    %642 = vmatpush.bf16.msra.mxu0 %v483
    %643 = vmatpush.bf16.msra.mxu0 %v475
    %644 = vmatpush.bf16.msra.mxu0 %v467
    %645 = vmatpush.bf16.msra.mxu0 %v459
    %646 = vmatpush.bf16.msra.mxu0 %v451
    %647 = vmatmul.bf16.gmra.mxu0 %v171
    %v648 = vpop.f32.mrf.mxu0
    %v649 = vadd.f32 %v243, %v648
    %v650 = vpop.f32.mrf.mxu0
    %651 = vdwg.mxu0
    %652 = vmatpush.bf16.msra.mxu0 %v508
    %653 = vmatpush.bf16.msra.mxu0 %v500
    %654 = vmatpush.bf16.msra.mxu0 %v492
    %655 = vmatpush.bf16.msra.mxu0 %v484
    %656 = vmatpush.bf16.msra.mxu0 %v476
    %657 = vmatpush.bf16.msra.mxu0 %v468
    %658 = vmatpush.bf16.msra.mxu0 %v460
    %659 = vmatpush.bf16.msra.mxu0 %v452
    %660 = vmatmul.bf16.gmra.mxu0 %v171
    %v661 = vpop.f32.mrf.mxu0
    %v662 = vadd.f32 %v244, %v661
    %v663 = vpop.f32.mrf.mxu0
    %664 = vdwg.mxu0
    %665 = vmatpush.bf16.msra.mxu0 %v509
    %666 = vmatpush.bf16.msra.mxu0 %v501
    %667 = vmatpush.bf16.msra.mxu0 %v493
    %668 = vmatpush.bf16.msra.mxu0 %v485
    %669 = vmatpush.bf16.msra.mxu0 %v477
    %670 = vmatpush.bf16.msra.mxu0 %v469
    %671 = vmatpush.bf16.msra.mxu0 %v461
    %672 = vmatpush.bf16.msra.mxu0 %v453
    %673 = vmatmul.bf16.gmra.mxu0 %v171
    %v674 = vpop.f32.mrf.mxu0
    %v675 = vadd.f32 %v245, %v674
    %v676 = vpop.f32.mrf.mxu0
    %677 = vdwg.mxu0
    %v678 = vmul.f32 %v584, 0.2
    %v679 = vmul.f32 %v597, 0.2
    %v680 = vmul.f32 %v610, 0.2
    %v681 = vmul.f32 %v623, 0.2
    %v682 = vmul.f32 %v636, 0.2
    %v683 = vmul.f32 %v649, 0.2
    %v684 = vmul.f32 %v662, 0.2
    %v685 = vmul.f32 %v675, 0.2
    %v686 = vmax.f32 %v584, %v678
    %v687 = vmax.f32 %v597, %v679
    %v688 = vmax.f32 %v610, %v680
    %v689 = vmax.f32 %v623, %v681
    %v690 = vmax.f32 %v636, %v682
    %v691 = vmax.f32 %v649, %v683
    %v692 = vmax.f32 %v662, %v684
    %v693 = vmax.f32 %v675, %v685
    %v694 = vpack.c.bf16 %v686, %v686
    %v695 = vpack.c.bf16 %v687, %v687
    %v696 = vpack.c.bf16 %v688, %v688
    %v697 = vpack.c.bf16 %v689, %v689
    %v698 = vpack.c.bf16 %v690, %v690
    %v699 = vpack.c.bf16 %v691, %v691
    %v700 = vpack.c.bf16 %v692, %v692
    %v701 = vpack.c.bf16 %v693, %v693
    %v702 = vld [vmem:[#allocation8] sm:$0xff]
    %v703 = vld [vmem:[#allocation8 + $0x8] sm:$0xff]
    %v704 = vld [vmem:[#allocation8 + $0x10] sm:$0xff]
    %v705 = vld [vmem:[#allocation8 + $0x18] sm:$0xff]
    %v706 = vld [vmem:[#allocation8 + $0x20] sm:$0xff]
    %v707 = vld [vmem:[#allocation8 + $0x28] sm:$0xff]
    %v708 = vld [vmem:[#allocation8 + $0x30] sm:$0xff]
    %v709 = vld [vmem:[#allocation8 + $0x38] sm:$0xff]
    %v710 = vld [vmem:[#allocation8 + $0x40] sm:$0xff]
    %v711 = vld [vmem:[#allocation8 + $0x48] sm:$0xff]
    %v712 = vld [vmem:[#allocation8 + $0x50] sm:$0xff]
    %v713 = vld [vmem:[#allocation8 + $0x58] sm:$0xff]
    %v714 = vld [vmem:[#allocation8 + $0x60] sm:$0xff]
    %v715 = vld [vmem:[#allocation8 + $0x68] sm:$0xff]
    %v716 = vld [vmem:[#allocation8 + $0x70] sm:$0xff]
    %v717 = vld [vmem:[#allocation8 + $0x78] sm:$0xff]
    %v718 = vld [vmem:[#allocation8 + $0x80] sm:$0xff]
    %v719 = vld [vmem:[#allocation8 + $0x88] sm:$0xff]
    %v720 = vld [vmem:[#allocation8 + $0x90] sm:$0xff]
    %v721 = vld [vmem:[#allocation8 + $0x98] sm:$0xff]
    %v722 = vld [vmem:[#allocation8 + $0xa0] sm:$0xff]
    %v723 = vld [vmem:[#allocation8 + $0xa8] sm:$0xff]
    %v724 = vld [vmem:[#allocation8 + $0xb0] sm:$0xff]
    %v725 = vld [vmem:[#allocation8 + $0xb8] sm:$0xff]
    %v726 = vld [vmem:[#allocation8 + $0xc0] sm:$0xff]
    %v727 = vld [vmem:[#allocation8 + $0xc8] sm:$0xff]
    %v728 = vld [vmem:[#allocation8 + $0xd0] sm:$0xff]
    %v729 = vld [vmem:[#allocation8 + $0xd8] sm:$0xff]
    %v730 = vld [vmem:[#allocation8 + $0xe0] sm:$0xff]
    %v731 = vld [vmem:[#allocation8 + $0xe8] sm:$0xff]
    %v732 = vld [vmem:[#allocation8 + $0xf0] sm:$0xff]
    %v733 = vld [vmem:[#allocation8 + $0xf8] sm:$0xff]
    %v734 = vld [vmem:[#allocation8 + $0x100] sm:$0xff]
    %v735 = vld [vmem:[#allocation8 + $0x108] sm:$0xff]
    %v736 = vld [vmem:[#allocation8 + $0x110] sm:$0xff]
    %v737 = vld [vmem:[#allocation8 + $0x118] sm:$0xff]
    %v738 = vld [vmem:[#allocation8 + $0x120] sm:$0xff]
    %v739 = vld [vmem:[#allocation8 + $0x128] sm:$0xff]
    %v740 = vld [vmem:[#allocation8 + $0x130] sm:$0xff]
    %v741 = vld [vmem:[#allocation8 + $0x138] sm:$0xff]
    %v742 = vld [vmem:[#allocation8 + $0x140] sm:$0xff]
    %v743 = vld [vmem:[#allocation8 + $0x148] sm:$0xff]
    %v744 = vld [vmem:[#allocation8 + $0x150] sm:$0xff]
    %v745 = vld [vmem:[#allocation8 + $0x158] sm:$0xff]
    %v746 = vld [vmem:[#allocation8 + $0x160] sm:$0xff]
    %v747 = vld [vmem:[#allocation8 + $0x168] sm:$0xff]
    %v748 = vld [vmem:[#allocation8 + $0x170] sm:$0xff]
    %v749 = vld [vmem:[#allocation8 + $0x178] sm:$0xff]
    %v750 = vld [vmem:[#allocation8 + $0x180] sm:$0xff]
    %v751 = vld [vmem:[#allocation8 + $0x188] sm:$0xff]
    %v752 = vld [vmem:[#allocation8 + $0x190] sm:$0xff]
    %v753 = vld [vmem:[#allocation8 + $0x198] sm:$0xff]
    %v754 = vld [vmem:[#allocation8 + $0x1a0] sm:$0xff]
    %v755 = vld [vmem:[#allocation8 + $0x1a8] sm:$0xff]
    %v756 = vld [vmem:[#allocation8 + $0x1b0] sm:$0xff]
    %v757 = vld [vmem:[#allocation8 + $0x1b8] sm:$0xff]
    %v758 = vld [vmem:[#allocation8 + $0x1c0] sm:$0xff]
    %v759 = vld [vmem:[#allocation8 + $0x1c8] sm:$0xff]
    %v760 = vld [vmem:[#allocation8 + $0x1d0] sm:$0xff]
    %v761 = vld [vmem:[#allocation8 + $0x1d8] sm:$0xff]
    %v762 = vld [vmem:[#allocation8 + $0x1e0] sm:$0xff]
    %v763 = vld [vmem:[#allocation8 + $0x1e8] sm:$0xff]
    %v764 = vld [vmem:[#allocation8 + $0x1f0] sm:$0xff]
    %v765 = vld [vmem:[#allocation8 + $0x1f8] sm:$0xff]
    %v766 = vld [vmem:[#allocation8 + $0x200] sm:$0xff]
    %v767 = vld [vmem:[#allocation8 + $0x208] sm:$0xff]
    %v768 = vld [vmem:[#allocation8 + $0x210] sm:$0xff]
    %v769 = vld [vmem:[#allocation8 + $0x218] sm:$0xff]
    %v770 = vld [vmem:[#allocation8 + $0x220] sm:$0xff]
    %v771 = vld [vmem:[#allocation8 + $0x228] sm:$0xff]
    %v772 = vld [vmem:[#allocation8 + $0x230] sm:$0xff]
    %v773 = vld [vmem:[#allocation8 + $0x238] sm:$0xff]
    %v774 = vld [vmem:[#allocation8 + $0x240] sm:$0xff]
    %v775 = vld [vmem:[#allocation8 + $0x248] sm:$0xff]
    %v776 = vld [vmem:[#allocation8 + $0x250] sm:$0xff]
    %v777 = vld [vmem:[#allocation8 + $0x258] sm:$0xff]
    %v778 = vld [vmem:[#allocation8 + $0x260] sm:$0xff]
    %v779 = vld [vmem:[#allocation8 + $0x268] sm:$0xff]
    %v780 = vld [vmem:[#allocation8 + $0x270] sm:$0xff]
    %v781 = vld [vmem:[#allocation8 + $0x278] sm:$0xff]
    %v782 = vld [vmem:[#allocation8 + $0x280] sm:$0xff]
    %v783 = vld [vmem:[#allocation8 + $0x288] sm:$0xff]
    %v784 = vld [vmem:[#allocation8 + $0x290] sm:$0xff]
    %v785 = vld [vmem:[#allocation8 + $0x298] sm:$0xff]
    %v786 = vld [vmem:[#allocation8 + $0x2a0] sm:$0xff]
    %v787 = vld [vmem:[#allocation8 + $0x2a8] sm:$0xff]
    %v788 = vld [vmem:[#allocation8 + $0x2b0] sm:$0xff]
    %v789 = vld [vmem:[#allocation8 + $0x2b8] sm:$0xff]
    %v790 = vld [vmem:[#allocation8 + $0x2c0] sm:$0xff]
    %v791 = vld [vmem:[#allocation8 + $0x2c8] sm:$0xff]
    %v792 = vld [vmem:[#allocation8 + $0x2d0] sm:$0xff]
    %v793 = vld [vmem:[#allocation8 + $0x2d8] sm:$0xff]
    %v794 = vld [vmem:[#allocation8 + $0x2e0] sm:$0xff]
    %v795 = vld [vmem:[#allocation8 + $0x2e8] sm:$0xff]
    %v796 = vld [vmem:[#allocation8 + $0x2f0] sm:$0xff]
    %v797 = vld [vmem:[#allocation8 + $0x2f8] sm:$0xff]
    %v798 = vld [vmem:[#allocation8 + $0x300] sm:$0xff]
    %v799 = vld [vmem:[#allocation8 + $0x308] sm:$0xff]
    %v800 = vld [vmem:[#allocation8 + $0x310] sm:$0xff]
    %v801 = vld [vmem:[#allocation8 + $0x318] sm:$0xff]
    %v802 = vld [vmem:[#allocation8 + $0x320] sm:$0xff]
    %v803 = vld [vmem:[#allocation8 + $0x328] sm:$0xff]
    %v804 = vld [vmem:[#allocation8 + $0x330] sm:$0xff]
    %v805 = vld [vmem:[#allocation8 + $0x338] sm:$0xff]
    %v806 = vld [vmem:[#allocation8 + $0x340] sm:$0xff]
    %v807 = vld [vmem:[#allocation8 + $0x348] sm:$0xff]
    %v808 = vld [vmem:[#allocation8 + $0x350] sm:$0xff]
    %v809 = vld [vmem:[#allocation8 + $0x358] sm:$0xff]
    %v810 = vld [vmem:[#allocation8 + $0x360] sm:$0xff]
    %v811 = vld [vmem:[#allocation8 + $0x368] sm:$0xff]
    %v812 = vld [vmem:[#allocation8 + $0x370] sm:$0xff]
    %v813 = vld [vmem:[#allocation8 + $0x378] sm:$0xff]
    %v814 = vld [vmem:[#allocation8 + $0x380] sm:$0xff]
    %v815 = vld [vmem:[#allocation8 + $0x388] sm:$0xff]
    %v816 = vld [vmem:[#allocation8 + $0x390] sm:$0xff]
    %v817 = vld [vmem:[#allocation8 + $0x398] sm:$0xff]
    %v818 = vld [vmem:[#allocation8 + $0x3a0] sm:$0xff]
    %v819 = vld [vmem:[#allocation8 + $0x3a8] sm:$0xff]
    %v820 = vld [vmem:[#allocation8 + $0x3b0] sm:$0xff]
    %v821 = vld [vmem:[#allocation8 + $0x3b8] sm:$0xff]
    %v822 = vld [vmem:[#allocation8 + $0x3c0] sm:$0xff]
    %v823 = vld [vmem:[#allocation8 + $0x3c8] sm:$0xff]
    %v824 = vld [vmem:[#allocation8 + $0x3d0] sm:$0xff]
    %v825 = vld [vmem:[#allocation8 + $0x3d8] sm:$0xff]
    %v826 = vld [vmem:[#allocation8 + $0x3e0] sm:$0xff]
    %v827 = vld [vmem:[#allocation8 + $0x3e8] sm:$0xff]
    %v828 = vld [vmem:[#allocation8 + $0x3f0] sm:$0xff]
    %v829 = vld [vmem:[#allocation8 + $0x3f8] sm:$0xff]
    %v830 = vld [vmem:[#allocation8 + $0x400] sm:$0xff]
    %v831 = vld [vmem:[#allocation8 + $0x408] sm:$0xff]
    %v832 = vld [vmem:[#allocation8 + $0x410] sm:$0xff]
    %v833 = vld [vmem:[#allocation8 + $0x418] sm:$0xff]
    %v834 = vld [vmem:[#allocation8 + $0x420] sm:$0xff]
    %v835 = vld [vmem:[#allocation8 + $0x428] sm:$0xff]
    %v836 = vld [vmem:[#allocation8 + $0x430] sm:$0xff]
    %v837 = vld [vmem:[#allocation8 + $0x438] sm:$0xff]
    %v838 = vld [vmem:[#allocation8 + $0x440] sm:$0xff]
    %v839 = vld [vmem:[#allocation8 + $0x448] sm:$0xff]
    %v840 = vld [vmem:[#allocation8 + $0x450] sm:$0xff]
    %v841 = vld [vmem:[#allocation8 + $0x458] sm:$0xff]
    %v842 = vld [vmem:[#allocation8 + $0x460] sm:$0xff]
    %v843 = vld [vmem:[#allocation8 + $0x468] sm:$0xff]
    %v844 = vld [vmem:[#allocation8 + $0x470] sm:$0xff]
    %v845 = vld [vmem:[#allocation8 + $0x478] sm:$0xff]
    %v846 = vld [vmem:[#allocation8 + $0x480] sm:$0xff]
    %v847 = vld [vmem:[#allocation8 + $0x488] sm:$0xff]
    %v848 = vld [vmem:[#allocation8 + $0x490] sm:$0xff]
    %v849 = vld [vmem:[#allocation8 + $0x498] sm:$0xff]
    %v850 = vld [vmem:[#allocation8 + $0x4a0] sm:$0xff]
    %v851 = vld [vmem:[#allocation8 + $0x4a8] sm:$0xff]
    %v852 = vld [vmem:[#allocation8 + $0x4b0] sm:$0xff]
    %v853 = vld [vmem:[#allocation8 + $0x4b8] sm:$0xff]
    %v854 = vld [vmem:[#allocation8 + $0x4c0] sm:$0xff]
    %v855 = vld [vmem:[#allocation8 + $0x4c8] sm:$0xff]
    %v856 = vld [vmem:[#allocation8 + $0x4d0] sm:$0xff]
    %v857 = vld [vmem:[#allocation8 + $0x4d8] sm:$0xff]
    %v858 = vld [vmem:[#allocation8 + $0x4e0] sm:$0xff]
    %v859 = vld [vmem:[#allocation8 + $0x4e8] sm:$0xff]
    %v860 = vld [vmem:[#allocation8 + $0x4f0] sm:$0xff]
    %v861 = vld [vmem:[#allocation8 + $0x4f8] sm:$0xff]
    %v862 = vld [vmem:[#allocation8 + $0x500] sm:$0xff]
    %v863 = vld [vmem:[#allocation8 + $0x508] sm:$0xff]
    %v864 = vld [vmem:[#allocation8 + $0x510] sm:$0xff]
    %v865 = vld [vmem:[#allocation8 + $0x518] sm:$0xff]
    %v866 = vld [vmem:[#allocation8 + $0x520] sm:$0xff]
    %v867 = vld [vmem:[#allocation8 + $0x528] sm:$0xff]
    %v868 = vld [vmem:[#allocation8 + $0x530] sm:$0xff]
    %v869 = vld [vmem:[#allocation8 + $0x538] sm:$0xff]
    %v870 = vld [vmem:[#allocation8 + $0x540] sm:$0xff]
    %v871 = vld [vmem:[#allocation8 + $0x548] sm:$0xff]
    %v872 = vld [vmem:[#allocation8 + $0x550] sm:$0xff]
    %v873 = vld [vmem:[#allocation8 + $0x558] sm:$0xff]
    %v874 = vld [vmem:[#allocation8 + $0x560] sm:$0xff]
    %v875 = vld [vmem:[#allocation8 + $0x568] sm:$0xff]
    %v876 = vld [vmem:[#allocation8 + $0x570] sm:$0xff]
    %v877 = vld [vmem:[#allocation8 + $0x578] sm:$0xff]
    %v878 = vld [vmem:[#allocation8 + $0x580] sm:$0xff]
    %v879 = vld [vmem:[#allocation8 + $0x588] sm:$0xff]
    %v880 = vld [vmem:[#allocation8 + $0x590] sm:$0xff]
    %v881 = vld [vmem:[#allocation8 + $0x598] sm:$0xff]
    %v882 = vld [vmem:[#allocation8 + $0x5a0] sm:$0xff]
    %v883 = vld [vmem:[#allocation8 + $0x5a8] sm:$0xff]
    %v884 = vld [vmem:[#allocation8 + $0x5b0] sm:$0xff]
    %v885 = vld [vmem:[#allocation8 + $0x5b8] sm:$0xff]
    %v886 = vld [vmem:[#allocation8 + $0x5c0] sm:$0xff]
    %v887 = vld [vmem:[#allocation8 + $0x5c8] sm:$0xff]
    %v888 = vld [vmem:[#allocation8 + $0x5d0] sm:$0xff]
    %v889 = vld [vmem:[#allocation8 + $0x5d8] sm:$0xff]
    %v890 = vld [vmem:[#allocation8 + $0x5e0] sm:$0xff]
    %v891 = vld [vmem:[#allocation8 + $0x5e8] sm:$0xff]
    %v892 = vld [vmem:[#allocation8 + $0x5f0] sm:$0xff]
    %v893 = vld [vmem:[#allocation8 + $0x5f8] sm:$0xff]
    %v894 = vld [vmem:[#allocation8 + $0x600] sm:$0xff]
    %v895 = vld [vmem:[#allocation8 + $0x608] sm:$0xff]
    %v896 = vld [vmem:[#allocation8 + $0x610] sm:$0xff]
    %v897 = vld [vmem:[#allocation8 + $0x618] sm:$0xff]
    %v898 = vld [vmem:[#allocation8 + $0x620] sm:$0xff]
    %v899 = vld [vmem:[#allocation8 + $0x628] sm:$0xff]
    %v900 = vld [vmem:[#allocation8 + $0x630] sm:$0xff]
    %v901 = vld [vmem:[#allocation8 + $0x638] sm:$0xff]
    %v902 = vld [vmem:[#allocation8 + $0x640] sm:$0xff]
    %v903 = vld [vmem:[#allocation8 + $0x648] sm:$0xff]
    %v904 = vld [vmem:[#allocation8 + $0x650] sm:$0xff]
    %v905 = vld [vmem:[#allocation8 + $0x658] sm:$0xff]
    %v906 = vld [vmem:[#allocation8 + $0x660] sm:$0xff]
    %v907 = vld [vmem:[#allocation8 + $0x668] sm:$0xff]
    %v908 = vld [vmem:[#allocation8 + $0x670] sm:$0xff]
    %v909 = vld [vmem:[#allocation8 + $0x678] sm:$0xff]
    %v910 = vld [vmem:[#allocation8 + $0x680] sm:$0xff]
    %v911 = vld [vmem:[#allocation8 + $0x688] sm:$0xff]
    %v912 = vld [vmem:[#allocation8 + $0x690] sm:$0xff]
    %v913 = vld [vmem:[#allocation8 + $0x698] sm:$0xff]
    %v914 = vld [vmem:[#allocation8 + $0x6a0] sm:$0xff]
    %v915 = vld [vmem:[#allocation8 + $0x6a8] sm:$0xff]
    %v916 = vld [vmem:[#allocation8 + $0x6b0] sm:$0xff]
    %v917 = vld [vmem:[#allocation8 + $0x6b8] sm:$0xff]
    %v918 = vld [vmem:[#allocation8 + $0x6c0] sm:$0xff]
    %v919 = vld [vmem:[#allocation8 + $0x6c8] sm:$0xff]
    %v920 = vld [vmem:[#allocation8 + $0x6d0] sm:$0xff]
    %v921 = vld [vmem:[#allocation8 + $0x6d8] sm:$0xff]
    %v922 = vld [vmem:[#allocation8 + $0x6e0] sm:$0xff]
    %v923 = vld [vmem:[#allocation8 + $0x6e8] sm:$0xff]
    %v924 = vld [vmem:[#allocation8 + $0x6f0] sm:$0xff]
    %v925 = vld [vmem:[#allocation8 + $0x6f8] sm:$0xff]
    %v926 = vld [vmem:[#allocation8 + $0x700] sm:$0xff]
    %v927 = vld [vmem:[#allocation8 + $0x708] sm:$0xff]
    %v928 = vld [vmem:[#allocation8 + $0x710] sm:$0xff]
    %v929 = vld [vmem:[#allocation8 + $0x718] sm:$0xff]
    %v930 = vld [vmem:[#allocation8 + $0x720] sm:$0xff]
    %v931 = vld [vmem:[#allocation8 + $0x728] sm:$0xff]
    %v932 = vld [vmem:[#allocation8 + $0x730] sm:$0xff]
    %v933 = vld [vmem:[#allocation8 + $0x738] sm:$0xff]
    %v934 = vld [vmem:[#allocation8 + $0x740] sm:$0xff]
    %v935 = vld [vmem:[#allocation8 + $0x748] sm:$0xff]
    %v936 = vld [vmem:[#allocation8 + $0x750] sm:$0xff]
    %v937 = vld [vmem:[#allocation8 + $0x758] sm:$0xff]
    %v938 = vld [vmem:[#allocation8 + $0x760] sm:$0xff]
    %v939 = vld [vmem:[#allocation8 + $0x768] sm:$0xff]
    %v940 = vld [vmem:[#allocation8 + $0x770] sm:$0xff]
    %v941 = vld [vmem:[#allocation8 + $0x778] sm:$0xff]
    %v942 = vld [vmem:[#allocation8 + $0x780] sm:$0xff]
    %v943 = vld [vmem:[#allocation8 + $0x788] sm:$0xff]
    %v944 = vld [vmem:[#allocation8 + $0x790] sm:$0xff]
    %v945 = vld [vmem:[#allocation8 + $0x798] sm:$0xff]
    %v946 = vld [vmem:[#allocation8 + $0x7a0] sm:$0xff]
    %v947 = vld [vmem:[#allocation8 + $0x7a8] sm:$0xff]
    %v948 = vld [vmem:[#allocation8 + $0x7b0] sm:$0xff]
    %v949 = vld [vmem:[#allocation8 + $0x7b8] sm:$0xff]
    %v950 = vld [vmem:[#allocation8 + $0x7c0] sm:$0xff]
    %v951 = vld [vmem:[#allocation8 + $0x7c8] sm:$0xff]
    %v952 = vld [vmem:[#allocation8 + $0x7d0] sm:$0xff]
    %v953 = vld [vmem:[#allocation8 + $0x7d8] sm:$0xff]
    %v954 = vld [vmem:[#allocation8 + $0x7e0] sm:$0xff]
    %v955 = vld [vmem:[#allocation8 + $0x7e8] sm:$0xff]
    %v956 = vld [vmem:[#allocation8 + $0x7f0] sm:$0xff]
    %v957 = vld [vmem:[#allocation8 + $0x7f8] sm:$0xff]
    %v958 = vld [vmem:[#allocation10] sm:$0xf]
    %v960 = vperm.slane %v958, 0
    %v961 = vperm.slane %v958, 1
    %v962 = vperm.slane %v958, 2
    %v963 = vperm.slane %v958, 3
    %v1224 = vunpack.c.l.b16 %v702
    %v1225 = vunpack.c.h.b16 %v702
    %v1226 = vunpack.c.l.b16 %v703
    %v1227 = vunpack.c.h.b16 %v703
    %v1228 = vunpack.c.l.b16 %v704
    %v1229 = vunpack.c.h.b16 %v704
    %v1230 = vunpack.c.l.b16 %v705
    %v1231 = vunpack.c.h.b16 %v705
    %v1232 = vunpack.c.l.b16 %v706
    %v1233 = vunpack.c.h.b16 %v706
    %v1234 = vunpack.c.l.b16 %v707
    %v1235 = vunpack.c.h.b16 %v707
    %v1236 = vunpack.c.l.b16 %v708
    %v1237 = vunpack.c.h.b16 %v708
    %v1238 = vunpack.c.l.b16 %v709
    %v1239 = vunpack.c.h.b16 %v709
    %v1240 = vunpack.c.l.b16 %v710
    %v1241 = vunpack.c.h.b16 %v710
    %v1242 = vunpack.c.l.b16 %v711
    %v1243 = vunpack.c.h.b16 %v711
    %v1244 = vunpack.c.l.b16 %v712
    %v1245 = vunpack.c.h.b16 %v712
    %v1246 = vunpack.c.l.b16 %v713
    %v1247 = vunpack.c.h.b16 %v713
    %v1248 = vunpack.c.l.b16 %v714
    %v1249 = vunpack.c.h.b16 %v714
    %v1250 = vunpack.c.l.b16 %v715
    %v1251 = vunpack.c.h.b16 %v715
    %v1252 = vunpack.c.l.b16 %v716
    %v1253 = vunpack.c.h.b16 %v716
    %v1254 = vunpack.c.l.b16 %v717
    %v1255 = vunpack.c.h.b16 %v717
    %v1256 = vunpack.c.l.b16 %v718
    %v1257 = vunpack.c.h.b16 %v718
    %v1258 = vunpack.c.l.b16 %v719
    %v1259 = vunpack.c.h.b16 %v719
    %v1260 = vunpack.c.l.b16 %v720
    %v1261 = vunpack.c.h.b16 %v720
    %v1262 = vunpack.c.l.b16 %v721
    %v1263 = vunpack.c.h.b16 %v721
    %v1264 = vunpack.c.l.b16 %v722
    %v1265 = vunpack.c.h.b16 %v722
    %v1266 = vunpack.c.l.b16 %v723
    %v1267 = vunpack.c.h.b16 %v723
    %v1268 = vunpack.c.l.b16 %v724
    %v1269 = vunpack.c.h.b16 %v724
    %v1270 = vunpack.c.l.b16 %v725
    %v1271 = vunpack.c.h.b16 %v725
    %v1272 = vunpack.c.l.b16 %v726
    %v1273 = vunpack.c.h.b16 %v726
    %v1274 = vunpack.c.l.b16 %v727
    %v1275 = vunpack.c.h.b16 %v727
    %v1276 = vunpack.c.l.b16 %v728
    %v1277 = vunpack.c.h.b16 %v728
    %v1278 = vunpack.c.l.b16 %v729
    %v1279 = vunpack.c.h.b16 %v729
    %v1280 = vunpack.c.l.b16 %v730
    %v1281 = vunpack.c.h.b16 %v730
    %v1282 = vunpack.c.l.b16 %v731
    %v1283 = vunpack.c.h.b16 %v731
    %v1284 = vunpack.c.l.b16 %v732
    %v1285 = vunpack.c.h.b16 %v732
    %v1286 = vunpack.c.l.b16 %v733
    %v1287 = vunpack.c.h.b16 %v733
    %v1288 = vunpack.c.l.b16 %v734
    %v1289 = vunpack.c.h.b16 %v734
    %v1290 = vunpack.c.l.b16 %v735
    %v1291 = vunpack.c.h.b16 %v735
    %v1292 = vunpack.c.l.b16 %v736
    %v1293 = vunpack.c.h.b16 %v736
    %v1294 = vunpack.c.l.b16 %v737
    %v1295 = vunpack.c.h.b16 %v737
    %v1296 = vunpack.c.l.b16 %v738
    %v1297 = vunpack.c.h.b16 %v738
    %v1298 = vunpack.c.l.b16 %v739
    %v1299 = vunpack.c.h.b16 %v739
    %v1300 = vunpack.c.l.b16 %v740
    %v1301 = vunpack.c.h.b16 %v740
    %v1302 = vunpack.c.l.b16 %v741
    %v1303 = vunpack.c.h.b16 %v741
    %v1304 = vunpack.c.l.b16 %v742
    %v1305 = vunpack.c.h.b16 %v742
    %v1306 = vunpack.c.l.b16 %v743
    %v1307 = vunpack.c.h.b16 %v743
    %v1308 = vunpack.c.l.b16 %v744
    %v1309 = vunpack.c.h.b16 %v744
    %v1310 = vunpack.c.l.b16 %v745
    %v1311 = vunpack.c.h.b16 %v745
    %v1312 = vunpack.c.l.b16 %v746
    %v1313 = vunpack.c.h.b16 %v746
    %v1314 = vunpack.c.l.b16 %v747
    %v1315 = vunpack.c.h.b16 %v747
    %v1316 = vunpack.c.l.b16 %v748
    %v1317 = vunpack.c.h.b16 %v748
    %v1318 = vunpack.c.l.b16 %v749
    %v1319 = vunpack.c.h.b16 %v749
    %v1320 = vunpack.c.l.b16 %v750
    %v1321 = vunpack.c.h.b16 %v750
    %v1322 = vunpack.c.l.b16 %v751
    %v1323 = vunpack.c.h.b16 %v751
    %v1324 = vunpack.c.l.b16 %v752
    %v1325 = vunpack.c.h.b16 %v752
    %v1326 = vunpack.c.l.b16 %v753
    %v1327 = vunpack.c.h.b16 %v753
    %v1328 = vunpack.c.l.b16 %v754
    %v1329 = vunpack.c.h.b16 %v754
    %v1330 = vunpack.c.l.b16 %v755
    %v1331 = vunpack.c.h.b16 %v755
    %v1332 = vunpack.c.l.b16 %v756
    %v1333 = vunpack.c.h.b16 %v756
    %v1334 = vunpack.c.l.b16 %v757
    %v1335 = vunpack.c.h.b16 %v757
    %v1336 = vunpack.c.l.b16 %v758
    %v1337 = vunpack.c.h.b16 %v758
    %v1338 = vunpack.c.l.b16 %v759
    %v1339 = vunpack.c.h.b16 %v759
    %v1340 = vunpack.c.l.b16 %v760
    %v1341 = vunpack.c.h.b16 %v760
    %v1342 = vunpack.c.l.b16 %v761
    %v1343 = vunpack.c.h.b16 %v761
    %v1344 = vunpack.c.l.b16 %v762
    %v1345 = vunpack.c.h.b16 %v762
    %v1346 = vunpack.c.l.b16 %v763
    %v1347 = vunpack.c.h.b16 %v763
    %v1348 = vunpack.c.l.b16 %v764
    %v1349 = vunpack.c.h.b16 %v764
    %v1350 = vunpack.c.l.b16 %v765
    %v1351 = vunpack.c.h.b16 %v765
    %v1352 = vunpack.c.l.b16 %v766
    %v1353 = vunpack.c.h.b16 %v766
    %v1354 = vunpack.c.l.b16 %v767
    %v1355 = vunpack.c.h.b16 %v767
    %v1356 = vunpack.c.l.b16 %v768
    %v1357 = vunpack.c.h.b16 %v768
    %v1358 = vunpack.c.l.b16 %v769
    %v1359 = vunpack.c.h.b16 %v769
    %v1360 = vunpack.c.l.b16 %v770
    %v1361 = vunpack.c.h.b16 %v770
    %v1362 = vunpack.c.l.b16 %v771
    %v1363 = vunpack.c.h.b16 %v771
    %v1364 = vunpack.c.l.b16 %v772
    %v1365 = vunpack.c.h.b16 %v772
    %v1366 = vunpack.c.l.b16 %v773
    %v1367 = vunpack.c.h.b16 %v773
    %v1368 = vunpack.c.l.b16 %v774
    %v1369 = vunpack.c.h.b16 %v774
    %v1370 = vunpack.c.l.b16 %v775
    %v1371 = vunpack.c.h.b16 %v775
    %v1372 = vunpack.c.l.b16 %v776
    %v1373 = vunpack.c.h.b16 %v776
    %v1374 = vunpack.c.l.b16 %v777
    %v1375 = vunpack.c.h.b16 %v777
    %v1376 = vunpack.c.l.b16 %v778
    %v1377 = vunpack.c.h.b16 %v778
    %v1378 = vunpack.c.l.b16 %v779
    %v1379 = vunpack.c.h.b16 %v779
    %v1380 = vunpack.c.l.b16 %v780
    %v1381 = vunpack.c.h.b16 %v780
    %v1382 = vunpack.c.l.b16 %v781
    %v1383 = vunpack.c.h.b16 %v781
    %v1384 = vunpack.c.l.b16 %v782
    %v1385 = vunpack.c.h.b16 %v782
    %v1386 = vunpack.c.l.b16 %v783
    %v1387 = vunpack.c.h.b16 %v783
    %v1388 = vunpack.c.l.b16 %v784
    %v1389 = vunpack.c.h.b16 %v784
    %v1390 = vunpack.c.l.b16 %v785
    %v1391 = vunpack.c.h.b16 %v785
    %v1392 = vunpack.c.l.b16 %v786
    %v1393 = vunpack.c.h.b16 %v786
    %v1394 = vunpack.c.l.b16 %v787
    %v1395 = vunpack.c.h.b16 %v787
    %v1396 = vunpack.c.l.b16 %v788
    %v1397 = vunpack.c.h.b16 %v788
    %v1398 = vunpack.c.l.b16 %v789
    %v1399 = vunpack.c.h.b16 %v789
    %v1400 = vunpack.c.l.b16 %v790
    %v1401 = vunpack.c.h.b16 %v790
    %v1402 = vunpack.c.l.b16 %v791
    %v1403 = vunpack.c.h.b16 %v791
    %v1404 = vunpack.c.l.b16 %v792
    %v1405 = vunpack.c.h.b16 %v792
    %v1406 = vunpack.c.l.b16 %v793
    %v1407 = vunpack.c.h.b16 %v793
    %v1408 = vunpack.c.l.b16 %v794
    %v1409 = vunpack.c.h.b16 %v794
    %v1410 = vunpack.c.l.b16 %v795
    %v1411 = vunpack.c.h.b16 %v795
    %v1412 = vunpack.c.l.b16 %v796
    %v1413 = vunpack.c.h.b16 %v796
    %v1414 = vunpack.c.l.b16 %v797
    %v1415 = vunpack.c.h.b16 %v797
    %v1416 = vunpack.c.l.b16 %v798
    %v1417 = vunpack.c.h.b16 %v798
    %v1418 = vunpack.c.l.b16 %v799
    %v1419 = vunpack.c.h.b16 %v799
    %v1420 = vunpack.c.l.b16 %v800
    %v1421 = vunpack.c.h.b16 %v800
    %v1422 = vunpack.c.l.b16 %v801
    %v1423 = vunpack.c.h.b16 %v801
    %v1424 = vunpack.c.l.b16 %v802
    %v1425 = vunpack.c.h.b16 %v802
    %v1426 = vunpack.c.l.b16 %v803
    %v1427 = vunpack.c.h.b16 %v803
    %v1428 = vunpack.c.l.b16 %v804
    %v1429 = vunpack.c.h.b16 %v804
    %v1430 = vunpack.c.l.b16 %v805
    %v1431 = vunpack.c.h.b16 %v805
    %v1432 = vunpack.c.l.b16 %v806
    %v1433 = vunpack.c.h.b16 %v806
    %v1434 = vunpack.c.l.b16 %v807
    %v1435 = vunpack.c.h.b16 %v807
    %v1436 = vunpack.c.l.b16 %v808
    %v1437 = vunpack.c.h.b16 %v808
    %v1438 = vunpack.c.l.b16 %v809
    %v1439 = vunpack.c.h.b16 %v809
    %v1440 = vunpack.c.l.b16 %v810
    %v1441 = vunpack.c.h.b16 %v810
    %v1442 = vunpack.c.l.b16 %v811
    %v1443 = vunpack.c.h.b16 %v811
    %v1444 = vunpack.c.l.b16 %v812
    %v1445 = vunpack.c.h.b16 %v812
    %v1446 = vunpack.c.l.b16 %v813
    %v1447 = vunpack.c.h.b16 %v813
    %v1448 = vunpack.c.l.b16 %v814
    %v1449 = vunpack.c.h.b16 %v814
    %v1450 = vunpack.c.l.b16 %v815
    %v1451 = vunpack.c.h.b16 %v815
    %v1452 = vunpack.c.l.b16 %v816
    %v1453 = vunpack.c.h.b16 %v816
    %v1454 = vunpack.c.l.b16 %v817
    %v1455 = vunpack.c.h.b16 %v817
    %v1456 = vunpack.c.l.b16 %v818
    %v1457 = vunpack.c.h.b16 %v818
    %v1458 = vunpack.c.l.b16 %v819
    %v1459 = vunpack.c.h.b16 %v819
    %v1460 = vunpack.c.l.b16 %v820
    %v1461 = vunpack.c.h.b16 %v820
    %v1462 = vunpack.c.l.b16 %v821
    %v1463 = vunpack.c.h.b16 %v821
    %v1464 = vunpack.c.l.b16 %v822
    %v1465 = vunpack.c.h.b16 %v822
    %v1466 = vunpack.c.l.b16 %v823
    %v1467 = vunpack.c.h.b16 %v823
    %v1468 = vunpack.c.l.b16 %v824
    %v1469 = vunpack.c.h.b16 %v824
    %v1470 = vunpack.c.l.b16 %v825
    %v1471 = vunpack.c.h.b16 %v825
    %v1472 = vunpack.c.l.b16 %v826
    %v1473 = vunpack.c.h.b16 %v826
    %v1474 = vunpack.c.l.b16 %v827
    %v1475 = vunpack.c.h.b16 %v827
    %v1476 = vunpack.c.l.b16 %v828
    %v1477 = vunpack.c.h.b16 %v828
    %v1478 = vunpack.c.l.b16 %v829
    %v1479 = vunpack.c.h.b16 %v829
    %v1480 = vunpack.c.l.b16 %v830
    %v1481 = vunpack.c.h.b16 %v830
    %v1482 = vunpack.c.l.b16 %v831
    %v1483 = vunpack.c.h.b16 %v831
    %v1484 = vunpack.c.l.b16 %v832
    %v1485 = vunpack.c.h.b16 %v832
    %v1486 = vunpack.c.l.b16 %v833
    %v1487 = vunpack.c.h.b16 %v833
    %v1488 = vunpack.c.l.b16 %v834
    %v1489 = vunpack.c.h.b16 %v834
    %v1490 = vunpack.c.l.b16 %v835
    %v1491 = vunpack.c.h.b16 %v835
    %v1492 = vunpack.c.l.b16 %v836
    %v1493 = vunpack.c.h.b16 %v836
    %v1494 = vunpack.c.l.b16 %v837
    %v1495 = vunpack.c.h.b16 %v837
    %v1496 = vunpack.c.l.b16 %v838
    %v1497 = vunpack.c.h.b16 %v838
    %v1498 = vunpack.c.l.b16 %v839
    %v1499 = vunpack.c.h.b16 %v839
    %v1500 = vunpack.c.l.b16 %v840
    %v1501 = vunpack.c.h.b16 %v840
    %v1502 = vunpack.c.l.b16 %v841
    %v1503 = vunpack.c.h.b16 %v841
    %v1504 = vunpack.c.l.b16 %v842
    %v1505 = vunpack.c.h.b16 %v842
    %v1506 = vunpack.c.l.b16 %v843
    %v1507 = vunpack.c.h.b16 %v843
    %v1508 = vunpack.c.l.b16 %v844
    %v1509 = vunpack.c.h.b16 %v844
    %v1510 = vunpack.c.l.b16 %v845
    %v1511 = vunpack.c.h.b16 %v845
    %v1512 = vunpack.c.l.b16 %v846
    %v1513 = vunpack.c.h.b16 %v846
    %v1514 = vunpack.c.l.b16 %v847
    %v1515 = vunpack.c.h.b16 %v847
    %v1516 = vunpack.c.l.b16 %v848
    %v1517 = vunpack.c.h.b16 %v848
    %v1518 = vunpack.c.l.b16 %v849
    %v1519 = vunpack.c.h.b16 %v849
    %v1520 = vunpack.c.l.b16 %v850
    %v1521 = vunpack.c.h.b16 %v850
    %v1522 = vunpack.c.l.b16 %v851
    %v1523 = vunpack.c.h.b16 %v851
    %v1524 = vunpack.c.l.b16 %v852
    %v1525 = vunpack.c.h.b16 %v852
    %v1526 = vunpack.c.l.b16 %v853
    %v1527 = vunpack.c.h.b16 %v853
    %v1528 = vunpack.c.l.b16 %v854
    %v1529 = vunpack.c.h.b16 %v854
    %v1530 = vunpack.c.l.b16 %v855
    %v1531 = vunpack.c.h.b16 %v855
    %v1532 = vunpack.c.l.b16 %v856
    %v1533 = vunpack.c.h.b16 %v856
    %v1534 = vunpack.c.l.b16 %v857
    %v1535 = vunpack.c.h.b16 %v857
    %v1536 = vunpack.c.l.b16 %v858
    %v1537 = vunpack.c.h.b16 %v858
    %v1538 = vunpack.c.l.b16 %v859
    %v1539 = vunpack.c.h.b16 %v859
    %v1540 = vunpack.c.l.b16 %v860
    %v1541 = vunpack.c.h.b16 %v860
    %v1542 = vunpack.c.l.b16 %v861
    %v1543 = vunpack.c.h.b16 %v861
    %v1544 = vunpack.c.l.b16 %v862
    %v1545 = vunpack.c.h.b16 %v862
    %v1546 = vunpack.c.l.b16 %v863
    %v1547 = vunpack.c.h.b16 %v863
    %v1548 = vunpack.c.l.b16 %v864
    %v1549 = vunpack.c.h.b16 %v864
    %v1550 = vunpack.c.l.b16 %v865
    %v1551 = vunpack.c.h.b16 %v865
    %v1552 = vunpack.c.l.b16 %v866
    %v1553 = vunpack.c.h.b16 %v866
    %v1554 = vunpack.c.l.b16 %v867
    %v1555 = vunpack.c.h.b16 %v867
    %v1556 = vunpack.c.l.b16 %v868
    %v1557 = vunpack.c.h.b16 %v868
    %v1558 = vunpack.c.l.b16 %v869
    %v1559 = vunpack.c.h.b16 %v869
    %v1560 = vunpack.c.l.b16 %v870
    %v1561 = vunpack.c.h.b16 %v870
    %v1562 = vunpack.c.l.b16 %v871
    %v1563 = vunpack.c.h.b16 %v871
    %v1564 = vunpack.c.l.b16 %v872
    %v1565 = vunpack.c.h.b16 %v872
    %v1566 = vunpack.c.l.b16 %v873
    %v1567 = vunpack.c.h.b16 %v873
    %v1568 = vunpack.c.l.b16 %v874
    %v1569 = vunpack.c.h.b16 %v874
    %v1570 = vunpack.c.l.b16 %v875
    %v1571 = vunpack.c.h.b16 %v875
    %v1572 = vunpack.c.l.b16 %v876
    %v1573 = vunpack.c.h.b16 %v876
    %v1574 = vunpack.c.l.b16 %v877
    %v1575 = vunpack.c.h.b16 %v877
    %v1576 = vunpack.c.l.b16 %v878
    %v1577 = vunpack.c.h.b16 %v878
    %v1578 = vunpack.c.l.b16 %v879
    %v1579 = vunpack.c.h.b16 %v879
    %v1580 = vunpack.c.l.b16 %v880
    %v1581 = vunpack.c.h.b16 %v880
    %v1582 = vunpack.c.l.b16 %v881
    %v1583 = vunpack.c.h.b16 %v881
    %v1584 = vunpack.c.l.b16 %v882
    %v1585 = vunpack.c.h.b16 %v882
    %v1586 = vunpack.c.l.b16 %v883
    %v1587 = vunpack.c.h.b16 %v883
    %v1588 = vunpack.c.l.b16 %v884
    %v1589 = vunpack.c.h.b16 %v884
    %v1590 = vunpack.c.l.b16 %v885
    %v1591 = vunpack.c.h.b16 %v885
    %v1592 = vunpack.c.l.b16 %v886
    %v1593 = vunpack.c.h.b16 %v886
    %v1594 = vunpack.c.l.b16 %v887
    %v1595 = vunpack.c.h.b16 %v887
    %v1596 = vunpack.c.l.b16 %v888
    %v1597 = vunpack.c.h.b16 %v888
    %v1598 = vunpack.c.l.b16 %v889
    %v1599 = vunpack.c.h.b16 %v889
    %v1600 = vunpack.c.l.b16 %v890
    %v1601 = vunpack.c.h.b16 %v890
    %v1602 = vunpack.c.l.b16 %v891
    %v1603 = vunpack.c.h.b16 %v891
    %v1604 = vunpack.c.l.b16 %v892
    %v1605 = vunpack.c.h.b16 %v892
    %v1606 = vunpack.c.l.b16 %v893
    %v1607 = vunpack.c.h.b16 %v893
    %v1608 = vunpack.c.l.b16 %v894
    %v1609 = vunpack.c.h.b16 %v894
    %v1610 = vunpack.c.l.b16 %v895
    %v1611 = vunpack.c.h.b16 %v895
    %v1612 = vunpack.c.l.b16 %v896
    %v1613 = vunpack.c.h.b16 %v896
    %v1614 = vunpack.c.l.b16 %v897
    %v1615 = vunpack.c.h.b16 %v897
    %v1616 = vunpack.c.l.b16 %v898
    %v1617 = vunpack.c.h.b16 %v898
    %v1618 = vunpack.c.l.b16 %v899
    %v1619 = vunpack.c.h.b16 %v899
    %v1620 = vunpack.c.l.b16 %v900
    %v1621 = vunpack.c.h.b16 %v900
    %v1622 = vunpack.c.l.b16 %v901
    %v1623 = vunpack.c.h.b16 %v901
    %v1624 = vunpack.c.l.b16 %v902
    %v1625 = vunpack.c.h.b16 %v902
    %v1626 = vunpack.c.l.b16 %v903
    %v1627 = vunpack.c.h.b16 %v903
    %v1628 = vunpack.c.l.b16 %v904
    %v1629 = vunpack.c.h.b16 %v904
    %v1630 = vunpack.c.l.b16 %v905
    %v1631 = vunpack.c.h.b16 %v905
    %v1632 = vunpack.c.l.b16 %v906
    %v1633 = vunpack.c.h.b16 %v906
    %v1634 = vunpack.c.l.b16 %v907
    %v1635 = vunpack.c.h.b16 %v907
    %v1636 = vunpack.c.l.b16 %v908
    %v1637 = vunpack.c.h.b16 %v908
    %v1638 = vunpack.c.l.b16 %v909
    %v1639 = vunpack.c.h.b16 %v909
    %v1640 = vunpack.c.l.b16 %v910
    %v1641 = vunpack.c.h.b16 %v910
    %v1642 = vunpack.c.l.b16 %v911
    %v1643 = vunpack.c.h.b16 %v911
    %v1644 = vunpack.c.l.b16 %v912
    %v1645 = vunpack.c.h.b16 %v912
    %v1646 = vunpack.c.l.b16 %v913
    %v1647 = vunpack.c.h.b16 %v913
    %v1648 = vunpack.c.l.b16 %v914
    %v1649 = vunpack.c.h.b16 %v914
    %v1650 = vunpack.c.l.b16 %v915
    %v1651 = vunpack.c.h.b16 %v915
    %v1652 = vunpack.c.l.b16 %v916
    %v1653 = vunpack.c.h.b16 %v916
    %v1654 = vunpack.c.l.b16 %v917
    %v1655 = vunpack.c.h.b16 %v917
    %v1656 = vunpack.c.l.b16 %v918
    %v1657 = vunpack.c.h.b16 %v918
    %v1658 = vunpack.c.l.b16 %v919
    %v1659 = vunpack.c.h.b16 %v919
    %v1660 = vunpack.c.l.b16 %v920
    %v1661 = vunpack.c.h.b16 %v920
    %v1662 = vunpack.c.l.b16 %v921
    %v1663 = vunpack.c.h.b16 %v921
    %v1664 = vunpack.c.l.b16 %v922
    %v1665 = vunpack.c.h.b16 %v922
    %v1666 = vunpack.c.l.b16 %v923
    %v1667 = vunpack.c.h.b16 %v923
    %v1668 = vunpack.c.l.b16 %v924
    %v1669 = vunpack.c.h.b16 %v924
    %v1670 = vunpack.c.l.b16 %v925
    %v1671 = vunpack.c.h.b16 %v925
    %v1672 = vunpack.c.l.b16 %v926
    %v1673 = vunpack.c.h.b16 %v926
    %v1674 = vunpack.c.l.b16 %v927
    %v1675 = vunpack.c.h.b16 %v927
    %v1676 = vunpack.c.l.b16 %v928
    %v1677 = vunpack.c.h.b16 %v928
    %v1678 = vunpack.c.l.b16 %v929
    %v1679 = vunpack.c.h.b16 %v929
    %v1680 = vunpack.c.l.b16 %v930
    %v1681 = vunpack.c.h.b16 %v930
    %v1682 = vunpack.c.l.b16 %v931
    %v1683 = vunpack.c.h.b16 %v931
    %v1684 = vunpack.c.l.b16 %v932
    %v1685 = vunpack.c.h.b16 %v932
    %v1686 = vunpack.c.l.b16 %v933
    %v1687 = vunpack.c.h.b16 %v933
    %v1688 = vunpack.c.l.b16 %v934
    %v1689 = vunpack.c.h.b16 %v934
    %v1690 = vunpack.c.l.b16 %v935
    %v1691 = vunpack.c.h.b16 %v935
    %v1692 = vunpack.c.l.b16 %v936
    %v1693 = vunpack.c.h.b16 %v936
    %v1694 = vunpack.c.l.b16 %v937
    %v1695 = vunpack.c.h.b16 %v937
    %v1696 = vunpack.c.l.b16 %v938
    %v1697 = vunpack.c.h.b16 %v938
    %v1698 = vunpack.c.l.b16 %v939
    %v1699 = vunpack.c.h.b16 %v939
    %v1700 = vunpack.c.l.b16 %v940
    %v1701 = vunpack.c.h.b16 %v940
    %v1702 = vunpack.c.l.b16 %v941
    %v1703 = vunpack.c.h.b16 %v941
    %v1704 = vunpack.c.l.b16 %v942
    %v1705 = vunpack.c.h.b16 %v942
    %v1706 = vunpack.c.l.b16 %v943
    %v1707 = vunpack.c.h.b16 %v943
    %v1708 = vunpack.c.l.b16 %v944
    %v1709 = vunpack.c.h.b16 %v944
    %v1710 = vunpack.c.l.b16 %v945
    %v1711 = vunpack.c.h.b16 %v945
    %v1712 = vunpack.c.l.b16 %v946
    %v1713 = vunpack.c.h.b16 %v946
    %v1714 = vunpack.c.l.b16 %v947
    %v1715 = vunpack.c.h.b16 %v947
    %v1716 = vunpack.c.l.b16 %v948
    %v1717 = vunpack.c.h.b16 %v948
    %v1718 = vunpack.c.l.b16 %v949
    %v1719 = vunpack.c.h.b16 %v949
    %v1720 = vunpack.c.l.b16 %v950
    %v1721 = vunpack.c.h.b16 %v950
    %v1722 = vunpack.c.l.b16 %v951
    %v1723 = vunpack.c.h.b16 %v951
    %v1724 = vunpack.c.l.b16 %v952
    %v1725 = vunpack.c.h.b16 %v952
    %v1726 = vunpack.c.l.b16 %v953
    %v1727 = vunpack.c.h.b16 %v953
    %v1728 = vunpack.c.l.b16 %v954
    %v1729 = vunpack.c.h.b16 %v954
    %v1730 = vunpack.c.l.b16 %v955
    %v1731 = vunpack.c.h.b16 %v955
    %v1732 = vunpack.c.l.b16 %v956
    %v1733 = vunpack.c.h.b16 %v956
    %v1734 = vunpack.c.l.b16 %v957
    %v1735 = vunpack.c.h.b16 %v957
    %v1736 = vpack.c.b16 %v1228, %v1224
    %v1737 = vpack.c.b16 %v1229, %v1225
    %v1738 = vpack.c.b16 %v1230, %v1226
    %v1739 = vpack.c.b16 %v1231, %v1227
    %v1740 = vpack.c.b16 %v1236, %v1232
    %v1741 = vpack.c.b16 %v1237, %v1233
    %v1742 = vpack.c.b16 %v1238, %v1234
    %v1743 = vpack.c.b16 %v1239, %v1235
    %v1744 = vpack.c.b16 %v1244, %v1240
    %v1745 = vpack.c.b16 %v1245, %v1241
    %v1746 = vpack.c.b16 %v1246, %v1242
    %v1747 = vpack.c.b16 %v1247, %v1243
    %v1748 = vpack.c.b16 %v1252, %v1248
    %v1749 = vpack.c.b16 %v1253, %v1249
    %v1750 = vpack.c.b16 %v1254, %v1250
    %v1751 = vpack.c.b16 %v1255, %v1251
    %v1752 = vpack.c.b16 %v1260, %v1256
    %v1753 = vpack.c.b16 %v1261, %v1257
    %v1754 = vpack.c.b16 %v1262, %v1258
    %v1755 = vpack.c.b16 %v1263, %v1259
    %v1756 = vpack.c.b16 %v1268, %v1264
    %v1757 = vpack.c.b16 %v1269, %v1265
    %v1758 = vpack.c.b16 %v1270, %v1266
    %v1759 = vpack.c.b16 %v1271, %v1267
    %v1760 = vpack.c.b16 %v1276, %v1272
    %v1761 = vpack.c.b16 %v1277, %v1273
    %v1762 = vpack.c.b16 %v1278, %v1274
    %v1763 = vpack.c.b16 %v1279, %v1275
    %v1764 = vpack.c.b16 %v1284, %v1280
    %v1765 = vpack.c.b16 %v1285, %v1281
    %v1766 = vpack.c.b16 %v1286, %v1282
    %v1767 = vpack.c.b16 %v1287, %v1283
    %v1768 = vpack.c.b16 %v1292, %v1288
    %v1769 = vpack.c.b16 %v1293, %v1289
    %v1770 = vpack.c.b16 %v1294, %v1290
    %v1771 = vpack.c.b16 %v1295, %v1291
    %v1772 = vpack.c.b16 %v1300, %v1296
    %v1773 = vpack.c.b16 %v1301, %v1297
    %v1774 = vpack.c.b16 %v1302, %v1298
    %v1775 = vpack.c.b16 %v1303, %v1299
    %v1776 = vpack.c.b16 %v1308, %v1304
    %v1777 = vpack.c.b16 %v1309, %v1305
    %v1778 = vpack.c.b16 %v1310, %v1306
    %v1779 = vpack.c.b16 %v1311, %v1307
    %v1780 = vpack.c.b16 %v1316, %v1312
    %v1781 = vpack.c.b16 %v1317, %v1313
    %v1782 = vpack.c.b16 %v1318, %v1314
    %v1783 = vpack.c.b16 %v1319, %v1315
    %v1784 = vpack.c.b16 %v1324, %v1320
    %v1785 = vpack.c.b16 %v1325, %v1321
    %v1786 = vpack.c.b16 %v1326, %v1322
    %v1787 = vpack.c.b16 %v1327, %v1323
    %v1788 = vpack.c.b16 %v1332, %v1328
    %v1789 = vpack.c.b16 %v1333, %v1329
    %v1790 = vpack.c.b16 %v1334, %v1330
    %v1791 = vpack.c.b16 %v1335, %v1331
    %v1792 = vpack.c.b16 %v1340, %v1336
    %v1793 = vpack.c.b16 %v1341, %v1337
    %v1794 = vpack.c.b16 %v1342, %v1338
    %v1795 = vpack.c.b16 %v1343, %v1339
    %v1796 = vpack.c.b16 %v1348, %v1344
    %v1797 = vpack.c.b16 %v1349, %v1345
    %v1798 = vpack.c.b16 %v1350, %v1346
    %v1799 = vpack.c.b16 %v1351, %v1347
    %v1800 = vpack.c.b16 %v1356, %v1352
    %v1801 = vpack.c.b16 %v1357, %v1353
    %v1802 = vpack.c.b16 %v1358, %v1354
    %v1803 = vpack.c.b16 %v1359, %v1355
    %v1804 = vpack.c.b16 %v1364, %v1360
    %v1805 = vpack.c.b16 %v1365, %v1361
    %v1806 = vpack.c.b16 %v1366, %v1362
    %v1807 = vpack.c.b16 %v1367, %v1363
    %v1808 = vpack.c.b16 %v1372, %v1368
    %v1809 = vpack.c.b16 %v1373, %v1369
    %v1810 = vpack.c.b16 %v1374, %v1370
    %v1811 = vpack.c.b16 %v1375, %v1371
    %v1812 = vpack.c.b16 %v1380, %v1376
    %v1813 = vpack.c.b16 %v1381, %v1377
    %v1814 = vpack.c.b16 %v1382, %v1378
    %v1815 = vpack.c.b16 %v1383, %v1379
    %v1816 = vpack.c.b16 %v1388, %v1384
    %v1817 = vpack.c.b16 %v1389, %v1385
    %v1818 = vpack.c.b16 %v1390, %v1386
    %v1819 = vpack.c.b16 %v1391, %v1387
    %v1820 = vpack.c.b16 %v1396, %v1392
    %v1821 = vpack.c.b16 %v1397, %v1393
    %v1822 = vpack.c.b16 %v1398, %v1394
    %v1823 = vpack.c.b16 %v1399, %v1395
    %v1824 = vpack.c.b16 %v1404, %v1400
    %v1825 = vpack.c.b16 %v1405, %v1401
    %v1826 = vpack.c.b16 %v1406, %v1402
    %v1827 = vpack.c.b16 %v1407, %v1403
    %v1828 = vpack.c.b16 %v1412, %v1408
    %v1829 = vpack.c.b16 %v1413, %v1409
    %v1830 = vpack.c.b16 %v1414, %v1410
    %v1831 = vpack.c.b16 %v1415, %v1411
    %v1832 = vpack.c.b16 %v1420, %v1416
    %v1833 = vpack.c.b16 %v1421, %v1417
    %v1834 = vpack.c.b16 %v1422, %v1418
    %v1835 = vpack.c.b16 %v1423, %v1419
    %v1836 = vpack.c.b16 %v1428, %v1424
    %v1837 = vpack.c.b16 %v1429, %v1425
    %v1838 = vpack.c.b16 %v1430, %v1426
    %v1839 = vpack.c.b16 %v1431, %v1427
    %v1840 = vpack.c.b16 %v1436, %v1432
    %v1841 = vpack.c.b16 %v1437, %v1433
    %v1842 = vpack.c.b16 %v1438, %v1434
    %v1843 = vpack.c.b16 %v1439, %v1435
    %v1844 = vpack.c.b16 %v1444, %v1440
    %v1845 = vpack.c.b16 %v1445, %v1441
    %v1846 = vpack.c.b16 %v1446, %v1442
    %v1847 = vpack.c.b16 %v1447, %v1443
    %v1848 = vpack.c.b16 %v1452, %v1448
    %v1849 = vpack.c.b16 %v1453, %v1449
    %v1850 = vpack.c.b16 %v1454, %v1450
    %v1851 = vpack.c.b16 %v1455, %v1451
    %v1852 = vpack.c.b16 %v1460, %v1456
    %v1853 = vpack.c.b16 %v1461, %v1457
    %v1854 = vpack.c.b16 %v1462, %v1458
    %v1855 = vpack.c.b16 %v1463, %v1459
    %v1856 = vpack.c.b16 %v1468, %v1464
    %v1857 = vpack.c.b16 %v1469, %v1465
    %v1858 = vpack.c.b16 %v1470, %v1466
    %v1859 = vpack.c.b16 %v1471, %v1467
    %v1860 = vpack.c.b16 %v1476, %v1472
    %v1861 = vpack.c.b16 %v1477, %v1473
    %v1862 = vpack.c.b16 %v1478, %v1474
    %v1863 = vpack.c.b16 %v1479, %v1475
    %v1864 = vpack.c.b16 %v1484, %v1480
    %v1865 = vpack.c.b16 %v1485, %v1481
    %v1866 = vpack.c.b16 %v1486, %v1482
    %v1867 = vpack.c.b16 %v1487, %v1483
    %v1868 = vpack.c.b16 %v1492, %v1488
    %v1869 = vpack.c.b16 %v1493, %v1489
    %v1870 = vpack.c.b16 %v1494, %v1490
    %v1871 = vpack.c.b16 %v1495, %v1491
    %v1872 = vpack.c.b16 %v1500, %v1496
    %v1873 = vpack.c.b16 %v1501, %v1497
    %v1874 = vpack.c.b16 %v1502, %v1498
    %v1875 = vpack.c.b16 %v1503, %v1499
    %v1876 = vpack.c.b16 %v1508, %v1504
    %v1877 = vpack.c.b16 %v1509, %v1505
    %v1878 = vpack.c.b16 %v1510, %v1506
    %v1879 = vpack.c.b16 %v1511, %v1507
    %v1880 = vpack.c.b16 %v1516, %v1512
    %v1881 = vpack.c.b16 %v1517, %v1513
    %v1882 = vpack.c.b16 %v1518, %v1514
    %v1883 = vpack.c.b16 %v1519, %v1515
    %v1884 = vpack.c.b16 %v1524, %v1520
    %v1885 = vpack.c.b16 %v1525, %v1521
    %v1886 = vpack.c.b16 %v1526, %v1522
    %v1887 = vpack.c.b16 %v1527, %v1523
    %v1888 = vpack.c.b16 %v1532, %v1528
    %v1889 = vpack.c.b16 %v1533, %v1529
    %v1890 = vpack.c.b16 %v1534, %v1530
    %v1891 = vpack.c.b16 %v1535, %v1531
    %v1892 = vpack.c.b16 %v1540, %v1536
    %v1893 = vpack.c.b16 %v1541, %v1537
    %v1894 = vpack.c.b16 %v1542, %v1538
    %v1895 = vpack.c.b16 %v1543, %v1539
    %v1896 = vpack.c.b16 %v1548, %v1544
    %v1897 = vpack.c.b16 %v1549, %v1545
    %v1898 = vpack.c.b16 %v1550, %v1546
    %v1899 = vpack.c.b16 %v1551, %v1547
    %v1900 = vpack.c.b16 %v1556, %v1552
    %v1901 = vpack.c.b16 %v1557, %v1553
    %v1902 = vpack.c.b16 %v1558, %v1554
    %v1903 = vpack.c.b16 %v1559, %v1555
    %v1904 = vpack.c.b16 %v1564, %v1560
    %v1905 = vpack.c.b16 %v1565, %v1561
    %v1906 = vpack.c.b16 %v1566, %v1562
    %v1907 = vpack.c.b16 %v1567, %v1563
    %v1908 = vpack.c.b16 %v1572, %v1568
    %v1909 = vpack.c.b16 %v1573, %v1569
    %v1910 = vpack.c.b16 %v1574, %v1570
    %v1911 = vpack.c.b16 %v1575, %v1571
    %v1912 = vpack.c.b16 %v1580, %v1576
    %v1913 = vpack.c.b16 %v1581, %v1577
    %v1914 = vpack.c.b16 %v1582, %v1578
    %v1915 = vpack.c.b16 %v1583, %v1579
    %v1916 = vpack.c.b16 %v1588, %v1584
    %v1917 = vpack.c.b16 %v1589, %v1585
    %v1918 = vpack.c.b16 %v1590, %v1586
    %v1919 = vpack.c.b16 %v1591, %v1587
    %v1920 = vpack.c.b16 %v1596, %v1592
    %v1921 = vpack.c.b16 %v1597, %v1593
    %v1922 = vpack.c.b16 %v1598, %v1594
    %v1923 = vpack.c.b16 %v1599, %v1595
    %v1924 = vpack.c.b16 %v1604, %v1600
    %v1925 = vpack.c.b16 %v1605, %v1601
    %v1926 = vpack.c.b16 %v1606, %v1602
    %v1927 = vpack.c.b16 %v1607, %v1603
    %v1928 = vpack.c.b16 %v1612, %v1608
    %v1929 = vpack.c.b16 %v1613, %v1609
    %v1930 = vpack.c.b16 %v1614, %v1610
    %v1931 = vpack.c.b16 %v1615, %v1611
    %v1932 = vpack.c.b16 %v1620, %v1616
    %v1933 = vpack.c.b16 %v1621, %v1617
    %v1934 = vpack.c.b16 %v1622, %v1618
    %v1935 = vpack.c.b16 %v1623, %v1619
    %v1936 = vpack.c.b16 %v1628, %v1624
    %v1937 = vpack.c.b16 %v1629, %v1625
    %v1938 = vpack.c.b16 %v1630, %v1626
    %v1939 = vpack.c.b16 %v1631, %v1627
    %v1940 = vpack.c.b16 %v1636, %v1632
    %v1941 = vpack.c.b16 %v1637, %v1633
    %v1942 = vpack.c.b16 %v1638, %v1634
    %v1943 = vpack.c.b16 %v1639, %v1635
    %v1944 = vpack.c.b16 %v1644, %v1640
    %v1945 = vpack.c.b16 %v1645, %v1641
    %v1946 = vpack.c.b16 %v1646, %v1642
    %v1947 = vpack.c.b16 %v1647, %v1643
    %v1948 = vpack.c.b16 %v1652, %v1648
    %v1949 = vpack.c.b16 %v1653, %v1649
    %v1950 = vpack.c.b16 %v1654, %v1650
    %v1951 = vpack.c.b16 %v1655, %v1651
    %v1952 = vpack.c.b16 %v1660, %v1656
    %v1953 = vpack.c.b16 %v1661, %v1657
    %v1954 = vpack.c.b16 %v1662, %v1658
    %v1955 = vpack.c.b16 %v1663, %v1659
    %v1956 = vpack.c.b16 %v1668, %v1664
    %v1957 = vpack.c.b16 %v1669, %v1665
    %v1958 = vpack.c.b16 %v1670, %v1666
    %v1959 = vpack.c.b16 %v1671, %v1667
    %v1960 = vpack.c.b16 %v1676, %v1672
    %v1961 = vpack.c.b16 %v1677, %v1673
    %v1962 = vpack.c.b16 %v1678, %v1674
    %v1963 = vpack.c.b16 %v1679, %v1675
    %v1964 = vpack.c.b16 %v1684, %v1680
    %v1965 = vpack.c.b16 %v1685, %v1681
    %v1966 = vpack.c.b16 %v1686, %v1682
    %v1967 = vpack.c.b16 %v1687, %v1683
    %v1968 = vpack.c.b16 %v1692, %v1688
    %v1969 = vpack.c.b16 %v1693, %v1689
    %v1970 = vpack.c.b16 %v1694, %v1690
    %v1971 = vpack.c.b16 %v1695, %v1691
    %v1972 = vpack.c.b16 %v1700, %v1696
    %v1973 = vpack.c.b16 %v1701, %v1697
    %v1974 = vpack.c.b16 %v1702, %v1698
    %v1975 = vpack.c.b16 %v1703, %v1699
    %v1976 = vpack.c.b16 %v1708, %v1704
    %v1977 = vpack.c.b16 %v1709, %v1705
    %v1978 = vpack.c.b16 %v1710, %v1706
    %v1979 = vpack.c.b16 %v1711, %v1707
    %v1980 = vpack.c.b16 %v1716, %v1712
    %v1981 = vpack.c.b16 %v1717, %v1713
    %v1982 = vpack.c.b16 %v1718, %v1714
    %v1983 = vpack.c.b16 %v1719, %v1715
    %v1984 = vpack.c.b16 %v1724, %v1720
    %v1985 = vpack.c.b16 %v1725, %v1721
    %v1986 = vpack.c.b16 %v1726, %v1722
    %v1987 = vpack.c.b16 %v1727, %v1723
    %v1988 = vpack.c.b16 %v1732, %v1728
    %v1989 = vpack.c.b16 %v1733, %v1729
    %v1990 = vpack.c.b16 %v1734, %v1730
    %v1991 = vpack.c.b16 %v1735, %v1731
    %2248 = vmatpush.bf16.msra.mxu0 %v1764
    %2249 = vmatpush.bf16.msra.mxu0 %v1760
    %2250 = vmatpush.bf16.msra.mxu0 %v1756
    %2251 = vmatpush.bf16.msra.mxu0 %v1752
    %2252 = vmatpush.bf16.msra.mxu0 %v1748
    %2253 = vmatpush.bf16.msra.mxu0 %v1744
    %2254 = vmatpush.bf16.msra.mxu0 %v1740
    %2255 = vmatpush.bf16.msra.mxu0 %v1736
    %2256 = vmatmul.bf16.gmra.mxu0 %v694
    %v2257 = vpop.f32.mrf.mxu0
    %v2258 = vadd.f32 %v960, %v2257
    %v2259 = vpop.f32.mrf.mxu0
    %2260 = vdwg.mxu0
    %2261 = vmatpush.bf16.msra.mxu0 %v1796
    %2262 = vmatpush.bf16.msra.mxu0 %v1792
    %2263 = vmatpush.bf16.msra.mxu0 %v1788
    %2264 = vmatpush.bf16.msra.mxu0 %v1784
    %2265 = vmatpush.bf16.msra.mxu0 %v1780
    %2266 = vmatpush.bf16.msra.mxu0 %v1776
    %2267 = vmatpush.bf16.msra.mxu0 %v1772
    %2268 = vmatpush.bf16.msra.mxu0 %v1768
    %2269 = vmatmul.bf16.gmra.mxu0 %v695
    %v2270 = vpop.f32.mrf.mxu0
    %v2271 = vadd.f32 %v2258, %v2270
    %v2272 = vpop.f32.mrf.mxu0
    %2273 = vdwg.mxu0
    %2274 = vmatpush.bf16.msra.mxu0 %v1828
    %2275 = vmatpush.bf16.msra.mxu0 %v1824
    %2276 = vmatpush.bf16.msra.mxu0 %v1820
    %2277 = vmatpush.bf16.msra.mxu0 %v1816
    %2278 = vmatpush.bf16.msra.mxu0 %v1812
    %2279 = vmatpush.bf16.msra.mxu0 %v1808
    %2280 = vmatpush.bf16.msra.mxu0 %v1804
    %2281 = vmatpush.bf16.msra.mxu0 %v1800
    %2282 = vmatmul.bf16.gmra.mxu0 %v696
    %v2283 = vpop.f32.mrf.mxu0
    %v2284 = vadd.f32 %v2271, %v2283
    %v2285 = vpop.f32.mrf.mxu0
    %2286 = vdwg.mxu0
    %2287 = vmatpush.bf16.msra.mxu0 %v1860
    %2288 = vmatpush.bf16.msra.mxu0 %v1856
    %2289 = vmatpush.bf16.msra.mxu0 %v1852
    %2290 = vmatpush.bf16.msra.mxu0 %v1848
    %2291 = vmatpush.bf16.msra.mxu0 %v1844
    %2292 = vmatpush.bf16.msra.mxu0 %v1840
    %2293 = vmatpush.bf16.msra.mxu0 %v1836
    %2294 = vmatpush.bf16.msra.mxu0 %v1832
    %2295 = vmatmul.bf16.gmra.mxu0 %v697
    %v2296 = vpop.f32.mrf.mxu0
    %v2297 = vadd.f32 %v2284, %v2296
    %v2298 = vpop.f32.mrf.mxu0
    %2299 = vdwg.mxu0
    %2300 = vmatpush.bf16.msra.mxu0 %v1892
    %2301 = vmatpush.bf16.msra.mxu0 %v1888
    %2302 = vmatpush.bf16.msra.mxu0 %v1884
    %2303 = vmatpush.bf16.msra.mxu0 %v1880
    %2304 = vmatpush.bf16.msra.mxu0 %v1876
    %2305 = vmatpush.bf16.msra.mxu0 %v1872
    %2306 = vmatpush.bf16.msra.mxu0 %v1868
    %2307 = vmatpush.bf16.msra.mxu0 %v1864
    %2308 = vmatmul.bf16.gmra.mxu0 %v698
    %v2309 = vpop.f32.mrf.mxu0
    %v2310 = vadd.f32 %v2297, %v2309
    %v2311 = vpop.f32.mrf.mxu0
    %2312 = vdwg.mxu0
    %2313 = vmatpush.bf16.msra.mxu0 %v1924
    %2314 = vmatpush.bf16.msra.mxu0 %v1920
    %2315 = vmatpush.bf16.msra.mxu0 %v1916
    %2316 = vmatpush.bf16.msra.mxu0 %v1912
    %2317 = vmatpush.bf16.msra.mxu0 %v1908
    %2318 = vmatpush.bf16.msra.mxu0 %v1904
    %2319 = vmatpush.bf16.msra.mxu0 %v1900
    %2320 = vmatpush.bf16.msra.mxu0 %v1896
    %2321 = vmatmul.bf16.gmra.mxu0 %v699
    %v2322 = vpop.f32.mrf.mxu0
    %v2323 = vadd.f32 %v2310, %v2322
    %v2324 = vpop.f32.mrf.mxu0
    %2325 = vdwg.mxu0
    %2326 = vmatpush.bf16.msra.mxu0 %v1956
    %2327 = vmatpush.bf16.msra.mxu0 %v1952
    %2328 = vmatpush.bf16.msra.mxu0 %v1948
    %2329 = vmatpush.bf16.msra.mxu0 %v1944
    %2330 = vmatpush.bf16.msra.mxu0 %v1940
    %2331 = vmatpush.bf16.msra.mxu0 %v1936
    %2332 = vmatpush.bf16.msra.mxu0 %v1932
    %2333 = vmatpush.bf16.msra.mxu0 %v1928
    %2334 = vmatmul.bf16.gmra.mxu0 %v700
    %v2335 = vpop.f32.mrf.mxu0
    %v2336 = vadd.f32 %v2323, %v2335
    %v2337 = vpop.f32.mrf.mxu0
    %2338 = vdwg.mxu0
    %2339 = vmatpush.bf16.msra.mxu0 %v1988
    %2340 = vmatpush.bf16.msra.mxu0 %v1984
    %2341 = vmatpush.bf16.msra.mxu0 %v1980
    %2342 = vmatpush.bf16.msra.mxu0 %v1976
    %2343 = vmatpush.bf16.msra.mxu0 %v1972
    %2344 = vmatpush.bf16.msra.mxu0 %v1968
    %2345 = vmatpush.bf16.msra.mxu0 %v1964
    %2346 = vmatpush.bf16.msra.mxu0 %v1960
    %2347 = vmatmul.bf16.gmra.mxu0 %v701
    %v2348 = vpop.f32.mrf.mxu0
    %v2349 = vadd.f32 %v2336, %v2348
    %v2350 = vpop.f32.mrf.mxu0
    %2351 = vdwg.mxu0
    %2352 = vmatpush.bf16.msra.mxu0 %v1765
    %2353 = vmatpush.bf16.msra.mxu0 %v1761
    %2354 = vmatpush.bf16.msra.mxu0 %v1757
    %2355 = vmatpush.bf16.msra.mxu0 %v1753
    %2356 = vmatpush.bf16.msra.mxu0 %v1749
    %2357 = vmatpush.bf16.msra.mxu0 %v1745
    %2358 = vmatpush.bf16.msra.mxu0 %v1741
    %2359 = vmatpush.bf16.msra.mxu0 %v1737
    %2360 = vmatmul.bf16.gmra.mxu0 %v694
    %v2361 = vpop.f32.mrf.mxu0
    %v2362 = vadd.f32 %v961, %v2361
    %v2363 = vpop.f32.mrf.mxu0
    %2364 = vdwg.mxu0
    %2365 = vmatpush.bf16.msra.mxu0 %v1797
    %2366 = vmatpush.bf16.msra.mxu0 %v1793
    %2367 = vmatpush.bf16.msra.mxu0 %v1789
    %2368 = vmatpush.bf16.msra.mxu0 %v1785
    %2369 = vmatpush.bf16.msra.mxu0 %v1781
    %2370 = vmatpush.bf16.msra.mxu0 %v1777
    %2371 = vmatpush.bf16.msra.mxu0 %v1773
    %2372 = vmatpush.bf16.msra.mxu0 %v1769
    %2373 = vmatmul.bf16.gmra.mxu0 %v695
    %v2374 = vpop.f32.mrf.mxu0
    %v2375 = vadd.f32 %v2362, %v2374
    %v2376 = vpop.f32.mrf.mxu0
    %2377 = vdwg.mxu0
    %2378 = vmatpush.bf16.msra.mxu0 %v1829
    %2379 = vmatpush.bf16.msra.mxu0 %v1825
    %2380 = vmatpush.bf16.msra.mxu0 %v1821
    %2381 = vmatpush.bf16.msra.mxu0 %v1817
    %2382 = vmatpush.bf16.msra.mxu0 %v1813
    %2383 = vmatpush.bf16.msra.mxu0 %v1809
    %2384 = vmatpush.bf16.msra.mxu0 %v1805
    %2385 = vmatpush.bf16.msra.mxu0 %v1801
    %2386 = vmatmul.bf16.gmra.mxu0 %v696
    %v2387 = vpop.f32.mrf.mxu0
    %v2388 = vadd.f32 %v2375, %v2387
    %v2389 = vpop.f32.mrf.mxu0
    %2390 = vdwg.mxu0
    %2391 = vmatpush.bf16.msra.mxu0 %v1861
    %2392 = vmatpush.bf16.msra.mxu0 %v1857
    %2393 = vmatpush.bf16.msra.mxu0 %v1853
    %2394 = vmatpush.bf16.msra.mxu0 %v1849
    %2395 = vmatpush.bf16.msra.mxu0 %v1845
    %2396 = vmatpush.bf16.msra.mxu0 %v1841
    %2397 = vmatpush.bf16.msra.mxu0 %v1837
    %2398 = vmatpush.bf16.msra.mxu0 %v1833
    %2399 = vmatmul.bf16.gmra.mxu0 %v697
    %v2400 = vpop.f32.mrf.mxu0
    %v2401 = vadd.f32 %v2388, %v2400
    %v2402 = vpop.f32.mrf.mxu0
    %2403 = vdwg.mxu0
    %2404 = vmatpush.bf16.msra.mxu0 %v1893
    %2405 = vmatpush.bf16.msra.mxu0 %v1889
    %2406 = vmatpush.bf16.msra.mxu0 %v1885
    %2407 = vmatpush.bf16.msra.mxu0 %v1881
    %2408 = vmatpush.bf16.msra.mxu0 %v1877
    %2409 = vmatpush.bf16.msra.mxu0 %v1873
    %2410 = vmatpush.bf16.msra.mxu0 %v1869
    %2411 = vmatpush.bf16.msra.mxu0 %v1865
    %2412 = vmatmul.bf16.gmra.mxu0 %v698
    %v2413 = vpop.f32.mrf.mxu0
    %v2414 = vadd.f32 %v2401, %v2413
    %v2415 = vpop.f32.mrf.mxu0
    %2416 = vdwg.mxu0
    %2417 = vmatpush.bf16.msra.mxu0 %v1925
    %2418 = vmatpush.bf16.msra.mxu0 %v1921
    %2419 = vmatpush.bf16.msra.mxu0 %v1917
    %2420 = vmatpush.bf16.msra.mxu0 %v1913
    %2421 = vmatpush.bf16.msra.mxu0 %v1909
    %2422 = vmatpush.bf16.msra.mxu0 %v1905
    %2423 = vmatpush.bf16.msra.mxu0 %v1901
    %2424 = vmatpush.bf16.msra.mxu0 %v1897
    %2425 = vmatmul.bf16.gmra.mxu0 %v699
    %v2426 = vpop.f32.mrf.mxu0
    %v2427 = vadd.f32 %v2414, %v2426
    %v2428 = vpop.f32.mrf.mxu0
    %2429 = vdwg.mxu0
    %2430 = vmatpush.bf16.msra.mxu0 %v1957
    %2431 = vmatpush.bf16.msra.mxu0 %v1953
    %2432 = vmatpush.bf16.msra.mxu0 %v1949
    %2433 = vmatpush.bf16.msra.mxu0 %v1945
    %2434 = vmatpush.bf16.msra.mxu0 %v1941
    %2435 = vmatpush.bf16.msra.mxu0 %v1937
    %2436 = vmatpush.bf16.msra.mxu0 %v1933
    %2437 = vmatpush.bf16.msra.mxu0 %v1929
    %2438 = vmatmul.bf16.gmra.mxu0 %v700
    %v2439 = vpop.f32.mrf.mxu0
    %v2440 = vadd.f32 %v2427, %v2439
    %v2441 = vpop.f32.mrf.mxu0
    %2442 = vdwg.mxu0
    %2443 = vmatpush.bf16.msra.mxu0 %v1989
    %2444 = vmatpush.bf16.msra.mxu0 %v1985
    %2445 = vmatpush.bf16.msra.mxu0 %v1981
    %2446 = vmatpush.bf16.msra.mxu0 %v1977
    %2447 = vmatpush.bf16.msra.mxu0 %v1973
    %2448 = vmatpush.bf16.msra.mxu0 %v1969
    %2449 = vmatpush.bf16.msra.mxu0 %v1965
    %2450 = vmatpush.bf16.msra.mxu0 %v1961
    %2451 = vmatmul.bf16.gmra.mxu0 %v701
    %v2452 = vpop.f32.mrf.mxu0
    %v2453 = vadd.f32 %v2440, %v2452
    %v2454 = vpop.f32.mrf.mxu0
    %2455 = vdwg.mxu0
    %2456 = vmatpush.bf16.msra.mxu0 %v1766
    %2457 = vmatpush.bf16.msra.mxu0 %v1762
    %2458 = vmatpush.bf16.msra.mxu0 %v1758
    %2459 = vmatpush.bf16.msra.mxu0 %v1754
    %2460 = vmatpush.bf16.msra.mxu0 %v1750
    %2461 = vmatpush.bf16.msra.mxu0 %v1746
    %2462 = vmatpush.bf16.msra.mxu0 %v1742
    %2463 = vmatpush.bf16.msra.mxu0 %v1738
    %2464 = vmatmul.bf16.gmra.mxu0 %v694
    %v2465 = vpop.f32.mrf.mxu0
    %v2466 = vadd.f32 %v962, %v2465
    %v2467 = vpop.f32.mrf.mxu0
    %2468 = vdwg.mxu0
    %2469 = vmatpush.bf16.msra.mxu0 %v1798
    %2470 = vmatpush.bf16.msra.mxu0 %v1794
    %2471 = vmatpush.bf16.msra.mxu0 %v1790
    %2472 = vmatpush.bf16.msra.mxu0 %v1786
    %2473 = vmatpush.bf16.msra.mxu0 %v1782
    %2474 = vmatpush.bf16.msra.mxu0 %v1778
    %2475 = vmatpush.bf16.msra.mxu0 %v1774
    %2476 = vmatpush.bf16.msra.mxu0 %v1770
    %2477 = vmatmul.bf16.gmra.mxu0 %v695
    %v2478 = vpop.f32.mrf.mxu0
    %v2479 = vadd.f32 %v2466, %v2478
    %v2480 = vpop.f32.mrf.mxu0
    %2481 = vdwg.mxu0
    %2482 = vmatpush.bf16.msra.mxu0 %v1830
    %2483 = vmatpush.bf16.msra.mxu0 %v1826
    %2484 = vmatpush.bf16.msra.mxu0 %v1822
    %2485 = vmatpush.bf16.msra.mxu0 %v1818
    %2486 = vmatpush.bf16.msra.mxu0 %v1814
    %2487 = vmatpush.bf16.msra.mxu0 %v1810
    %2488 = vmatpush.bf16.msra.mxu0 %v1806
    %2489 = vmatpush.bf16.msra.mxu0 %v1802
    %2490 = vmatmul.bf16.gmra.mxu0 %v696
    %v2491 = vpop.f32.mrf.mxu0
    %v2492 = vadd.f32 %v2479, %v2491
    %v2493 = vpop.f32.mrf.mxu0
    %2494 = vdwg.mxu0
    %2495 = vmatpush.bf16.msra.mxu0 %v1862
    %2496 = vmatpush.bf16.msra.mxu0 %v1858
    %2497 = vmatpush.bf16.msra.mxu0 %v1854
    %2498 = vmatpush.bf16.msra.mxu0 %v1850
    %2499 = vmatpush.bf16.msra.mxu0 %v1846
    %2500 = vmatpush.bf16.msra.mxu0 %v1842
    %2501 = vmatpush.bf16.msra.mxu0 %v1838
    %2502 = vmatpush.bf16.msra.mxu0 %v1834
    %2503 = vmatmul.bf16.gmra.mxu0 %v697
    %v2504 = vpop.f32.mrf.mxu0
    %v2505 = vadd.f32 %v2492, %v2504
    %v2506 = vpop.f32.mrf.mxu0
    %2507 = vdwg.mxu0
    %2508 = vmatpush.bf16.msra.mxu0 %v1894
    %2509 = vmatpush.bf16.msra.mxu0 %v1890
    %2510 = vmatpush.bf16.msra.mxu0 %v1886
    %2511 = vmatpush.bf16.msra.mxu0 %v1882
    %2512 = vmatpush.bf16.msra.mxu0 %v1878
    %2513 = vmatpush.bf16.msra.mxu0 %v1874
    %2514 = vmatpush.bf16.msra.mxu0 %v1870
    %2515 = vmatpush.bf16.msra.mxu0 %v1866
    %2516 = vmatmul.bf16.gmra.mxu0 %v698
    %v2517 = vpop.f32.mrf.mxu0
    %v2518 = vadd.f32 %v2505, %v2517
    %v2519 = vpop.f32.mrf.mxu0
    %2520 = vdwg.mxu0
    %2521 = vmatpush.bf16.msra.mxu0 %v1926
    %2522 = vmatpush.bf16.msra.mxu0 %v1922
    %2523 = vmatpush.bf16.msra.mxu0 %v1918
    %2524 = vmatpush.bf16.msra.mxu0 %v1914
    %2525 = vmatpush.bf16.msra.mxu0 %v1910
    %2526 = vmatpush.bf16.msra.mxu0 %v1906
    %2527 = vmatpush.bf16.msra.mxu0 %v1902
    %2528 = vmatpush.bf16.msra.mxu0 %v1898
    %2529 = vmatmul.bf16.gmra.mxu0 %v699
    %v2530 = vpop.f32.mrf.mxu0
    %v2531 = vadd.f32 %v2518, %v2530
    %v2532 = vpop.f32.mrf.mxu0
    %2533 = vdwg.mxu0
    %2534 = vmatpush.bf16.msra.mxu0 %v1958
    %2535 = vmatpush.bf16.msra.mxu0 %v1954
    %2536 = vmatpush.bf16.msra.mxu0 %v1950
    %2537 = vmatpush.bf16.msra.mxu0 %v1946
    %2538 = vmatpush.bf16.msra.mxu0 %v1942
    %2539 = vmatpush.bf16.msra.mxu0 %v1938
    %2540 = vmatpush.bf16.msra.mxu0 %v1934
    %2541 = vmatpush.bf16.msra.mxu0 %v1930
    %2542 = vmatmul.bf16.gmra.mxu0 %v700
    %v2543 = vpop.f32.mrf.mxu0
    %v2544 = vadd.f32 %v2531, %v2543
    %v2545 = vpop.f32.mrf.mxu0
    %2546 = vdwg.mxu0
    %2547 = vmatpush.bf16.msra.mxu0 %v1990
    %2548 = vmatpush.bf16.msra.mxu0 %v1986
    %2549 = vmatpush.bf16.msra.mxu0 %v1982
    %2550 = vmatpush.bf16.msra.mxu0 %v1978
    %2551 = vmatpush.bf16.msra.mxu0 %v1974
    %2552 = vmatpush.bf16.msra.mxu0 %v1970
    %2553 = vmatpush.bf16.msra.mxu0 %v1966
    %2554 = vmatpush.bf16.msra.mxu0 %v1962
    %2555 = vmatmul.bf16.gmra.mxu0 %v701
    %v2556 = vpop.f32.mrf.mxu0
    %v2557 = vadd.f32 %v2544, %v2556
    %v2558 = vpop.f32.mrf.mxu0
    %2559 = vdwg.mxu0
    %2560 = vmatpush.bf16.msra.mxu0 %v1767
    %2561 = vmatpush.bf16.msra.mxu0 %v1763
    %2562 = vmatpush.bf16.msra.mxu0 %v1759
    %2563 = vmatpush.bf16.msra.mxu0 %v1755
    %2564 = vmatpush.bf16.msra.mxu0 %v1751
    %2565 = vmatpush.bf16.msra.mxu0 %v1747
    %2566 = vmatpush.bf16.msra.mxu0 %v1743
    %2567 = vmatpush.bf16.msra.mxu0 %v1739
    %2568 = vmatmul.bf16.gmra.mxu0 %v694
    %v2569 = vpop.f32.mrf.mxu0
    %v2570 = vadd.f32 %v963, %v2569
    %v2571 = vpop.f32.mrf.mxu0
    %2572 = vdwg.mxu0
    %2573 = vmatpush.bf16.msra.mxu0 %v1799
    %2574 = vmatpush.bf16.msra.mxu0 %v1795
    %2575 = vmatpush.bf16.msra.mxu0 %v1791
    %2576 = vmatpush.bf16.msra.mxu0 %v1787
    %2577 = vmatpush.bf16.msra.mxu0 %v1783
    %2578 = vmatpush.bf16.msra.mxu0 %v1779
    %2579 = vmatpush.bf16.msra.mxu0 %v1775
    %2580 = vmatpush.bf16.msra.mxu0 %v1771
    %2581 = vmatmul.bf16.gmra.mxu0 %v695
    %v2582 = vpop.f32.mrf.mxu0
    %v2583 = vadd.f32 %v2570, %v2582
    %v2584 = vpop.f32.mrf.mxu0
    %2585 = vdwg.mxu0
    %2586 = vmatpush.bf16.msra.mxu0 %v1831
    %2587 = vmatpush.bf16.msra.mxu0 %v1827
    %2588 = vmatpush.bf16.msra.mxu0 %v1823
    %2589 = vmatpush.bf16.msra.mxu0 %v1819
    %2590 = vmatpush.bf16.msra.mxu0 %v1815
    %2591 = vmatpush.bf16.msra.mxu0 %v1811
    %2592 = vmatpush.bf16.msra.mxu0 %v1807
    %2593 = vmatpush.bf16.msra.mxu0 %v1803
    %2594 = vmatmul.bf16.gmra.mxu0 %v696
    %v2595 = vpop.f32.mrf.mxu0
    %v2596 = vadd.f32 %v2583, %v2595
    %v2597 = vpop.f32.mrf.mxu0
    %2598 = vdwg.mxu0
    %2599 = vmatpush.bf16.msra.mxu0 %v1863
    %2600 = vmatpush.bf16.msra.mxu0 %v1859
    %2601 = vmatpush.bf16.msra.mxu0 %v1855
    %2602 = vmatpush.bf16.msra.mxu0 %v1851
    %2603 = vmatpush.bf16.msra.mxu0 %v1847
    %2604 = vmatpush.bf16.msra.mxu0 %v1843
    %2605 = vmatpush.bf16.msra.mxu0 %v1839
    %2606 = vmatpush.bf16.msra.mxu0 %v1835
    %2607 = vmatmul.bf16.gmra.mxu0 %v697
    %v2608 = vpop.f32.mrf.mxu0
    %v2609 = vadd.f32 %v2596, %v2608
    %v2610 = vpop.f32.mrf.mxu0
    %2611 = vdwg.mxu0
    %2612 = vmatpush.bf16.msra.mxu0 %v1895
    %2613 = vmatpush.bf16.msra.mxu0 %v1891
    %2614 = vmatpush.bf16.msra.mxu0 %v1887
    %2615 = vmatpush.bf16.msra.mxu0 %v1883
    %2616 = vmatpush.bf16.msra.mxu0 %v1879
    %2617 = vmatpush.bf16.msra.mxu0 %v1875
    %2618 = vmatpush.bf16.msra.mxu0 %v1871
    %2619 = vmatpush.bf16.msra.mxu0 %v1867
    %2620 = vmatmul.bf16.gmra.mxu0 %v698
    %v2621 = vpop.f32.mrf.mxu0
    %v2622 = vadd.f32 %v2609, %v2621
    %v2623 = vpop.f32.mrf.mxu0
    %2624 = vdwg.mxu0
    %2625 = vmatpush.bf16.msra.mxu0 %v1927
    %2626 = vmatpush.bf16.msra.mxu0 %v1923
    %2627 = vmatpush.bf16.msra.mxu0 %v1919
    %2628 = vmatpush.bf16.msra.mxu0 %v1915
    %2629 = vmatpush.bf16.msra.mxu0 %v1911
    %2630 = vmatpush.bf16.msra.mxu0 %v1907
    %2631 = vmatpush.bf16.msra.mxu0 %v1903
    %2632 = vmatpush.bf16.msra.mxu0 %v1899
    %2633 = vmatmul.bf16.gmra.mxu0 %v699
    %v2634 = vpop.f32.mrf.mxu0
    %v2635 = vadd.f32 %v2622, %v2634
    %v2636 = vpop.f32.mrf.mxu0
    %2637 = vdwg.mxu0
    %2638 = vmatpush.bf16.msra.mxu0 %v1959
    %2639 = vmatpush.bf16.msra.mxu0 %v1955
    %2640 = vmatpush.bf16.msra.mxu0 %v1951
    %2641 = vmatpush.bf16.msra.mxu0 %v1947
    %2642 = vmatpush.bf16.msra.mxu0 %v1943
    %2643 = vmatpush.bf16.msra.mxu0 %v1939
    %2644 = vmatpush.bf16.msra.mxu0 %v1935
    %2645 = vmatpush.bf16.msra.mxu0 %v1931
    %2646 = vmatmul.bf16.gmra.mxu0 %v700
    %v2647 = vpop.f32.mrf.mxu0
    %v2648 = vadd.f32 %v2635, %v2647
    %v2649 = vpop.f32.mrf.mxu0
    %2650 = vdwg.mxu0
    %2651 = vmatpush.bf16.msra.mxu0 %v1991
    %2652 = vmatpush.bf16.msra.mxu0 %v1987
    %2653 = vmatpush.bf16.msra.mxu0 %v1983
    %2654 = vmatpush.bf16.msra.mxu0 %v1979
    %2655 = vmatpush.bf16.msra.mxu0 %v1975
    %2656 = vmatpush.bf16.msra.mxu0 %v1971
    %2657 = vmatpush.bf16.msra.mxu0 %v1967
    %2658 = vmatpush.bf16.msra.mxu0 %v1963
    %2659 = vmatmul.bf16.gmra.mxu0 %v701
    %v2660 = vpop.f32.mrf.mxu0
    %v2661 = vadd.f32 %v2648, %v2660
    %v2662 = vpop.f32.mrf.mxu0
    %2663 = vdwg.mxu0
    %v2664 = vmul.f32 %v2349, 0.2
    %v2665 = vmul.f32 %v2453, 0.2
    %v2666 = vmul.f32 %v2557, 0.2
    %v2667 = vmul.f32 %v2661, 0.2
    %v2668 = vmax.f32 %v2349, %v2664
    %v2669 = vmax.f32 %v2453, %v2665
    %v2670 = vmax.f32 %v2557, %v2666
    %v2671 = vmax.f32 %v2661, %v2667
    %v2672 = vpack.c.bf16 %v2668, %v2668
    %v2673 = vpack.c.bf16 %v2669, %v2669
    %v2674 = vpack.c.bf16 %v2670, %v2670
    %v2675 = vpack.c.bf16 %v2671, %v2671
    %v2676 = vld [vmem:[#allocation11] sm:$0xff]
    %v2677 = vld [vmem:[#allocation11 + $0x8] sm:$0xff]
    %v2678 = vld [vmem:[#allocation11 + $0x10] sm:$0xff]
    %v2679 = vld [vmem:[#allocation11 + $0x18] sm:$0xff]
    %v2680 = vld [vmem:[#allocation11 + $0x20] sm:$0xff]
    %v2681 = vld [vmem:[#allocation11 + $0x28] sm:$0xff]
    %v2682 = vld [vmem:[#allocation11 + $0x30] sm:$0xff]
    %v2683 = vld [vmem:[#allocation11 + $0x38] sm:$0xff]
    %v2684 = vld [vmem:[#allocation11 + $0x40] sm:$0xff]
    %v2685 = vld [vmem:[#allocation11 + $0x48] sm:$0xff]
    %v2686 = vld [vmem:[#allocation11 + $0x50] sm:$0xff]
    %v2687 = vld [vmem:[#allocation11 + $0x58] sm:$0xff]
    %v2688 = vld [vmem:[#allocation11 + $0x60] sm:$0xff]
    %v2689 = vld [vmem:[#allocation11 + $0x68] sm:$0xff]
    %v2690 = vld [vmem:[#allocation11 + $0x70] sm:$0xff]
    %v2691 = vld [vmem:[#allocation11 + $0x78] sm:$0xff]
    %v2692 = vld [vmem:[#allocation11 + $0x80] sm:$0xff]
    %v2693 = vld [vmem:[#allocation11 + $0x88] sm:$0xff]
    %v2694 = vld [vmem:[#allocation11 + $0x90] sm:$0xff]
    %v2695 = vld [vmem:[#allocation11 + $0x98] sm:$0xff]
    %v2696 = vld [vmem:[#allocation11 + $0xa0] sm:$0xff]
    %v2697 = vld [vmem:[#allocation11 + $0xa8] sm:$0xff]
    %v2698 = vld [vmem:[#allocation11 + $0xb0] sm:$0xff]
    %v2699 = vld [vmem:[#allocation11 + $0xb8] sm:$0xff]
    %v2700 = vld [vmem:[#allocation11 + $0xc0] sm:$0xff]
    %v2701 = vld [vmem:[#allocation11 + $0xc8] sm:$0xff]
    %v2702 = vld [vmem:[#allocation11 + $0xd0] sm:$0xff]
    %v2703 = vld [vmem:[#allocation11 + $0xd8] sm:$0xff]
    %v2704 = vld [vmem:[#allocation11 + $0xe0] sm:$0xff]
    %v2705 = vld [vmem:[#allocation11 + $0xe8] sm:$0xff]
    %v2706 = vld [vmem:[#allocation11 + $0xf0] sm:$0xff]
    %v2707 = vld [vmem:[#allocation11 + $0xf8] sm:$0xff]
    %v2708 = vld [vmem:[#allocation11 + $0x100] sm:$0xff]
    %v2709 = vld [vmem:[#allocation11 + $0x108] sm:$0xff]
    %v2710 = vld [vmem:[#allocation11 + $0x110] sm:$0xff]
    %v2711 = vld [vmem:[#allocation11 + $0x118] sm:$0xff]
    %v2712 = vld [vmem:[#allocation11 + $0x120] sm:$0xff]
    %v2713 = vld [vmem:[#allocation11 + $0x128] sm:$0xff]
    %v2714 = vld [vmem:[#allocation11 + $0x130] sm:$0xff]
    %v2715 = vld [vmem:[#allocation11 + $0x138] sm:$0xff]
    %v2716 = vld [vmem:[#allocation11 + $0x140] sm:$0xff]
    %v2717 = vld [vmem:[#allocation11 + $0x148] sm:$0xff]
    %v2718 = vld [vmem:[#allocation11 + $0x150] sm:$0xff]
    %v2719 = vld [vmem:[#allocation11 + $0x158] sm:$0xff]
    %v2720 = vld [vmem:[#allocation11 + $0x160] sm:$0xff]
    %v2721 = vld [vmem:[#allocation11 + $0x168] sm:$0xff]
    %v2722 = vld [vmem:[#allocation11 + $0x170] sm:$0xff]
    %v2723 = vld [vmem:[#allocation11 + $0x178] sm:$0xff]
    %v2724 = vld [vmem:[#allocation11 + $0x180] sm:$0xff]
    %v2725 = vld [vmem:[#allocation11 + $0x188] sm:$0xff]
    %v2726 = vld [vmem:[#allocation11 + $0x190] sm:$0xff]
    %v2727 = vld [vmem:[#allocation11 + $0x198] sm:$0xff]
    %v2728 = vld [vmem:[#allocation11 + $0x1a0] sm:$0xff]
    %v2729 = vld [vmem:[#allocation11 + $0x1a8] sm:$0xff]
    %v2730 = vld [vmem:[#allocation11 + $0x1b0] sm:$0xff]
    %v2731 = vld [vmem:[#allocation11 + $0x1b8] sm:$0xff]
    %v2732 = vld [vmem:[#allocation11 + $0x1c0] sm:$0xff]
    %v2733 = vld [vmem:[#allocation11 + $0x1c8] sm:$0xff]
    %v2734 = vld [vmem:[#allocation11 + $0x1d0] sm:$0xff]
    %v2735 = vld [vmem:[#allocation11 + $0x1d8] sm:$0xff]
    %v2736 = vld [vmem:[#allocation11 + $0x1e0] sm:$0xff]
    %v2737 = vld [vmem:[#allocation11 + $0x1e8] sm:$0xff]
    %v2738 = vld [vmem:[#allocation11 + $0x1f0] sm:$0xff]
    %v2739 = vld [vmem:[#allocation11 + $0x1f8] sm:$0xff]
    %v2740 = vld [vmem:[%s6] sm:$0x3]
    %v2742 = vperm.slane %v2740, 0
    %v2743 = vperm.slane %v2740, 1
    %v2810 = vunpack.c.l.b16 %v2676
    %v2811 = vunpack.c.h.b16 %v2676
    %v2812 = vunpack.c.l.b16 %v2677
    %v2813 = vunpack.c.h.b16 %v2677
    %v2814 = vunpack.c.l.b16 %v2678
    %v2815 = vunpack.c.h.b16 %v2678
    %v2816 = vunpack.c.l.b16 %v2679
    %v2817 = vunpack.c.h.b16 %v2679
    %v2818 = vunpack.c.l.b16 %v2680
    %v2819 = vunpack.c.h.b16 %v2680
    %v2820 = vunpack.c.l.b16 %v2681
    %v2821 = vunpack.c.h.b16 %v2681
    %v2822 = vunpack.c.l.b16 %v2682
    %v2823 = vunpack.c.h.b16 %v2682
    %v2824 = vunpack.c.l.b16 %v2683
    %v2825 = vunpack.c.h.b16 %v2683
    %v2826 = vunpack.c.l.b16 %v2684
    %v2827 = vunpack.c.h.b16 %v2684
    %v2828 = vunpack.c.l.b16 %v2685
    %v2829 = vunpack.c.h.b16 %v2685
    %v2830 = vunpack.c.l.b16 %v2686
    %v2831 = vunpack.c.h.b16 %v2686
    %v2832 = vunpack.c.l.b16 %v2687
    %v2833 = vunpack.c.h.b16 %v2687
    %v2834 = vunpack.c.l.b16 %v2688
    %v2835 = vunpack.c.h.b16 %v2688
    %v2836 = vunpack.c.l.b16 %v2689
    %v2837 = vunpack.c.h.b16 %v2689
    %v2838 = vunpack.c.l.b16 %v2690
    %v2839 = vunpack.c.h.b16 %v2690
    %v2840 = vunpack.c.l.b16 %v2691
    %v2841 = vunpack.c.h.b16 %v2691
    %v2842 = vunpack.c.l.b16 %v2692
    %v2843 = vunpack.c.h.b16 %v2692
    %v2844 = vunpack.c.l.b16 %v2693
    %v2845 = vunpack.c.h.b16 %v2693
    %v2846 = vunpack.c.l.b16 %v2694
    %v2847 = vunpack.c.h.b16 %v2694
    %v2848 = vunpack.c.l.b16 %v2695
    %v2849 = vunpack.c.h.b16 %v2695
    %v2850 = vunpack.c.l.b16 %v2696
    %v2851 = vunpack.c.h.b16 %v2696
    %v2852 = vunpack.c.l.b16 %v2697
    %v2853 = vunpack.c.h.b16 %v2697
    %v2854 = vunpack.c.l.b16 %v2698
    %v2855 = vunpack.c.h.b16 %v2698
    %v2856 = vunpack.c.l.b16 %v2699
    %v2857 = vunpack.c.h.b16 %v2699
    %v2858 = vunpack.c.l.b16 %v2700
    %v2859 = vunpack.c.h.b16 %v2700
    %v2860 = vunpack.c.l.b16 %v2701
    %v2861 = vunpack.c.h.b16 %v2701
    %v2862 = vunpack.c.l.b16 %v2702
    %v2863 = vunpack.c.h.b16 %v2702
    %v2864 = vunpack.c.l.b16 %v2703
    %v2865 = vunpack.c.h.b16 %v2703
    %v2866 = vunpack.c.l.b16 %v2704
    %v2867 = vunpack.c.h.b16 %v2704
    %v2868 = vunpack.c.l.b16 %v2705
    %v2869 = vunpack.c.h.b16 %v2705
    %v2870 = vunpack.c.l.b16 %v2706
    %v2871 = vunpack.c.h.b16 %v2706
    %v2872 = vunpack.c.l.b16 %v2707
    %v2873 = vunpack.c.h.b16 %v2707
    %v2874 = vunpack.c.l.b16 %v2708
    %v2875 = vunpack.c.h.b16 %v2708
    %v2876 = vunpack.c.l.b16 %v2709
    %v2877 = vunpack.c.h.b16 %v2709
    %v2878 = vunpack.c.l.b16 %v2710
    %v2879 = vunpack.c.h.b16 %v2710
    %v2880 = vunpack.c.l.b16 %v2711
    %v2881 = vunpack.c.h.b16 %v2711
    %v2882 = vunpack.c.l.b16 %v2712
    %v2883 = vunpack.c.h.b16 %v2712
    %v2884 = vunpack.c.l.b16 %v2713
    %v2885 = vunpack.c.h.b16 %v2713
    %v2886 = vunpack.c.l.b16 %v2714
    %v2887 = vunpack.c.h.b16 %v2714
    %v2888 = vunpack.c.l.b16 %v2715
    %v2889 = vunpack.c.h.b16 %v2715
    %v2890 = vunpack.c.l.b16 %v2716
    %v2891 = vunpack.c.h.b16 %v2716
    %v2892 = vunpack.c.l.b16 %v2717
    %v2893 = vunpack.c.h.b16 %v2717
    %v2894 = vunpack.c.l.b16 %v2718
    %v2895 = vunpack.c.h.b16 %v2718
    %v2896 = vunpack.c.l.b16 %v2719
    %v2897 = vunpack.c.h.b16 %v2719
    %v2898 = vunpack.c.l.b16 %v2720
    %v2899 = vunpack.c.h.b16 %v2720
    %v2900 = vunpack.c.l.b16 %v2721
    %v2901 = vunpack.c.h.b16 %v2721
    %v2902 = vunpack.c.l.b16 %v2722
    %v2903 = vunpack.c.h.b16 %v2722
    %v2904 = vunpack.c.l.b16 %v2723
    %v2905 = vunpack.c.h.b16 %v2723
    %v2906 = vunpack.c.l.b16 %v2724
    %v2907 = vunpack.c.h.b16 %v2724
    %v2908 = vunpack.c.l.b16 %v2725
    %v2909 = vunpack.c.h.b16 %v2725
    %v2910 = vunpack.c.l.b16 %v2726
    %v2911 = vunpack.c.h.b16 %v2726
    %v2912 = vunpack.c.l.b16 %v2727
    %v2913 = vunpack.c.h.b16 %v2727
    %v2914 = vunpack.c.l.b16 %v2728
    %v2915 = vunpack.c.h.b16 %v2728
    %v2916 = vunpack.c.l.b16 %v2729
    %v2917 = vunpack.c.h.b16 %v2729
    %v2918 = vunpack.c.l.b16 %v2730
    %v2919 = vunpack.c.h.b16 %v2730
    %v2920 = vunpack.c.l.b16 %v2731
    %v2921 = vunpack.c.h.b16 %v2731
    %v2922 = vunpack.c.l.b16 %v2732
    %v2923 = vunpack.c.h.b16 %v2732
    %v2924 = vunpack.c.l.b16 %v2733
    %v2925 = vunpack.c.h.b16 %v2733
    %v2926 = vunpack.c.l.b16 %v2734
    %v2927 = vunpack.c.h.b16 %v2734
    %v2928 = vunpack.c.l.b16 %v2735
    %v2929 = vunpack.c.h.b16 %v2735
    %v2930 = vunpack.c.l.b16 %v2736
    %v2931 = vunpack.c.h.b16 %v2736
    %v2932 = vunpack.c.l.b16 %v2737
    %v2933 = vunpack.c.h.b16 %v2737
    %v2934 = vunpack.c.l.b16 %v2738
    %v2935 = vunpack.c.h.b16 %v2738
    %v2936 = vunpack.c.l.b16 %v2739
    %v2937 = vunpack.c.h.b16 %v2739
    %v2938 = vpack.c.b16 %v2812, %v2810
    %v2939 = vpack.c.b16 %v2813, %v2811
    %v2940 = vpack.c.b16 %v2816, %v2814
    %v2941 = vpack.c.b16 %v2817, %v2815
    %v2942 = vpack.c.b16 %v2820, %v2818
    %v2943 = vpack.c.b16 %v2821, %v2819
    %v2944 = vpack.c.b16 %v2824, %v2822
    %v2945 = vpack.c.b16 %v2825, %v2823
    %v2946 = vpack.c.b16 %v2828, %v2826
    %v2947 = vpack.c.b16 %v2829, %v2827
    %v2948 = vpack.c.b16 %v2832, %v2830
    %v2949 = vpack.c.b16 %v2833, %v2831
    %v2950 = vpack.c.b16 %v2836, %v2834
    %v2951 = vpack.c.b16 %v2837, %v2835
    %v2952 = vpack.c.b16 %v2840, %v2838
    %v2953 = vpack.c.b16 %v2841, %v2839
    %v2954 = vpack.c.b16 %v2844, %v2842
    %v2955 = vpack.c.b16 %v2845, %v2843
    %v2956 = vpack.c.b16 %v2848, %v2846
    %v2957 = vpack.c.b16 %v2849, %v2847
    %v2958 = vpack.c.b16 %v2852, %v2850
    %v2959 = vpack.c.b16 %v2853, %v2851
    %v2960 = vpack.c.b16 %v2856, %v2854
    %v2961 = vpack.c.b16 %v2857, %v2855
    %v2962 = vpack.c.b16 %v2860, %v2858
    %v2963 = vpack.c.b16 %v2861, %v2859
    %v2964 = vpack.c.b16 %v2864, %v2862
    %v2965 = vpack.c.b16 %v2865, %v2863
    %v2966 = vpack.c.b16 %v2868, %v2866
    %v2967 = vpack.c.b16 %v2869, %v2867
    %v2968 = vpack.c.b16 %v2872, %v2870
    %v2969 = vpack.c.b16 %v2873, %v2871
    %v2970 = vpack.c.b16 %v2876, %v2874
    %v2971 = vpack.c.b16 %v2877, %v2875
    %v2972 = vpack.c.b16 %v2880, %v2878
    %v2973 = vpack.c.b16 %v2881, %v2879
    %v2974 = vpack.c.b16 %v2884, %v2882
    %v2975 = vpack.c.b16 %v2885, %v2883
    %v2976 = vpack.c.b16 %v2888, %v2886
    %v2977 = vpack.c.b16 %v2889, %v2887
    %v2978 = vpack.c.b16 %v2892, %v2890
    %v2979 = vpack.c.b16 %v2893, %v2891
    %v2980 = vpack.c.b16 %v2896, %v2894
    %v2981 = vpack.c.b16 %v2897, %v2895
    %v2982 = vpack.c.b16 %v2900, %v2898
    %v2983 = vpack.c.b16 %v2901, %v2899
    %v2984 = vpack.c.b16 %v2904, %v2902
    %v2985 = vpack.c.b16 %v2905, %v2903
    %v2986 = vpack.c.b16 %v2908, %v2906
    %v2987 = vpack.c.b16 %v2909, %v2907
    %v2988 = vpack.c.b16 %v2912, %v2910
    %v2989 = vpack.c.b16 %v2913, %v2911
    %v2990 = vpack.c.b16 %v2916, %v2914
    %v2991 = vpack.c.b16 %v2917, %v2915
    %v2992 = vpack.c.b16 %v2920, %v2918
    %v2993 = vpack.c.b16 %v2921, %v2919
    %v2994 = vpack.c.b16 %v2924, %v2922
    %v2995 = vpack.c.b16 %v2925, %v2923
    %v2996 = vpack.c.b16 %v2928, %v2926
    %v2997 = vpack.c.b16 %v2929, %v2927
    %v2998 = vpack.c.b16 %v2932, %v2930
    %v2999 = vpack.c.b16 %v2933, %v2931
    %v3000 = vpack.c.b16 %v2936, %v2934
    %v3001 = vpack.c.b16 %v2937, %v2935
    %3066 = vmatpush.bf16.msra.mxu0 %v2952
    %3067 = vmatpush.bf16.msra.mxu0 %v2950
    %3068 = vmatpush.bf16.msra.mxu0 %v2948
    %3069 = vmatpush.bf16.msra.mxu0 %v2946
    %3070 = vmatpush.bf16.msra.mxu0 %v2944
    %3071 = vmatpush.bf16.msra.mxu0 %v2942
    %3072 = vmatpush.bf16.msra.mxu0 %v2940
    %3073 = vmatpush.bf16.msra.mxu0 %v2938
    %3074 = vmatmul.bf16.gmra.mxu0 %v2672
    %v3075 = vpop.f32.mrf.mxu0
    %v3076 = vadd.f32 %v2742, %v3075
    %v3077 = vpop.f32.mrf.mxu0
    %3078 = vdwg.mxu0
    %3079 = vmatpush.bf16.msra.mxu0 %v2968
    %3080 = vmatpush.bf16.msra.mxu0 %v2966
    %3081 = vmatpush.bf16.msra.mxu0 %v2964
    %3082 = vmatpush.bf16.msra.mxu0 %v2962
    %3083 = vmatpush.bf16.msra.mxu0 %v2960
    %3084 = vmatpush.bf16.msra.mxu0 %v2958
    %3085 = vmatpush.bf16.msra.mxu0 %v2956
    %3086 = vmatpush.bf16.msra.mxu0 %v2954
    %3087 = vmatmul.bf16.gmra.mxu0 %v2673
    %v3088 = vpop.f32.mrf.mxu0
    %v3089 = vadd.f32 %v3076, %v3088
    %v3090 = vpop.f32.mrf.mxu0
    %3091 = vdwg.mxu0
    %3092 = vmatpush.bf16.msra.mxu0 %v2984
    %3093 = vmatpush.bf16.msra.mxu0 %v2982
    %3094 = vmatpush.bf16.msra.mxu0 %v2980
    %3095 = vmatpush.bf16.msra.mxu0 %v2978
    %3096 = vmatpush.bf16.msra.mxu0 %v2976
    %3097 = vmatpush.bf16.msra.mxu0 %v2974
    %3098 = vmatpush.bf16.msra.mxu0 %v2972
    %3099 = vmatpush.bf16.msra.mxu0 %v2970
    %3100 = vmatmul.bf16.gmra.mxu0 %v2674
    %v3101 = vpop.f32.mrf.mxu0
    %v3102 = vadd.f32 %v3089, %v3101
    %v3103 = vpop.f32.mrf.mxu0
    %3104 = vdwg.mxu0
    %3105 = vmatpush.bf16.msra.mxu0 %v3000
    %3106 = vmatpush.bf16.msra.mxu0 %v2998
    %3107 = vmatpush.bf16.msra.mxu0 %v2996
    %3108 = vmatpush.bf16.msra.mxu0 %v2994
    %3109 = vmatpush.bf16.msra.mxu0 %v2992
    %3110 = vmatpush.bf16.msra.mxu0 %v2990
    %3111 = vmatpush.bf16.msra.mxu0 %v2988
    %3112 = vmatpush.bf16.msra.mxu0 %v2986
    %3113 = vmatmul.bf16.gmra.mxu0 %v2675
    %v3114 = vpop.f32.mrf.mxu0
    %v3115 = vadd.f32 %v3102, %v3114
    %v3116 = vpop.f32.mrf.mxu0
    %3117 = vdwg.mxu0
    %3118 = vmatpush.bf16.msra.mxu0 %v2953
    %3119 = vmatpush.bf16.msra.mxu0 %v2951
    %3120 = vmatpush.bf16.msra.mxu0 %v2949
    %3121 = vmatpush.bf16.msra.mxu0 %v2947
    %3122 = vmatpush.bf16.msra.mxu0 %v2945
    %3123 = vmatpush.bf16.msra.mxu0 %v2943
    %3124 = vmatpush.bf16.msra.mxu0 %v2941
    %3125 = vmatpush.bf16.msra.mxu0 %v2939
    %3126 = vmatmul.bf16.gmra.mxu0 %v2672
    %v3127 = vpop.f32.mrf.mxu0
    %v3128 = vadd.f32 %v2743, %v3127
    %v3129 = vpop.f32.mrf.mxu0
    %3130 = vdwg.mxu0
    %3131 = vmatpush.bf16.msra.mxu0 %v2969
    %3132 = vmatpush.bf16.msra.mxu0 %v2967
    %3133 = vmatpush.bf16.msra.mxu0 %v2965
    %3134 = vmatpush.bf16.msra.mxu0 %v2963
    %3135 = vmatpush.bf16.msra.mxu0 %v2961
    %3136 = vmatpush.bf16.msra.mxu0 %v2959
    %3137 = vmatpush.bf16.msra.mxu0 %v2957
    %3138 = vmatpush.bf16.msra.mxu0 %v2955
    %3139 = vmatmul.bf16.gmra.mxu0 %v2673
    %v3140 = vpop.f32.mrf.mxu0
    %v3141 = vadd.f32 %v3128, %v3140
    %v3142 = vpop.f32.mrf.mxu0
    %3143 = vdwg.mxu0
    %3144 = vmatpush.bf16.msra.mxu0 %v2985
    %3145 = vmatpush.bf16.msra.mxu0 %v2983
    %3146 = vmatpush.bf16.msra.mxu0 %v2981
    %3147 = vmatpush.bf16.msra.mxu0 %v2979
    %3148 = vmatpush.bf16.msra.mxu0 %v2977
    %3149 = vmatpush.bf16.msra.mxu0 %v2975
    %3150 = vmatpush.bf16.msra.mxu0 %v2973
    %3151 = vmatpush.bf16.msra.mxu0 %v2971
    %3152 = vmatmul.bf16.gmra.mxu0 %v2674
    %v3153 = vpop.f32.mrf.mxu0
    %v3154 = vadd.f32 %v3141, %v3153
    %v3155 = vpop.f32.mrf.mxu0
    %3156 = vdwg.mxu0
    %3157 = vmatpush.bf16.msra.mxu0 %v3001
    %3158 = vmatpush.bf16.msra.mxu0 %v2999
    %3159 = vmatpush.bf16.msra.mxu0 %v2997
    %3160 = vmatpush.bf16.msra.mxu0 %v2995
    %3161 = vmatpush.bf16.msra.mxu0 %v2993
    %3162 = vmatpush.bf16.msra.mxu0 %v2991
    %3163 = vmatpush.bf16.msra.mxu0 %v2989
    %3164 = vmatpush.bf16.msra.mxu0 %v2987
    %3165 = vmatmul.bf16.gmra.mxu0 %v2675
    %v3166 = vpop.f32.mrf.mxu0
    %v3167 = vadd.f32 %v3154, %v3166
    %v3168 = vpop.f32.mrf.mxu0
    %3169 = vdwg.mxu0
    %v3170 = vmul.f32 %v3115, 0.2
    %v3171 = vmul.f32 %v3167, 0.2
    %v3172 = vmax.f32 %v3115, %v3170
    %v3173 = vmax.f32 %v3167, %v3171
    %v3174 = vpack.c.bf16 %v3172, %v3172
    %v3175 = vpack.c.bf16 %v3173, %v3173
    %v3176 = vld [vmem:[#allocation13] sm:$0xf]
    %v3177 = vld [vmem:[#allocation13 + $0x4] sm:$0xf]
    %v3178 = vld [vmem:[#allocation13 + $0x8] sm:$0xf]
    %v3179 = vld [vmem:[#allocation13 + $0xc] sm:$0xf]
    %v3180 = vld [vmem:[#allocation13 + $0x10] sm:$0xf]
    %v3181 = vld [vmem:[#allocation13 + $0x14] sm:$0xf]
    %v3182 = vld [vmem:[#allocation13 + $0x18] sm:$0xf]
    %v3183 = vld [vmem:[#allocation13 + $0x1c] sm:$0xf]
    %v3184 = vld [vmem:[#allocation13 + $0x20] sm:$0xf]
    %v3185 = vld [vmem:[#allocation13 + $0x24] sm:$0xf]
    %v3186 = vld [vmem:[#allocation13 + $0x28] sm:$0xf]
    %v3187 = vld [vmem:[#allocation13 + $0x2c] sm:$0xf]
    %v3188 = vld [vmem:[#allocation13 + $0x30] sm:$0xf]
    %v3189 = vld [vmem:[#allocation13 + $0x34] sm:$0xf]
    %v3190 = vld [vmem:[#allocation13 + $0x38] sm:$0xf]
    %v3191 = vld [vmem:[#allocation13 + $0x3c] sm:$0xf]
    %v3192 = vld [vmem:[#allocation13 + $0x40] sm:$0xf]
    %v3193 = vld [vmem:[#allocation13 + $0x44] sm:$0xf]
    %v3194 = vld [vmem:[#allocation13 + $0x48] sm:$0xf]
    %v3195 = vld [vmem:[#allocation13 + $0x4c] sm:$0xf]
    %v3196 = vld [vmem:[#allocation13 + $0x50] sm:$0xf]
    %v3197 = vld [vmem:[#allocation13 + $0x54] sm:$0xf]
    %v3198 = vld [vmem:[#allocation13 + $0x58] sm:$0xf]
    %v3199 = vld [vmem:[#allocation13 + $0x5c] sm:$0xf]
    %v3200 = vld [vmem:[#allocation13 + $0x60] sm:$0xf]
    %v3201 = vld [vmem:[#allocation13 + $0x64] sm:$0xf]
    %v3202 = vld [vmem:[#allocation13 + $0x68] sm:$0xf]
    %v3203 = vld [vmem:[#allocation13 + $0x6c] sm:$0xf]
    %v3204 = vld [vmem:[#allocation13 + $0x70] sm:$0xf]
    %v3205 = vld [vmem:[#allocation13 + $0x74] sm:$0xf]
    %v3206 = vld [vmem:[#allocation13 + $0x78] sm:$0xf]
    %v3207 = vld [vmem:[#allocation13 + $0x7c] sm:$0xf]
    %v3208 = vld [vmem:[%s8] sm:$0x1]
    %v3210 = vperm.slane %v3208, 0
    %v3244 = vunpack.c.l.b16 %v3176
    %v3245 = vunpack.c.l.b16 %v3177
    %v3246 = vunpack.c.l.b16 %v3178
    %v3247 = vunpack.c.l.b16 %v3179
    %v3248 = vunpack.c.l.b16 %v3180
    %v3249 = vunpack.c.l.b16 %v3181
    %v3250 = vunpack.c.l.b16 %v3182
    %v3251 = vunpack.c.l.b16 %v3183
    %v3252 = vunpack.c.l.b16 %v3184
    %v3253 = vunpack.c.l.b16 %v3185
    %v3254 = vunpack.c.l.b16 %v3186
    %v3255 = vunpack.c.l.b16 %v3187
    %v3256 = vunpack.c.l.b16 %v3188
    %v3257 = vunpack.c.l.b16 %v3189
    %v3258 = vunpack.c.l.b16 %v3190
    %v3259 = vunpack.c.l.b16 %v3191
    %v3260 = vunpack.c.l.b16 %v3192
    %v3261 = vunpack.c.l.b16 %v3193
    %v3262 = vunpack.c.l.b16 %v3194
    %v3263 = vunpack.c.l.b16 %v3195
    %v3264 = vunpack.c.l.b16 %v3196
    %v3265 = vunpack.c.l.b16 %v3197
    %v3266 = vunpack.c.l.b16 %v3198
    %v3267 = vunpack.c.l.b16 %v3199
    %v3268 = vunpack.c.l.b16 %v3200
    %v3269 = vunpack.c.l.b16 %v3201
    %v3270 = vunpack.c.l.b16 %v3202
    %v3271 = vunpack.c.l.b16 %v3203
    %v3272 = vunpack.c.l.b16 %v3204
    %v3273 = vunpack.c.l.b16 %v3205
    %v3274 = vunpack.c.l.b16 %v3206
    %v3275 = vunpack.c.l.b16 %v3207
    %v3276 = vpack.c.b16 %v3245, %v3244
    %v3277 = vpack.c.b16 %v3247, %v3246
    %v3278 = vpack.c.b16 %v3249, %v3248
    %v3279 = vpack.c.b16 %v3251, %v3250
    %v3280 = vpack.c.b16 %v3253, %v3252
    %v3281 = vpack.c.b16 %v3255, %v3254
    %v3282 = vpack.c.b16 %v3257, %v3256
    %v3283 = vpack.c.b16 %v3259, %v3258
    %v3284 = vpack.c.b16 %v3261, %v3260
    %v3285 = vpack.c.b16 %v3263, %v3262
    %v3286 = vpack.c.b16 %v3265, %v3264
    %v3287 = vpack.c.b16 %v3267, %v3266
    %v3288 = vpack.c.b16 %v3269, %v3268
    %v3289 = vpack.c.b16 %v3271, %v3270
    %v3290 = vpack.c.b16 %v3273, %v3272
    %v3291 = vpack.c.b16 %v3275, %v3274
    %3308 = vmatpush.bf16.msra.mxu0 %v3283
    %3309 = vmatpush.bf16.msra.mxu0 %v3282
    %3310 = vmatpush.bf16.msra.mxu0 %v3281
    %3311 = vmatpush.bf16.msra.mxu0 %v3280
    %3312 = vmatpush.bf16.msra.mxu0 %v3279
    %3313 = vmatpush.bf16.msra.mxu0 %v3278
    %3314 = vmatpush.bf16.msra.mxu0 %v3277
    %3315 = vmatpush.bf16.msra.mxu0 %v3276
    %3316 = vmatmul.bf16.gmra.mxu0 %v3174
    %v3317 = vpop.f32.mrf.mxu0
    %v3318 = vadd.f32 %v3210, %v3317
    %v3319 = vpop.f32.mrf.mxu0
    %3320 = vdwg.mxu0
    %3321 = vmatpush.bf16.msra.mxu0 %v3291
    %3322 = vmatpush.bf16.msra.mxu0 %v3290
    %3323 = vmatpush.bf16.msra.mxu0 %v3289
    %3324 = vmatpush.bf16.msra.mxu0 %v3288
    %3325 = vmatpush.bf16.msra.mxu0 %v3287
    %3326 = vmatpush.bf16.msra.mxu0 %v3286
    %3327 = vmatpush.bf16.msra.mxu0 %v3285
    %3328 = vmatpush.bf16.msra.mxu0 %v3284
    %3329 = vmatmul.bf16.gmra.mxu0 %v3175
    %v3330 = vpop.f32.mrf.mxu0
    %v3331 = vadd.f32 %v3318, %v3330
    %v3332 = vpop.f32.mrf.mxu0
    %3333 = vdwg.mxu0
    %v3334 = vmul.f32 %v3331, 0.2
    %v3335 = vmax.f32 %v3331, %v3334
    %v3336 = vpack.c.bf16 %v3335, %v3335
    %v3337 = vld [vmem:[#allocation14] sm:$0xff]
    %v3338 = vld [vmem:[#allocation14 + $0x8] sm:$0xff]
    %v3339 = vld [vmem:[#allocation14 + $0x10] sm:$0xff]
    %v3340 = vld [vmem:[#allocation14 + $0x18] sm:$0xff]
    %v3341 = vld [vmem:[#allocation14 + $0x20] sm:$0xff]
    %v3342 = vld [vmem:[#allocation14 + $0x28] sm:$0xff]
    %v3343 = vld [vmem:[#allocation14 + $0x30] sm:$0xff]
    %v3344 = vld [vmem:[#allocation14 + $0x38] sm:$0xff]
    %v3345 = vld [vmem:[#allocation14 + $0x40] sm:$0xff]
    %v3346 = vld [vmem:[#allocation14 + $0x48] sm:$0xff]
    %v3347 = vld [vmem:[#allocation14 + $0x50] sm:$0xff]
    %v3348 = vld [vmem:[#allocation14 + $0x58] sm:$0xff]
    %v3349 = vld [vmem:[#allocation14 + $0x60] sm:$0xff]
    %v3350 = vld [vmem:[#allocation14 + $0x68] sm:$0xff]
    %v3351 = vld [vmem:[#allocation14 + $0x70] sm:$0xff]
    %v3352 = vld [vmem:[#allocation14 + $0x78] sm:$0xff]
    %v3353 = vld [vmem:[#allocation14 + $0x80] sm:$0xff]
    %v3354 = vld [vmem:[#allocation14 + $0x88] sm:$0xff]
    %v3355 = vld [vmem:[#allocation14 + $0x90] sm:$0xff]
    %v3356 = vld [vmem:[#allocation14 + $0x98] sm:$0xff]
    %v3357 = vld [vmem:[#allocation14 + $0xa0] sm:$0xff]
    %v3358 = vld [vmem:[#allocation14 + $0xa8] sm:$0xff]
    %v3359 = vld [vmem:[#allocation14 + $0xb0] sm:$0xff]
    %v3360 = vld [vmem:[#allocation14 + $0xb8] sm:$0xff]
    %v3361 = vld [vmem:[#allocation14 + $0xc0] sm:$0xff]
    %v3362 = vld [vmem:[#allocation14 + $0xc8] sm:$0xff]
    %v3363 = vld [vmem:[#allocation14 + $0xd0] sm:$0xff]
    %v3364 = vld [vmem:[#allocation14 + $0xd8] sm:$0xff]
    %v3365 = vld [vmem:[#allocation14 + $0xe0] sm:$0xff]
    %v3366 = vld [vmem:[#allocation14 + $0xe8] sm:$0xff]
    %v3367 = vld [vmem:[#allocation14 + $0xf0] sm:$0xff]
    %v3368 = vld [vmem:[#allocation14 + $0xf8] sm:$0xff]
    %v3369 = vld [vmem:[#allocation14 + $0x100] sm:$0xff]
    %v3370 = vld [vmem:[#allocation14 + $0x108] sm:$0xff]
    %v3371 = vld [vmem:[#allocation14 + $0x110] sm:$0xff]
    %v3372 = vld [vmem:[#allocation14 + $0x118] sm:$0xff]
    %v3373 = vld [vmem:[#allocation14 + $0x120] sm:$0xff]
    %v3374 = vld [vmem:[#allocation14 + $0x128] sm:$0xff]
    %v3375 = vld [vmem:[#allocation14 + $0x130] sm:$0xff]
    %v3376 = vld [vmem:[#allocation14 + $0x138] sm:$0xff]
    %v3377 = vld [vmem:[#allocation14 + $0x140] sm:$0xff]
    %v3378 = vld [vmem:[#allocation14 + $0x148] sm:$0xff]
    %v3379 = vld [vmem:[#allocation14 + $0x150] sm:$0xff]
    %v3380 = vld [vmem:[#allocation14 + $0x158] sm:$0xff]
    %v3381 = vld [vmem:[#allocation14 + $0x160] sm:$0xff]
    %v3382 = vld [vmem:[#allocation14 + $0x168] sm:$0xff]
    %v3383 = vld [vmem:[#allocation14 + $0x170] sm:$0xff]
    %v3384 = vld [vmem:[#allocation14 + $0x178] sm:$0xff]
    %v3385 = vld [vmem:[#allocation14 + $0x180] sm:$0xff]
    %v3386 = vld [vmem:[#allocation14 + $0x188] sm:$0xff]
    %v3387 = vld [vmem:[#allocation14 + $0x190] sm:$0xff]
    %v3388 = vld [vmem:[#allocation14 + $0x198] sm:$0xff]
    %v3389 = vld [vmem:[#allocation14 + $0x1a0] sm:$0xff]
    %v3390 = vld [vmem:[#allocation14 + $0x1a8] sm:$0xff]
    %v3391 = vld [vmem:[#allocation14 + $0x1b0] sm:$0xff]
    %v3392 = vld [vmem:[#allocation14 + $0x1b8] sm:$0xff]
    %v3393 = vld [vmem:[#allocation14 + $0x1c0] sm:$0xff]
    %v3394 = vld [vmem:[#allocation14 + $0x1c8] sm:$0xff]
    %v3395 = vld [vmem:[#allocation14 + $0x1d0] sm:$0xff]
    %v3396 = vld [vmem:[#allocation14 + $0x1d8] sm:$0xff]
    %v3397 = vld [vmem:[#allocation14 + $0x1e0] sm:$0xff]
    %v3398 = vld [vmem:[#allocation14 + $0x1e8] sm:$0xff]
    %v3399 = vld [vmem:[#allocation14 + $0x1f0] sm:$0xff]
    %v3400 = vld [vmem:[#allocation14 + $0x1f8] sm:$0xff]
    %v3401 = vld [vmem:[#allocation14 + $0x200] sm:$0xff]
    %v3402 = vld [vmem:[#allocation14 + $0x208] sm:$0xff]
    %v3403 = vld [vmem:[#allocation14 + $0x210] sm:$0xff]
    %v3404 = vld [vmem:[#allocation14 + $0x218] sm:$0xff]
    %v3405 = vld [vmem:[#allocation14 + $0x220] sm:$0xff]
    %v3406 = vld [vmem:[#allocation14 + $0x228] sm:$0xff]
    %v3407 = vld [vmem:[#allocation14 + $0x230] sm:$0xff]
    %v3408 = vld [vmem:[#allocation14 + $0x238] sm:$0xff]
    %v3409 = vld [vmem:[#allocation14 + $0x240] sm:$0xff]
    %v3410 = vld [vmem:[#allocation14 + $0x248] sm:$0xff]
    %v3411 = vld [vmem:[#allocation14 + $0x250] sm:$0xff]
    %v3412 = vld [vmem:[#allocation14 + $0x258] sm:$0xff]
    %v3413 = vld [vmem:[#allocation14 + $0x260] sm:$0xff]
    %v3414 = vld [vmem:[#allocation14 + $0x268] sm:$0xff]
    %v3415 = vld [vmem:[#allocation14 + $0x270] sm:$0xff]
    %v3416 = vld [vmem:[#allocation14 + $0x278] sm:$0xff]
    %v3417 = vld [vmem:[#allocation14 + $0x280] sm:$0xff]
    %v3418 = vld [vmem:[#allocation14 + $0x288] sm:$0xff]
    %v3419 = vld [vmem:[#allocation14 + $0x290] sm:$0xff]
    %v3420 = vld [vmem:[#allocation14 + $0x298] sm:$0xff]
    %v3421 = vld [vmem:[#allocation14 + $0x2a0] sm:$0xff]
    %v3422 = vld [vmem:[#allocation14 + $0x2a8] sm:$0xff]
    %v3423 = vld [vmem:[#allocation14 + $0x2b0] sm:$0xff]
    %v3424 = vld [vmem:[#allocation14 + $0x2b8] sm:$0xff]
    %v3425 = vld [vmem:[#allocation14 + $0x2c0] sm:$0xff]
    %v3426 = vld [vmem:[#allocation14 + $0x2c8] sm:$0xff]
    %v3427 = vld [vmem:[#allocation14 + $0x2d0] sm:$0xff]
    %v3428 = vld [vmem:[#allocation14 + $0x2d8] sm:$0xff]
    %v3429 = vld [vmem:[#allocation14 + $0x2e0] sm:$0xff]
    %v3430 = vld [vmem:[#allocation14 + $0x2e8] sm:$0xff]
    %v3431 = vld [vmem:[#allocation14 + $0x2f0] sm:$0xff]
    %v3432 = vld [vmem:[#allocation14 + $0x2f8] sm:$0xff]
    %v3433 = vld [vmem:[#allocation14 + $0x300] sm:$0xff]
    %v3434 = vld [vmem:[#allocation14 + $0x308] sm:$0xff]
    %v3435 = vld [vmem:[#allocation14 + $0x310] sm:$0xff]
    %v3436 = vld [vmem:[#allocation14 + $0x318] sm:$0xff]
    %v3437 = vld [vmem:[#allocation14 + $0x320] sm:$0xff]
    %v3438 = vld [vmem:[#allocation14 + $0x328] sm:$0xff]
    %v3439 = vld [vmem:[#allocation14 + $0x330] sm:$0xff]
    %v3440 = vld [vmem:[#allocation14 + $0x338] sm:$0xff]
    %v3441 = vld [vmem:[#allocation14 + $0x340] sm:$0xff]
    %v3442 = vld [vmem:[#allocation14 + $0x348] sm:$0xff]
    %v3443 = vld [vmem:[#allocation14 + $0x350] sm:$0xff]
    %v3444 = vld [vmem:[#allocation14 + $0x358] sm:$0xff]
    %v3445 = vld [vmem:[#allocation14 + $0x360] sm:$0xff]
    %v3446 = vld [vmem:[#allocation14 + $0x368] sm:$0xff]
    %v3447 = vld [vmem:[#allocation14 + $0x370] sm:$0xff]
    %v3448 = vld [vmem:[#allocation14 + $0x378] sm:$0xff]
    %v3449 = vld [vmem:[#allocation14 + $0x380] sm:$0xff]
    %v3450 = vld [vmem:[#allocation14 + $0x388] sm:$0xff]
    %v3451 = vld [vmem:[#allocation14 + $0x390] sm:$0xff]
    %v3452 = vld [vmem:[#allocation14 + $0x398] sm:$0xff]
    %v3453 = vld [vmem:[#allocation14 + $0x3a0] sm:$0xff]
    %v3454 = vld [vmem:[#allocation14 + $0x3a8] sm:$0xff]
    %v3455 = vld [vmem:[#allocation14 + $0x3b0] sm:$0xff]
    %v3456 = vld [vmem:[#allocation14 + $0x3b8] sm:$0xff]
    %v3457 = vld [vmem:[#allocation14 + $0x3c0] sm:$0xff]
    %v3458 = vld [vmem:[#allocation14 + $0x3c8] sm:$0xff]
    %v3459 = vld [vmem:[#allocation14 + $0x3d0] sm:$0xff]
    %v3460 = vld [vmem:[#allocation14 + $0x3d8] sm:$0xff]
    %v3461 = vld [vmem:[#allocation14 + $0x3e0] sm:$0xff]
    %v3462 = vld [vmem:[#allocation14 + $0x3e8] sm:$0xff]
    %v3463 = vld [vmem:[#allocation14 + $0x3f0] sm:$0xff]
    %v3464 = vld [vmem:[#allocation14 + $0x3f8] sm:$0xff]
    %v3465 = vld [vmem:[#allocation14 + $0x400] sm:$0xff]
    %v3466 = vld [vmem:[#allocation14 + $0x408] sm:$0xff]
    %v3467 = vld [vmem:[#allocation14 + $0x410] sm:$0xff]
    %v3468 = vld [vmem:[#allocation14 + $0x418] sm:$0xff]
    %v3469 = vld [vmem:[#allocation14 + $0x420] sm:$0xff]
    %v3470 = vld [vmem:[#allocation14 + $0x428] sm:$0xff]
    %v3471 = vld [vmem:[#allocation14 + $0x430] sm:$0xff]
    %v3472 = vld [vmem:[#allocation14 + $0x438] sm:$0xff]
    %v3473 = vld [vmem:[#allocation14 + $0x440] sm:$0xff]
    %v3474 = vld [vmem:[#allocation14 + $0x448] sm:$0xff]
    %v3475 = vld [vmem:[#allocation14 + $0x450] sm:$0xff]
    %v3476 = vld [vmem:[#allocation14 + $0x458] sm:$0xff]
    %v3477 = vld [vmem:[#allocation14 + $0x460] sm:$0xff]
    %v3478 = vld [vmem:[#allocation14 + $0x468] sm:$0xff]
    %v3479 = vld [vmem:[#allocation14 + $0x470] sm:$0xff]
    %v3480 = vld [vmem:[#allocation14 + $0x478] sm:$0xff]
    %v3481 = vld [vmem:[#allocation14 + $0x480] sm:$0xff]
    %v3482 = vld [vmem:[#allocation14 + $0x488] sm:$0xff]
    %v3483 = vld [vmem:[#allocation14 + $0x490] sm:$0xff]
    %v3484 = vld [vmem:[#allocation14 + $0x498] sm:$0xff]
    %v3485 = vld [vmem:[#allocation14 + $0x4a0] sm:$0xff]
    %v3486 = vld [vmem:[#allocation14 + $0x4a8] sm:$0xff]
    %v3487 = vld [vmem:[#allocation14 + $0x4b0] sm:$0xff]
    %v3488 = vld [vmem:[#allocation14 + $0x4b8] sm:$0xff]
    %v3489 = vld [vmem:[#allocation14 + $0x4c0] sm:$0xff]
    %v3490 = vld [vmem:[#allocation14 + $0x4c8] sm:$0xff]
    %v3491 = vld [vmem:[#allocation14 + $0x4d0] sm:$0xff]
    %v3492 = vld [vmem:[#allocation14 + $0x4d8] sm:$0xff]
    %v3493 = vld [vmem:[#allocation14 + $0x4e0] sm:$0xff]
    %v3494 = vld [vmem:[#allocation14 + $0x4e8] sm:$0xff]
    %v3495 = vld [vmem:[#allocation14 + $0x4f0] sm:$0xff]
    %v3496 = vld [vmem:[#allocation14 + $0x4f8] sm:$0xff]
    %v3497 = vld [vmem:[#allocation14 + $0x500] sm:$0xff]
    %v3498 = vld [vmem:[#allocation14 + $0x508] sm:$0xff]
    %v3499 = vld [vmem:[#allocation14 + $0x510] sm:$0xff]
    %v3500 = vld [vmem:[#allocation14 + $0x518] sm:$0xff]
    %v3501 = vld [vmem:[#allocation14 + $0x520] sm:$0xff]
    %v3502 = vld [vmem:[#allocation14 + $0x528] sm:$0xff]
    %v3503 = vld [vmem:[#allocation14 + $0x530] sm:$0xff]
    %v3504 = vld [vmem:[#allocation14 + $0x538] sm:$0xff]
    %v3505 = vld [vmem:[#allocation14 + $0x540] sm:$0xff]
    %v3506 = vld [vmem:[#allocation14 + $0x548] sm:$0xff]
    %v3507 = vld [vmem:[#allocation14 + $0x550] sm:$0xff]
    %v3508 = vld [vmem:[#allocation14 + $0x558] sm:$0xff]
    %v3509 = vld [vmem:[#allocation14 + $0x560] sm:$0xff]
    %v3510 = vld [vmem:[#allocation14 + $0x568] sm:$0xff]
    %v3511 = vld [vmem:[#allocation14 + $0x570] sm:$0xff]
    %v3512 = vld [vmem:[#allocation14 + $0x578] sm:$0xff]
    %v3513 = vld [vmem:[#allocation14 + $0x580] sm:$0xff]
    %v3514 = vld [vmem:[#allocation14 + $0x588] sm:$0xff]
    %v3515 = vld [vmem:[#allocation14 + $0x590] sm:$0xff]
    %v3516 = vld [vmem:[#allocation14 + $0x598] sm:$0xff]
    %v3517 = vld [vmem:[#allocation14 + $0x5a0] sm:$0xff]
    %v3518 = vld [vmem:[#allocation14 + $0x5a8] sm:$0xff]
    %v3519 = vld [vmem:[#allocation14 + $0x5b0] sm:$0xff]
    %v3520 = vld [vmem:[#allocation14 + $0x5b8] sm:$0xff]
    %v3521 = vld [vmem:[#allocation14 + $0x5c0] sm:$0xff]
    %v3522 = vld [vmem:[#allocation14 + $0x5c8] sm:$0xff]
    %v3523 = vld [vmem:[#allocation14 + $0x5d0] sm:$0xff]
    %v3524 = vld [vmem:[#allocation14 + $0x5d8] sm:$0xff]
    %v3525 = vld [vmem:[#allocation14 + $0x5e0] sm:$0xff]
    %v3526 = vld [vmem:[#allocation14 + $0x5e8] sm:$0xff]
    %v3527 = vld [vmem:[#allocation14 + $0x5f0] sm:$0xff]
    %v3528 = vld [vmem:[#allocation14 + $0x5f8] sm:$0xff]
    %v3529 = vld [vmem:[#allocation14 + $0x600] sm:$0xff]
    %v3530 = vld [vmem:[#allocation14 + $0x608] sm:$0xff]
    %v3531 = vld [vmem:[#allocation14 + $0x610] sm:$0xff]
    %v3532 = vld [vmem:[#allocation14 + $0x618] sm:$0xff]
    %v3533 = vld [vmem:[#allocation14 + $0x620] sm:$0xff]
    %v3534 = vld [vmem:[#allocation14 + $0x628] sm:$0xff]
    %v3535 = vld [vmem:[#allocation14 + $0x630] sm:$0xff]
    %v3536 = vld [vmem:[#allocation14 + $0x638] sm:$0xff]
    %v3537 = vld [vmem:[#allocation14 + $0x640] sm:$0xff]
    %v3538 = vld [vmem:[#allocation14 + $0x648] sm:$0xff]
    %v3539 = vld [vmem:[#allocation14 + $0x650] sm:$0xff]
    %v3540 = vld [vmem:[#allocation14 + $0x658] sm:$0xff]
    %v3541 = vld [vmem:[#allocation14 + $0x660] sm:$0xff]
    %v3542 = vld [vmem:[#allocation14 + $0x668] sm:$0xff]
    %v3543 = vld [vmem:[#allocation14 + $0x670] sm:$0xff]
    %v3544 = vld [vmem:[#allocation14 + $0x678] sm:$0xff]
    %v3545 = vld [vmem:[#allocation14 + $0x680] sm:$0xff]
    %v3546 = vld [vmem:[#allocation14 + $0x688] sm:$0xff]
    %v3547 = vld [vmem:[#allocation14 + $0x690] sm:$0xff]
    %v3548 = vld [vmem:[#allocation14 + $0x698] sm:$0xff]
    %v3549 = vld [vmem:[#allocation14 + $0x6a0] sm:$0xff]
    %v3550 = vld [vmem:[#allocation14 + $0x6a8] sm:$0xff]
    %v3551 = vld [vmem:[#allocation14 + $0x6b0] sm:$0xff]
    %v3552 = vld [vmem:[#allocation14 + $0x6b8] sm:$0xff]
    %v3553 = vld [vmem:[#allocation14 + $0x6c0] sm:$0xff]
    %v3554 = vld [vmem:[#allocation14 + $0x6c8] sm:$0xff]
    %v3555 = vld [vmem:[#allocation14 + $0x6d0] sm:$0xff]
    %v3556 = vld [vmem:[#allocation14 + $0x6d8] sm:$0xff]
    %v3557 = vld [vmem:[#allocation14 + $0x6e0] sm:$0xff]
    %v3558 = vld [vmem:[#allocation14 + $0x6e8] sm:$0xff]
    %v3559 = vld [vmem:[#allocation14 + $0x6f0] sm:$0xff]
    %v3560 = vld [vmem:[#allocation14 + $0x6f8] sm:$0xff]
    %v3561 = vld [vmem:[#allocation14 + $0x700] sm:$0xff]
    %v3562 = vld [vmem:[#allocation14 + $0x708] sm:$0xff]
    %v3563 = vld [vmem:[#allocation14 + $0x710] sm:$0xff]
    %v3564 = vld [vmem:[#allocation14 + $0x718] sm:$0xff]
    %v3565 = vld [vmem:[#allocation14 + $0x720] sm:$0xff]
    %v3566 = vld [vmem:[#allocation14 + $0x728] sm:$0xff]
    %v3567 = vld [vmem:[#allocation14 + $0x730] sm:$0xff]
    %v3568 = vld [vmem:[#allocation14 + $0x738] sm:$0xff]
    %v3569 = vld [vmem:[#allocation14 + $0x740] sm:$0xff]
    %v3570 = vld [vmem:[#allocation14 + $0x748] sm:$0xff]
    %v3571 = vld [vmem:[#allocation14 + $0x750] sm:$0xff]
    %v3572 = vld [vmem:[#allocation14 + $0x758] sm:$0xff]
    %v3573 = vld [vmem:[#allocation14 + $0x760] sm:$0xff]
    %v3574 = vld [vmem:[#allocation14 + $0x768] sm:$0xff]
    %v3575 = vld [vmem:[#allocation14 + $0x770] sm:$0xff]
    %v3576 = vld [vmem:[#allocation14 + $0x778] sm:$0xff]
    %v3577 = vld [vmem:[#allocation14 + $0x780] sm:$0xff]
    %v3578 = vld [vmem:[#allocation14 + $0x788] sm:$0xff]
    %v3579 = vld [vmem:[#allocation14 + $0x790] sm:$0xff]
    %v3580 = vld [vmem:[#allocation14 + $0x798] sm:$0xff]
    %v3581 = vld [vmem:[#allocation14 + $0x7a0] sm:$0xff]
    %v3582 = vld [vmem:[#allocation14 + $0x7a8] sm:$0xff]
    %v3583 = vld [vmem:[#allocation14 + $0x7b0] sm:$0xff]
    %v3584 = vld [vmem:[#allocation14 + $0x7b8] sm:$0xff]
    %v3585 = vld [vmem:[#allocation14 + $0x7c0] sm:$0xff]
    %v3586 = vld [vmem:[#allocation14 + $0x7c8] sm:$0xff]
    %v3587 = vld [vmem:[#allocation14 + $0x7d0] sm:$0xff]
    %v3588 = vld [vmem:[#allocation14 + $0x7d8] sm:$0xff]
    %v3589 = vld [vmem:[#allocation14 + $0x7e0] sm:$0xff]
    %v3590 = vld [vmem:[#allocation14 + $0x7e8] sm:$0xff]
    %v3591 = vld [vmem:[#allocation14 + $0x7f0] sm:$0xff]
    %v3592 = vld [vmem:[#allocation14 + $0x7f8] sm:$0xff]
    %v3593 = vld [vmem:[#allocation16] sm:$0xff]
    %v3594 = vld [vmem:[#allocation16 + $0x8] sm:$0xff]
    %v3595 = vld [vmem:[#allocation16 + $0x10] sm:$0xff]
    %v3596 = vld [vmem:[#allocation16 + $0x18] sm:$0xff]
    %v3601 = vperm.slane %v3593, 0
    %v3602 = vperm.slane %v3593, 1
    %v3603 = vperm.slane %v3593, 2
    %v3604 = vperm.slane %v3593, 3
    %v3605 = vperm.slane %v3593, 4
    %v3606 = vperm.slane %v3593, 5
    %v3607 = vperm.slane %v3593, 6
    %v3608 = vperm.slane %v3593, 7
    %v3609 = vperm.slane %v3594, 0
    %v3610 = vperm.slane %v3594, 1
    %v3611 = vperm.slane %v3594, 2
    %v3612 = vperm.slane %v3594, 3
    %v3613 = vperm.slane %v3594, 4
    %v3614 = vperm.slane %v3594, 5
    %v3615 = vperm.slane %v3594, 6
    %v3616 = vperm.slane %v3594, 7
    %v3617 = vperm.slane %v3595, 0
    %v3618 = vperm.slane %v3595, 1
    %v3619 = vperm.slane %v3595, 2
    %v3620 = vperm.slane %v3595, 3
    %v3621 = vperm.slane %v3595, 4
    %v3622 = vperm.slane %v3595, 5
    %v3623 = vperm.slane %v3595, 6
    %v3624 = vperm.slane %v3595, 7
    %v3625 = vperm.slane %v3596, 0
    %v3626 = vperm.slane %v3596, 1
    %v3627 = vperm.slane %v3596, 2
    %v3628 = vperm.slane %v3596, 3
    %v3629 = vperm.slane %v3596, 4
    %v3630 = vperm.slane %v3596, 5
    %v3631 = vperm.slane %v3596, 6
    %v3632 = vperm.slane %v3596, 7
    %v3921 = vunpack.c.l.b16 %v3337
    %v3922 = vunpack.c.h.b16 %v3337
    %v3923 = vunpack.c.l.b16 %v3338
    %v3924 = vunpack.c.h.b16 %v3338
    %v3925 = vunpack.c.l.b16 %v3339
    %v3926 = vunpack.c.h.b16 %v3339
    %v3927 = vunpack.c.l.b16 %v3340
    %v3928 = vunpack.c.h.b16 %v3340
    %v3929 = vunpack.c.l.b16 %v3341
    %v3930 = vunpack.c.h.b16 %v3341
    %v3931 = vunpack.c.l.b16 %v3342
    %v3932 = vunpack.c.h.b16 %v3342
    %v3933 = vunpack.c.l.b16 %v3343
    %v3934 = vunpack.c.h.b16 %v3343
    %v3935 = vunpack.c.l.b16 %v3344
    %v3936 = vunpack.c.h.b16 %v3344
    %v3937 = vunpack.c.l.b16 %v3345
    %v3938 = vunpack.c.h.b16 %v3345
    %v3939 = vunpack.c.l.b16 %v3346
    %v3940 = vunpack.c.h.b16 %v3346
    %v3941 = vunpack.c.l.b16 %v3347
    %v3942 = vunpack.c.h.b16 %v3347
    %v3943 = vunpack.c.l.b16 %v3348
    %v3944 = vunpack.c.h.b16 %v3348
    %v3945 = vunpack.c.l.b16 %v3349
    %v3946 = vunpack.c.h.b16 %v3349
    %v3947 = vunpack.c.l.b16 %v3350
    %v3948 = vunpack.c.h.b16 %v3350
    %v3949 = vunpack.c.l.b16 %v3351
    %v3950 = vunpack.c.h.b16 %v3351
    %v3951 = vunpack.c.l.b16 %v3352
    %v3952 = vunpack.c.h.b16 %v3352
    %v3953 = vunpack.c.l.b16 %v3353
    %v3954 = vunpack.c.h.b16 %v3353
    %v3955 = vunpack.c.l.b16 %v3354
    %v3956 = vunpack.c.h.b16 %v3354
    %v3957 = vunpack.c.l.b16 %v3355
    %v3958 = vunpack.c.h.b16 %v3355
    %v3959 = vunpack.c.l.b16 %v3356
    %v3960 = vunpack.c.h.b16 %v3356
    %v3961 = vunpack.c.l.b16 %v3357
    %v3962 = vunpack.c.h.b16 %v3357
    %v3963 = vunpack.c.l.b16 %v3358
    %v3964 = vunpack.c.h.b16 %v3358
    %v3965 = vunpack.c.l.b16 %v3359
    %v3966 = vunpack.c.h.b16 %v3359
    %v3967 = vunpack.c.l.b16 %v3360
    %v3968 = vunpack.c.h.b16 %v3360
    %v3969 = vunpack.c.l.b16 %v3361
    %v3970 = vunpack.c.h.b16 %v3361
    %v3971 = vunpack.c.l.b16 %v3362
    %v3972 = vunpack.c.h.b16 %v3362
    %v3973 = vunpack.c.l.b16 %v3363
    %v3974 = vunpack.c.h.b16 %v3363
    %v3975 = vunpack.c.l.b16 %v3364
    %v3976 = vunpack.c.h.b16 %v3364
    %v3977 = vunpack.c.l.b16 %v3365
    %v3978 = vunpack.c.h.b16 %v3365
    %v3979 = vunpack.c.l.b16 %v3366
    %v3980 = vunpack.c.h.b16 %v3366
    %v3981 = vunpack.c.l.b16 %v3367
    %v3982 = vunpack.c.h.b16 %v3367
    %v3983 = vunpack.c.l.b16 %v3368
    %v3984 = vunpack.c.h.b16 %v3368
    %v3985 = vunpack.c.l.b16 %v3369
    %v3986 = vunpack.c.h.b16 %v3369
    %v3987 = vunpack.c.l.b16 %v3370
    %v3988 = vunpack.c.h.b16 %v3370
    %v3989 = vunpack.c.l.b16 %v3371
    %v3990 = vunpack.c.h.b16 %v3371
    %v3991 = vunpack.c.l.b16 %v3372
    %v3992 = vunpack.c.h.b16 %v3372
    %v3993 = vunpack.c.l.b16 %v3373
    %v3994 = vunpack.c.h.b16 %v3373
    %v3995 = vunpack.c.l.b16 %v3374
    %v3996 = vunpack.c.h.b16 %v3374
    %v3997 = vunpack.c.l.b16 %v3375
    %v3998 = vunpack.c.h.b16 %v3375
    %v3999 = vunpack.c.l.b16 %v3376
    %v4000 = vunpack.c.h.b16 %v3376
    %v4001 = vunpack.c.l.b16 %v3377
    %v4002 = vunpack.c.h.b16 %v3377
    %v4003 = vunpack.c.l.b16 %v3378
    %v4004 = vunpack.c.h.b16 %v3378
    %v4005 = vunpack.c.l.b16 %v3379
    %v4006 = vunpack.c.h.b16 %v3379
    %v4007 = vunpack.c.l.b16 %v3380
    %v4008 = vunpack.c.h.b16 %v3380
    %v4009 = vunpack.c.l.b16 %v3381
    %v4010 = vunpack.c.h.b16 %v3381
    %v4011 = vunpack.c.l.b16 %v3382
    %v4012 = vunpack.c.h.b16 %v3382
    %v4013 = vunpack.c.l.b16 %v3383
    %v4014 = vunpack.c.h.b16 %v3383
    %v4015 = vunpack.c.l.b16 %v3384
    %v4016 = vunpack.c.h.b16 %v3384
    %v4017 = vunpack.c.l.b16 %v3385
    %v4018 = vunpack.c.h.b16 %v3385
    %v4019 = vunpack.c.l.b16 %v3386
    %v4020 = vunpack.c.h.b16 %v3386
    %v4021 = vunpack.c.l.b16 %v3387
    %v4022 = vunpack.c.h.b16 %v3387
    %v4023 = vunpack.c.l.b16 %v3388
    %v4024 = vunpack.c.h.b16 %v3388
    %v4025 = vunpack.c.l.b16 %v3389
    %v4026 = vunpack.c.h.b16 %v3389
    %v4027 = vunpack.c.l.b16 %v3390
    %v4028 = vunpack.c.h.b16 %v3390
    %v4029 = vunpack.c.l.b16 %v3391
    %v4030 = vunpack.c.h.b16 %v3391
    %v4031 = vunpack.c.l.b16 %v3392
    %v4032 = vunpack.c.h.b16 %v3392
    %v4033 = vunpack.c.l.b16 %v3393
    %v4034 = vunpack.c.h.b16 %v3393
    %v4035 = vunpack.c.l.b16 %v3394
    %v4036 = vunpack.c.h.b16 %v3394
    %v4037 = vunpack.c.l.b16 %v3395
    %v4038 = vunpack.c.h.b16 %v3395
    %v4039 = vunpack.c.l.b16 %v3396
    %v4040 = vunpack.c.h.b16 %v3396
    %v4041 = vunpack.c.l.b16 %v3397
    %v4042 = vunpack.c.h.b16 %v3397
    %v4043 = vunpack.c.l.b16 %v3398
    %v4044 = vunpack.c.h.b16 %v3398
    %v4045 = vunpack.c.l.b16 %v3399
    %v4046 = vunpack.c.h.b16 %v3399
    %v4047 = vunpack.c.l.b16 %v3400
    %v4048 = vunpack.c.h.b16 %v3400
    %v4049 = vunpack.c.l.b16 %v3401
    %v4050 = vunpack.c.h.b16 %v3401
    %v4051 = vunpack.c.l.b16 %v3402
    %v4052 = vunpack.c.h.b16 %v3402
    %v4053 = vunpack.c.l.b16 %v3403
    %v4054 = vunpack.c.h.b16 %v3403
    %v4055 = vunpack.c.l.b16 %v3404
    %v4056 = vunpack.c.h.b16 %v3404
    %v4057 = vunpack.c.l.b16 %v3405
    %v4058 = vunpack.c.h.b16 %v3405
    %v4059 = vunpack.c.l.b16 %v3406
    %v4060 = vunpack.c.h.b16 %v3406
    %v4061 = vunpack.c.l.b16 %v3407
    %v4062 = vunpack.c.h.b16 %v3407
    %v4063 = vunpack.c.l.b16 %v3408
    %v4064 = vunpack.c.h.b16 %v3408
    %v4065 = vunpack.c.l.b16 %v3409
    %v4066 = vunpack.c.h.b16 %v3409
    %v4067 = vunpack.c.l.b16 %v3410
    %v4068 = vunpack.c.h.b16 %v3410
    %v4069 = vunpack.c.l.b16 %v3411
    %v4070 = vunpack.c.h.b16 %v3411
    %v4071 = vunpack.c.l.b16 %v3412
    %v4072 = vunpack.c.h.b16 %v3412
    %v4073 = vunpack.c.l.b16 %v3413
    %v4074 = vunpack.c.h.b16 %v3413
    %v4075 = vunpack.c.l.b16 %v3414
    %v4076 = vunpack.c.h.b16 %v3414
    %v4077 = vunpack.c.l.b16 %v3415
    %v4078 = vunpack.c.h.b16 %v3415
    %v4079 = vunpack.c.l.b16 %v3416
    %v4080 = vunpack.c.h.b16 %v3416
    %v4081 = vunpack.c.l.b16 %v3417
    %v4082 = vunpack.c.h.b16 %v3417
    %v4083 = vunpack.c.l.b16 %v3418
    %v4084 = vunpack.c.h.b16 %v3418
    %v4085 = vunpack.c.l.b16 %v3419
    %v4086 = vunpack.c.h.b16 %v3419
    %v4087 = vunpack.c.l.b16 %v3420
    %v4088 = vunpack.c.h.b16 %v3420
    %v4089 = vunpack.c.l.b16 %v3421
    %v4090 = vunpack.c.h.b16 %v3421
    %v4091 = vunpack.c.l.b16 %v3422
    %v4092 = vunpack.c.h.b16 %v3422
    %v4093 = vunpack.c.l.b16 %v3423
    %v4094 = vunpack.c.h.b16 %v3423
    %v4095 = vunpack.c.l.b16 %v3424
    %v4096 = vunpack.c.h.b16 %v3424
    %v4097 = vunpack.c.l.b16 %v3425
    %v4098 = vunpack.c.h.b16 %v3425
    %v4099 = vunpack.c.l.b16 %v3426
    %v4100 = vunpack.c.h.b16 %v3426
    %v4101 = vunpack.c.l.b16 %v3427
    %v4102 = vunpack.c.h.b16 %v3427
    %v4103 = vunpack.c.l.b16 %v3428
    %v4104 = vunpack.c.h.b16 %v3428
    %v4105 = vunpack.c.l.b16 %v3429
    %v4106 = vunpack.c.h.b16 %v3429
    %v4107 = vunpack.c.l.b16 %v3430
    %v4108 = vunpack.c.h.b16 %v3430
    %v4109 = vunpack.c.l.b16 %v3431
    %v4110 = vunpack.c.h.b16 %v3431
    %v4111 = vunpack.c.l.b16 %v3432
    %v4112 = vunpack.c.h.b16 %v3432
    %v4113 = vunpack.c.l.b16 %v3433
    %v4114 = vunpack.c.h.b16 %v3433
    %v4115 = vunpack.c.l.b16 %v3434
    %v4116 = vunpack.c.h.b16 %v3434
    %v4117 = vunpack.c.l.b16 %v3435
    %v4118 = vunpack.c.h.b16 %v3435
    %v4119 = vunpack.c.l.b16 %v3436
    %v4120 = vunpack.c.h.b16 %v3436
    %v4121 = vunpack.c.l.b16 %v3437
    %v4122 = vunpack.c.h.b16 %v3437
    %v4123 = vunpack.c.l.b16 %v3438
    %v4124 = vunpack.c.h.b16 %v3438
    %v4125 = vunpack.c.l.b16 %v3439
    %v4126 = vunpack.c.h.b16 %v3439
    %v4127 = vunpack.c.l.b16 %v3440
    %v4128 = vunpack.c.h.b16 %v3440
    %v4129 = vunpack.c.l.b16 %v3441
    %v4130 = vunpack.c.h.b16 %v3441
    %v4131 = vunpack.c.l.b16 %v3442
    %v4132 = vunpack.c.h.b16 %v3442
    %v4133 = vunpack.c.l.b16 %v3443
    %v4134 = vunpack.c.h.b16 %v3443
    %v4135 = vunpack.c.l.b16 %v3444
    %v4136 = vunpack.c.h.b16 %v3444
    %v4137 = vunpack.c.l.b16 %v3445
    %v4138 = vunpack.c.h.b16 %v3445
    %v4139 = vunpack.c.l.b16 %v3446
    %v4140 = vunpack.c.h.b16 %v3446
    %v4141 = vunpack.c.l.b16 %v3447
    %v4142 = vunpack.c.h.b16 %v3447
    %v4143 = vunpack.c.l.b16 %v3448
    %v4144 = vunpack.c.h.b16 %v3448
    %v4145 = vunpack.c.l.b16 %v3449
    %v4146 = vunpack.c.h.b16 %v3449
    %v4147 = vunpack.c.l.b16 %v3450
    %v4148 = vunpack.c.h.b16 %v3450
    %v4149 = vunpack.c.l.b16 %v3451
    %v4150 = vunpack.c.h.b16 %v3451
    %v4151 = vunpack.c.l.b16 %v3452
    %v4152 = vunpack.c.h.b16 %v3452
    %v4153 = vunpack.c.l.b16 %v3453
    %v4154 = vunpack.c.h.b16 %v3453
    %v4155 = vunpack.c.l.b16 %v3454
    %v4156 = vunpack.c.h.b16 %v3454
    %v4157 = vunpack.c.l.b16 %v3455
    %v4158 = vunpack.c.h.b16 %v3455
    %v4159 = vunpack.c.l.b16 %v3456
    %v4160 = vunpack.c.h.b16 %v3456
    %v4161 = vunpack.c.l.b16 %v3457
    %v4162 = vunpack.c.h.b16 %v3457
    %v4163 = vunpack.c.l.b16 %v3458
    %v4164 = vunpack.c.h.b16 %v3458
    %v4165 = vunpack.c.l.b16 %v3459
    %v4166 = vunpack.c.h.b16 %v3459
    %v4167 = vunpack.c.l.b16 %v3460
    %v4168 = vunpack.c.h.b16 %v3460
    %v4169 = vunpack.c.l.b16 %v3461
    %v4170 = vunpack.c.h.b16 %v3461
    %v4171 = vunpack.c.l.b16 %v3462
    %v4172 = vunpack.c.h.b16 %v3462
    %v4173 = vunpack.c.l.b16 %v3463
    %v4174 = vunpack.c.h.b16 %v3463
    %v4175 = vunpack.c.l.b16 %v3464
    %v4176 = vunpack.c.h.b16 %v3464
    %v4177 = vunpack.c.l.b16 %v3465
    %v4178 = vunpack.c.h.b16 %v3465
    %v4179 = vunpack.c.l.b16 %v3466
    %v4180 = vunpack.c.h.b16 %v3466
    %v4181 = vunpack.c.l.b16 %v3467
    %v4182 = vunpack.c.h.b16 %v3467
    %v4183 = vunpack.c.l.b16 %v3468
    %v4184 = vunpack.c.h.b16 %v3468
    %v4185 = vunpack.c.l.b16 %v3469
    %v4186 = vunpack.c.h.b16 %v3469
    %v4187 = vunpack.c.l.b16 %v3470
    %v4188 = vunpack.c.h.b16 %v3470
    %v4189 = vunpack.c.l.b16 %v3471
    %v4190 = vunpack.c.h.b16 %v3471
    %v4191 = vunpack.c.l.b16 %v3472
    %v4192 = vunpack.c.h.b16 %v3472
    %v4193 = vunpack.c.l.b16 %v3473
    %v4194 = vunpack.c.h.b16 %v3473
    %v4195 = vunpack.c.l.b16 %v3474
    %v4196 = vunpack.c.h.b16 %v3474
    %v4197 = vunpack.c.l.b16 %v3475
    %v4198 = vunpack.c.h.b16 %v3475
    %v4199 = vunpack.c.l.b16 %v3476
    %v4200 = vunpack.c.h.b16 %v3476
    %v4201 = vunpack.c.l.b16 %v3477
    %v4202 = vunpack.c.h.b16 %v3477
    %v4203 = vunpack.c.l.b16 %v3478
    %v4204 = vunpack.c.h.b16 %v3478
    %v4205 = vunpack.c.l.b16 %v3479
    %v4206 = vunpack.c.h.b16 %v3479
    %v4207 = vunpack.c.l.b16 %v3480
    %v4208 = vunpack.c.h.b16 %v3480
    %v4209 = vunpack.c.l.b16 %v3481
    %v4210 = vunpack.c.h.b16 %v3481
    %v4211 = vunpack.c.l.b16 %v3482
    %v4212 = vunpack.c.h.b16 %v3482
    %v4213 = vunpack.c.l.b16 %v3483
    %v4214 = vunpack.c.h.b16 %v3483
    %v4215 = vunpack.c.l.b16 %v3484
    %v4216 = vunpack.c.h.b16 %v3484
    %v4217 = vunpack.c.l.b16 %v3485
    %v4218 = vunpack.c.h.b16 %v3485
    %v4219 = vunpack.c.l.b16 %v3486
    %v4220 = vunpack.c.h.b16 %v3486
    %v4221 = vunpack.c.l.b16 %v3487
    %v4222 = vunpack.c.h.b16 %v3487
    %v4223 = vunpack.c.l.b16 %v3488
    %v4224 = vunpack.c.h.b16 %v3488
    %v4225 = vunpack.c.l.b16 %v3489
    %v4226 = vunpack.c.h.b16 %v3489
    %v4227 = vunpack.c.l.b16 %v3490
    %v4228 = vunpack.c.h.b16 %v3490
    %v4229 = vunpack.c.l.b16 %v3491
    %v4230 = vunpack.c.h.b16 %v3491
    %v4231 = vunpack.c.l.b16 %v3492
    %v4232 = vunpack.c.h.b16 %v3492
    %v4233 = vunpack.c.l.b16 %v3493
    %v4234 = vunpack.c.h.b16 %v3493
    %v4235 = vunpack.c.l.b16 %v3494
    %v4236 = vunpack.c.h.b16 %v3494
    %v4237 = vunpack.c.l.b16 %v3495
    %v4238 = vunpack.c.h.b16 %v3495
    %v4239 = vunpack.c.l.b16 %v3496
    %v4240 = vunpack.c.h.b16 %v3496
    %v4241 = vunpack.c.l.b16 %v3497
    %v4242 = vunpack.c.h.b16 %v3497
    %v4243 = vunpack.c.l.b16 %v3498
    %v4244 = vunpack.c.h.b16 %v3498
    %v4245 = vunpack.c.l.b16 %v3499
    %v4246 = vunpack.c.h.b16 %v3499
    %v4247 = vunpack.c.l.b16 %v3500
    %v4248 = vunpack.c.h.b16 %v3500
    %v4249 = vunpack.c.l.b16 %v3501
    %v4250 = vunpack.c.h.b16 %v3501
    %v4251 = vunpack.c.l.b16 %v3502
    %v4252 = vunpack.c.h.b16 %v3502
    %v4253 = vunpack.c.l.b16 %v3503
    %v4254 = vunpack.c.h.b16 %v3503
    %v4255 = vunpack.c.l.b16 %v3504
    %v4256 = vunpack.c.h.b16 %v3504
    %v4257 = vunpack.c.l.b16 %v3505
    %v4258 = vunpack.c.h.b16 %v3505
    %v4259 = vunpack.c.l.b16 %v3506
    %v4260 = vunpack.c.h.b16 %v3506
    %v4261 = vunpack.c.l.b16 %v3507
    %v4262 = vunpack.c.h.b16 %v3507
    %v4263 = vunpack.c.l.b16 %v3508
    %v4264 = vunpack.c.h.b16 %v3508
    %v4265 = vunpack.c.l.b16 %v3509
    %v4266 = vunpack.c.h.b16 %v3509
    %v4267 = vunpack.c.l.b16 %v3510
    %v4268 = vunpack.c.h.b16 %v3510
    %v4269 = vunpack.c.l.b16 %v3511
    %v4270 = vunpack.c.h.b16 %v3511
    %v4271 = vunpack.c.l.b16 %v3512
    %v4272 = vunpack.c.h.b16 %v3512
    %v4273 = vunpack.c.l.b16 %v3513
    %v4274 = vunpack.c.h.b16 %v3513
    %v4275 = vunpack.c.l.b16 %v3514
    %v4276 = vunpack.c.h.b16 %v3514
    %v4277 = vunpack.c.l.b16 %v3515
    %v4278 = vunpack.c.h.b16 %v3515
    %v4279 = vunpack.c.l.b16 %v3516
    %v4280 = vunpack.c.h.b16 %v3516
    %v4281 = vunpack.c.l.b16 %v3517
    %v4282 = vunpack.c.h.b16 %v3517
    %v4283 = vunpack.c.l.b16 %v3518
    %v4284 = vunpack.c.h.b16 %v3518
    %v4285 = vunpack.c.l.b16 %v3519
    %v4286 = vunpack.c.h.b16 %v3519
    %v4287 = vunpack.c.l.b16 %v3520
    %v4288 = vunpack.c.h.b16 %v3520
    %v4289 = vunpack.c.l.b16 %v3521
    %v4290 = vunpack.c.h.b16 %v3521
    %v4291 = vunpack.c.l.b16 %v3522
    %v4292 = vunpack.c.h.b16 %v3522
    %v4293 = vunpack.c.l.b16 %v3523
    %v4294 = vunpack.c.h.b16 %v3523
    %v4295 = vunpack.c.l.b16 %v3524
    %v4296 = vunpack.c.h.b16 %v3524
    %v4297 = vunpack.c.l.b16 %v3525
    %v4298 = vunpack.c.h.b16 %v3525
    %v4299 = vunpack.c.l.b16 %v3526
    %v4300 = vunpack.c.h.b16 %v3526
    %v4301 = vunpack.c.l.b16 %v3527
    %v4302 = vunpack.c.h.b16 %v3527
    %v4303 = vunpack.c.l.b16 %v3528
    %v4304 = vunpack.c.h.b16 %v3528
    %v4305 = vunpack.c.l.b16 %v3529
    %v4306 = vunpack.c.h.b16 %v3529
    %v4307 = vunpack.c.l.b16 %v3530
    %v4308 = vunpack.c.h.b16 %v3530
    %v4309 = vunpack.c.l.b16 %v3531
    %v4310 = vunpack.c.h.b16 %v3531
    %v4311 = vunpack.c.l.b16 %v3532
    %v4312 = vunpack.c.h.b16 %v3532
    %v4313 = vunpack.c.l.b16 %v3533
    %v4314 = vunpack.c.h.b16 %v3533
    %v4315 = vunpack.c.l.b16 %v3534
    %v4316 = vunpack.c.h.b16 %v3534
    %v4317 = vunpack.c.l.b16 %v3535
    %v4318 = vunpack.c.h.b16 %v3535
    %v4319 = vunpack.c.l.b16 %v3536
    %v4320 = vunpack.c.h.b16 %v3536
    %v4321 = vunpack.c.l.b16 %v3537
    %v4322 = vunpack.c.h.b16 %v3537
    %v4323 = vunpack.c.l.b16 %v3538
    %v4324 = vunpack.c.h.b16 %v3538
    %v4325 = vunpack.c.l.b16 %v3539
    %v4326 = vunpack.c.h.b16 %v3539
    %v4327 = vunpack.c.l.b16 %v3540
    %v4328 = vunpack.c.h.b16 %v3540
    %v4329 = vunpack.c.l.b16 %v3541
    %v4330 = vunpack.c.h.b16 %v3541
    %v4331 = vunpack.c.l.b16 %v3542
    %v4332 = vunpack.c.h.b16 %v3542
    %v4333 = vunpack.c.l.b16 %v3543
    %v4334 = vunpack.c.h.b16 %v3543
    %v4335 = vunpack.c.l.b16 %v3544
    %v4336 = vunpack.c.h.b16 %v3544
    %v4337 = vunpack.c.l.b16 %v3545
    %v4338 = vunpack.c.h.b16 %v3545
    %v4339 = vunpack.c.l.b16 %v3546
    %v4340 = vunpack.c.h.b16 %v3546
    %v4341 = vunpack.c.l.b16 %v3547
    %v4342 = vunpack.c.h.b16 %v3547
    %v4343 = vunpack.c.l.b16 %v3548
    %v4344 = vunpack.c.h.b16 %v3548
    %v4345 = vunpack.c.l.b16 %v3549
    %v4346 = vunpack.c.h.b16 %v3549
    %v4347 = vunpack.c.l.b16 %v3550
    %v4348 = vunpack.c.h.b16 %v3550
    %v4349 = vunpack.c.l.b16 %v3551
    %v4350 = vunpack.c.h.b16 %v3551
    %v4351 = vunpack.c.l.b16 %v3552
    %v4352 = vunpack.c.h.b16 %v3552
    %v4353 = vunpack.c.l.b16 %v3553
    %v4354 = vunpack.c.h.b16 %v3553
    %v4355 = vunpack.c.l.b16 %v3554
    %v4356 = vunpack.c.h.b16 %v3554
    %v4357 = vunpack.c.l.b16 %v3555
    %v4358 = vunpack.c.h.b16 %v3555
    %v4359 = vunpack.c.l.b16 %v3556
    %v4360 = vunpack.c.h.b16 %v3556
    %v4361 = vunpack.c.l.b16 %v3557
    %v4362 = vunpack.c.h.b16 %v3557
    %v4363 = vunpack.c.l.b16 %v3558
    %v4364 = vunpack.c.h.b16 %v3558
    %v4365 = vunpack.c.l.b16 %v3559
    %v4366 = vunpack.c.h.b16 %v3559
    %v4367 = vunpack.c.l.b16 %v3560
    %v4368 = vunpack.c.h.b16 %v3560
    %v4369 = vunpack.c.l.b16 %v3561
    %v4370 = vunpack.c.h.b16 %v3561
    %v4371 = vunpack.c.l.b16 %v3562
    %v4372 = vunpack.c.h.b16 %v3562
    %v4373 = vunpack.c.l.b16 %v3563
    %v4374 = vunpack.c.h.b16 %v3563
    %v4375 = vunpack.c.l.b16 %v3564
    %v4376 = vunpack.c.h.b16 %v3564
    %v4377 = vunpack.c.l.b16 %v3565
    %v4378 = vunpack.c.h.b16 %v3565
    %v4379 = vunpack.c.l.b16 %v3566
    %v4380 = vunpack.c.h.b16 %v3566
    %v4381 = vunpack.c.l.b16 %v3567
    %v4382 = vunpack.c.h.b16 %v3567
    %v4383 = vunpack.c.l.b16 %v3568
    %v4384 = vunpack.c.h.b16 %v3568
    %v4385 = vunpack.c.l.b16 %v3569
    %v4386 = vunpack.c.h.b16 %v3569
    %v4387 = vunpack.c.l.b16 %v3570
    %v4388 = vunpack.c.h.b16 %v3570
    %v4389 = vunpack.c.l.b16 %v3571
    %v4390 = vunpack.c.h.b16 %v3571
    %v4391 = vunpack.c.l.b16 %v3572
    %v4392 = vunpack.c.h.b16 %v3572
    %v4393 = vunpack.c.l.b16 %v3573
    %v4394 = vunpack.c.h.b16 %v3573
    %v4395 = vunpack.c.l.b16 %v3574
    %v4396 = vunpack.c.h.b16 %v3574
    %v4397 = vunpack.c.l.b16 %v3575
    %v4398 = vunpack.c.h.b16 %v3575
    %v4399 = vunpack.c.l.b16 %v3576
    %v4400 = vunpack.c.h.b16 %v3576
    %v4401 = vunpack.c.l.b16 %v3577
    %v4402 = vunpack.c.h.b16 %v3577
    %v4403 = vunpack.c.l.b16 %v3578
    %v4404 = vunpack.c.h.b16 %v3578
    %v4405 = vunpack.c.l.b16 %v3579
    %v4406 = vunpack.c.h.b16 %v3579
    %v4407 = vunpack.c.l.b16 %v3580
    %v4408 = vunpack.c.h.b16 %v3580
    %v4409 = vunpack.c.l.b16 %v3581
    %v4410 = vunpack.c.h.b16 %v3581
    %v4411 = vunpack.c.l.b16 %v3582
    %v4412 = vunpack.c.h.b16 %v3582
    %v4413 = vunpack.c.l.b16 %v3583
    %v4414 = vunpack.c.h.b16 %v3583
    %v4415 = vunpack.c.l.b16 %v3584
    %v4416 = vunpack.c.h.b16 %v3584
    %v4417 = vunpack.c.l.b16 %v3585
    %v4418 = vunpack.c.h.b16 %v3585
    %v4419 = vunpack.c.l.b16 %v3586
    %v4420 = vunpack.c.h.b16 %v3586
    %v4421 = vunpack.c.l.b16 %v3587
    %v4422 = vunpack.c.h.b16 %v3587
    %v4423 = vunpack.c.l.b16 %v3588
    %v4424 = vunpack.c.h.b16 %v3588
    %v4425 = vunpack.c.l.b16 %v3589
    %v4426 = vunpack.c.h.b16 %v3589
    %v4427 = vunpack.c.l.b16 %v3590
    %v4428 = vunpack.c.h.b16 %v3590
    %v4429 = vunpack.c.l.b16 %v3591
    %v4430 = vunpack.c.h.b16 %v3591
    %v4431 = vunpack.c.l.b16 %v3592
    %v4432 = vunpack.c.h.b16 %v3592
    %v4433 = vpack.c.b16 %v3953, %v3921
    %v4434 = vpack.c.b16 %v3954, %v3922
    %v4435 = vpack.c.b16 %v3955, %v3923
    %v4436 = vpack.c.b16 %v3956, %v3924
    %v4437 = vpack.c.b16 %v3957, %v3925
    %v4438 = vpack.c.b16 %v3958, %v3926
    %v4439 = vpack.c.b16 %v3959, %v3927
    %v4440 = vpack.c.b16 %v3960, %v3928
    %v4441 = vpack.c.b16 %v3961, %v3929
    %v4442 = vpack.c.b16 %v3962, %v3930
    %v4443 = vpack.c.b16 %v3963, %v3931
    %v4444 = vpack.c.b16 %v3964, %v3932
    %v4445 = vpack.c.b16 %v3965, %v3933
    %v4446 = vpack.c.b16 %v3966, %v3934
    %v4447 = vpack.c.b16 %v3967, %v3935
    %v4448 = vpack.c.b16 %v3968, %v3936
    %v4449 = vpack.c.b16 %v3969, %v3937
    %v4450 = vpack.c.b16 %v3970, %v3938
    %v4451 = vpack.c.b16 %v3971, %v3939
    %v4452 = vpack.c.b16 %v3972, %v3940
    %v4453 = vpack.c.b16 %v3973, %v3941
    %v4454 = vpack.c.b16 %v3974, %v3942
    %v4455 = vpack.c.b16 %v3975, %v3943
    %v4456 = vpack.c.b16 %v3976, %v3944
    %v4457 = vpack.c.b16 %v3977, %v3945
    %v4458 = vpack.c.b16 %v3978, %v3946
    %v4459 = vpack.c.b16 %v3979, %v3947
    %v4460 = vpack.c.b16 %v3980, %v3948
    %v4461 = vpack.c.b16 %v3981, %v3949
    %v4462 = vpack.c.b16 %v3982, %v3950
    %v4463 = vpack.c.b16 %v3983, %v3951
    %v4464 = vpack.c.b16 %v3984, %v3952
    %v4465 = vpack.c.b16 %v4017, %v3985
    %v4466 = vpack.c.b16 %v4018, %v3986
    %v4467 = vpack.c.b16 %v4019, %v3987
    %v4468 = vpack.c.b16 %v4020, %v3988
    %v4469 = vpack.c.b16 %v4021, %v3989
    %v4470 = vpack.c.b16 %v4022, %v3990
    %v4471 = vpack.c.b16 %v4023, %v3991
    %v4472 = vpack.c.b16 %v4024, %v3992
    %v4473 = vpack.c.b16 %v4025, %v3993
    %v4474 = vpack.c.b16 %v4026, %v3994
    %v4475 = vpack.c.b16 %v4027, %v3995
    %v4476 = vpack.c.b16 %v4028, %v3996
    %v4477 = vpack.c.b16 %v4029, %v3997
    %v4478 = vpack.c.b16 %v4030, %v3998
    %v4479 = vpack.c.b16 %v4031, %v3999
    %v4480 = vpack.c.b16 %v4032, %v4000
    %v4481 = vpack.c.b16 %v4033, %v4001
    %v4482 = vpack.c.b16 %v4034, %v4002
    %v4483 = vpack.c.b16 %v4035, %v4003
    %v4484 = vpack.c.b16 %v4036, %v4004
    %v4485 = vpack.c.b16 %v4037, %v4005
    %v4486 = vpack.c.b16 %v4038, %v4006
    %v4487 = vpack.c.b16 %v4039, %v4007
    %v4488 = vpack.c.b16 %v4040, %v4008
    %v4489 = vpack.c.b16 %v4041, %v4009
    %v4490 = vpack.c.b16 %v4042, %v4010
    %v4491 = vpack.c.b16 %v4043, %v4011
    %v4492 = vpack.c.b16 %v4044, %v4012
    %v4493 = vpack.c.b16 %v4045, %v4013
    %v4494 = vpack.c.b16 %v4046, %v4014
    %v4495 = vpack.c.b16 %v4047, %v4015
    %v4496 = vpack.c.b16 %v4048, %v4016
    %v4497 = vpack.c.b16 %v4081, %v4049
    %v4498 = vpack.c.b16 %v4082, %v4050
    %v4499 = vpack.c.b16 %v4083, %v4051
    %v4500 = vpack.c.b16 %v4084, %v4052
    %v4501 = vpack.c.b16 %v4085, %v4053
    %v4502 = vpack.c.b16 %v4086, %v4054
    %v4503 = vpack.c.b16 %v4087, %v4055
    %v4504 = vpack.c.b16 %v4088, %v4056
    %v4505 = vpack.c.b16 %v4089, %v4057
    %v4506 = vpack.c.b16 %v4090, %v4058
    %v4507 = vpack.c.b16 %v4091, %v4059
    %v4508 = vpack.c.b16 %v4092, %v4060
    %v4509 = vpack.c.b16 %v4093, %v4061
    %v4510 = vpack.c.b16 %v4094, %v4062
    %v4511 = vpack.c.b16 %v4095, %v4063
    %v4512 = vpack.c.b16 %v4096, %v4064
    %v4513 = vpack.c.b16 %v4097, %v4065
    %v4514 = vpack.c.b16 %v4098, %v4066
    %v4515 = vpack.c.b16 %v4099, %v4067
    %v4516 = vpack.c.b16 %v4100, %v4068
    %v4517 = vpack.c.b16 %v4101, %v4069
    %v4518 = vpack.c.b16 %v4102, %v4070
    %v4519 = vpack.c.b16 %v4103, %v4071
    %v4520 = vpack.c.b16 %v4104, %v4072
    %v4521 = vpack.c.b16 %v4105, %v4073
    %v4522 = vpack.c.b16 %v4106, %v4074
    %v4523 = vpack.c.b16 %v4107, %v4075
    %v4524 = vpack.c.b16 %v4108, %v4076
    %v4525 = vpack.c.b16 %v4109, %v4077
    %v4526 = vpack.c.b16 %v4110, %v4078
    %v4527 = vpack.c.b16 %v4111, %v4079
    %v4528 = vpack.c.b16 %v4112, %v4080
    %v4529 = vpack.c.b16 %v4145, %v4113
    %v4530 = vpack.c.b16 %v4146, %v4114
    %v4531 = vpack.c.b16 %v4147, %v4115
    %v4532 = vpack.c.b16 %v4148, %v4116
    %v4533 = vpack.c.b16 %v4149, %v4117
    %v4534 = vpack.c.b16 %v4150, %v4118
    %v4535 = vpack.c.b16 %v4151, %v4119
    %v4536 = vpack.c.b16 %v4152, %v4120
    %v4537 = vpack.c.b16 %v4153, %v4121
    %v4538 = vpack.c.b16 %v4154, %v4122
    %v4539 = vpack.c.b16 %v4155, %v4123
    %v4540 = vpack.c.b16 %v4156, %v4124
    %v4541 = vpack.c.b16 %v4157, %v4125
    %v4542 = vpack.c.b16 %v4158, %v4126
    %v4543 = vpack.c.b16 %v4159, %v4127
    %v4544 = vpack.c.b16 %v4160, %v4128
    %v4545 = vpack.c.b16 %v4161, %v4129
    %v4546 = vpack.c.b16 %v4162, %v4130
    %v4547 = vpack.c.b16 %v4163, %v4131
    %v4548 = vpack.c.b16 %v4164, %v4132
    %v4549 = vpack.c.b16 %v4165, %v4133
    %v4550 = vpack.c.b16 %v4166, %v4134
    %v4551 = vpack.c.b16 %v4167, %v4135
    %v4552 = vpack.c.b16 %v4168, %v4136
    %v4553 = vpack.c.b16 %v4169, %v4137
    %v4554 = vpack.c.b16 %v4170, %v4138
    %v4555 = vpack.c.b16 %v4171, %v4139
    %v4556 = vpack.c.b16 %v4172, %v4140
    %v4557 = vpack.c.b16 %v4173, %v4141
    %v4558 = vpack.c.b16 %v4174, %v4142
    %v4559 = vpack.c.b16 %v4175, %v4143
    %v4560 = vpack.c.b16 %v4176, %v4144
    %v4561 = vpack.c.b16 %v4209, %v4177
    %v4562 = vpack.c.b16 %v4210, %v4178
    %v4563 = vpack.c.b16 %v4211, %v4179
    %v4564 = vpack.c.b16 %v4212, %v4180
    %v4565 = vpack.c.b16 %v4213, %v4181
    %v4566 = vpack.c.b16 %v4214, %v4182
    %v4567 = vpack.c.b16 %v4215, %v4183
    %v4568 = vpack.c.b16 %v4216, %v4184
    %v4569 = vpack.c.b16 %v4217, %v4185
    %v4570 = vpack.c.b16 %v4218, %v4186
    %v4571 = vpack.c.b16 %v4219, %v4187
    %v4572 = vpack.c.b16 %v4220, %v4188
    %v4573 = vpack.c.b16 %v4221, %v4189
    %v4574 = vpack.c.b16 %v4222, %v4190
    %v4575 = vpack.c.b16 %v4223, %v4191
    %v4576 = vpack.c.b16 %v4224, %v4192
    %v4577 = vpack.c.b16 %v4225, %v4193
    %v4578 = vpack.c.b16 %v4226, %v4194
    %v4579 = vpack.c.b16 %v4227, %v4195
    %v4580 = vpack.c.b16 %v4228, %v4196
    %v4581 = vpack.c.b16 %v4229, %v4197
    %v4582 = vpack.c.b16 %v4230, %v4198
    %v4583 = vpack.c.b16 %v4231, %v4199
    %v4584 = vpack.c.b16 %v4232, %v4200
    %v4585 = vpack.c.b16 %v4233, %v4201
    %v4586 = vpack.c.b16 %v4234, %v4202
    %v4587 = vpack.c.b16 %v4235, %v4203
    %v4588 = vpack.c.b16 %v4236, %v4204
    %v4589 = vpack.c.b16 %v4237, %v4205
    %v4590 = vpack.c.b16 %v4238, %v4206
    %v4591 = vpack.c.b16 %v4239, %v4207
    %v4592 = vpack.c.b16 %v4240, %v4208
    %v4593 = vpack.c.b16 %v4273, %v4241
    %v4594 = vpack.c.b16 %v4274, %v4242
    %v4595 = vpack.c.b16 %v4275, %v4243
    %v4596 = vpack.c.b16 %v4276, %v4244
    %v4597 = vpack.c.b16 %v4277, %v4245
    %v4598 = vpack.c.b16 %v4278, %v4246
    %v4599 = vpack.c.b16 %v4279, %v4247
    %v4600 = vpack.c.b16 %v4280, %v4248
    %v4601 = vpack.c.b16 %v4281, %v4249
    %v4602 = vpack.c.b16 %v4282, %v4250
    %v4603 = vpack.c.b16 %v4283, %v4251
    %v4604 = vpack.c.b16 %v4284, %v4252
    %v4605 = vpack.c.b16 %v4285, %v4253
    %v4606 = vpack.c.b16 %v4286, %v4254
    %v4607 = vpack.c.b16 %v4287, %v4255
    %v4608 = vpack.c.b16 %v4288, %v4256
    %v4609 = vpack.c.b16 %v4289, %v4257
    %v4610 = vpack.c.b16 %v4290, %v4258
    %v4611 = vpack.c.b16 %v4291, %v4259
    %v4612 = vpack.c.b16 %v4292, %v4260
    %v4613 = vpack.c.b16 %v4293, %v4261
    %v4614 = vpack.c.b16 %v4294, %v4262
    %v4615 = vpack.c.b16 %v4295, %v4263
    %v4616 = vpack.c.b16 %v4296, %v4264
    %v4617 = vpack.c.b16 %v4297, %v4265
    %v4618 = vpack.c.b16 %v4298, %v4266
    %v4619 = vpack.c.b16 %v4299, %v4267
    %v4620 = vpack.c.b16 %v4300, %v4268
    %v4621 = vpack.c.b16 %v4301, %v4269
    %v4622 = vpack.c.b16 %v4302, %v4270
    %v4623 = vpack.c.b16 %v4303, %v4271
    %v4624 = vpack.c.b16 %v4304, %v4272
    %v4625 = vpack.c.b16 %v4337, %v4305
    %v4626 = vpack.c.b16 %v4338, %v4306
    %v4627 = vpack.c.b16 %v4339, %v4307
    %v4628 = vpack.c.b16 %v4340, %v4308
    %v4629 = vpack.c.b16 %v4341, %v4309
    %v4630 = vpack.c.b16 %v4342, %v4310
    %v4631 = vpack.c.b16 %v4343, %v4311
    %v4632 = vpack.c.b16 %v4344, %v4312
    %v4633 = vpack.c.b16 %v4345, %v4313
    %v4634 = vpack.c.b16 %v4346, %v4314
    %v4635 = vpack.c.b16 %v4347, %v4315
    %v4636 = vpack.c.b16 %v4348, %v4316
    %v4637 = vpack.c.b16 %v4349, %v4317
    %v4638 = vpack.c.b16 %v4350, %v4318
    %v4639 = vpack.c.b16 %v4351, %v4319
    %v4640 = vpack.c.b16 %v4352, %v4320
    %v4641 = vpack.c.b16 %v4353, %v4321
    %v4642 = vpack.c.b16 %v4354, %v4322
    %v4643 = vpack.c.b16 %v4355, %v4323
    %v4644 = vpack.c.b16 %v4356, %v4324
    %v4645 = vpack.c.b16 %v4357, %v4325
    %v4646 = vpack.c.b16 %v4358, %v4326
    %v4647 = vpack.c.b16 %v4359, %v4327
    %v4648 = vpack.c.b16 %v4360, %v4328
    %v4649 = vpack.c.b16 %v4361, %v4329
    %v4650 = vpack.c.b16 %v4362, %v4330
    %v4651 = vpack.c.b16 %v4363, %v4331
    %v4652 = vpack.c.b16 %v4364, %v4332
    %v4653 = vpack.c.b16 %v4365, %v4333
    %v4654 = vpack.c.b16 %v4366, %v4334
    %v4655 = vpack.c.b16 %v4367, %v4335
    %v4656 = vpack.c.b16 %v4368, %v4336
    %v4657 = vpack.c.b16 %v4401, %v4369
    %v4658 = vpack.c.b16 %v4402, %v4370
    %v4659 = vpack.c.b16 %v4403, %v4371
    %v4660 = vpack.c.b16 %v4404, %v4372
    %v4661 = vpack.c.b16 %v4405, %v4373
    %v4662 = vpack.c.b16 %v4406, %v4374
    %v4663 = vpack.c.b16 %v4407, %v4375
    %v4664 = vpack.c.b16 %v4408, %v4376
    %v4665 = vpack.c.b16 %v4409, %v4377
    %v4666 = vpack.c.b16 %v4410, %v4378
    %v4667 = vpack.c.b16 %v4411, %v4379
    %v4668 = vpack.c.b16 %v4412, %v4380
    %v4669 = vpack.c.b16 %v4413, %v4381
    %v4670 = vpack.c.b16 %v4414, %v4382
    %v4671 = vpack.c.b16 %v4415, %v4383
    %v4672 = vpack.c.b16 %v4416, %v4384
    %v4673 = vpack.c.b16 %v4417, %v4385
    %v4674 = vpack.c.b16 %v4418, %v4386
    %v4675 = vpack.c.b16 %v4419, %v4387
    %v4676 = vpack.c.b16 %v4420, %v4388
    %v4677 = vpack.c.b16 %v4421, %v4389
    %v4678 = vpack.c.b16 %v4422, %v4390
    %v4679 = vpack.c.b16 %v4423, %v4391
    %v4680 = vpack.c.b16 %v4424, %v4392
    %v4681 = vpack.c.b16 %v4425, %v4393
    %v4682 = vpack.c.b16 %v4426, %v4394
    %v4683 = vpack.c.b16 %v4427, %v4395
    %v4684 = vpack.c.b16 %v4428, %v4396
    %v4685 = vpack.c.b16 %v4429, %v4397
    %v4686 = vpack.c.b16 %v4430, %v4398
    %v4687 = vpack.c.b16 %v4431, %v4399
    %v4688 = vpack.c.b16 %v4432, %v4400
    %4945 = vmatpush.bf16.msra.mxu0 %v4657
    %4946 = vmatpush.bf16.msra.mxu0 %v4625
    %4947 = vmatpush.bf16.msra.mxu0 %v4593
    %4948 = vmatpush.bf16.msra.mxu0 %v4561
    %4949 = vmatpush.bf16.msra.mxu0 %v4529
    %4950 = vmatpush.bf16.msra.mxu0 %v4497
    %4951 = vmatpush.bf16.msra.mxu0 %v4465
    %4952 = vmatpush.bf16.msra.mxu0 %v4433
    %4953 = vmatmul.bf16.gmra.mxu0 %v3336
    %v4954 = vpop.f32.mrf.mxu0
    %v4955 = vadd.f32 %v3601, %v4954
    %v4956 = vpop.f32.mrf.mxu0
    %4957 = vdwg.mxu0
    %4958 = vmatpush.bf16.msra.mxu0 %v4658
    %4959 = vmatpush.bf16.msra.mxu0 %v4626
    %4960 = vmatpush.bf16.msra.mxu0 %v4594
    %4961 = vmatpush.bf16.msra.mxu0 %v4562
    %4962 = vmatpush.bf16.msra.mxu0 %v4530
    %4963 = vmatpush.bf16.msra.mxu0 %v4498
    %4964 = vmatpush.bf16.msra.mxu0 %v4466
    %4965 = vmatpush.bf16.msra.mxu0 %v4434
    %4966 = vmatmul.bf16.gmra.mxu0 %v3336
    %v4967 = vpop.f32.mrf.mxu0
    %v4968 = vadd.f32 %v3602, %v4967
    %v4969 = vpop.f32.mrf.mxu0
    %4970 = vdwg.mxu0
    %4971 = vmatpush.bf16.msra.mxu0 %v4659
    %4972 = vmatpush.bf16.msra.mxu0 %v4627
    %4973 = vmatpush.bf16.msra.mxu0 %v4595
    %4974 = vmatpush.bf16.msra.mxu0 %v4563
    %4975 = vmatpush.bf16.msra.mxu0 %v4531
    %4976 = vmatpush.bf16.msra.mxu0 %v4499
    %4977 = vmatpush.bf16.msra.mxu0 %v4467
    %4978 = vmatpush.bf16.msra.mxu0 %v4435
    %4979 = vmatmul.bf16.gmra.mxu0 %v3336
    %v4980 = vpop.f32.mrf.mxu0
    %v4981 = vadd.f32 %v3603, %v4980
    %v4982 = vpop.f32.mrf.mxu0
    %4983 = vdwg.mxu0
    %4984 = vmatpush.bf16.msra.mxu0 %v4660
    %4985 = vmatpush.bf16.msra.mxu0 %v4628
    %4986 = vmatpush.bf16.msra.mxu0 %v4596
    %4987 = vmatpush.bf16.msra.mxu0 %v4564
    %4988 = vmatpush.bf16.msra.mxu0 %v4532
    %4989 = vmatpush.bf16.msra.mxu0 %v4500
    %4990 = vmatpush.bf16.msra.mxu0 %v4468
    %4991 = vmatpush.bf16.msra.mxu0 %v4436
    %4992 = vmatmul.bf16.gmra.mxu0 %v3336
    %v4993 = vpop.f32.mrf.mxu0
    %v4994 = vadd.f32 %v3604, %v4993
    %v4995 = vpop.f32.mrf.mxu0
    %4996 = vdwg.mxu0
    %4997 = vmatpush.bf16.msra.mxu0 %v4661
    %4998 = vmatpush.bf16.msra.mxu0 %v4629
    %4999 = vmatpush.bf16.msra.mxu0 %v4597
    %5000 = vmatpush.bf16.msra.mxu0 %v4565
    %5001 = vmatpush.bf16.msra.mxu0 %v4533
    %5002 = vmatpush.bf16.msra.mxu0 %v4501
    %5003 = vmatpush.bf16.msra.mxu0 %v4469
    %5004 = vmatpush.bf16.msra.mxu0 %v4437
    %5005 = vmatmul.bf16.gmra.mxu0 %v3336
    %v5006 = vpop.f32.mrf.mxu0
    %v5007 = vadd.f32 %v3605, %v5006
    %v5008 = vpop.f32.mrf.mxu0
    %5009 = vdwg.mxu0
    %5010 = vmatpush.bf16.msra.mxu0 %v4662
    %5011 = vmatpush.bf16.msra.mxu0 %v4630
    %5012 = vmatpush.bf16.msra.mxu0 %v4598
    %5013 = vmatpush.bf16.msra.mxu0 %v4566
    %5014 = vmatpush.bf16.msra.mxu0 %v4534
    %5015 = vmatpush.bf16.msra.mxu0 %v4502
    %5016 = vmatpush.bf16.msra.mxu0 %v4470
    %5017 = vmatpush.bf16.msra.mxu0 %v4438
    %5018 = vmatmul.bf16.gmra.mxu0 %v3336
    %v5019 = vpop.f32.mrf.mxu0
    %v5020 = vadd.f32 %v3606, %v5019
    %v5021 = vpop.f32.mrf.mxu0
    %5022 = vdwg.mxu0
    %5023 = vmatpush.bf16.msra.mxu0 %v4663
    %5024 = vmatpush.bf16.msra.mxu0 %v4631
    %5025 = vmatpush.bf16.msra.mxu0 %v4599
    %5026 = vmatpush.bf16.msra.mxu0 %v4567
    %5027 = vmatpush.bf16.msra.mxu0 %v4535
    %5028 = vmatpush.bf16.msra.mxu0 %v4503
    %5029 = vmatpush.bf16.msra.mxu0 %v4471
    %5030 = vmatpush.bf16.msra.mxu0 %v4439
    %5031 = vmatmul.bf16.gmra.mxu0 %v3336
    %v5032 = vpop.f32.mrf.mxu0
    %v5033 = vadd.f32 %v3607, %v5032
    %v5034 = vpop.f32.mrf.mxu0
    %5035 = vdwg.mxu0
    %5036 = vmatpush.bf16.msra.mxu0 %v4664
    %5037 = vmatpush.bf16.msra.mxu0 %v4632
    %5038 = vmatpush.bf16.msra.mxu0 %v4600
    %5039 = vmatpush.bf16.msra.mxu0 %v4568
    %5040 = vmatpush.bf16.msra.mxu0 %v4536
    %5041 = vmatpush.bf16.msra.mxu0 %v4504
    %5042 = vmatpush.bf16.msra.mxu0 %v4472
    %5043 = vmatpush.bf16.msra.mxu0 %v4440
    %5044 = vmatmul.bf16.gmra.mxu0 %v3336
    %v5045 = vpop.f32.mrf.mxu0
    %v5046 = vadd.f32 %v3608, %v5045
    %v5047 = vpop.f32.mrf.mxu0
    %5048 = vdwg.mxu0
    %5049 = vmatpush.bf16.msra.mxu0 %v4665
    %5050 = vmatpush.bf16.msra.mxu0 %v4633
    %5051 = vmatpush.bf16.msra.mxu0 %v4601
    %5052 = vmatpush.bf16.msra.mxu0 %v4569
    %5053 = vmatpush.bf16.msra.mxu0 %v4537
    %5054 = vmatpush.bf16.msra.mxu0 %v4505
    %5055 = vmatpush.bf16.msra.mxu0 %v4473
    %5056 = vmatpush.bf16.msra.mxu0 %v4441
    %5057 = vmatmul.bf16.gmra.mxu0 %v3336
    %v5058 = vpop.f32.mrf.mxu0
    %v5059 = vadd.f32 %v3609, %v5058
    %v5060 = vpop.f32.mrf.mxu0
    %5061 = vdwg.mxu0
    %5062 = vmatpush.bf16.msra.mxu0 %v4666
    %5063 = vmatpush.bf16.msra.mxu0 %v4634
    %5064 = vmatpush.bf16.msra.mxu0 %v4602
    %5065 = vmatpush.bf16.msra.mxu0 %v4570
    %5066 = vmatpush.bf16.msra.mxu0 %v4538
    %5067 = vmatpush.bf16.msra.mxu0 %v4506
    %5068 = vmatpush.bf16.msra.mxu0 %v4474
    %5069 = vmatpush.bf16.msra.mxu0 %v4442
    %5070 = vmatmul.bf16.gmra.mxu0 %v3336
    %v5071 = vpop.f32.mrf.mxu0
    %v5072 = vadd.f32 %v3610, %v5071
    %v5073 = vpop.f32.mrf.mxu0
    %5074 = vdwg.mxu0
    %5075 = vmatpush.bf16.msra.mxu0 %v4667
    %5076 = vmatpush.bf16.msra.mxu0 %v4635
    %5077 = vmatpush.bf16.msra.mxu0 %v4603
    %5078 = vmatpush.bf16.msra.mxu0 %v4571
    %5079 = vmatpush.bf16.msra.mxu0 %v4539
    %5080 = vmatpush.bf16.msra.mxu0 %v4507
    %5081 = vmatpush.bf16.msra.mxu0 %v4475
    %5082 = vmatpush.bf16.msra.mxu0 %v4443
    %5083 = vmatmul.bf16.gmra.mxu0 %v3336
    %v5084 = vpop.f32.mrf.mxu0
    %v5085 = vadd.f32 %v3611, %v5084
    %v5086 = vpop.f32.mrf.mxu0
    %5087 = vdwg.mxu0
    %5088 = vmatpush.bf16.msra.mxu0 %v4668
    %5089 = vmatpush.bf16.msra.mxu0 %v4636
    %5090 = vmatpush.bf16.msra.mxu0 %v4604
    %5091 = vmatpush.bf16.msra.mxu0 %v4572
    %5092 = vmatpush.bf16.msra.mxu0 %v4540
    %5093 = vmatpush.bf16.msra.mxu0 %v4508
    %5094 = vmatpush.bf16.msra.mxu0 %v4476
    %5095 = vmatpush.bf16.msra.mxu0 %v4444
    %5096 = vmatmul.bf16.gmra.mxu0 %v3336
    %v5097 = vpop.f32.mrf.mxu0
    %v5098 = vadd.f32 %v3612, %v5097
    %v5099 = vpop.f32.mrf.mxu0
    %5100 = vdwg.mxu0
    %5101 = vmatpush.bf16.msra.mxu0 %v4669
    %5102 = vmatpush.bf16.msra.mxu0 %v4637
    %5103 = vmatpush.bf16.msra.mxu0 %v4605
    %5104 = vmatpush.bf16.msra.mxu0 %v4573
    %5105 = vmatpush.bf16.msra.mxu0 %v4541
    %5106 = vmatpush.bf16.msra.mxu0 %v4509
    %5107 = vmatpush.bf16.msra.mxu0 %v4477
    %5108 = vmatpush.bf16.msra.mxu0 %v4445
    %5109 = vmatmul.bf16.gmra.mxu0 %v3336
    %v5110 = vpop.f32.mrf.mxu0
    %v5111 = vadd.f32 %v3613, %v5110
    %v5112 = vpop.f32.mrf.mxu0
    %5113 = vdwg.mxu0
    %5114 = vmatpush.bf16.msra.mxu0 %v4670
    %5115 = vmatpush.bf16.msra.mxu0 %v4638
    %5116 = vmatpush.bf16.msra.mxu0 %v4606
    %5117 = vmatpush.bf16.msra.mxu0 %v4574
    %5118 = vmatpush.bf16.msra.mxu0 %v4542
    %5119 = vmatpush.bf16.msra.mxu0 %v4510
    %5120 = vmatpush.bf16.msra.mxu0 %v4478
    %5121 = vmatpush.bf16.msra.mxu0 %v4446
    %5122 = vmatmul.bf16.gmra.mxu0 %v3336
    %v5123 = vpop.f32.mrf.mxu0
    %v5124 = vadd.f32 %v3614, %v5123
    %v5125 = vpop.f32.mrf.mxu0
    %5126 = vdwg.mxu0
    %5127 = vmatpush.bf16.msra.mxu0 %v4671
    %5128 = vmatpush.bf16.msra.mxu0 %v4639
    %5129 = vmatpush.bf16.msra.mxu0 %v4607
    %5130 = vmatpush.bf16.msra.mxu0 %v4575
    %5131 = vmatpush.bf16.msra.mxu0 %v4543
    %5132 = vmatpush.bf16.msra.mxu0 %v4511
    %5133 = vmatpush.bf16.msra.mxu0 %v4479
    %5134 = vmatpush.bf16.msra.mxu0 %v4447
    %5135 = vmatmul.bf16.gmra.mxu0 %v3336
    %v5136 = vpop.f32.mrf.mxu0
    %v5137 = vadd.f32 %v3615, %v5136
    %v5138 = vpop.f32.mrf.mxu0
    %5139 = vdwg.mxu0
    %5140 = vmatpush.bf16.msra.mxu0 %v4672
    %5141 = vmatpush.bf16.msra.mxu0 %v4640
    %5142 = vmatpush.bf16.msra.mxu0 %v4608
    %5143 = vmatpush.bf16.msra.mxu0 %v4576
    %5144 = vmatpush.bf16.msra.mxu0 %v4544
    %5145 = vmatpush.bf16.msra.mxu0 %v4512
    %5146 = vmatpush.bf16.msra.mxu0 %v4480
    %5147 = vmatpush.bf16.msra.mxu0 %v4448
    %5148 = vmatmul.bf16.gmra.mxu0 %v3336
    %v5149 = vpop.f32.mrf.mxu0
    %v5150 = vadd.f32 %v3616, %v5149
    %v5151 = vpop.f32.mrf.mxu0
    %5152 = vdwg.mxu0
    %5153 = vmatpush.bf16.msra.mxu0 %v4673
    %5154 = vmatpush.bf16.msra.mxu0 %v4641
    %5155 = vmatpush.bf16.msra.mxu0 %v4609
    %5156 = vmatpush.bf16.msra.mxu0 %v4577
    %5157 = vmatpush.bf16.msra.mxu0 %v4545
    %5158 = vmatpush.bf16.msra.mxu0 %v4513
    %5159 = vmatpush.bf16.msra.mxu0 %v4481
    %5160 = vmatpush.bf16.msra.mxu0 %v4449
    %5161 = vmatmul.bf16.gmra.mxu0 %v3336
    %v5162 = vpop.f32.mrf.mxu0
    %v5163 = vadd.f32 %v3617, %v5162
    %v5164 = vpop.f32.mrf.mxu0
    %5165 = vdwg.mxu0
    %5166 = vmatpush.bf16.msra.mxu0 %v4674
    %5167 = vmatpush.bf16.msra.mxu0 %v4642
    %5168 = vmatpush.bf16.msra.mxu0 %v4610
    %5169 = vmatpush.bf16.msra.mxu0 %v4578
    %5170 = vmatpush.bf16.msra.mxu0 %v4546
    %5171 = vmatpush.bf16.msra.mxu0 %v4514
    %5172 = vmatpush.bf16.msra.mxu0 %v4482
    %5173 = vmatpush.bf16.msra.mxu0 %v4450
    %5174 = vmatmul.bf16.gmra.mxu0 %v3336
    %v5175 = vpop.f32.mrf.mxu0
    %v5176 = vadd.f32 %v3618, %v5175
    %v5177 = vpop.f32.mrf.mxu0
    %5178 = vdwg.mxu0
    %5179 = vmatpush.bf16.msra.mxu0 %v4675
    %5180 = vmatpush.bf16.msra.mxu0 %v4643
    %5181 = vmatpush.bf16.msra.mxu0 %v4611
    %5182 = vmatpush.bf16.msra.mxu0 %v4579
    %5183 = vmatpush.bf16.msra.mxu0 %v4547
    %5184 = vmatpush.bf16.msra.mxu0 %v4515
    %5185 = vmatpush.bf16.msra.mxu0 %v4483
    %5186 = vmatpush.bf16.msra.mxu0 %v4451
    %5187 = vmatmul.bf16.gmra.mxu0 %v3336
    %v5188 = vpop.f32.mrf.mxu0
    %v5189 = vadd.f32 %v3619, %v5188
    %v5190 = vpop.f32.mrf.mxu0
    %5191 = vdwg.mxu0
    %5192 = vmatpush.bf16.msra.mxu0 %v4676
    %5193 = vmatpush.bf16.msra.mxu0 %v4644
    %5194 = vmatpush.bf16.msra.mxu0 %v4612
    %5195 = vmatpush.bf16.msra.mxu0 %v4580
    %5196 = vmatpush.bf16.msra.mxu0 %v4548
    %5197 = vmatpush.bf16.msra.mxu0 %v4516
    %5198 = vmatpush.bf16.msra.mxu0 %v4484
    %5199 = vmatpush.bf16.msra.mxu0 %v4452
    %5200 = vmatmul.bf16.gmra.mxu0 %v3336
    %v5201 = vpop.f32.mrf.mxu0
    %v5202 = vadd.f32 %v3620, %v5201
    %v5203 = vpop.f32.mrf.mxu0
    %5204 = vdwg.mxu0
    %5205 = vmatpush.bf16.msra.mxu0 %v4677
    %5206 = vmatpush.bf16.msra.mxu0 %v4645
    %5207 = vmatpush.bf16.msra.mxu0 %v4613
    %5208 = vmatpush.bf16.msra.mxu0 %v4581
    %5209 = vmatpush.bf16.msra.mxu0 %v4549
    %5210 = vmatpush.bf16.msra.mxu0 %v4517
    %5211 = vmatpush.bf16.msra.mxu0 %v4485
    %5212 = vmatpush.bf16.msra.mxu0 %v4453
    %5213 = vmatmul.bf16.gmra.mxu0 %v3336
    %v5214 = vpop.f32.mrf.mxu0
    %v5215 = vadd.f32 %v3621, %v5214
    %v5216 = vpop.f32.mrf.mxu0
    %5217 = vdwg.mxu0
    %5218 = vmatpush.bf16.msra.mxu0 %v4678
    %5219 = vmatpush.bf16.msra.mxu0 %v4646
    %5220 = vmatpush.bf16.msra.mxu0 %v4614
    %5221 = vmatpush.bf16.msra.mxu0 %v4582
    %5222 = vmatpush.bf16.msra.mxu0 %v4550
    %5223 = vmatpush.bf16.msra.mxu0 %v4518
    %5224 = vmatpush.bf16.msra.mxu0 %v4486
    %5225 = vmatpush.bf16.msra.mxu0 %v4454
    %5226 = vmatmul.bf16.gmra.mxu0 %v3336
    %v5227 = vpop.f32.mrf.mxu0
    %v5228 = vadd.f32 %v3622, %v5227
    %v5229 = vpop.f32.mrf.mxu0
    %5230 = vdwg.mxu0
    %5231 = vmatpush.bf16.msra.mxu0 %v4679
    %5232 = vmatpush.bf16.msra.mxu0 %v4647
    %5233 = vmatpush.bf16.msra.mxu0 %v4615
    %5234 = vmatpush.bf16.msra.mxu0 %v4583
    %5235 = vmatpush.bf16.msra.mxu0 %v4551
    %5236 = vmatpush.bf16.msra.mxu0 %v4519
    %5237 = vmatpush.bf16.msra.mxu0 %v4487
    %5238 = vmatpush.bf16.msra.mxu0 %v4455
    %5239 = vmatmul.bf16.gmra.mxu0 %v3336
    %v5240 = vpop.f32.mrf.mxu0
    %v5241 = vadd.f32 %v3623, %v5240
    %v5242 = vpop.f32.mrf.mxu0
    %5243 = vdwg.mxu0
    %5244 = vmatpush.bf16.msra.mxu0 %v4680
    %5245 = vmatpush.bf16.msra.mxu0 %v4648
    %5246 = vmatpush.bf16.msra.mxu0 %v4616
    %5247 = vmatpush.bf16.msra.mxu0 %v4584
    %5248 = vmatpush.bf16.msra.mxu0 %v4552
    %5249 = vmatpush.bf16.msra.mxu0 %v4520
    %5250 = vmatpush.bf16.msra.mxu0 %v4488
    %5251 = vmatpush.bf16.msra.mxu0 %v4456
    %5252 = vmatmul.bf16.gmra.mxu0 %v3336
    %v5253 = vpop.f32.mrf.mxu0
    %v5254 = vadd.f32 %v3624, %v5253
    %v5255 = vpop.f32.mrf.mxu0
    %5256 = vdwg.mxu0
    %5257 = vmatpush.bf16.msra.mxu0 %v4681
    %5258 = vmatpush.bf16.msra.mxu0 %v4649
    %5259 = vmatpush.bf16.msra.mxu0 %v4617
    %5260 = vmatpush.bf16.msra.mxu0 %v4585
    %5261 = vmatpush.bf16.msra.mxu0 %v4553
    %5262 = vmatpush.bf16.msra.mxu0 %v4521
    %5263 = vmatpush.bf16.msra.mxu0 %v4489
    %5264 = vmatpush.bf16.msra.mxu0 %v4457
    %5265 = vmatmul.bf16.gmra.mxu0 %v3336
    %v5266 = vpop.f32.mrf.mxu0
    %v5267 = vadd.f32 %v3625, %v5266
    %v5268 = vpop.f32.mrf.mxu0
    %5269 = vdwg.mxu0
    %5270 = vmatpush.bf16.msra.mxu0 %v4682
    %5271 = vmatpush.bf16.msra.mxu0 %v4650
    %5272 = vmatpush.bf16.msra.mxu0 %v4618
    %5273 = vmatpush.bf16.msra.mxu0 %v4586
    %5274 = vmatpush.bf16.msra.mxu0 %v4554
    %5275 = vmatpush.bf16.msra.mxu0 %v4522
    %5276 = vmatpush.bf16.msra.mxu0 %v4490
    %5277 = vmatpush.bf16.msra.mxu0 %v4458
    %5278 = vmatmul.bf16.gmra.mxu0 %v3336
    %v5279 = vpop.f32.mrf.mxu0
    %v5280 = vadd.f32 %v3626, %v5279
    %v5281 = vpop.f32.mrf.mxu0
    %5282 = vdwg.mxu0
    %5283 = vmatpush.bf16.msra.mxu0 %v4683
    %5284 = vmatpush.bf16.msra.mxu0 %v4651
    %5285 = vmatpush.bf16.msra.mxu0 %v4619
    %5286 = vmatpush.bf16.msra.mxu0 %v4587
    %5287 = vmatpush.bf16.msra.mxu0 %v4555
    %5288 = vmatpush.bf16.msra.mxu0 %v4523
    %5289 = vmatpush.bf16.msra.mxu0 %v4491
    %5290 = vmatpush.bf16.msra.mxu0 %v4459
    %5291 = vmatmul.bf16.gmra.mxu0 %v3336
    %v5292 = vpop.f32.mrf.mxu0
    %v5293 = vadd.f32 %v3627, %v5292
    %v5294 = vpop.f32.mrf.mxu0
    %5295 = vdwg.mxu0
    %5296 = vmatpush.bf16.msra.mxu0 %v4684
    %5297 = vmatpush.bf16.msra.mxu0 %v4652
    %5298 = vmatpush.bf16.msra.mxu0 %v4620
    %5299 = vmatpush.bf16.msra.mxu0 %v4588
    %5300 = vmatpush.bf16.msra.mxu0 %v4556
    %5301 = vmatpush.bf16.msra.mxu0 %v4524
    %5302 = vmatpush.bf16.msra.mxu0 %v4492
    %5303 = vmatpush.bf16.msra.mxu0 %v4460
    %5304 = vmatmul.bf16.gmra.mxu0 %v3336
    %v5305 = vpop.f32.mrf.mxu0
    %v5306 = vadd.f32 %v3628, %v5305
    %v5307 = vpop.f32.mrf.mxu0
    %5308 = vdwg.mxu0
    %5309 = vmatpush.bf16.msra.mxu0 %v4685
    %5310 = vmatpush.bf16.msra.mxu0 %v4653
    %5311 = vmatpush.bf16.msra.mxu0 %v4621
    %5312 = vmatpush.bf16.msra.mxu0 %v4589
    %5313 = vmatpush.bf16.msra.mxu0 %v4557
    %5314 = vmatpush.bf16.msra.mxu0 %v4525
    %5315 = vmatpush.bf16.msra.mxu0 %v4493
    %5316 = vmatpush.bf16.msra.mxu0 %v4461
    %5317 = vmatmul.bf16.gmra.mxu0 %v3336
    %v5318 = vpop.f32.mrf.mxu0
    %v5319 = vadd.f32 %v3629, %v5318
    %v5320 = vpop.f32.mrf.mxu0
    %5321 = vdwg.mxu0
    %5322 = vmatpush.bf16.msra.mxu0 %v4686
    %5323 = vmatpush.bf16.msra.mxu0 %v4654
    %5324 = vmatpush.bf16.msra.mxu0 %v4622
    %5325 = vmatpush.bf16.msra.mxu0 %v4590
    %5326 = vmatpush.bf16.msra.mxu0 %v4558
    %5327 = vmatpush.bf16.msra.mxu0 %v4526
    %5328 = vmatpush.bf16.msra.mxu0 %v4494
    %5329 = vmatpush.bf16.msra.mxu0 %v4462
    %5330 = vmatmul.bf16.gmra.mxu0 %v3336
    %v5331 = vpop.f32.mrf.mxu0
    %v5332 = vadd.f32 %v3630, %v5331
    %v5333 = vpop.f32.mrf.mxu0
    %5334 = vdwg.mxu0
    %5335 = vmatpush.bf16.msra.mxu0 %v4687
    %5336 = vmatpush.bf16.msra.mxu0 %v4655
    %5337 = vmatpush.bf16.msra.mxu0 %v4623
    %5338 = vmatpush.bf16.msra.mxu0 %v4591
    %5339 = vmatpush.bf16.msra.mxu0 %v4559
    %5340 = vmatpush.bf16.msra.mxu0 %v4527
    %5341 = vmatpush.bf16.msra.mxu0 %v4495
    %5342 = vmatpush.bf16.msra.mxu0 %v4463
    %5343 = vmatmul.bf16.gmra.mxu0 %v3336
    %v5344 = vpop.f32.mrf.mxu0
    %v5345 = vadd.f32 %v3631, %v5344
    %v5346 = vpop.f32.mrf.mxu0
    %5347 = vdwg.mxu0
    %5348 = vmatpush.bf16.msra.mxu0 %v4688
    %5349 = vmatpush.bf16.msra.mxu0 %v4656
    %5350 = vmatpush.bf16.msra.mxu0 %v4624
    %5351 = vmatpush.bf16.msra.mxu0 %v4592
    %5352 = vmatpush.bf16.msra.mxu0 %v4560
    %5353 = vmatpush.bf16.msra.mxu0 %v4528
    %5354 = vmatpush.bf16.msra.mxu0 %v4496
    %5355 = vmatpush.bf16.msra.mxu0 %v4464
    %5356 = vmatmul.bf16.gmra.mxu0 %v3336
    %v5357 = vpop.f32.mrf.mxu0
    %v5358 = vadd.f32 %v3632, %v5357
    %v5359 = vpop.f32.mrf.mxu0
    %5360 = vdwg.mxu0
    %v5361 = vpack.c.bf16 %v4968, %v4955
    %v5362 = vpack.c.bf16 %v4994, %v4981
    %v5363 = vpack.c.bf16 %v5020, %v5007
    %v5364 = vpack.c.bf16 %v5046, %v5033
    %v5365 = vpack.c.bf16 %v5072, %v5059
    %v5366 = vpack.c.bf16 %v5098, %v5085
    %v5367 = vpack.c.bf16 %v5124, %v5111
    %v5368 = vpack.c.bf16 %v5150, %v5137
    %v5369 = vpack.c.bf16 %v5176, %v5163
    %v5370 = vpack.c.bf16 %v5202, %v5189
    %v5371 = vpack.c.bf16 %v5228, %v5215
    %v5372 = vpack.c.bf16 %v5254, %v5241
    %v5373 = vpack.c.bf16 %v5280, %v5267
    %v5374 = vpack.c.bf16 %v5306, %v5293
    %v5375 = vpack.c.bf16 %v5332, %v5319
    %v5376 = vpack.c.bf16 %v5358, %v5345
    %v5377 = vunpack.c.l.bf16 %v5361
    %v5378 = vunpack.c.h.bf16 %v5361
    %v5379 = vunpack.c.l.bf16 %v5362
    %v5380 = vunpack.c.h.bf16 %v5362
    %v5381 = vunpack.c.l.bf16 %v5363
    %v5382 = vunpack.c.h.bf16 %v5363
    %v5383 = vunpack.c.l.bf16 %v5364
    %v5384 = vunpack.c.h.bf16 %v5364
    %v5385 = vunpack.c.l.bf16 %v5365
    %v5386 = vunpack.c.h.bf16 %v5365
    %v5387 = vunpack.c.l.bf16 %v5366
    %v5388 = vunpack.c.h.bf16 %v5366
    %v5389 = vunpack.c.l.bf16 %v5367
    %v5390 = vunpack.c.h.bf16 %v5367
    %v5391 = vunpack.c.l.bf16 %v5368
    %v5392 = vunpack.c.h.bf16 %v5368
    %v5393 = vunpack.c.l.bf16 %v5369
    %v5394 = vunpack.c.h.bf16 %v5369
    %v5395 = vunpack.c.l.bf16 %v5370
    %v5396 = vunpack.c.h.bf16 %v5370
    %v5397 = vunpack.c.l.bf16 %v5371
    %v5398 = vunpack.c.h.bf16 %v5371
    %v5399 = vunpack.c.l.bf16 %v5372
    %v5400 = vunpack.c.h.bf16 %v5372
    %v5401 = vunpack.c.l.bf16 %v5373
    %v5402 = vunpack.c.h.bf16 %v5373
    %v5403 = vunpack.c.l.bf16 %v5374
    %v5404 = vunpack.c.h.bf16 %v5374
    %v5405 = vunpack.c.l.bf16 %v5375
    %v5406 = vunpack.c.h.bf16 %v5375
    %v5407 = vunpack.c.l.bf16 %v5376
    %v5408 = vunpack.c.h.bf16 %v5376
    %v5409 = vtanh.pop %v5377
    %v5410 = vtanh.pop %v5378
    %v5411 = vtanh.pop %v5379
    %v5412 = vtanh.pop %v5380
    %v5413 = vtanh.pop %v5381
    %v5414 = vtanh.pop %v5382
    %v5415 = vtanh.pop %v5383
    %v5416 = vtanh.pop %v5384
    %v5417 = vtanh.pop %v5385
    %v5418 = vtanh.pop %v5386
    %v5419 = vtanh.pop %v5387
    %v5420 = vtanh.pop %v5388
    %v5421 = vtanh.pop %v5389
    %v5422 = vtanh.pop %v5390
    %v5423 = vtanh.pop %v5391
    %v5424 = vtanh.pop %v5392
    %v5425 = vtanh.pop %v5393
    %v5426 = vtanh.pop %v5394
    %v5427 = vtanh.pop %v5395
    %v5428 = vtanh.pop %v5396
    %v5429 = vtanh.pop %v5397
    %v5430 = vtanh.pop %v5398
    %v5431 = vtanh.pop %v5399
    %v5432 = vtanh.pop %v5400
    %v5433 = vtanh.pop %v5401
    %v5434 = vtanh.pop %v5402
    %v5435 = vtanh.pop %v5403
    %v5436 = vtanh.pop %v5404
    %v5437 = vtanh.pop %v5405
    %v5438 = vtanh.pop %v5406
    %v5439 = vtanh.pop %v5407
    %v5440 = vtanh.pop %v5408
    %v5441 = vpack.c.bf16 %v5410, %v5409
    %v5442 = vpack.c.bf16 %v5412, %v5411
    %v5443 = vpack.c.bf16 %v5414, %v5413
    %v5444 = vpack.c.bf16 %v5416, %v5415
    %v5445 = vpack.c.bf16 %v5418, %v5417
    %v5446 = vpack.c.bf16 %v5420, %v5419
    %v5447 = vpack.c.bf16 %v5422, %v5421
    %v5448 = vpack.c.bf16 %v5424, %v5423
    %v5449 = vpack.c.bf16 %v5426, %v5425
    %v5450 = vpack.c.bf16 %v5428, %v5427
    %v5451 = vpack.c.bf16 %v5430, %v5429
    %v5452 = vpack.c.bf16 %v5432, %v5431
    %v5453 = vpack.c.bf16 %v5434, %v5433
    %v5454 = vpack.c.bf16 %v5436, %v5435
    %v5455 = vpack.c.bf16 %v5438, %v5437
    %v5456 = vpack.c.bf16 %v5440, %v5439
    %5457 = vst [vmem:[#allocation17] sm:$0xff] %v5441
    %5458 = vst [vmem:[#allocation17 + $0x8] sm:$0xff] %v5442
    %5459 = vst [vmem:[#allocation17 + $0x10] sm:$0xff] %v5443
    %5460 = vst [vmem:[#allocation17 + $0x18] sm:$0xff] %v5444
    %5461 = vst [vmem:[#allocation17 + $0x20] sm:$0xff] %v5445
    %5462 = vst [vmem:[#allocation17 + $0x28] sm:$0xff] %v5446
    %5463 = vst [vmem:[#allocation17 + $0x30] sm:$0xff] %v5447
    %5464 = vst [vmem:[#allocation17 + $0x38] sm:$0xff] %v5448
    %5465 = vst [vmem:[#allocation17 + $0x40] sm:$0xff] %v5449
    %5466 = vst [vmem:[#allocation17 + $0x48] sm:$0xff] %v5450
    %5467 = vst [vmem:[#allocation17 + $0x50] sm:$0xff] %v5451
    %5468 = vst [vmem:[#allocation17 + $0x58] sm:$0xff] %v5452
    %5469 = vst [vmem:[#allocation17 + $0x60] sm:$0xff] %v5453
    %5470 = vst [vmem:[#allocation17 + $0x68] sm:$0xff] %v5454
    %5471 = vst [vmem:[#allocation17 + $0x70] sm:$0xff] %v5455
    %5472 = vst [vmem:[#allocation17 + $0x78] sm:$0xff] %v5456
    // Predicated region
    $region82: #{tpu_custom_call.1} parent=1 // pred_check
      _
    $region83: #{tpu_custom_call.1} parent=1 // pred_check_branch
      %5474 = sbr.rel (0) target = $region85
    $region84: #{tpu_custom_call.1} parent=1 // pred_region
      %5476 = vsyncadd [#allocation4], 0
      %s5478 = sshll.u32 [#allocation17], 4
      %s5479 = int_to_ptr.vmem [resolvable:$true] %s5478
      %s5480 = sshll.u32 %s11, 4
      %s5481 = int_to_ptr.hbm [resolvable:$true] %s5480
      %5483 = dma.vmem_to_hbm [thread:$0]  %s5479, 2048, %s5481, [#allocation4]
    $region85: #{tpu_custom_call.1} parent=1 // pred_fallthru
      _
    // Predicated region
    $region86: #{tpu_custom_call.1} parent=1 // pred_check
      _
    $region87: #{tpu_custom_call.1} parent=1 // pred_check_branch
      %5485 = sbr.rel (0) target = $region89
    $region88: #{tpu_custom_call.1} parent=1 // pred_region
      %5487 = dma.done [#allocation4], 2048
    $region89: #{tpu_custom_call.1} parent=1 // pred_fallthru
      _
    %5488 = vsyncpa [#allocation3], 1
    %5489 = vsyncpa [#allocation6], 1
    %5490 = vsyncpa [#allocation9], 1
    %5491 = vsyncpa [#allocation12], 1
    %5492 = vsyncpa [#allocation15], 1
    %5493 = vsyncpa [#allocation4], 1

// kernel: tpu_custom_call.1
$region0: #{tpu_custom_call.1}
  #allocation0 [shape = 'u32[]', space=smem, size = 0x4, offset = 0x4, fixed_abs, tag = 'smem constant byte address 0x4 - core index']
  #allocation1 [shape = 'u32[72,128]{1,0:T(1,128)}', space=vmem, size = 0x9000, scoped, tag = 'internal scratch']
  %s0 = inlined_call_operand.hbm [shape: bf16[8,128], index: 0, kind: input, shape index: {}]
  %s1 = inlined_call_operand.hbm [shape: bf16[128,1024], index: 1, kind: input, shape index: {}]
  %s2 = inlined_call_operand.hbm [shape: f32[1,1024], index: 2, kind: input, shape index: {}]
  %s3 = inlined_call_operand.hbm [shape: bf16[1024,512], index: 3, kind: input, shape index: {}]
  %s4 = inlined_call_operand.hbm [shape: f32[1,512], index: 4, kind: input, shape index: {}]
  %s5 = inlined_call_operand.hbm [shape: bf16[512,256], index: 5, kind: input, shape index: {}]
  %s6 = inlined_call_operand.vmem [shape: f32[1,256], index: 6, kind: input, shape index: {}]
  %s7 = inlined_call_operand.hbm [shape: bf16[256,128], index: 7, kind: input, shape index: {}]
  %s8 = inlined_call_operand.vmem [shape: f32[1,128], index: 8, kind: input, shape index: {}]
  %s9 = inlined_call_operand.hbm [shape: bf16[128,4096], index: 9, kind: input, shape index: {}]
  %s10 = inlined_call_operand.hbm [shape: f32[1,4096], index: 10, kind: input, shape index: {}]
  %s11 = inlined_call_operand.hbm [shape: bf16[8,4096], index: 11, kind: output, shape index: {}]
  %s12 = sld [smem:[#allocation0]]
  $region90: #{tpu_custom_call.1} parent=0
    _
  %s14 = ssub.s32 1, %s12
  %s15 = scalar_select 0, %s14, %s12
  $region1: #{tpu_custom_call.1} parent=0
    #allocation2 [shape = 'u8[2048]{0}', space=vmem, size = 0x800, scoped, tag = 'input window, operand 0, single buffered']
    #allocation3 [shape = 's32[1]{0}', space=sflag, size = 0x4, scoped, tag = 'scoped memory for tpu_custom_call.1']
    #allocation4 [shape = 's32[1]{0}', space=sflag, size = 0x4, scoped, tag = 'scoped memory for tpu_custom_call.1']
    #allocation5 [shape = 'u8[262144]{0}', space=vmem, size = 0x40000, scoped, tag = 'input window, operand 1, single buffered']
    #allocation6 [shape = 's32[1]{0}', space=sflag, size = 0x4, scoped, tag = 'scoped memory for tpu_custom_call.1']
    #allocation7 [shape = 'u8[4096]{0}', space=vmem, size = 0x1000, scoped, tag = 'input window, operand 2, single buffered']
    #allocation8 [shape = 'u8[1048576]{0}', space=vmem, size = 0x100000, scoped, tag = 'input window, operand 3, single buffered']
    #allocation9 [shape = 's32[1]{0}', space=sflag, size = 0x4, scoped, tag = 'scoped memory for tpu_custom_call.1']
    #allocation10 [shape = 'u8[2048]{0}', space=vmem, size = 0x800, scoped, tag = 'input window, operand 4, single buffered']
    #allocation11 [shape = 'u8[262144]{0}', space=vmem, size = 0x40000, scoped, tag = 'input window, operand 5, single buffered']
    #allocation12 [shape = 's32[1]{0}', space=sflag, size = 0x4, scoped, tag = 'scoped memory for tpu_custom_call.1']
    #allocation13 [shape = 'u8[65536]{0}', space=vmem, size = 0x10000, scoped, tag = 'input window, operand 7, single buffered']
    #allocation14 [shape = 'u8[1048576]{0}', space=vmem, size = 0x100000, scoped, tag = 'input window, operand 9, single buffered']
    #allocation15 [shape = 's32[1]{0}', space=sflag, size = 0x4, scoped, tag = 'scoped memory for tpu_custom_call.1']
    #allocation16 [shape = 'u8[16384]{0}', space=vmem, size = 0x4000, scoped, tag = 'input window, operand 10, single buffered']
    #allocation17 [shape = 'u8[65536]{0}', space=vmem, size = 0x10000, scoped, tag = 'output window, operand 0, single buffered']
    %16 = vsyncpa [#allocation3], 0
    %17 = vsyncpa [#allocation6], 0
    %18 = vsyncpa [#allocation9], 0
    %19 = vsyncpa [#allocation12], 0
    %20 = vsyncpa [#allocation15], 0
    %21 = vsyncpa [#allocation4], 0
    // Predicated region
    $region2: #{tpu_custom_call.1} parent=1 // pred_check
      _
    $region3: #{tpu_custom_call.1} parent=1 // pred_check_branch
      %23 = sbr.rel (0) target = $region5
    $region4: #{tpu_custom_call.1} parent=1 // pred_region
      %25 = vsyncadd [#allocation3], 0
      %s27 = sshll.u32 %s0, 4
      %s28 = int_to_ptr.hbm [resolvable:$true] %s27
      %s29 = sshll.u32 [#allocation2], 4
      %s30 = int_to_ptr.vmem [resolvable:$true] %s29
      %32 = dma.hbm_to_vmem [thread:$0]  %s28, 64, %s30, [#allocation3]
    $region5: #{tpu_custom_call.1} parent=1 // pred_fallthru
      _
    // Predicated region
    $region6: #{tpu_custom_call.1} parent=1 // pred_check
      _
    $region7: #{tpu_custom_call.1} parent=1 // pred_check_branch
      %34 = sbr.rel (0) target = $region9
    $region8: #{tpu_custom_call.1} parent=1 // pred_region
      %36 = vsyncadd [#allocation6], 0
      %s37 = sshll.u32 %s1, 4
      %s38 = int_to_ptr.hbm [resolvable:$true] %s37
      %s39 = sshll.u32 [#allocation5], 4
      %s40 = int_to_ptr.vmem [resolvable:$true] %s39
      %45 = dma.hbm_to_vmem [thread:$0]  %s38, 8192, %s40, [#allocation6], 512, 512, 32
    $region9: #{tpu_custom_call.1} parent=1 // pred_fallthru
      _
    // Predicated region
    $region10: #{tpu_custom_call.1} parent=1 // pred_check
      _
    $region11: #{tpu_custom_call.1} parent=1 // pred_check_branch
      %47 = sbr.rel (0) target = $region13
    $region12: #{tpu_custom_call.1} parent=1 // pred_region
      %49 = vsyncadd [#allocation6], 0
      %s51 = sshll.u32 %s2, 4
      %s52 = int_to_ptr.hbm [resolvable:$true] %s51
      %s53 = sshll.u32 [#allocation7], 4
      %s54 = int_to_ptr.vmem [resolvable:$true] %s53
      %56 = dma.hbm_to_vmem [thread:$0]  %s52, 128, %s54, [#allocation6]
    $region13: #{tpu_custom_call.1} parent=1 // pred_fallthru
      _
    // Predicated region
    $region14: #{tpu_custom_call.1} parent=1 // pred_check
      _
    $region15: #{tpu_custom_call.1} parent=1 // pred_check_branch
      %58 = sbr.rel (0) target = $region17
    $region16: #{tpu_custom_call.1} parent=1 // pred_region
      %60 = vsyncadd [#allocation9], 0
      %s61 = sshll.u32 %s3, 4
      %s62 = int_to_ptr.hbm [resolvable:$true] %s61
      %s63 = sshll.u32 [#allocation8], 4
      %s64 = int_to_ptr.vmem [resolvable:$true] %s63
      %69 = dma.hbm_to_vmem [thread:$0]  %s62, 32768, %s64, [#allocation9], 256, 256, 16
    $region17: #{tpu_custom_call.1} parent=1 // pred_fallthru
      _
    // Predicated region
    $region18: #{tpu_custom_call.1} parent=1 // pred_check
      _
    $region19: #{tpu_custom_call.1} parent=1 // pred_check_branch
      %71 = sbr.rel (0) target = $region21
    $region20: #{tpu_custom_call.1} parent=1 // pred_region
      %73 = vsyncadd [#allocation9], 0
      %s75 = sshll.u32 %s4, 4
      %s76 = int_to_ptr.hbm [resolvable:$true] %s75
      %s77 = sshll.u32 [#allocation10], 4
      %s78 = int_to_ptr.vmem [resolvable:$true] %s77
      %80 = dma.hbm_to_vmem [thread:$0]  %s76, 64, %s78, [#allocation9]
    $region21: #{tpu_custom_call.1} parent=1 // pred_fallthru
      _
    // Predicated region
    $region22: #{tpu_custom_call.1} parent=1 // pred_check
      _
    $region23: #{tpu_custom_call.1} parent=1 // pred_check_branch
      %82 = sbr.rel (0) target = $region25
    $region24: #{tpu_custom_call.1} parent=1 // pred_region
      %84 = vsyncadd [#allocation12], 0
      %s85 = sshll.u32 %s5, 4
      %s86 = int_to_ptr.hbm [resolvable:$true] %s85
      %s87 = sshll.u32 [#allocation11], 4
      %s88 = int_to_ptr.vmem [resolvable:$true] %s87
      %93 = dma.hbm_to_vmem [thread:$0]  %s86, 8192, %s88, [#allocation12], 128, 128, 8
    $region25: #{tpu_custom_call.1} parent=1 // pred_fallthru
      _
    // Predicated region
    $region26: #{tpu_custom_call.1} parent=1 // pred_check
      _
    $region27: #{tpu_custom_call.1} parent=1 // pred_check_branch
      %95 = sbr.rel (0) target = $region29
    $region28: #{tpu_custom_call.1} parent=1 // pred_region
      _
    $region29: #{tpu_custom_call.1} parent=1 // pred_fallthru
      _
    // Predicated region
    $region30: #{tpu_custom_call.1} parent=1 // pred_check
      _
    $region31: #{tpu_custom_call.1} parent=1 // pred_check_branch
      %97 = sbr.rel (0) target = $region33
    $region32: #{tpu_custom_call.1} parent=1 // pred_region
      %99 = vsyncadd [#allocation12], 0
      %s100 = sshll.u32 %s7, 4
      %s101 = int_to_ptr.hbm [resolvable:$true] %s100
      %s102 = sshll.u32 [#allocation13], 4
      %s103 = int_to_ptr.vmem [resolvable:$true] %s102
      %108 = dma.hbm_to_vmem [thread:$0]  %s101, 2048, %s103, [#allocation12], 64, 64, 4
    $region33: #{tpu_custom_call.1} parent=1 // pred_fallthru
      _
    // Predicated region
    $region34: #{tpu_custom_call.1} parent=1 // pred_check
      _
    $region35: #{tpu_custom_call.1} parent=1 // pred_check_branch
      %110 = sbr.rel (0) target = $region37
    $region36: #{tpu_custom_call.1} parent=1 // pred_region
      _
    $region37: #{tpu_custom_call.1} parent=1 // pred_fallthru
      _
    // Predicated region
    $region38: #{tpu_custom_call.1} parent=1 // pred_check
      _
    $region39: #{tpu_custom_call.1} parent=1 // pred_check_branch
      %112 = sbr.rel (0) target = $region41
    $region40: #{tpu_custom_call.1} parent=1 // pred_region
      %114 = vsyncadd [#allocation15], 0
      %s115 = sshll.u32 %s9, 4
      %s116 = int_to_ptr.hbm [resolvable:$true] %s115
      %s117 = sshll.u32 [#allocation14], 4
      %s118 = int_to_ptr.vmem [resolvable:$true] %s117
      %123 = dma.hbm_to_vmem [thread:$0]  %s116, 32768, %s118, [#allocation15], 2048, 2048, 128
    $region41: #{tpu_custom_call.1} parent=1 // pred_fallthru
      _
    // Predicated region
    $region42: #{tpu_custom_call.1} parent=1 // pred_check
      _
    $region43: #{tpu_custom_call.1} parent=1 // pred_check_branch
      %125 = sbr.rel (0) target = $region45
    $region44: #{tpu_custom_call.1} parent=1 // pred_region
      %127 = vsyncadd [#allocation15], 0
      %s129 = sshll.u32 %s10, 4
      %s130 = int_to_ptr.hbm [resolvable:$true] %s129
      %s131 = sshll.u32 [#allocation16], 4
      %s132 = int_to_ptr.vmem [resolvable:$true] %s131
      %134 = dma.hbm_to_vmem [thread:$0]  %s130, 512, %s132, [#allocation15]
    $region45: #{tpu_custom_call.1} parent=1 // pred_fallthru
      _
    // Predicated region
    $region46: #{tpu_custom_call.1} parent=1 // pred_check
      _
    $region47: #{tpu_custom_call.1} parent=1 // pred_check_branch
      %136 = sbr.rel (0) target = $region49
    $region48: #{tpu_custom_call.1} parent=1 // pred_region
      %138 = dma.done [#allocation3], 64
    $region49: #{tpu_custom_call.1} parent=1 // pred_fallthru
      _
    // Predicated region
    $region50: #{tpu_custom_call.1} parent=1 // pred_check
      _
    $region51: #{tpu_custom_call.1} parent=1 // pred_check_branch
      %140 = sbr.rel (0) target = $region53
    $region52: #{tpu_custom_call.1} parent=1 // pred_region
      %142 = dma.done [#allocation6], 8192
    $region53: #{tpu_custom_call.1} parent=1 // pred_fallthru
      _
    // Predicated region
    $region54: #{tpu_custom_call.1} parent=1 // pred_check
      _
    $region55: #{tpu_custom_call.1} parent=1 // pred_check_branch
      %144 = sbr.rel (0) target = $region57
    $region56: #{tpu_custom_call.1} parent=1 // pred_region
      %146 = dma.done [#allocation6], 128
    $region57: #{tpu_custom_call.1} parent=1 // pred_fallthru
      _
    // Predicated region
    $region58: #{tpu_custom_call.1} parent=1 // pred_check
      _
    $region59: #{tpu_custom_call.1} parent=1 // pred_check_branch
      %148 = sbr.rel (0) target = $region61
    $region60: #{tpu_custom_call.1} parent=1 // pred_region
      %150 = dma.done [#allocation9], 32768
    $region61: #{tpu_custom_call.1} parent=1 // pred_fallthru
      _
    // Predicated region
    $region62: #{tpu_custom_call.1} parent=1 // pred_check
      _
    $region63: #{tpu_custom_call.1} parent=1 // pred_check_branch
      %152 = sbr.rel (0) target = $region65
    $region64: #{tpu_custom_call.1} parent=1 // pred_region
      %154 = dma.done [#allocation9], 64
    $region65: #{tpu_custom_call.1} parent=1 // pred_fallthru
      _
    // Predicated region
    $region66: #{tpu_custom_call.1} parent=1 // pred_check
      _
    $region67: #{tpu_custom_call.1} parent=1 // pred_check_branch
      %156 = sbr.rel (0) target = $region69
    $region68: #{tpu_custom_call.1} parent=1 // pred_region
      %158 = dma.done [#allocation12], 8192
    $region69: #{tpu_custom_call.1} parent=1 // pred_fallthru
      _
    // Predicated region
    $region70: #{tpu_custom_call.1} parent=1 // pred_check
      _
    $region71: #{tpu_custom_call.1} parent=1 // pred_check_branch
      %160 = sbr.rel (0) target = $region73
    $region72: #{tpu_custom_call.1} parent=1 // pred_region
      %162 = dma.done [#allocation12], 2048
    $region73: #{tpu_custom_call.1} parent=1 // pred_fallthru
      _
    // Predicated region
    $region74: #{tpu_custom_call.1} parent=1 // pred_check
      _
    $region75: #{tpu_custom_call.1} parent=1 // pred_check_branch
      %164 = sbr.rel (0) target = $region77
    $region76: #{tpu_custom_call.1} parent=1 // pred_region
      %166 = dma.done [#allocation15], 32768
    $region77: #{tpu_custom_call.1} parent=1 // pred_fallthru
      _
    // Predicated region
    $region78: #{tpu_custom_call.1} parent=1 // pred_check
      _
    $region79: #{tpu_custom_call.1} parent=1 // pred_check_branch
      %168 = sbr.rel (0) target = $region81
    $region80: #{tpu_custom_call.1} parent=1 // pred_region
      %170 = dma.done [#allocation15], 512
    $region81: #{tpu_custom_call.1} parent=1 // pred_fallthru
      _
    %v171 = vld [vmem:[#allocation2] sm:$0xf]
    %v172 = vld [vmem:[#allocation5] sm:$0xff]
    %v173 = vld [vmem:[#allocation5 + $0x8] sm:$0xff]
    %v174 = vld [vmem:[#allocation5 + $0x10] sm:$0xff]
    %v175 = vld [vmem:[#allocation5 + $0x18] sm:$0xff]
    %v176 = vld [vmem:[#allocation5 + $0x20] sm:$0xff]
    %v177 = vld [vmem:[#allocation5 + $0x28] sm:$0xff]
    %v178 = vld [vmem:[#allocation5 + $0x30] sm:$0xff]
    %v179 = vld [vmem:[#allocation5 + $0x38] sm:$0xff]
    %v180 = vld [vmem:[#allocation5 + $0x40] sm:$0xff]
    %v181 = vld [vmem:[#allocation5 + $0x48] sm:$0xff]
    %v182 = vld [vmem:[#allocation5 + $0x50] sm:$0xff]
    %v183 = vld [vmem:[#allocation5 + $0x58] sm:$0xff]
    %v184 = vld [vmem:[#allocation5 + $0x60] sm:$0xff]
    %v185 = vld [vmem:[#allocation5 + $0x68] sm:$0xff]
    %v186 = vld [vmem:[#allocation5 + $0x70] sm:$0xff]
    %v187 = vld [vmem:[#allocation5 + $0x78] sm:$0xff]
    %v188 = vld [vmem:[#allocation5 + $0x80] sm:$0xff]
    %v189 = vld [vmem:[#allocation5 + $0x88] sm:$0xff]
    %v190 = vld [vmem:[#allocation5 + $0x90] sm:$0xff]
    %v191 = vld [vmem:[#allocation5 + $0x98] sm:$0xff]
    %v192 = vld [vmem:[#allocation5 + $0xa0] sm:$0xff]
    %v193 = vld [vmem:[#allocation5 + $0xa8] sm:$0xff]
    %v194 = vld [vmem:[#allocation5 + $0xb0] sm:$0xff]
    %v195 = vld [vmem:[#allocation5 + $0xb8] sm:$0xff]
    %v196 = vld [vmem:[#allocation5 + $0xc0] sm:$0xff]
    %v197 = vld [vmem:[#allocation5 + $0xc8] sm:$0xff]
    %v198 = vld [vmem:[#allocation5 + $0xd0] sm:$0xff]
    %v199 = vld [vmem:[#allocation5 + $0xd8] sm:$0xff]
    %v200 = vld [vmem:[#allocation5 + $0xe0] sm:$0xff]
    %v201 = vld [vmem:[#allocation5 + $0xe8] sm:$0xff]
    %v202 = vld [vmem:[#allocation5 + $0xf0] sm:$0xff]
    %v203 = vld [vmem:[#allocation5 + $0xf8] sm:$0xff]
    %v204 = vld [vmem:[#allocation5 + $0x100] sm:$0xff]
    %v205 = vld [vmem:[#allocation5 + $0x108] sm:$0xff]
    %v206 = vld [vmem:[#allocation5 + $0x110] sm:$0xff]
    %v207 = vld [vmem:[#allocation5 + $0x118] sm:$0xff]
    %v208 = vld [vmem:[#allocation5 + $0x120] sm:$0xff]
    %v209 = vld [vmem:[#allocation5 + $0x128] sm:$0xff]
    %v210 = vld [vmem:[#allocation5 + $0x130] sm:$0xff]
    %v211 = vld [vmem:[#allocation5 + $0x138] sm:$0xff]
    %v212 = vld [vmem:[#allocation5 + $0x140] sm:$0xff]
    %v213 = vld [vmem:[#allocation5 + $0x148] sm:$0xff]
    %v214 = vld [vmem:[#allocation5 + $0x150] sm:$0xff]
    %v215 = vld [vmem:[#allocation5 + $0x158] sm:$0xff]
    %v216 = vld [vmem:[#allocation5 + $0x160] sm:$0xff]
    %v217 = vld [vmem:[#allocation5 + $0x168] sm:$0xff]
    %v218 = vld [vmem:[#allocation5 + $0x170] sm:$0xff]
    %v219 = vld [vmem:[#allocation5 + $0x178] sm:$0xff]
    %v220 = vld [vmem:[#allocation5 + $0x180] sm:$0xff]
    %v221 = vld [vmem:[#allocation5 + $0x188] sm:$0xff]
    %v222 = vld [vmem:[#allocation5 + $0x190] sm:$0xff]
    %v223 = vld [vmem:[#allocation5 + $0x198] sm:$0xff]
    %v224 = vld [vmem:[#allocation5 + $0x1a0] sm:$0xff]
    %v225 = vld [vmem:[#allocation5 + $0x1a8] sm:$0xff]
    %v226 = vld [vmem:[#allocation5 + $0x1b0] sm:$0xff]
    %v227 = vld [vmem:[#allocation5 + $0x1b8] sm:$0xff]
    %v228 = vld [vmem:[#allocation5 + $0x1c0] sm:$0xff]
    %v229 = vld [vmem:[#allocation5 + $0x1c8] sm:$0xff]
    %v230 = vld [vmem:[#allocation5 + $0x1d0] sm:$0xff]
    %v231 = vld [vmem:[#allocation5 + $0x1d8] sm:$0xff]
    %v232 = vld [vmem:[#allocation5 + $0x1e0] sm:$0xff]
    %v233 = vld [vmem:[#allocation5 + $0x1e8] sm:$0xff]
    %v234 = vld [vmem:[#allocation5 + $0x1f0] sm:$0xff]
    %v235 = vld [vmem:[#allocation5 + $0x1f8] sm:$0xff]
    %v236 = vld [vmem:[#allocation7] sm:$0xff]
    %v238 = vperm.slane %v236, 0
    %v239 = vperm.slane %v236, 1
    %v240 = vperm.slane %v236, 2
    %v241 = vperm.slane %v236, 3
    %v242 = vperm.slane %v236, 4
    %v243 = vperm.slane %v236, 5
    %v244 = vperm.slane %v236, 6
    %v245 = vperm.slane %v236, 7
    %v318 = vunpack.c.l.b16 %v172
    %v319 = vunpack.c.h.b16 %v172
    %v320 = vunpack.c.l.b16 %v173
    %v321 = vunpack.c.h.b16 %v173
    %v322 = vunpack.c.l.b16 %v174
    %v323 = vunpack.c.h.b16 %v174
    %v324 = vunpack.c.l.b16 %v175
    %v325 = vunpack.c.h.b16 %v175
    %v326 = vunpack.c.l.b16 %v176
    %v327 = vunpack.c.h.b16 %v176
    %v328 = vunpack.c.l.b16 %v177
    %v329 = vunpack.c.h.b16 %v177
    %v330 = vunpack.c.l.b16 %v178
    %v331 = vunpack.c.h.b16 %v178
    %v332 = vunpack.c.l.b16 %v179
    %v333 = vunpack.c.h.b16 %v179
    %v334 = vunpack.c.l.b16 %v180
    %v335 = vunpack.c.h.b16 %v180
    %v336 = vunpack.c.l.b16 %v181
    %v337 = vunpack.c.h.b16 %v181
    %v338 = vunpack.c.l.b16 %v182
    %v339 = vunpack.c.h.b16 %v182
    %v340 = vunpack.c.l.b16 %v183
    %v341 = vunpack.c.h.b16 %v183
    %v342 = vunpack.c.l.b16 %v184
    %v343 = vunpack.c.h.b16 %v184
    %v344 = vunpack.c.l.b16 %v185
    %v345 = vunpack.c.h.b16 %v185
    %v346 = vunpack.c.l.b16 %v186
    %v347 = vunpack.c.h.b16 %v186
    %v348 = vunpack.c.l.b16 %v187
    %v349 = vunpack.c.h.b16 %v187
    %v350 = vunpack.c.l.b16 %v188
    %v351 = vunpack.c.h.b16 %v188
    %v352 = vunpack.c.l.b16 %v189
    %v353 = vunpack.c.h.b16 %v189
    %v354 = vunpack.c.l.b16 %v190
    %v355 = vunpack.c.h.b16 %v190
    %v356 = vunpack.c.l.b16 %v191
    %v357 = vunpack.c.h.b16 %v191
    %v358 = vunpack.c.l.b16 %v192
    %v359 = vunpack.c.h.b16 %v192
    %v360 = vunpack.c.l.b16 %v193
    %v361 = vunpack.c.h.b16 %v193
    %v362 = vunpack.c.l.b16 %v194
    %v363 = vunpack.c.h.b16 %v194
    %v364 = vunpack.c.l.b16 %v195
    %v365 = vunpack.c.h.b16 %v195
    %v366 = vunpack.c.l.b16 %v196
    %v367 = vunpack.c.h.b16 %v196
    %v368 = vunpack.c.l.b16 %v197
    %v369 = vunpack.c.h.b16 %v197
    %v370 = vunpack.c.l.b16 %v198
    %v371 = vunpack.c.h.b16 %v198
    %v372 = vunpack.c.l.b16 %v199
    %v373 = vunpack.c.h.b16 %v199
    %v374 = vunpack.c.l.b16 %v200
    %v375 = vunpack.c.h.b16 %v200
    %v376 = vunpack.c.l.b16 %v201
    %v377 = vunpack.c.h.b16 %v201
    %v378 = vunpack.c.l.b16 %v202
    %v379 = vunpack.c.h.b16 %v202
    %v380 = vunpack.c.l.b16 %v203
    %v381 = vunpack.c.h.b16 %v203
    %v382 = vunpack.c.l.b16 %v204
    %v383 = vunpack.c.h.b16 %v204
    %v384 = vunpack.c.l.b16 %v205
    %v385 = vunpack.c.h.b16 %v205
    %v386 = vunpack.c.l.b16 %v206
    %v387 = vunpack.c.h.b16 %v206
    %v388 = vunpack.c.l.b16 %v207
    %v389 = vunpack.c.h.b16 %v207
    %v390 = vunpack.c.l.b16 %v208
    %v391 = vunpack.c.h.b16 %v208
    %v392 = vunpack.c.l.b16 %v209
    %v393 = vunpack.c.h.b16 %v209
    %v394 = vunpack.c.l.b16 %v210
    %v395 = vunpack.c.h.b16 %v210
    %v396 = vunpack.c.l.b16 %v211
    %v397 = vunpack.c.h.b16 %v211
    %v398 = vunpack.c.l.b16 %v212
    %v399 = vunpack.c.h.b16 %v212
    %v400 = vunpack.c.l.b16 %v213
    %v401 = vunpack.c.h.b16 %v213
    %v402 = vunpack.c.l.b16 %v214
    %v403 = vunpack.c.h.b16 %v214
    %v404 = vunpack.c.l.b16 %v215
    %v405 = vunpack.c.h.b16 %v215
    %v406 = vunpack.c.l.b16 %v216
    %v407 = vunpack.c.h.b16 %v216
    %v408 = vunpack.c.l.b16 %v217
    %v409 = vunpack.c.h.b16 %v217
    %v410 = vunpack.c.l.b16 %v218
    %v411 = vunpack.c.h.b16 %v218
    %v412 = vunpack.c.l.b16 %v219
    %v413 = vunpack.c.h.b16 %v219
    %v414 = vunpack.c.l.b16 %v220
    %v415 = vunpack.c.h.b16 %v220
    %v416 = vunpack.c.l.b16 %v221
    %v417 = vunpack.c.h.b16 %v221
    %v418 = vunpack.c.l.b16 %v222
    %v419 = vunpack.c.h.b16 %v222
    %v420 = vunpack.c.l.b16 %v223
    %v421 = vunpack.c.h.b16 %v223
    %v422 = vunpack.c.l.b16 %v224
    %v423 = vunpack.c.h.b16 %v224
    %v424 = vunpack.c.l.b16 %v225
    %v425 = vunpack.c.h.b16 %v225
    %v426 = vunpack.c.l.b16 %v226
    %v427 = vunpack.c.h.b16 %v226
    %v428 = vunpack.c.l.b16 %v227
    %v429 = vunpack.c.h.b16 %v227
    %v430 = vunpack.c.l.b16 %v228
    %v431 = vunpack.c.h.b16 %v228
    %v432 = vunpack.c.l.b16 %v229
    %v433 = vunpack.c.h.b16 %v229
    %v434 = vunpack.c.l.b16 %v230
    %v435 = vunpack.c.h.b16 %v230
    %v436 = vunpack.c.l.b16 %v231
    %v437 = vunpack.c.h.b16 %v231
    %v438 = vunpack.c.l.b16 %v232
    %v439 = vunpack.c.h.b16 %v232
    %v440 = vunpack.c.l.b16 %v233
    %v441 = vunpack.c.h.b16 %v233
    %v442 = vunpack.c.l.b16 %v234
    %v443 = vunpack.c.h.b16 %v234
    %v444 = vunpack.c.l.b16 %v235
    %v445 = vunpack.c.h.b16 %v235
    %v446 = vpack.c.b16 %v326, %v318
    %v447 = vpack.c.b16 %v327, %v319
    %v448 = vpack.c.b16 %v328, %v320
    %v449 = vpack.c.b16 %v329, %v321
    %v450 = vpack.c.b16 %v330, %v322
    %v451 = vpack.c.b16 %v331, %v323
    %v452 = vpack.c.b16 %v332, %v324
    %v453 = vpack.c.b16 %v333, %v325
    %v454 = vpack.c.b16 %v342, %v334
    %v455 = vpack.c.b16 %v343, %v335
    %v456 = vpack.c.b16 %v344, %v336
    %v457 = vpack.c.b16 %v345, %v337
    %v458 = vpack.c.b16 %v346, %v338
    %v459 = vpack.c.b16 %v347, %v339
    %v460 = vpack.c.b16 %v348, %v340
    %v461 = vpack.c.b16 %v349, %v341
    %v462 = vpack.c.b16 %v358, %v350
    %v463 = vpack.c.b16 %v359, %v351
    %v464 = vpack.c.b16 %v360, %v352
    %v465 = vpack.c.b16 %v361, %v353
    %v466 = vpack.c.b16 %v362, %v354
    %v467 = vpack.c.b16 %v363, %v355
    %v468 = vpack.c.b16 %v364, %v356
    %v469 = vpack.c.b16 %v365, %v357
    %v470 = vpack.c.b16 %v374, %v366
    %v471 = vpack.c.b16 %v375, %v367
    %v472 = vpack.c.b16 %v376, %v368
    %v473 = vpack.c.b16 %v377, %v369
    %v474 = vpack.c.b16 %v378, %v370
    %v475 = vpack.c.b16 %v379, %v371
    %v476 = vpack.c.b16 %v380, %v372
    %v477 = vpack.c.b16 %v381, %v373
    %v478 = vpack.c.b16 %v390, %v382
    %v479 = vpack.c.b16 %v391, %v383
    %v480 = vpack.c.b16 %v392, %v384
    %v481 = vpack.c.b16 %v393, %v385
    %v482 = vpack.c.b16 %v394, %v386
    %v483 = vpack.c.b16 %v395, %v387
    %v484 = vpack.c.b16 %v396, %v388
    %v485 = vpack.c.b16 %v397, %v389
    %v486 = vpack.c.b16 %v406, %v398
    %v487 = vpack.c.b16 %v407, %v399
    %v488 = vpack.c.b16 %v408, %v400
    %v489 = vpack.c.b16 %v409, %v401
    %v490 = vpack.c.b16 %v410, %v402
    %v491 = vpack.c.b16 %v411, %v403
    %v492 = vpack.c.b16 %v412, %v404
    %v493 = vpack.c.b16 %v413, %v405
    %v494 = vpack.c.b16 %v422, %v414
    %v495 = vpack.c.b16 %v423, %v415
    %v496 = vpack.c.b16 %v424, %v416
    %v497 = vpack.c.b16 %v425, %v417
    %v498 = vpack.c.b16 %v426, %v418
    %v499 = vpack.c.b16 %v427, %v419
    %v500 = vpack.c.b16 %v428, %v420
    %v501 = vpack.c.b16 %v429, %v421
    %v502 = vpack.c.b16 %v438, %v430
    %v503 = vpack.c.b16 %v439, %v431
    %v504 = vpack.c.b16 %v440, %v432
    %v505 = vpack.c.b16 %v441, %v433
    %v506 = vpack.c.b16 %v442, %v434
    %v507 = vpack.c.b16 %v443, %v435
    %v508 = vpack.c.b16 %v444, %v436
    %v509 = vpack.c.b16 %v445, %v437
    %574 = vmatpush.bf16.msra.mxu0 %v502
    %575 = vmatpush.bf16.msra.mxu0 %v494
    %576 = vmatpush.bf16.msra.mxu0 %v486
    %577 = vmatpush.bf16.msra.mxu0 %v478
    %578 = vmatpush.bf16.msra.mxu0 %v470
    %579 = vmatpush.bf16.msra.mxu0 %v462
    %580 = vmatpush.bf16.msra.mxu0 %v454
    %581 = vmatpush.bf16.msra.mxu0 %v446
    %582 = vmatmul.bf16.gmra.mxu0 %v171
    %v583 = vpop.f32.mrf.mxu0
    %v584 = vadd.f32 %v238, %v583
    %v585 = vpop.f32.mrf.mxu0
    %586 = vdwg.mxu0
    %587 = vmatpush.bf16.msra.mxu0 %v503
    %588 = vmatpush.bf16.msra.mxu0 %v495
    %589 = vmatpush.bf16.msra.mxu0 %v487
    %590 = vmatpush.bf16.msra.mxu0 %v479
    %591 = vmatpush.bf16.msra.mxu0 %v471
    %592 = vmatpush.bf16.msra.mxu0 %v463
    %593 = vmatpush.bf16.msra.mxu0 %v455
    %594 = vmatpush.bf16.msra.mxu0 %v447
    %595 = vmatmul.bf16.gmra.mxu0 %v171
    %v596 = vpop.f32.mrf.mxu0
    %v597 = vadd.f32 %v239, %v596
    %v598 = vpop.f32.mrf.mxu0
    %599 = vdwg.mxu0
    %600 = vmatpush.bf16.msra.mxu0 %v504
    %601 = vmatpush.bf16.msra.mxu0 %v496
    %602 = vmatpush.bf16.msra.mxu0 %v488
    %603 = vmatpush.bf16.msra.mxu0 %v480
    %604 = vmatpush.bf16.msra.mxu0 %v472
    %605 = vmatpush.bf16.msra.mxu0 %v464
    %606 = vmatpush.bf16.msra.mxu0 %v456
    %607 = vmatpush.bf16.msra.mxu0 %v448
    %608 = vmatmul.bf16.gmra.mxu0 %v171
    %v609 = vpop.f32.mrf.mxu0
    %v610 = vadd.f32 %v240, %v609
    %v611 = vpop.f32.mrf.mxu0
    %612 = vdwg.mxu0
    %613 = vmatpush.bf16.msra.mxu0 %v505
    %614 = vmatpush.bf16.msra.mxu0 %v497
    %615 = vmatpush.bf16.msra.mxu0 %v489
    %616 = vmatpush.bf16.msra.mxu0 %v481
    %617 = vmatpush.bf16.msra.mxu0 %v473
    %618 = vmatpush.bf16.msra.mxu0 %v465
    %619 = vmatpush.bf16.msra.mxu0 %v457
    %620 = vmatpush.bf16.msra.mxu0 %v449
    %621 = vmatmul.bf16.gmra.mxu0 %v171
    %v622 = vpop.f32.mrf.mxu0
    %v623 = vadd.f32 %v241, %v622
    %v624 = vpop.f32.mrf.mxu0
    %625 = vdwg.mxu0
    %626 = vmatpush.bf16.msra.mxu0 %v506
    %627 = vmatpush.bf16.msra.mxu0 %v498
    %628 = vmatpush.bf16.msra.mxu0 %v490
    %629 = vmatpush.bf16.msra.mxu0 %v482
    %630 = vmatpush.bf16.msra.mxu0 %v474
    %631 = vmatpush.bf16.msra.mxu0 %v466
    %632 = vmatpush.bf16.msra.mxu0 %v458
    %633 = vmatpush.bf16.msra.mxu0 %v450
    %634 = vmatmul.bf16.gmra.mxu0 %v171
    %v635 = vpop.f32.mrf.mxu0
    %v636 = vadd.f32 %v242, %v635
    %v637 = vpop.f32.mrf.mxu0
    %638 = vdwg.mxu0
    %639 = vmatpush.bf16.msra.mxu0 %v507
    %640 = vmatpush.bf16.msra.mxu0 %v499
    %641 = vmatpush.bf16.msra.mxu0 %v491
    %642 = vmatpush.bf16.msra.mxu0 %v483
    %643 = vmatpush.bf16.msra.mxu0 %v475
    %644 = vmatpush.bf16.msra.mxu0 %v467
    %645 = vmatpush.bf16.msra.mxu0 %v459
    %646 = vmatpush.bf16.msra.mxu0 %v451
    %647 = vmatmul.bf16.gmra.mxu0 %v171
    %v648 = vpop.f32.mrf.mxu0
    %v649 = vadd.f32 %v243, %v648
    %v650 = vpop.f32.mrf.mxu0
    %651 = vdwg.mxu0
    %652 = vmatpush.bf16.msra.mxu0 %v508
    %653 = vmatpush.bf16.msra.mxu0 %v500
    %654 = vmatpush.bf16.msra.mxu0 %v492
    %655 = vmatpush.bf16.msra.mxu0 %v484
    %656 = vmatpush.bf16.msra.mxu0 %v476
    %657 = vmatpush.bf16.msra.mxu0 %v468
    %658 = vmatpush.bf16.msra.mxu0 %v460
    %659 = vmatpush.bf16.msra.mxu0 %v452
    %660 = vmatmul.bf16.gmra.mxu0 %v171
    %v661 = vpop.f32.mrf.mxu0
    %v662 = vadd.f32 %v244, %v661
    %v663 = vpop.f32.mrf.mxu0
    %664 = vdwg.mxu0
    %665 = vmatpush.bf16.msra.mxu0 %v509
    %666 = vmatpush.bf16.msra.mxu0 %v501
    %667 = vmatpush.bf16.msra.mxu0 %v493
    %668 = vmatpush.bf16.msra.mxu0 %v485
    %669 = vmatpush.bf16.msra.mxu0 %v477
    %670 = vmatpush.bf16.msra.mxu0 %v469
    %671 = vmatpush.bf16.msra.mxu0 %v461
    %672 = vmatpush.bf16.msra.mxu0 %v453
    %673 = vmatmul.bf16.gmra.mxu0 %v171
    %v674 = vpop.f32.mrf.mxu0
    %v675 = vadd.f32 %v245, %v674
    %v676 = vpop.f32.mrf.mxu0
    %677 = vdwg.mxu0
    %v678 = vmul.f32 %v584, 0.2
    %v679 = vmul.f32 %v597, 0.2
    %v680 = vmul.f32 %v610, 0.2
    %v681 = vmul.f32 %v623, 0.2
    %v682 = vmul.f32 %v636, 0.2
    %v683 = vmul.f32 %v649, 0.2
    %v684 = vmul.f32 %v662, 0.2
    %v685 = vmul.f32 %v675, 0.2
    %v686 = vmax.f32 %v584, %v678
    %v687 = vmax.f32 %v597, %v679
    %v688 = vmax.f32 %v610, %v680
    %v689 = vmax.f32 %v623, %v681
    %v690 = vmax.f32 %v636, %v682
    %v691 = vmax.f32 %v649, %v683
    %v692 = vmax.f32 %v662, %v684
    %v693 = vmax.f32 %v675, %v685
    %v694 = vpack.c.bf16 %v686, %v686
    %v695 = vpack.c.bf16 %v687, %v687
    %v696 = vpack.c.bf16 %v688, %v688
    %v697 = vpack.c.bf16 %v689, %v689
    %v698 = vpack.c.bf16 %v690, %v690
    %v699 = vpack.c.bf16 %v691, %v691
    %v700 = vpack.c.bf16 %v692, %v692
    %v701 = vpack.c.bf16 %v693, %v693
    %v702 = vld [vmem:[#allocation8] sm:$0xff]
    %v703 = vld [vmem:[#allocation8 + $0x8] sm:$0xff]
    %v704 = vld [vmem:[#allocation8 + $0x10] sm:$0xff]
    %v705 = vld [vmem:[#allocation8 + $0x18] sm:$0xff]
    %v706 = vld [vmem:[#allocation8 + $0x20] sm:$0xff]
    %v707 = vld [vmem:[#allocation8 + $0x28] sm:$0xff]
    %v708 = vld [vmem:[#allocation8 + $0x30] sm:$0xff]
    %v709 = vld [vmem:[#allocation8 + $0x38] sm:$0xff]
    %v710 = vld [vmem:[#allocation8 + $0x40] sm:$0xff]
    %v711 = vld [vmem:[#allocation8 + $0x48] sm:$0xff]
    %v712 = vld [vmem:[#allocation8 + $0x50] sm:$0xff]
    %v713 = vld [vmem:[#allocation8 + $0x58] sm:$0xff]
    %v714 = vld [vmem:[#allocation8 + $0x60] sm:$0xff]
    %v715 = vld [vmem:[#allocation8 + $0x68] sm:$0xff]
    %v716 = vld [vmem:[#allocation8 + $0x70] sm:$0xff]
    %v717 = vld [vmem:[#allocation8 + $0x78] sm:$0xff]
    %v718 = vld [vmem:[#allocation8 + $0x80] sm:$0xff]
    %v719 = vld [vmem:[#allocation8 + $0x88] sm:$0xff]
    %v720 = vld [vmem:[#allocation8 + $0x90] sm:$0xff]
    %v721 = vld [vmem:[#allocation8 + $0x98] sm:$0xff]
    %v722 = vld [vmem:[#allocation8 + $0xa0] sm:$0xff]
    %v723 = vld [vmem:[#allocation8 + $0xa8] sm:$0xff]
    %v724 = vld [vmem:[#allocation8 + $0xb0] sm:$0xff]
    %v725 = vld [vmem:[#allocation8 + $0xb8] sm:$0xff]
    %v726 = vld [vmem:[#allocation8 + $0xc0] sm:$0xff]
    %v727 = vld [vmem:[#allocation8 + $0xc8] sm:$0xff]
    %v728 = vld [vmem:[#allocation8 + $0xd0] sm:$0xff]
    %v729 = vld [vmem:[#allocation8 + $0xd8] sm:$0xff]
    %v730 = vld [vmem:[#allocation8 + $0xe0] sm:$0xff]
    %v731 = vld [vmem:[#allocation8 + $0xe8] sm:$0xff]
    %v732 = vld [vmem:[#allocation8 + $0xf0] sm:$0xff]
    %v733 = vld [vmem:[#allocation8 + $0xf8] sm:$0xff]
    %v734 = vld [vmem:[#allocation8 + $0x100] sm:$0xff]
    %v735 = vld [vmem:[#allocation8 + $0x108] sm:$0xff]
    %v736 = vld [vmem:[#allocation8 + $0x110] sm:$0xff]
    %v737 = vld [vmem:[#allocation8 + $0x118] sm:$0xff]
    %v738 = vld [vmem:[#allocation8 + $0x120] sm:$0xff]
    %v739 = vld [vmem:[#allocation8 + $0x128] sm:$0xff]
    %v740 = vld [vmem:[#allocation8 + $0x130] sm:$0xff]
    %v741 = vld [vmem:[#allocation8 + $0x138] sm:$0xff]
    %v742 = vld [vmem:[#allocation8 + $0x140] sm:$0xff]
    %v743 = vld [vmem:[#allocation8 + $0x148] sm:$0xff]
    %v744 = vld [vmem:[#allocation8 + $0x150] sm:$0xff]
    %v745 = vld [vmem:[#allocation8 + $0x158] sm:$0xff]
    %v746 = vld [vmem:[#allocation8 + $0x160] sm:$0xff]
    %v747 = vld [vmem:[#allocation8 + $0x168] sm:$0xff]
    %v748 = vld [vmem:[#allocation8 + $0x170] sm:$0xff]
    %v749 = vld [vmem:[#allocation8 + $0x178] sm:$0xff]
    %v750 = vld [vmem:[#allocation8 + $0x180] sm:$0xff]
    %v751 = vld [vmem:[#allocation8 + $0x188] sm:$0xff]
    %v752 = vld [vmem:[#allocation8 + $0x190] sm:$0xff]
    %v753 = vld [vmem:[#allocation8 + $0x198] sm:$0xff]
    %v754 = vld [vmem:[#allocation8 + $0x1a0] sm:$0xff]
    %v755 = vld [vmem:[#allocation8 + $0x1a8] sm:$0xff]
    %v756 = vld [vmem:[#allocation8 + $0x1b0] sm:$0xff]
    %v757 = vld [vmem:[#allocation8 + $0x1b8] sm:$0xff]
    %v758 = vld [vmem:[#allocation8 + $0x1c0] sm:$0xff]
    %v759 = vld [vmem:[#allocation8 + $0x1c8] sm:$0xff]
    %v760 = vld [vmem:[#allocation8 + $0x1d0] sm:$0xff]
    %v761 = vld [vmem:[#allocation8 + $0x1d8] sm:$0xff]
    %v762 = vld [vmem:[#allocation8 + $0x1e0] sm:$0xff]
    %v763 = vld [vmem:[#allocation8 + $0x1e8] sm:$0xff]
    %v764 = vld [vmem:[#allocation8 + $0x1f0] sm:$0xff]
    %v765 = vld [vmem:[#allocation8 + $0x1f8] sm:$0xff]
    %v766 = vld [vmem:[#allocation8 + $0x200] sm:$0xff]
    %v767 = vld [vmem:[#allocation8 + $0x208] sm:$0xff]
    %v768 = vld [vmem:[#allocation8 + $0x210] sm:$0xff]
    %v769 = vld [vmem:[#allocation8 + $0x218] sm:$0xff]
    %v770 = vld [vmem:[#allocation8 + $0x220] sm:$0xff]
    %v771 = vld [vmem:[#allocation8 + $0x228] sm:$0xff]
    %v772 = vld [vmem:[#allocation8 + $0x230] sm:$0xff]
    %v773 = vld [vmem:[#allocation8 + $0x238] sm:$0xff]
    %v774 = vld [vmem:[#allocation8 + $0x240] sm:$0xff]
    %v775 = vld [vmem:[#allocation8 + $0x248] sm:$0xff]
    %v776 = vld [vmem:[#allocation8 + $0x250] sm:$0xff]
    %v777 = vld [vmem:[#allocation8 + $0x258] sm:$0xff]
    %v778 = vld [vmem:[#allocation8 + $0x260] sm:$0xff]
    %v779 = vld [vmem:[#allocation8 + $0x268] sm:$0xff]
    %v780 = vld [vmem:[#allocation8 + $0x270] sm:$0xff]
    %v781 = vld [vmem:[#allocation8 + $0x278] sm:$0xff]
    %v782 = vld [vmem:[#allocation8 + $0x280] sm:$0xff]
    %v783 = vld [vmem:[#allocation8 + $0x288] sm:$0xff]
    %v784 = vld [vmem:[#allocation8 + $0x290] sm:$0xff]
    %v785 = vld [vmem:[#allocation8 + $0x298] sm:$0xff]
    %v786 = vld [vmem:[#allocation8 + $0x2a0] sm:$0xff]
    %v787 = vld [vmem:[#allocation8 + $0x2a8] sm:$0xff]
    %v788 = vld [vmem:[#allocation8 + $0x2b0] sm:$0xff]
    %v789 = vld [vmem:[#allocation8 + $0x2b8] sm:$0xff]
    %v790 = vld [vmem:[#allocation8 + $0x2c0] sm:$0xff]
    %v791 = vld [vmem:[#allocation8 + $0x2c8] sm:$0xff]
    %v792 = vld [vmem:[#allocation8 + $0x2d0] sm:$0xff]
    %v793 = vld [vmem:[#allocation8 + $0x2d8] sm:$0xff]
    %v794 = vld [vmem:[#allocation8 + $0x2e0] sm:$0xff]
    %v795 = vld [vmem:[#allocation8 + $0x2e8] sm:$0xff]
    %v796 = vld [vmem:[#allocation8 + $0x2f0] sm:$0xff]
    %v797 = vld [vmem:[#allocation8 + $0x2f8] sm:$0xff]
    %v798 = vld [vmem:[#allocation8 + $0x300] sm:$0xff]
    %v799 = vld [vmem:[#allocation8 + $0x308] sm:$0xff]
    %v800 = vld [vmem:[#allocation8 + $0x310] sm:$0xff]
    %v801 = vld [vmem:[#allocation8 + $0x318] sm:$0xff]
    %v802 = vld [vmem:[#allocation8 + $0x320] sm:$0xff]
    %v803 = vld [vmem:[#allocation8 + $0x328] sm:$0xff]
    %v804 = vld [vmem:[#allocation8 + $0x330] sm:$0xff]
    %v805 = vld [vmem:[#allocation8 + $0x338] sm:$0xff]
    %v806 = vld [vmem:[#allocation8 + $0x340] sm:$0xff]
    %v807 = vld [vmem:[#allocation8 + $0x348] sm:$0xff]
    %v808 = vld [vmem:[#allocation8 + $0x350] sm:$0xff]
    %v809 = vld [vmem:[#allocation8 + $0x358] sm:$0xff]
    %v810 = vld [vmem:[#allocation8 + $0x360] sm:$0xff]
    %v811 = vld [vmem:[#allocation8 + $0x368] sm:$0xff]
    %v812 = vld [vmem:[#allocation8 + $0x370] sm:$0xff]
    %v813 = vld [vmem:[#allocation8 + $0x378] sm:$0xff]
    %v814 = vld [vmem:[#allocation8 + $0x380] sm:$0xff]
    %v815 = vld [vmem:[#allocation8 + $0x388] sm:$0xff]
    %v816 = vld [vmem:[#allocation8 + $0x390] sm:$0xff]
    %v817 = vld [vmem:[#allocation8 + $0x398] sm:$0xff]
    %v818 = vld [vmem:[#allocation8 + $0x3a0] sm:$0xff]
    %v819 = vld [vmem:[#allocation8 + $0x3a8] sm:$0xff]
    %v820 = vld [vmem:[#allocation8 + $0x3b0] sm:$0xff]
    %v821 = vld [vmem:[#allocation8 + $0x3b8] sm:$0xff]
    %v822 = vld [vmem:[#allocation8 + $0x3c0] sm:$0xff]
    %v823 = vld [vmem:[#allocation8 + $0x3c8] sm:$0xff]
    %v824 = vld [vmem:[#allocation8 + $0x3d0] sm:$0xff]
    %v825 = vld [vmem:[#allocation8 + $0x3d8] sm:$0xff]
    %v826 = vld [vmem:[#allocation8 + $0x3e0] sm:$0xff]
    %v827 = vld [vmem:[#allocation8 + $0x3e8] sm:$0xff]
    %v828 = vld [vmem:[#allocation8 + $0x3f0] sm:$0xff]
    %v829 = vld [vmem:[#allocation8 + $0x3f8] sm:$0xff]
    %v830 = vld [vmem:[#allocation8 + $0x400] sm:$0xff]
    %v831 = vld [vmem:[#allocation8 + $0x408] sm:$0xff]
    %v832 = vld [vmem:[#allocation8 + $0x410] sm:$0xff]
    %v833 = vld [vmem:[#allocation8 + $0x418] sm:$0xff]
    %v834 = vld [vmem:[#allocation8 + $0x420] sm:$0xff]
    %v835 = vld [vmem:[#allocation8 + $0x428] sm:$0xff]
    %v836 = vld [vmem:[#allocation8 + $0x430] sm:$0xff]
    %v837 = vld [vmem:[#allocation8 + $0x438] sm:$0xff]
    %v838 = vld [vmem:[#allocation8 + $0x440] sm:$0xff]
    %v839 = vld [vmem:[#allocation8 + $0x448] sm:$0xff]
    %v840 = vld [vmem:[#allocation8 + $0x450] sm:$0xff]
    %v841 = vld [vmem:[#allocation8 + $0x458] sm:$0xff]
    %v842 = vld [vmem:[#allocation8 + $0x460] sm:$0xff]
    %v843 = vld [vmem:[#allocation8 + $0x468] sm:$0xff]
    %v844 = vld [vmem:[#allocation8 + $0x470] sm:$0xff]
    %v845 = vld [vmem:[#allocation8 + $0x478] sm:$0xff]
    %v846 = vld [vmem:[#allocation8 + $0x480] sm:$0xff]
    %v847 = vld [vmem:[#allocation8 + $0x488] sm:$0xff]
    %v848 = vld [vmem:[#allocation8 + $0x490] sm:$0xff]
    %v849 = vld [vmem:[#allocation8 + $0x498] sm:$0xff]
    %v850 = vld [vmem:[#allocation8 + $0x4a0] sm:$0xff]
    %v851 = vld [vmem:[#allocation8 + $0x4a8] sm:$0xff]
    %v852 = vld [vmem:[#allocation8 + $0x4b0] sm:$0xff]
    %v853 = vld [vmem:[#allocation8 + $0x4b8] sm:$0xff]
    %v854 = vld [vmem:[#allocation8 + $0x4c0] sm:$0xff]
    %v855 = vld [vmem:[#allocation8 + $0x4c8] sm:$0xff]
    %v856 = vld [vmem:[#allocation8 + $0x4d0] sm:$0xff]
    %v857 = vld [vmem:[#allocation8 + $0x4d8] sm:$0xff]
    %v858 = vld [vmem:[#allocation8 + $0x4e0] sm:$0xff]
    %v859 = vld [vmem:[#allocation8 + $0x4e8] sm:$0xff]
    %v860 = vld [vmem:[#allocation8 + $0x4f0] sm:$0xff]
    %v861 = vld [vmem:[#allocation8 + $0x4f8] sm:$0xff]
    %v862 = vld [vmem:[#allocation8 + $0x500] sm:$0xff]
    %v863 = vld [vmem:[#allocation8 + $0x508] sm:$0xff]
    %v864 = vld [vmem:[#allocation8 + $0x510] sm:$0xff]
    %v865 = vld [vmem:[#allocation8 + $0x518] sm:$0xff]
    %v866 = vld [vmem:[#allocation8 + $0x520] sm:$0xff]
    %v867 = vld [vmem:[#allocation8 + $0x528] sm:$0xff]
    %v868 = vld [vmem:[#allocation8 + $0x530] sm:$0xff]
    %v869 = vld [vmem:[#allocation8 + $0x538] sm:$0xff]
    %v870 = vld [vmem:[#allocation8 + $0x540] sm:$0xff]
    %v871 = vld [vmem:[#allocation8 + $0x548] sm:$0xff]
    %v872 = vld [vmem:[#allocation8 + $0x550] sm:$0xff]
    %v873 = vld [vmem:[#allocation8 + $0x558] sm:$0xff]
    %v874 = vld [vmem:[#allocation8 + $0x560] sm:$0xff]
    %v875 = vld [vmem:[#allocation8 + $0x568] sm:$0xff]
    %v876 = vld [vmem:[#allocation8 + $0x570] sm:$0xff]
    %v877 = vld [vmem:[#allocation8 + $0x578] sm:$0xff]
    %v878 = vld [vmem:[#allocation8 + $0x580] sm:$0xff]
    %v879 = vld [vmem:[#allocation8 + $0x588] sm:$0xff]
    %v880 = vld [vmem:[#allocation8 + $0x590] sm:$0xff]
    %v881 = vld [vmem:[#allocation8 + $0x598] sm:$0xff]
    %v882 = vld [vmem:[#allocation8 + $0x5a0] sm:$0xff]
    %v883 = vld [vmem:[#allocation8 + $0x5a8] sm:$0xff]
    %v884 = vld [vmem:[#allocation8 + $0x5b0] sm:$0xff]
    %v885 = vld [vmem:[#allocation8 + $0x5b8] sm:$0xff]
    %v886 = vld [vmem:[#allocation8 + $0x5c0] sm:$0xff]
    %v887 = vld [vmem:[#allocation8 + $0x5c8] sm:$0xff]
    %v888 = vld [vmem:[#allocation8 + $0x5d0] sm:$0xff]
    %v889 = vld [vmem:[#allocation8 + $0x5d8] sm:$0xff]
    %v890 = vld [vmem:[#allocation8 + $0x5e0] sm:$0xff]
    %v891 = vld [vmem:[#allocation8 + $0x5e8] sm:$0xff]
    %v892 = vld [vmem:[#allocation8 + $0x5f0] sm:$0xff]
    %v893 = vld [vmem:[#allocation8 + $0x5f8] sm:$0xff]
    %v894 = vld [vmem:[#allocation8 + $0x600] sm:$0xff]
    %v895 = vld [vmem:[#allocation8 + $0x608] sm:$0xff]
    %v896 = vld [vmem:[#allocation8 + $0x610] sm:$0xff]
    %v897 = vld [vmem:[#allocation8 + $0x618] sm:$0xff]
    %v898 = vld [vmem:[#allocation8 + $0x620] sm:$0xff]
    %v899 = vld [vmem:[#allocation8 + $0x628] sm:$0xff]
    %v900 = vld [vmem:[#allocation8 + $0x630] sm:$0xff]
    %v901 = vld [vmem:[#allocation8 + $0x638] sm:$0xff]
    %v902 = vld [vmem:[#allocation8 + $0x640] sm:$0xff]
    %v903 = vld [vmem:[#allocation8 + $0x648] sm:$0xff]
    %v904 = vld [vmem:[#allocation8 + $0x650] sm:$0xff]
    %v905 = vld [vmem:[#allocation8 + $0x658] sm:$0xff]
    %v906 = vld [vmem:[#allocation8 + $0x660] sm:$0xff]
    %v907 = vld [vmem:[#allocation8 + $0x668] sm:$0xff]
    %v908 = vld [vmem:[#allocation8 + $0x670] sm:$0xff]
    %v909 = vld [vmem:[#allocation8 + $0x678] sm:$0xff]
    %v910 = vld [vmem:[#allocation8 + $0x680] sm:$0xff]
    %v911 = vld [vmem:[#allocation8 + $0x688] sm:$0xff]
    %v912 = vld [vmem:[#allocation8 + $0x690] sm:$0xff]
    %v913 = vld [vmem:[#allocation8 + $0x698] sm:$0xff]
    %v914 = vld [vmem:[#allocation8 + $0x6a0] sm:$0xff]
    %v915 = vld [vmem:[#allocation8 + $0x6a8] sm:$0xff]
    %v916 = vld [vmem:[#allocation8 + $0x6b0] sm:$0xff]
    %v917 = vld [vmem:[#allocation8 + $0x6b8] sm:$0xff]
    %v918 = vld [vmem:[#allocation8 + $0x6c0] sm:$0xff]
    %v919 = vld [vmem:[#allocation8 + $0x6c8] sm:$0xff]
    %v920 = vld [vmem:[#allocation8 + $0x6d0] sm:$0xff]
    %v921 = vld [vmem:[#allocation8 + $0x6d8] sm:$0xff]
    %v922 = vld [vmem:[#allocation8 + $0x6e0] sm:$0xff]
    %v923 = vld [vmem:[#allocation8 + $0x6e8] sm:$0xff]
    %v924 = vld [vmem:[#allocation8 + $0x6f0] sm:$0xff]
    %v925 = vld [vmem:[#allocation8 + $0x6f8] sm:$0xff]
    %v926 = vld [vmem:[#allocation8 + $0x700] sm:$0xff]
    %v927 = vld [vmem:[#allocation8 + $0x708] sm:$0xff]
    %v928 = vld [vmem:[#allocation8 + $0x710] sm:$0xff]
    %v929 = vld [vmem:[#allocation8 + $0x718] sm:$0xff]
    %v930 = vld [vmem:[#allocation8 + $0x720] sm:$0xff]
    %v931 = vld [vmem:[#allocation8 + $0x728] sm:$0xff]
    %v932 = vld [vmem:[#allocation8 + $0x730] sm:$0xff]
    %v933 = vld [vmem:[#allocation8 + $0x738] sm:$0xff]
    %v934 = vld [vmem:[#allocation8 + $0x740] sm:$0xff]
    %v935 = vld [vmem:[#allocation8 + $0x748] sm:$0xff]
    %v936 = vld [vmem:[#allocation8 + $0x750] sm:$0xff]
    %v937 = vld [vmem:[#allocation8 + $0x758] sm:$0xff]
    %v938 = vld [vmem:[#allocation8 + $0x760] sm:$0xff]
    %v939 = vld [vmem:[#allocation8 + $0x768] sm:$0xff]
    %v940 = vld [vmem:[#allocation8 + $0x770] sm:$0xff]
    %v941 = vld [vmem:[#allocation8 + $0x778] sm:$0xff]
    %v942 = vld [vmem:[#allocation8 + $0x780] sm:$0xff]
    %v943 = vld [vmem:[#allocation8 + $0x788] sm:$0xff]
    %v944 = vld [vmem:[#allocation8 + $0x790] sm:$0xff]
    %v945 = vld [vmem:[#allocation8 + $0x798] sm:$0xff]
    %v946 = vld [vmem:[#allocation8 + $0x7a0] sm:$0xff]
    %v947 = vld [vmem:[#allocation8 + $0x7a8] sm:$0xff]
    %v948 = vld [vmem:[#allocation8 + $0x7b0] sm:$0xff]
    %v949 = vld [vmem:[#allocation8 + $0x7b8] sm:$0xff]
    %v950 = vld [vmem:[#allocation8 + $0x7c0] sm:$0xff]
    %v951 = vld [vmem:[#allocation8 + $0x7c8] sm:$0xff]
    %v952 = vld [vmem:[#allocation8 + $0x7d0] sm:$0xff]
    %v953 = vld [vmem:[#allocation8 + $0x7d8] sm:$0xff]
    %v954 = vld [vmem:[#allocation8 + $0x7e0] sm:$0xff]
    %v955 = vld [vmem:[#allocation8 + $0x7e8] sm:$0xff]
    %v956 = vld [vmem:[#allocation8 + $0x7f0] sm:$0xff]
    %v957 = vld [vmem:[#allocation8 + $0x7f8] sm:$0xff]
    %v958 = vld [vmem:[#allocation10] sm:$0xf]
    %v960 = vperm.slane %v958, 0
    %v961 = vperm.slane %v958, 1
    %v962 = vperm.slane %v958, 2
    %v963 = vperm.slane %v958, 3
    %v1224 = vunpack.c.l.b16 %v702
    %v1225 = vunpack.c.h.b16 %v702
    %v1226 = vunpack.c.l.b16 %v703
    %v1227 = vunpack.c.h.b16 %v703
    %v1228 = vunpack.c.l.b16 %v704
    %v1229 = vunpack.c.h.b16 %v704
    %v1230 = vunpack.c.l.b16 %v705
    %v1231 = vunpack.c.h.b16 %v705
    %v1232 = vunpack.c.l.b16 %v706
    %v1233 = vunpack.c.h.b16 %v706
    %v1234 = vunpack.c.l.b16 %v707
    %v1235 = vunpack.c.h.b16 %v707
    %v1236 = vunpack.c.l.b16 %v708
    %v1237 = vunpack.c.h.b16 %v708
    %v1238 = vunpack.c.l.b16 %v709
    %v1239 = vunpack.c.h.b16 %v709
    %v1240 = vunpack.c.l.b16 %v710
    %v1241 = vunpack.c.h.b16 %v710
    %v1242 = vunpack.c.l.b16 %v711
    %v1243 = vunpack.c.h.b16 %v711
    %v1244 = vunpack.c.l.b16 %v712
    %v1245 = vunpack.c.h.b16 %v712
    %v1246 = vunpack.c.l.b16 %v713
    %v1247 = vunpack.c.h.b16 %v713
    %v1248 = vunpack.c.l.b16 %v714
    %v1249 = vunpack.c.h.b16 %v714
    %v1250 = vunpack.c.l.b16 %v715
    %v1251 = vunpack.c.h.b16 %v715
    %v1252 = vunpack.c.l.b16 %v716
    %v1253 = vunpack.c.h.b16 %v716
    %v1254 = vunpack.c.l.b16 %v717
    %v1255 = vunpack.c.h.b16 %v717
    %v1256 = vunpack.c.l.b16 %v718
    %v1257 = vunpack.c.h.b16 %v718
    %v1258 = vunpack.c.l.b16 %v719
    %v1259 = vunpack.c.h.b16 %v719
    %v1260 = vunpack.c.l.b16 %v720
    %v1261 = vunpack.c.h.b16 %v720
    %v1262 = vunpack.c.l.b16 %v721
    %v1263 = vunpack.c.h.b16 %v721
    %v1264 = vunpack.c.l.b16 %v722
    %v1265 = vunpack.c.h.b16 %v722
    %v1266 = vunpack.c.l.b16 %v723
    %v1267 = vunpack.c.h.b16 %v723
    %v1268 = vunpack.c.l.b16 %v724
    %v1269 = vunpack.c.h.b16 %v724
    %v1270 = vunpack.c.l.b16 %v725
    %v1271 = vunpack.c.h.b16 %v725
    %v1272 = vunpack.c.l.b16 %v726
    %v1273 = vunpack.c.h.b16 %v726
    %v1274 = vunpack.c.l.b16 %v727
    %v1275 = vunpack.c.h.b16 %v727
    %v1276 = vunpack.c.l.b16 %v728
    %v1277 = vunpack.c.h.b16 %v728
    %v1278 = vunpack.c.l.b16 %v729
    %v1279 = vunpack.c.h.b16 %v729
    %v1280 = vunpack.c.l.b16 %v730
    %v1281 = vunpack.c.h.b16 %v730
    %v1282 = vunpack.c.l.b16 %v731
    %v1283 = vunpack.c.h.b16 %v731
    %v1284 = vunpack.c.l.b16 %v732
    %v1285 = vunpack.c.h.b16 %v732
    %v1286 = vunpack.c.l.b16 %v733
    %v1287 = vunpack.c.h.b16 %v733
    %v1288 = vunpack.c.l.b16 %v734
    %v1289 = vunpack.c.h.b16 %v734
    %v1290 = vunpack.c.l.b16 %v735
    %v1291 = vunpack.c.h.b16 %v735
    %v1292 = vunpack.c.l.b16 %v736
    %v1293 = vunpack.c.h.b16 %v736
    %v1294 = vunpack.c.l.b16 %v737
    %v1295 = vunpack.c.h.b16 %v737
    %v1296 = vunpack.c.l.b16 %v738
    %v1297 = vunpack.c.h.b16 %v738
    %v1298 = vunpack.c.l.b16 %v739
    %v1299 = vunpack.c.h.b16 %v739
    %v1300 = vunpack.c.l.b16 %v740
    %v1301 = vunpack.c.h.b16 %v740
    %v1302 = vunpack.c.l.b16 %v741
    %v1303 = vunpack.c.h.b16 %v741
    %v1304 = vunpack.c.l.b16 %v742
    %v1305 = vunpack.c.h.b16 %v742
    %v1306 = vunpack.c.l.b16 %v743
    %v1307 = vunpack.c.h.b16 %v743
    %v1308 = vunpack.c.l.b16 %v744
    %v1309 = vunpack.c.h.b16 %v744
    %v1310 = vunpack.c.l.b16 %v745
    %v1311 = vunpack.c.h.b16 %v745
    %v1312 = vunpack.c.l.b16 %v746
    %v1313 = vunpack.c.h.b16 %v746
    %v1314 = vunpack.c.l.b16 %v747
    %v1315 = vunpack.c.h.b16 %v747
    %v1316 = vunpack.c.l.b16 %v748
    %v1317 = vunpack.c.h.b16 %v748
    %v1318 = vunpack.c.l.b16 %v749
    %v1319 = vunpack.c.h.b16 %v749
    %v1320 = vunpack.c.l.b16 %v750
    %v1321 = vunpack.c.h.b16 %v750
    %v1322 = vunpack.c.l.b16 %v751
    %v1323 = vunpack.c.h.b16 %v751
    %v1324 = vunpack.c.l.b16 %v752
    %v1325 = vunpack.c.h.b16 %v752
    %v1326 = vunpack.c.l.b16 %v753
    %v1327 = vunpack.c.h.b16 %v753
    %v1328 = vunpack.c.l.b16 %v754
    %v1329 = vunpack.c.h.b16 %v754
    %v1330 = vunpack.c.l.b16 %v755
    %v1331 = vunpack.c.h.b16 %v755
    %v1332 = vunpack.c.l.b16 %v756
    %v1333 = vunpack.c.h.b16 %v756
    %v1334 = vunpack.c.l.b16 %v757
    %v1335 = vunpack.c.h.b16 %v757
    %v1336 = vunpack.c.l.b16 %v758
    %v1337 = vunpack.c.h.b16 %v758
    %v1338 = vunpack.c.l.b16 %v759
    %v1339 = vunpack.c.h.b16 %v759
    %v1340 = vunpack.c.l.b16 %v760
    %v1341 = vunpack.c.h.b16 %v760
    %v1342 = vunpack.c.l.b16 %v761
    %v1343 = vunpack.c.h.b16 %v761
    %v1344 = vunpack.c.l.b16 %v762
    %v1345 = vunpack.c.h.b16 %v762
    %v1346 = vunpack.c.l.b16 %v763
    %v1347 = vunpack.c.h.b16 %v763
    %v1348 = vunpack.c.l.b16 %v764
    %v1349 = vunpack.c.h.b16 %v764
    %v1350 = vunpack.c.l.b16 %v765
    %v1351 = vunpack.c.h.b16 %v765
    %v1352 = vunpack.c.l.b16 %v766
    %v1353 = vunpack.c.h.b16 %v766
    %v1354 = vunpack.c.l.b16 %v767
    %v1355 = vunpack.c.h.b16 %v767
    %v1356 = vunpack.c.l.b16 %v768
    %v1357 = vunpack.c.h.b16 %v768
    %v1358 = vunpack.c.l.b16 %v769
    %v1359 = vunpack.c.h.b16 %v769
    %v1360 = vunpack.c.l.b16 %v770
    %v1361 = vunpack.c.h.b16 %v770
    %v1362 = vunpack.c.l.b16 %v771
    %v1363 = vunpack.c.h.b16 %v771
    %v1364 = vunpack.c.l.b16 %v772
    %v1365 = vunpack.c.h.b16 %v772
    %v1366 = vunpack.c.l.b16 %v773
    %v1367 = vunpack.c.h.b16 %v773
    %v1368 = vunpack.c.l.b16 %v774
    %v1369 = vunpack.c.h.b16 %v774
    %v1370 = vunpack.c.l.b16 %v775
    %v1371 = vunpack.c.h.b16 %v775
    %v1372 = vunpack.c.l.b16 %v776
    %v1373 = vunpack.c.h.b16 %v776
    %v1374 = vunpack.c.l.b16 %v777
    %v1375 = vunpack.c.h.b16 %v777
    %v1376 = vunpack.c.l.b16 %v778
    %v1377 = vunpack.c.h.b16 %v778
    %v1378 = vunpack.c.l.b16 %v779
    %v1379 = vunpack.c.h.b16 %v779
    %v1380 = vunpack.c.l.b16 %v780
    %v1381 = vunpack.c.h.b16 %v780
    %v1382 = vunpack.c.l.b16 %v781
    %v1383 = vunpack.c.h.b16 %v781
    %v1384 = vunpack.c.l.b16 %v782
    %v1385 = vunpack.c.h.b16 %v782
    %v1386 = vunpack.c.l.b16 %v783
    %v1387 = vunpack.c.h.b16 %v783
    %v1388 = vunpack.c.l.b16 %v784
    %v1389 = vunpack.c.h.b16 %v784
    %v1390 = vunpack.c.l.b16 %v785
    %v1391 = vunpack.c.h.b16 %v785
    %v1392 = vunpack.c.l.b16 %v786
    %v1393 = vunpack.c.h.b16 %v786
    %v1394 = vunpack.c.l.b16 %v787
    %v1395 = vunpack.c.h.b16 %v787
    %v1396 = vunpack.c.l.b16 %v788
    %v1397 = vunpack.c.h.b16 %v788
    %v1398 = vunpack.c.l.b16 %v789
    %v1399 = vunpack.c.h.b16 %v789
    %v1400 = vunpack.c.l.b16 %v790
    %v1401 = vunpack.c.h.b16 %v790
    %v1402 = vunpack.c.l.b16 %v791
    %v1403 = vunpack.c.h.b16 %v791
    %v1404 = vunpack.c.l.b16 %v792
    %v1405 = vunpack.c.h.b16 %v792
    %v1406 = vunpack.c.l.b16 %v793
    %v1407 = vunpack.c.h.b16 %v793
    %v1408 = vunpack.c.l.b16 %v794
    %v1409 = vunpack.c.h.b16 %v794
    %v1410 = vunpack.c.l.b16 %v795
    %v1411 = vunpack.c.h.b16 %v795
    %v1412 = vunpack.c.l.b16 %v796
    %v1413 = vunpack.c.h.b16 %v796
    %v1414 = vunpack.c.l.b16 %v797
    %v1415 = vunpack.c.h.b16 %v797
    %v1416 = vunpack.c.l.b16 %v798
    %v1417 = vunpack.c.h.b16 %v798
    %v1418 = vunpack.c.l.b16 %v799
    %v1419 = vunpack.c.h.b16 %v799
    %v1420 = vunpack.c.l.b16 %v800
    %v1421 = vunpack.c.h.b16 %v800
    %v1422 = vunpack.c.l.b16 %v801
    %v1423 = vunpack.c.h.b16 %v801
    %v1424 = vunpack.c.l.b16 %v802
    %v1425 = vunpack.c.h.b16 %v802
    %v1426 = vunpack.c.l.b16 %v803
    %v1427 = vunpack.c.h.b16 %v803
    %v1428 = vunpack.c.l.b16 %v804
    %v1429 = vunpack.c.h.b16 %v804
    %v1430 = vunpack.c.l.b16 %v805
    %v1431 = vunpack.c.h.b16 %v805
    %v1432 = vunpack.c.l.b16 %v806
    %v1433 = vunpack.c.h.b16 %v806
    %v1434 = vunpack.c.l.b16 %v807
    %v1435 = vunpack.c.h.b16 %v807
    %v1436 = vunpack.c.l.b16 %v808
    %v1437 = vunpack.c.h.b16 %v808
    %v1438 = vunpack.c.l.b16 %v809
    %v1439 = vunpack.c.h.b16 %v809
    %v1440 = vunpack.c.l.b16 %v810
    %v1441 = vunpack.c.h.b16 %v810
    %v1442 = vunpack.c.l.b16 %v811
    %v1443 = vunpack.c.h.b16 %v811
    %v1444 = vunpack.c.l.b16 %v812
    %v1445 = vunpack.c.h.b16 %v812
    %v1446 = vunpack.c.l.b16 %v813
    %v1447 = vunpack.c.h.b16 %v813
    %v1448 = vunpack.c.l.b16 %v814
    %v1449 = vunpack.c.h.b16 %v814
    %v1450 = vunpack.c.l.b16 %v815
    %v1451 = vunpack.c.h.b16 %v815
    %v1452 = vunpack.c.l.b16 %v816
    %v1453 = vunpack.c.h.b16 %v816
    %v1454 = vunpack.c.l.b16 %v817
    %v1455 = vunpack.c.h.b16 %v817
    %v1456 = vunpack.c.l.b16 %v818
    %v1457 = vunpack.c.h.b16 %v818
    %v1458 = vunpack.c.l.b16 %v819
    %v1459 = vunpack.c.h.b16 %v819
    %v1460 = vunpack.c.l.b16 %v820
    %v1461 = vunpack.c.h.b16 %v820
    %v1462 = vunpack.c.l.b16 %v821
    %v1463 = vunpack.c.h.b16 %v821
    %v1464 = vunpack.c.l.b16 %v822
    %v1465 = vunpack.c.h.b16 %v822
    %v1466 = vunpack.c.l.b16 %v823
    %v1467 = vunpack.c.h.b16 %v823
    %v1468 = vunpack.c.l.b16 %v824
    %v1469 = vunpack.c.h.b16 %v824
    %v1470 = vunpack.c.l.b16 %v825
    %v1471 = vunpack.c.h.b16 %v825
    %v1472 = vunpack.c.l.b16 %v826
    %v1473 = vunpack.c.h.b16 %v826
    %v1474 = vunpack.c.l.b16 %v827
    %v1475 = vunpack.c.h.b16 %v827
    %v1476 = vunpack.c.l.b16 %v828
    %v1477 = vunpack.c.h.b16 %v828
    %v1478 = vunpack.c.l.b16 %v829
    %v1479 = vunpack.c.h.b16 %v829
    %v1480 = vunpack.c.l.b16 %v830
    %v1481 = vunpack.c.h.b16 %v830
    %v1482 = vunpack.c.l.b16 %v831
    %v1483 = vunpack.c.h.b16 %v831
    %v1484 = vunpack.c.l.b16 %v832
    %v1485 = vunpack.c.h.b16 %v832
    %v1486 = vunpack.c.l.b16 %v833
    %v1487 = vunpack.c.h.b16 %v833
    %v1488 = vunpack.c.l.b16 %v834
    %v1489 = vunpack.c.h.b16 %v834
    %v1490 = vunpack.c.l.b16 %v835
    %v1491 = vunpack.c.h.b16 %v835
    %v1492 = vunpack.c.l.b16 %v836
    %v1493 = vunpack.c.h.b16 %v836
    %v1494 = vunpack.c.l.b16 %v837
    %v1495 = vunpack.c.h.b16 %v837
    %v1496 = vunpack.c.l.b16 %v838
    %v1497 = vunpack.c.h.b16 %v838
    %v1498 = vunpack.c.l.b16 %v839
    %v1499 = vunpack.c.h.b16 %v839
    %v1500 = vunpack.c.l.b16 %v840
    %v1501 = vunpack.c.h.b16 %v840
    %v1502 = vunpack.c.l.b16 %v841
    %v1503 = vunpack.c.h.b16 %v841
    %v1504 = vunpack.c.l.b16 %v842
    %v1505 = vunpack.c.h.b16 %v842
    %v1506 = vunpack.c.l.b16 %v843
    %v1507 = vunpack.c.h.b16 %v843
    %v1508 = vunpack.c.l.b16 %v844
    %v1509 = vunpack.c.h.b16 %v844
    %v1510 = vunpack.c.l.b16 %v845
    %v1511 = vunpack.c.h.b16 %v845
    %v1512 = vunpack.c.l.b16 %v846
    %v1513 = vunpack.c.h.b16 %v846
    %v1514 = vunpack.c.l.b16 %v847
    %v1515 = vunpack.c.h.b16 %v847
    %v1516 = vunpack.c.l.b16 %v848
    %v1517 = vunpack.c.h.b16 %v848
    %v1518 = vunpack.c.l.b16 %v849
    %v1519 = vunpack.c.h.b16 %v849
    %v1520 = vunpack.c.l.b16 %v850
    %v1521 = vunpack.c.h.b16 %v850
    %v1522 = vunpack.c.l.b16 %v851
    %v1523 = vunpack.c.h.b16 %v851
    %v1524 = vunpack.c.l.b16 %v852
    %v1525 = vunpack.c.h.b16 %v852
    %v1526 = vunpack.c.l.b16 %v853
    %v1527 = vunpack.c.h.b16 %v853
    %v1528 = vunpack.c.l.b16 %v854
    %v1529 = vunpack.c.h.b16 %v854
    %v1530 = vunpack.c.l.b16 %v855
    %v1531 = vunpack.c.h.b16 %v855
    %v1532 = vunpack.c.l.b16 %v856
    %v1533 = vunpack.c.h.b16 %v856
    %v1534 = vunpack.c.l.b16 %v857
    %v1535 = vunpack.c.h.b16 %v857
    %v1536 = vunpack.c.l.b16 %v858
    %v1537 = vunpack.c.h.b16 %v858
    %v1538 = vunpack.c.l.b16 %v859
    %v1539 = vunpack.c.h.b16 %v859
    %v1540 = vunpack.c.l.b16 %v860
    %v1541 = vunpack.c.h.b16 %v860
    %v1542 = vunpack.c.l.b16 %v861
    %v1543 = vunpack.c.h.b16 %v861
    %v1544 = vunpack.c.l.b16 %v862
    %v1545 = vunpack.c.h.b16 %v862
    %v1546 = vunpack.c.l.b16 %v863
    %v1547 = vunpack.c.h.b16 %v863
    %v1548 = vunpack.c.l.b16 %v864
    %v1549 = vunpack.c.h.b16 %v864
    %v1550 = vunpack.c.l.b16 %v865
    %v1551 = vunpack.c.h.b16 %v865
    %v1552 = vunpack.c.l.b16 %v866
    %v1553 = vunpack.c.h.b16 %v866
    %v1554 = vunpack.c.l.b16 %v867
    %v1555 = vunpack.c.h.b16 %v867
    %v1556 = vunpack.c.l.b16 %v868
    %v1557 = vunpack.c.h.b16 %v868
    %v1558 = vunpack.c.l.b16 %v869
    %v1559 = vunpack.c.h.b16 %v869
    %v1560 = vunpack.c.l.b16 %v870
    %v1561 = vunpack.c.h.b16 %v870
    %v1562 = vunpack.c.l.b16 %v871
    %v1563 = vunpack.c.h.b16 %v871
    %v1564 = vunpack.c.l.b16 %v872
    %v1565 = vunpack.c.h.b16 %v872
    %v1566 = vunpack.c.l.b16 %v873
    %v1567 = vunpack.c.h.b16 %v873
    %v1568 = vunpack.c.l.b16 %v874
    %v1569 = vunpack.c.h.b16 %v874
    %v1570 = vunpack.c.l.b16 %v875
    %v1571 = vunpack.c.h.b16 %v875
    %v1572 = vunpack.c.l.b16 %v876
    %v1573 = vunpack.c.h.b16 %v876
    %v1574 = vunpack.c.l.b16 %v877
    %v1575 = vunpack.c.h.b16 %v877
    %v1576 = vunpack.c.l.b16 %v878
    %v1577 = vunpack.c.h.b16 %v878
    %v1578 = vunpack.c.l.b16 %v879
    %v1579 = vunpack.c.h.b16 %v879
    %v1580 = vunpack.c.l.b16 %v880
    %v1581 = vunpack.c.h.b16 %v880
    %v1582 = vunpack.c.l.b16 %v881
    %v1583 = vunpack.c.h.b16 %v881
    %v1584 = vunpack.c.l.b16 %v882
    %v1585 = vunpack.c.h.b16 %v882
    %v1586 = vunpack.c.l.b16 %v883
    %v1587 = vunpack.c.h.b16 %v883
    %v1588 = vunpack.c.l.b16 %v884
    %v1589 = vunpack.c.h.b16 %v884
    %v1590 = vunpack.c.l.b16 %v885
    %v1591 = vunpack.c.h.b16 %v885
    %v1592 = vunpack.c.l.b16 %v886
    %v1593 = vunpack.c.h.b16 %v886
    %v1594 = vunpack.c.l.b16 %v887
    %v1595 = vunpack.c.h.b16 %v887
    %v1596 = vunpack.c.l.b16 %v888
    %v1597 = vunpack.c.h.b16 %v888
    %v1598 = vunpack.c.l.b16 %v889
    %v1599 = vunpack.c.h.b16 %v889
    %v1600 = vunpack.c.l.b16 %v890
    %v1601 = vunpack.c.h.b16 %v890
    %v1602 = vunpack.c.l.b16 %v891
    %v1603 = vunpack.c.h.b16 %v891
    %v1604 = vunpack.c.l.b16 %v892
    %v1605 = vunpack.c.h.b16 %v892
    %v1606 = vunpack.c.l.b16 %v893
    %v1607 = vunpack.c.h.b16 %v893
    %v1608 = vunpack.c.l.b16 %v894
    %v1609 = vunpack.c.h.b16 %v894
    %v1610 = vunpack.c.l.b16 %v895
    %v1611 = vunpack.c.h.b16 %v895
    %v1612 = vunpack.c.l.b16 %v896
    %v1613 = vunpack.c.h.b16 %v896
    %v1614 = vunpack.c.l.b16 %v897
    %v1615 = vunpack.c.h.b16 %v897
    %v1616 = vunpack.c.l.b16 %v898
    %v1617 = vunpack.c.h.b16 %v898
    %v1618 = vunpack.c.l.b16 %v899
    %v1619 = vunpack.c.h.b16 %v899
    %v1620 = vunpack.c.l.b16 %v900
    %v1621 = vunpack.c.h.b16 %v900
    %v1622 = vunpack.c.l.b16 %v901
    %v1623 = vunpack.c.h.b16 %v901
    %v1624 = vunpack.c.l.b16 %v902
    %v1625 = vunpack.c.h.b16 %v902
    %v1626 = vunpack.c.l.b16 %v903
    %v1627 = vunpack.c.h.b16 %v903
    %v1628 = vunpack.c.l.b16 %v904
    %v1629 = vunpack.c.h.b16 %v904
    %v1630 = vunpack.c.l.b16 %v905
    %v1631 = vunpack.c.h.b16 %v905
    %v1632 = vunpack.c.l.b16 %v906
    %v1633 = vunpack.c.h.b16 %v906
    %v1634 = vunpack.c.l.b16 %v907
    %v1635 = vunpack.c.h.b16 %v907
    %v1636 = vunpack.c.l.b16 %v908
    %v1637 = vunpack.c.h.b16 %v908
    %v1638 = vunpack.c.l.b16 %v909
    %v1639 = vunpack.c.h.b16 %v909
    %v1640 = vunpack.c.l.b16 %v910
    %v1641 = vunpack.c.h.b16 %v910
    %v1642 = vunpack.c.l.b16 %v911
    %v1643 = vunpack.c.h.b16 %v911
    %v1644 = vunpack.c.l.b16 %v912
    %v1645 = vunpack.c.h.b16 %v912
    %v1646 = vunpack.c.l.b16 %v913
    %v1647 = vunpack.c.h.b16 %v913
    %v1648 = vunpack.c.l.b16 %v914
    %v1649 = vunpack.c.h.b16 %v914
    %v1650 = vunpack.c.l.b16 %v915
    %v1651 = vunpack.c.h.b16 %v915
    %v1652 = vunpack.c.l.b16 %v916
    %v1653 = vunpack.c.h.b16 %v916
    %v1654 = vunpack.c.l.b16 %v917
    %v1655 = vunpack.c.h.b16 %v917
    %v1656 = vunpack.c.l.b16 %v918
    %v1657 = vunpack.c.h.b16 %v918
    %v1658 = vunpack.c.l.b16 %v919
    %v1659 = vunpack.c.h.b16 %v919
    %v1660 = vunpack.c.l.b16 %v920
    %v1661 = vunpack.c.h.b16 %v920
    %v1662 = vunpack.c.l.b16 %v921
    %v1663 = vunpack.c.h.b16 %v921
    %v1664 = vunpack.c.l.b16 %v922
    %v1665 = vunpack.c.h.b16 %v922
    %v1666 = vunpack.c.l.b16 %v923
    %v1667 = vunpack.c.h.b16 %v923
    %v1668 = vunpack.c.l.b16 %v924
    %v1669 = vunpack.c.h.b16 %v924
    %v1670 = vunpack.c.l.b16 %v925
    %v1671 = vunpack.c.h.b16 %v925
    %v1672 = vunpack.c.l.b16 %v926
    %v1673 = vunpack.c.h.b16 %v926
    %v1674 = vunpack.c.l.b16 %v927
    %v1675 = vunpack.c.h.b16 %v927
    %v1676 = vunpack.c.l.b16 %v928
    %v1677 = vunpack.c.h.b16 %v928
    %v1678 = vunpack.c.l.b16 %v929
    %v1679 = vunpack.c.h.b16 %v929
    %v1680 = vunpack.c.l.b16 %v930
    %v1681 = vunpack.c.h.b16 %v930
    %v1682 = vunpack.c.l.b16 %v931
    %v1683 = vunpack.c.h.b16 %v931
    %v1684 = vunpack.c.l.b16 %v932
    %v1685 = vunpack.c.h.b16 %v932
    %v1686 = vunpack.c.l.b16 %v933
    %v1687 = vunpack.c.h.b16 %v933
    %v1688 = vunpack.c.l.b16 %v934
    %v1689 = vunpack.c.h.b16 %v934
    %v1690 = vunpack.c.l.b16 %v935
    %v1691 = vunpack.c.h.b16 %v935
    %v1692 = vunpack.c.l.b16 %v936
    %v1693 = vunpack.c.h.b16 %v936
    %v1694 = vunpack.c.l.b16 %v937
    %v1695 = vunpack.c.h.b16 %v937
    %v1696 = vunpack.c.l.b16 %v938
    %v1697 = vunpack.c.h.b16 %v938
    %v1698 = vunpack.c.l.b16 %v939
    %v1699 = vunpack.c.h.b16 %v939
    %v1700 = vunpack.c.l.b16 %v940
    %v1701 = vunpack.c.h.b16 %v940
    %v1702 = vunpack.c.l.b16 %v941
    %v1703 = vunpack.c.h.b16 %v941
    %v1704 = vunpack.c.l.b16 %v942
    %v1705 = vunpack.c.h.b16 %v942
    %v1706 = vunpack.c.l.b16 %v943
    %v1707 = vunpack.c.h.b16 %v943
    %v1708 = vunpack.c.l.b16 %v944
    %v1709 = vunpack.c.h.b16 %v944
    %v1710 = vunpack.c.l.b16 %v945
    %v1711 = vunpack.c.h.b16 %v945
    %v1712 = vunpack.c.l.b16 %v946
    %v1713 = vunpack.c.h.b16 %v946
    %v1714 = vunpack.c.l.b16 %v947
    %v1715 = vunpack.c.h.b16 %v947
    %v1716 = vunpack.c.l.b16 %v948
    %v1717 = vunpack.c.h.b16 %v948
    %v1718 = vunpack.c.l.b16 %v949
    %v1719 = vunpack.c.h.b16 %v949
    %v1720 = vunpack.c.l.b16 %v950
    %v1721 = vunpack.c.h.b16 %v950
    %v1722 = vunpack.c.l.b16 %v951
    %v1723 = vunpack.c.h.b16 %v951
    %v1724 = vunpack.c.l.b16 %v952
    %v1725 = vunpack.c.h.b16 %v952
    %v1726 = vunpack.c.l.b16 %v953
    %v1727 = vunpack.c.h.b16 %v953
    %v1728 = vunpack.c.l.b16 %v954
    %v1729 = vunpack.c.h.b16 %v954
    %v1730 = vunpack.c.l.b16 %v955
    %v1731 = vunpack.c.h.b16 %v955
    %v1732 = vunpack.c.l.b16 %v956
    %v1733 = vunpack.c.h.b16 %v956
    %v1734 = vunpack.c.l.b16 %v957
    %v1735 = vunpack.c.h.b16 %v957
    %v1736 = vpack.c.b16 %v1228, %v1224
    %v1737 = vpack.c.b16 %v1229, %v1225
    %v1738 = vpack.c.b16 %v1230, %v1226
    %v1739 = vpack.c.b16 %v1231, %v1227
    %v1740 = vpack.c.b16 %v1236, %v1232
    %v1741 = vpack.c.b16 %v1237, %v1233
    %v1742 = vpack.c.b16 %v1238, %v1234
    %v1743 = vpack.c.b16 %v1239, %v1235
    %v1744 = vpack.c.b16 %v1244, %v1240
    %v1745 = vpack.c.b16 %v1245, %v1241
    %v1746 = vpack.c.b16 %v1246, %v1242
    %v1747 = vpack.c.b16 %v1247, %v1243
    %v1748 = vpack.c.b16 %v1252, %v1248
    %v1749 = vpack.c.b16 %v1253, %v1249
    %v1750 = vpack.c.b16 %v1254, %v1250
    %v1751 = vpack.c.b16 %v1255, %v1251
    %v1752 = vpack.c.b16 %v1260, %v1256
    %v1753 = vpack.c.b16 %v1261, %v1257
    %v1754 = vpack.c.b16 %v1262, %v1258
    %v1755 = vpack.c.b16 %v1263, %v1259
    %v1756 = vpack.c.b16 %v1268, %v1264
    %v1757 = vpack.c.b16 %v1269, %v1265
    %v1758 = vpack.c.b16 %v1270, %v1266
    %v1759 = vpack.c.b16 %v1271, %v1267
    %v1760 = vpack.c.b16 %v1276, %v1272
    %v1761 = vpack.c.b16 %v1277, %v1273
    %v1762 = vpack.c.b16 %v1278, %v1274
    %v1763 = vpack.c.b16 %v1279, %v1275
    %v1764 = vpack.c.b16 %v1284, %v1280
    %v1765 = vpack.c.b16 %v1285, %v1281
    %v1766 = vpack.c.b16 %v1286, %v1282
    %v1767 = vpack.c.b16 %v1287, %v1283
    %v1768 = vpack.c.b16 %v1292, %v1288
    %v1769 = vpack.c.b16 %v1293, %v1289
    %v1770 = vpack.c.b16 %v1294, %v1290
    %v1771 = vpack.c.b16 %v1295, %v1291
    %v1772 = vpack.c.b16 %v1300, %v1296
    %v1773 = vpack.c.b16 %v1301, %v1297
    %v1774 = vpack.c.b16 %v1302, %v1298
    %v1775 = vpack.c.b16 %v1303, %v1299
    %v1776 = vpack.c.b16 %v1308, %v1304
    %v1777 = vpack.c.b16 %v1309, %v1305
    %v1778 = vpack.c.b16 %v1310, %v1306
    %v1779 = vpack.c.b16 %v1311, %v1307
    %v1780 = vpack.c.b16 %v1316, %v1312
    %v1781 = vpack.c.b16 %v1317, %v1313
    %v1782 = vpack.c.b16 %v1318, %v1314
    %v1783 = vpack.c.b16 %v1319, %v1315
    %v1784 = vpack.c.b16 %v1324, %v1320
    %v1785 = vpack.c.b16 %v1325, %v1321
    %v1786 = vpack.c.b16 %v1326, %v1322
    %v1787 = vpack.c.b16 %v1327, %v1323
    %v1788 = vpack.c.b16 %v1332, %v1328
    %v1789 = vpack.c.b16 %v1333, %v1329
    %v1790 = vpack.c.b16 %v1334, %v1330
    %v1791 = vpack.c.b16 %v1335, %v1331
    %v1792 = vpack.c.b16 %v1340, %v1336
    %v1793 = vpack.c.b16 %v1341, %v1337
    %v1794 = vpack.c.b16 %v1342, %v1338
    %v1795 = vpack.c.b16 %v1343, %v1339
    %v1796 = vpack.c.b16 %v1348, %v1344
    %v1797 = vpack.c.b16 %v1349, %v1345
    %v1798 = vpack.c.b16 %v1350, %v1346
    %v1799 = vpack.c.b16 %v1351, %v1347
    %v1800 = vpack.c.b16 %v1356, %v1352
    %v1801 = vpack.c.b16 %v1357, %v1353
    %v1802 = vpack.c.b16 %v1358, %v1354
    %v1803 = vpack.c.b16 %v1359, %v1355
    %v1804 = vpack.c.b16 %v1364, %v1360
    %v1805 = vpack.c.b16 %v1365, %v1361
    %v1806 = vpack.c.b16 %v1366, %v1362
    %v1807 = vpack.c.b16 %v1367, %v1363
    %v1808 = vpack.c.b16 %v1372, %v1368
    %v1809 = vpack.c.b16 %v1373, %v1369
    %v1810 = vpack.c.b16 %v1374, %v1370
    %v1811 = vpack.c.b16 %v1375, %v1371
    %v1812 = vpack.c.b16 %v1380, %v1376
    %v1813 = vpack.c.b16 %v1381, %v1377
    %v1814 = vpack.c.b16 %v1382, %v1378
    %v1815 = vpack.c.b16 %v1383, %v1379
    %v1816 = vpack.c.b16 %v1388, %v1384
    %v1817 = vpack.c.b16 %v1389, %v1385
    %v1818 = vpack.c.b16 %v1390, %v1386
    %v1819 = vpack.c.b16 %v1391, %v1387
    %v1820 = vpack.c.b16 %v1396, %v1392
    %v1821 = vpack.c.b16 %v1397, %v1393
    %v1822 = vpack.c.b16 %v1398, %v1394
    %v1823 = vpack.c.b16 %v1399, %v1395
    %v1824 = vpack.c.b16 %v1404, %v1400
    %v1825 = vpack.c.b16 %v1405, %v1401
    %v1826 = vpack.c.b16 %v1406, %v1402
    %v1827 = vpack.c.b16 %v1407, %v1403
    %v1828 = vpack.c.b16 %v1412, %v1408
    %v1829 = vpack.c.b16 %v1413, %v1409
    %v1830 = vpack.c.b16 %v1414, %v1410
    %v1831 = vpack.c.b16 %v1415, %v1411
    %v1832 = vpack.c.b16 %v1420, %v1416
    %v1833 = vpack.c.b16 %v1421, %v1417
    %v1834 = vpack.c.b16 %v1422, %v1418
    %v1835 = vpack.c.b16 %v1423, %v1419
    %v1836 = vpack.c.b16 %v1428, %v1424
    %v1837 = vpack.c.b16 %v1429, %v1425
    %v1838 = vpack.c.b16 %v1430, %v1426
    %v1839 = vpack.c.b16 %v1431, %v1427
    %v1840 = vpack.c.b16 %v1436, %v1432
    %v1841 = vpack.c.b16 %v1437, %v1433
    %v1842 = vpack.c.b16 %v1438, %v1434
    %v1843 = vpack.c.b16 %v1439, %v1435
    %v1844 = vpack.c.b16 %v1444, %v1440
    %v1845 = vpack.c.b16 %v1445, %v1441
    %v1846 = vpack.c.b16 %v1446, %v1442
    %v1847 = vpack.c.b16 %v1447, %v1443
    %v1848 = vpack.c.b16 %v1452, %v1448
    %v1849 = vpack.c.b16 %v1453, %v1449
    %v1850 = vpack.c.b16 %v1454, %v1450
    %v1851 = vpack.c.b16 %v1455, %v1451
    %v1852 = vpack.c.b16 %v1460, %v1456
    %v1853 = vpack.c.b16 %v1461, %v1457
    %v1854 = vpack.c.b16 %v1462, %v1458
    %v1855 = vpack.c.b16 %v1463, %v1459
    %v1856 = vpack.c.b16 %v1468, %v1464
    %v1857 = vpack.c.b16 %v1469, %v1465
    %v1858 = vpack.c.b16 %v1470, %v1466
    %v1859 = vpack.c.b16 %v1471, %v1467
    %v1860 = vpack.c.b16 %v1476, %v1472
    %v1861 = vpack.c.b16 %v1477, %v1473
    %v1862 = vpack.c.b16 %v1478, %v1474
    %v1863 = vpack.c.b16 %v1479, %v1475
    %v1864 = vpack.c.b16 %v1484, %v1480
    %v1865 = vpack.c.b16 %v1485, %v1481
    %v1866 = vpack.c.b16 %v1486, %v1482
    %v1867 = vpack.c.b16 %v1487, %v1483
    %v1868 = vpack.c.b16 %v1492, %v1488
    %v1869 = vpack.c.b16 %v1493, %v1489
    %v1870 = vpack.c.b16 %v1494, %v1490
    %v1871 = vpack.c.b16 %v1495, %v1491
    %v1872 = vpack.c.b16 %v1500, %v1496
    %v1873 = vpack.c.b16 %v1501, %v1497
    %v1874 = vpack.c.b16 %v1502, %v1498
    %v1875 = vpack.c.b16 %v1503, %v1499
    %v1876 = vpack.c.b16 %v1508, %v1504
    %v1877 = vpack.c.b16 %v1509, %v1505
    %v1878 = vpack.c.b16 %v1510, %v1506
    %v1879 = vpack.c.b16 %v1511, %v1507
    %v1880 = vpack.c.b16 %v1516, %v1512
    %v1881 = vpack.c.b16 %v1517, %v1513
    %v1882 = vpack.c.b16 %v1518, %v1514
    %v1883 = vpack.c.b16 %v1519, %v1515
    %v1884 = vpack.c.b16 %v1524, %v1520
    %v1885 = vpack.c.b16 %v1525, %v1521
    %v1886 = vpack.c.b16 %v1526, %v1522
    %v1887 = vpack.c.b16 %v1527, %v1523
    %v1888 = vpack.c.b16 %v1532, %v1528
    %v1889 = vpack.c.b16 %v1533, %v1529
    %v1890 = vpack.c.b16 %v1534, %v1530
    %v1891 = vpack.c.b16 %v1535, %v1531
    %v1892 = vpack.c.b16 %v1540, %v1536
    %v1893 = vpack.c.b16 %v1541, %v1537
    %v1894 = vpack.c.b16 %v1542, %v1538
    %v1895 = vpack.c.b16 %v1543, %v1539
    %v1896 = vpack.c.b16 %v1548, %v1544
    %v1897 = vpack.c.b16 %v1549, %v1545
    %v1898 = vpack.c.b16 %v1550, %v1546
    %v1899 = vpack.c.b16 %v1551, %v1547
    %v1900 = vpack.c.b16 %v1556, %v1552
    %v1901 = vpack.c.b16 %v1557, %v1553
    %v1902 = vpack.c.b16 %v1558, %v1554
    %v1903 = vpack.c.b16 %v1559, %v1555
    %v1904 = vpack.c.b16 %v1564, %v1560
    %v1905 = vpack.c.b16 %v1565, %v1561
    %v1906 = vpack.c.b16 %v1566, %v1562
    %v1907 = vpack.c.b16 %v1567, %v1563
    %v1908 = vpack.c.b16 %v1572, %v1568
    %v1909 = vpack.c.b16 %v1573, %v1569
    %v1910 = vpack.c.b16 %v1574, %v1570
    %v1911 = vpack.c.b16 %v1575, %v1571
    %v1912 = vpack.c.b16 %v1580, %v1576
    %v1913 = vpack.c.b16 %v1581, %v1577
    %v1914 = vpack.c.b16 %v1582, %v1578
    %v1915 = vpack.c.b16 %v1583, %v1579
    %v1916 = vpack.c.b16 %v1588, %v1584
    %v1917 = vpack.c.b16 %v1589, %v1585
    %v1918 = vpack.c.b16 %v1590, %v1586
    %v1919 = vpack.c.b16 %v1591, %v1587
    %v1920 = vpack.c.b16 %v1596, %v1592
    %v1921 = vpack.c.b16 %v1597, %v1593
    %v1922 = vpack.c.b16 %v1598, %v1594
    %v1923 = vpack.c.b16 %v1599, %v1595
    %v1924 = vpack.c.b16 %v1604, %v1600
    %v1925 = vpack.c.b16 %v1605, %v1601
    %v1926 = vpack.c.b16 %v1606, %v1602
    %v1927 = vpack.c.b16 %v1607, %v1603
    %v1928 = vpack.c.b16 %v1612, %v1608
    %v1929 = vpack.c.b16 %v1613, %v1609
    %v1930 = vpack.c.b16 %v1614, %v1610
    %v1931 = vpack.c.b16 %v1615, %v1611
    %v1932 = vpack.c.b16 %v1620, %v1616
    %v1933 = vpack.c.b16 %v1621, %v1617
    %v1934 = vpack.c.b16 %v1622, %v1618
    %v1935 = vpack.c.b16 %v1623, %v1619
    %v1936 = vpack.c.b16 %v1628, %v1624
    %v1937 = vpack.c.b16 %v1629, %v1625
    %v1938 = vpack.c.b16 %v1630, %v1626
    %v1939 = vpack.c.b16 %v1631, %v1627
    %v1940 = vpack.c.b16 %v1636, %v1632
    %v1941 = vpack.c.b16 %v1637, %v1633
    %v1942 = vpack.c.b16 %v1638, %v1634
    %v1943 = vpack.c.b16 %v1639, %v1635
    %v1944 = vpack.c.b16 %v1644, %v1640
    %v1945 = vpack.c.b16 %v1645, %v1641
    %v1946 = vpack.c.b16 %v1646, %v1642
    %v1947 = vpack.c.b16 %v1647, %v1643
    %v1948 = vpack.c.b16 %v1652, %v1648
    %v1949 = vpack.c.b16 %v1653, %v1649
    %v1950 = vpack.c.b16 %v1654, %v1650
    %v1951 = vpack.c.b16 %v1655, %v1651
    %v1952 = vpack.c.b16 %v1660, %v1656
    %v1953 = vpack.c.b16 %v1661, %v1657
    %v1954 = vpack.c.b16 %v1662, %v1658
    %v1955 = vpack.c.b16 %v1663, %v1659
    %v1956 = vpack.c.b16 %v1668, %v1664
    %v1957 = vpack.c.b16 %v1669, %v1665
    %v1958 = vpack.c.b16 %v1670, %v1666
    %v1959 = vpack.c.b16 %v1671, %v1667
    %v1960 = vpack.c.b16 %v1676, %v1672
    %v1961 = vpack.c.b16 %v1677, %v1673
    %v1962 = vpack.c.b16 %v1678, %v1674
    %v1963 = vpack.c.b16 %v1679, %v1675
    %v1964 = vpack.c.b16 %v1684, %v1680
    %v1965 = vpack.c.b16 %v1685, %v1681
    %v1966 = vpack.c.b16 %v1686, %v1682
    %v1967 = vpack.c.b16 %v1687, %v1683
    %v1968 = vpack.c.b16 %v1692, %v1688
    %v1969 = vpack.c.b16 %v1693, %v1689
    %v1970 = vpack.c.b16 %v1694, %v1690
    %v1971 = vpack.c.b16 %v1695, %v1691
    %v1972 = vpack.c.b16 %v1700, %v1696
    %v1973 = vpack.c.b16 %v1701, %v1697
    %v1974 = vpack.c.b16 %v1702, %v1698
    %v1975 = vpack.c.b16 %v1703, %v1699
    %v1976 = vpack.c.b16 %v1708, %v1704
    %v1977 = vpack.c.b16 %v1709, %v1705
    %v1978 = vpack.c.b16 %v1710, %v1706
    %v1979 = vpack.c.b16 %v1711, %v1707
    %v1980 = vpack.c.b16 %v1716, %v1712
    %v1981 = vpack.c.b16 %v1717, %v1713
    %v1982 = vpack.c.b16 %v1718, %v1714
    %v1983 = vpack.c.b16 %v1719, %v1715
    %v1984 = vpack.c.b16 %v1724, %v1720
    %v1985 = vpack.c.b16 %v1725, %v1721
    %v1986 = vpack.c.b16 %v1726, %v1722
    %v1987 = vpack.c.b16 %v1727, %v1723
    %v1988 = vpack.c.b16 %v1732, %v1728
    %v1989 = vpack.c.b16 %v1733, %v1729
    %v1990 = vpack.c.b16 %v1734, %v1730
    %v1991 = vpack.c.b16 %v1735, %v1731
    %2248 = vmatpush.bf16.msra.mxu0 %v1764
    %2249 = vmatpush.bf16.msra.mxu0 %v1760
    %2250 = vmatpush.bf16.msra.mxu0 %v1756
    %2251 = vmatpush.bf16.msra.mxu0 %v1752
    %2252 = vmatpush.bf16.msra.mxu0 %v1748
    %2253 = vmatpush.bf16.msra.mxu0 %v1744
    %2254 = vmatpush.bf16.msra.mxu0 %v1740
    %2255 = vmatpush.bf16.msra.mxu0 %v1736
    %2256 = vmatmul.bf16.gmra.mxu0 %v694
    %v2257 = vpop.f32.mrf.mxu0
    %v2258 = vadd.f32 %v960, %v2257
    %v2259 = vpop.f32.mrf.mxu0
    %2260 = vdwg.mxu0
    %2261 = vmatpush.bf16.msra.mxu0 %v1796
    %2262 = vmatpush.bf16.msra.mxu0 %v1792
    %2263 = vmatpush.bf16.msra.mxu0 %v1788
    %2264 = vmatpush.bf16.msra.mxu0 %v1784
    %2265 = vmatpush.bf16.msra.mxu0 %v1780
    %2266 = vmatpush.bf16.msra.mxu0 %v1776
    %2267 = vmatpush.bf16.msra.mxu0 %v1772
    %2268 = vmatpush.bf16.msra.mxu0 %v1768
    %2269 = vmatmul.bf16.gmra.mxu0 %v695
    %v2270 = vpop.f32.mrf.mxu0
    %v2271 = vadd.f32 %v2258, %v2270
    %v2272 = vpop.f32.mrf.mxu0
    %2273 = vdwg.mxu0
    %2274 = vmatpush.bf16.msra.mxu0 %v1828
    %2275 = vmatpush.bf16.msra.mxu0 %v1824
    %2276 = vmatpush.bf16.msra.mxu0 %v1820
    %2277 = vmatpush.bf16.msra.mxu0 %v1816
    %2278 = vmatpush.bf16.msra.mxu0 %v1812
    %2279 = vmatpush.bf16.msra.mxu0 %v1808
    %2280 = vmatpush.bf16.msra.mxu0 %v1804
    %2281 = vmatpush.bf16.msra.mxu0 %v1800
    %2282 = vmatmul.bf16.gmra.mxu0 %v696
    %v2283 = vpop.f32.mrf.mxu0
    %v2284 = vadd.f32 %v2271, %v2283
    %v2285 = vpop.f32.mrf.mxu0
    %2286 = vdwg.mxu0
    %2287 = vmatpush.bf16.msra.mxu0 %v1860
    %2288 = vmatpush.bf16.msra.mxu0 %v1856
    %2289 = vmatpush.bf16.msra.mxu0 %v1852
    %2290 = vmatpush.bf16.msra.mxu0 %v1848
    %2291 = vmatpush.bf16.msra.mxu0 %v1844
    %2292 = vmatpush.bf16.msra.mxu0 %v1840
    %2293 = vmatpush.bf16.msra.mxu0 %v1836
    %2294 = vmatpush.bf16.msra.mxu0 %v1832
    %2295 = vmatmul.bf16.gmra.mxu0 %v697
    %v2296 = vpop.f32.mrf.mxu0
    %v2297 = vadd.f32 %v2284, %v2296
    %v2298 = vpop.f32.mrf.mxu0
    %2299 = vdwg.mxu0
    %2300 = vmatpush.bf16.msra.mxu0 %v1892
    %2301 = vmatpush.bf16.msra.mxu0 %v1888
    %2302 = vmatpush.bf16.msra.mxu0 %v1884
    %2303 = vmatpush.bf16.msra.mxu0 %v1880
    %2304 = vmatpush.bf16.msra.mxu0 %v1876
    %2305 = vmatpush.bf16.msra.mxu0 %v1872
    %2306 = vmatpush.bf16.msra.mxu0 %v1868
    %2307 = vmatpush.bf16.msra.mxu0 %v1864
    %2308 = vmatmul.bf16.gmra.mxu0 %v698
    %v2309 = vpop.f32.mrf.mxu0
    %v2310 = vadd.f32 %v2297, %v2309
    %v2311 = vpop.f32.mrf.mxu0
    %2312 = vdwg.mxu0
    %2313 = vmatpush.bf16.msra.mxu0 %v1924
    %2314 = vmatpush.bf16.msra.mxu0 %v1920
    %2315 = vmatpush.bf16.msra.mxu0 %v1916
    %2316 = vmatpush.bf16.msra.mxu0 %v1912
    %2317 = vmatpush.bf16.msra.mxu0 %v1908
    %2318 = vmatpush.bf16.msra.mxu0 %v1904
    %2319 = vmatpush.bf16.msra.mxu0 %v1900
    %2320 = vmatpush.bf16.msra.mxu0 %v1896
    %2321 = vmatmul.bf16.gmra.mxu0 %v699
    %v2322 = vpop.f32.mrf.mxu0
    %v2323 = vadd.f32 %v2310, %v2322
    %v2324 = vpop.f32.mrf.mxu0
    %2325 = vdwg.mxu0
    %2326 = vmatpush.bf16.msra.mxu0 %v1956
    %2327 = vmatpush.bf16.msra.mxu0 %v1952
    %2328 = vmatpush.bf16.msra.mxu0 %v1948
    %2329 = vmatpush.bf16.msra.mxu0 %v1944
    %2330 = vmatpush.bf16.msra.mxu0 %v1940
    %2331 = vmatpush.bf16.msra.mxu0 %v1936
    %2332 = vmatpush.bf16.msra.mxu0 %v1932
    %2333 = vmatpush.bf16.msra.mxu0 %v1928
    %2334 = vmatmul.bf16.gmra.mxu0 %v700
    %v2335 = vpop.f32.mrf.mxu0
    %v2336 = vadd.f32 %v2323, %v2335
    %v2337 = vpop.f32.mrf.mxu0
    %2338 = vdwg.mxu0
    %2339 = vmatpush.bf16.msra.mxu0 %v1988
    %2340 = vmatpush.bf16.msra.mxu0 %v1984
    %2341 = vmatpush.bf16.msra.mxu0 %v1980
    %2342 = vmatpush.bf16.msra.mxu0 %v1976
    %2343 = vmatpush.bf16.msra.mxu0 %v1972
    %2344 = vmatpush.bf16.msra.mxu0 %v1968
    %2345 = vmatpush.bf16.msra.mxu0 %v1964
    %2346 = vmatpush.bf16.msra.mxu0 %v1960
    %2347 = vmatmul.bf16.gmra.mxu0 %v701
    %v2348 = vpop.f32.mrf.mxu0
    %v2349 = vadd.f32 %v2336, %v2348
    %v2350 = vpop.f32.mrf.mxu0
    %2351 = vdwg.mxu0
    %2352 = vmatpush.bf16.msra.mxu0 %v1765
    %2353 = vmatpush.bf16.msra.mxu0 %v1761
    %2354 = vmatpush.bf16.msra.mxu0 %v1757
    %2355 = vmatpush.bf16.msra.mxu0 %v1753
    %2356 = vmatpush.bf16.msra.mxu0 %v1749
    %2357 = vmatpush.bf16.msra.mxu0 %v1745
    %2358 = vmatpush.bf16.msra.mxu0 %v1741
    %2359 = vmatpush.bf16.msra.mxu0 %v1737
    %2360 = vmatmul.bf16.gmra.mxu0 %v694
    %v2361 = vpop.f32.mrf.mxu0
    %v2362 = vadd.f32 %v961, %v2361
    %v2363 = vpop.f32.mrf.mxu0
    %2364 = vdwg.mxu0
    %2365 = vmatpush.bf16.msra.mxu0 %v1797
    %2366 = vmatpush.bf16.msra.mxu0 %v1793
    %2367 = vmatpush.bf16.msra.mxu0 %v1789
    %2368 = vmatpush.bf16.msra.mxu0 %v1785
    %2369 = vmatpush.bf16.msra.mxu0 %v1781
    %2370 = vmatpush.bf16.msra.mxu0 %v1777
    %2371 = vmatpush.bf16.msra.mxu0 %v1773
    %2372 = vmatpush.bf16.msra.mxu0 %v1769
    %2373 = vmatmul.bf16.gmra.mxu0 %v695
    %v2374 = vpop.f32.mrf.mxu0
    %v2375 = vadd.f32 %v2362, %v2374
    %v2376 = vpop.f32.mrf.mxu0
    %2377 = vdwg.mxu0
    %2378 = vmatpush.bf16.msra.mxu0 %v1829
    %2379 = vmatpush.bf16.msra.mxu0 %v1825
    %2380 = vmatpush.bf16.msra.mxu0 %v1821
    %2381 = vmatpush.bf16.msra.mxu0 %v1817
    %2382 = vmatpush.bf16.msra.mxu0 %v1813
    %2383 = vmatpush.bf16.msra.mxu0 %v1809
    %2384 = vmatpush.bf16.msra.mxu0 %v1805
    %2385 = vmatpush.bf16.msra.mxu0 %v1801
    %2386 = vmatmul.bf16.gmra.mxu0 %v696
    %v2387 = vpop.f32.mrf.mxu0
    %v2388 = vadd.f32 %v2375, %v2387
    %v2389 = vpop.f32.mrf.mxu0
    %2390 = vdwg.mxu0
    %2391 = vmatpush.bf16.msra.mxu0 %v1861
    %2392 = vmatpush.bf16.msra.mxu0 %v1857
    %2393 = vmatpush.bf16.msra.mxu0 %v1853
    %2394 = vmatpush.bf16.msra.mxu0 %v1849
    %2395 = vmatpush.bf16.msra.mxu0 %v1845
    %2396 = vmatpush.bf16.msra.mxu0 %v1841
    %2397 = vmatpush.bf16.msra.mxu0 %v1837
    %2398 = vmatpush.bf16.msra.mxu0 %v1833
    %2399 = vmatmul.bf16.gmra.mxu0 %v697
    %v2400 = vpop.f32.mrf.mxu0
    %v2401 = vadd.f32 %v2388, %v2400
    %v2402 = vpop.f32.mrf.mxu0
    %2403 = vdwg.mxu0
    %2404 = vmatpush.bf16.msra.mxu0 %v1893
    %2405 = vmatpush.bf16.msra.mxu0 %v1889
    %2406 = vmatpush.bf16.msra.mxu0 %v1885
    %2407 = vmatpush.bf16.msra.mxu0 %v1881
    %2408 = vmatpush.bf16.msra.mxu0 %v1877
    %2409 = vmatpush.bf16.msra.mxu0 %v1873
    %2410 = vmatpush.bf16.msra.mxu0 %v1869
    %2411 = vmatpush.bf16.msra.mxu0 %v1865
    %2412 = vmatmul.bf16.gmra.mxu0 %v698
    %v2413 = vpop.f32.mrf.mxu0
    %v2414 = vadd.f32 %v2401, %v2413
    %v2415 = vpop.f32.mrf.mxu0
    %2416 = vdwg.mxu0
    %2417 = vmatpush.bf16.msra.mxu0 %v1925
    %2418 = vmatpush.bf16.msra.mxu0 %v1921
    %2419 = vmatpush.bf16.msra.mxu0 %v1917
    %2420 = vmatpush.bf16.msra.mxu0 %v1913
    %2421 = vmatpush.bf16.msra.mxu0 %v1909
    %2422 = vmatpush.bf16.msra.mxu0 %v1905
    %2423 = vmatpush.bf16.msra.mxu0 %v1901
    %2424 = vmatpush.bf16.msra.mxu0 %v1897
    %2425 = vmatmul.bf16.gmra.mxu0 %v699
    %v2426 = vpop.f32.mrf.mxu0
    %v2427 = vadd.f32 %v2414, %v2426
    %v2428 = vpop.f32.mrf.mxu0
    %2429 = vdwg.mxu0
    %2430 = vmatpush.bf16.msra.mxu0 %v1957
    %2431 = vmatpush.bf16.msra.mxu0 %v1953
    %2432 = vmatpush.bf16.msra.mxu0 %v1949
    %2433 = vmatpush.bf16.msra.mxu0 %v1945
    %2434 = vmatpush.bf16.msra.mxu0 %v1941
    %2435 = vmatpush.bf16.msra.mxu0 %v1937
    %2436 = vmatpush.bf16.msra.mxu0 %v1933
    %2437 = vmatpush.bf16.msra.mxu0 %v1929
    %2438 = vmatmul.bf16.gmra.mxu0 %v700
    %v2439 = vpop.f32.mrf.mxu0
    %v2440 = vadd.f32 %v2427, %v2439
    %v2441 = vpop.f32.mrf.mxu0
    %2442 = vdwg.mxu0
    %2443 = vmatpush.bf16.msra.mxu0 %v1989
    %2444 = vmatpush.bf16.msra.mxu0 %v1985
    %2445 = vmatpush.bf16.msra.mxu0 %v1981
    %2446 = vmatpush.bf16.msra.mxu0 %v1977
    %2447 = vmatpush.bf16.msra.mxu0 %v1973
    %2448 = vmatpush.bf16.msra.mxu0 %v1969
    %2449 = vmatpush.bf16.msra.mxu0 %v1965
    %2450 = vmatpush.bf16.msra.mxu0 %v1961
    %2451 = vmatmul.bf16.gmra.mxu0 %v701
    %v2452 = vpop.f32.mrf.mxu0
    %v2453 = vadd.f32 %v2440, %v2452
    %v2454 = vpop.f32.mrf.mxu0
    %2455 = vdwg.mxu0
    %2456 = vmatpush.bf16.msra.mxu0 %v1766
    %2457 = vmatpush.bf16.msra.mxu0 %v1762
    %2458 = vmatpush.bf16.msra.mxu0 %v1758
    %2459 = vmatpush.bf16.msra.mxu0 %v1754
    %2460 = vmatpush.bf16.msra.mxu0 %v1750
    %2461 = vmatpush.bf16.msra.mxu0 %v1746
    %2462 = vmatpush.bf16.msra.mxu0 %v1742
    %2463 = vmatpush.bf16.msra.mxu0 %v1738
    %2464 = vmatmul.bf16.gmra.mxu0 %v694
    %v2465 = vpop.f32.mrf.mxu0
    %v2466 = vadd.f32 %v962, %v2465
    %v2467 = vpop.f32.mrf.mxu0
    %2468 = vdwg.mxu0
    %2469 = vmatpush.bf16.msra.mxu0 %v1798
    %2470 = vmatpush.bf16.msra.mxu0 %v1794
    %2471 = vmatpush.bf16.msra.mxu0 %v1790
    %2472 = vmatpush.bf16.msra.mxu0 %v1786
    %2473 = vmatpush.bf16.msra.mxu0 %v1782
    %2474 = vmatpush.bf16.msra.mxu0 %v1778
    %2475 = vmatpush.bf16.msra.mxu0 %v1774
    %2476 = vmatpush.bf16.msra.mxu0 %v1770
    %2477 = vmatmul.bf16.gmra.mxu0 %v695
    %v2478 = vpop.f32.mrf.mxu0
    %v2479 = vadd.f32 %v2466, %v2478
    %v2480 = vpop.f32.mrf.mxu0
    %2481 = vdwg.mxu0
    %2482 = vmatpush.bf16.msra.mxu0 %v1830
    %2483 = vmatpush.bf16.msra.mxu0 %v1826
    %2484 = vmatpush.bf16.msra.mxu0 %v1822
    %2485 = vmatpush.bf16.msra.mxu0 %v1818
    %2486 = vmatpush.bf16.msra.mxu0 %v1814
    %2487 = vmatpush.bf16.msra.mxu0 %v1810
    %2488 = vmatpush.bf16.msra.mxu0 %v1806
    %2489 = vmatpush.bf16.msra.mxu0 %v1802
    %2490 = vmatmul.bf16.gmra.mxu0 %v696
    %v2491 = vpop.f32.mrf.mxu0
    %v2492 = vadd.f32 %v2479, %v2491
    %v2493 = vpop.f32.mrf.mxu0
    %2494 = vdwg.mxu0
    %2495 = vmatpush.bf16.msra.mxu0 %v1862
    %2496 = vmatpush.bf16.msra.mxu0 %v1858
    %2497 = vmatpush.bf16.msra.mxu0 %v1854
    %2498 = vmatpush.bf16.msra.mxu0 %v1850
    %2499 = vmatpush.bf16.msra.mxu0 %v1846
    %2500 = vmatpush.bf16.msra.mxu0 %v1842
    %2501 = vmatpush.bf16.msra.mxu0 %v1838
    %2502 = vmatpush.bf16.msra.mxu0 %v1834
    %2503 = vmatmul.bf16.gmra.mxu0 %v697
    %v2504 = vpop.f32.mrf.mxu0
    %v2505 = vadd.f32 %v2492, %v2504
    %v2506 = vpop.f32.mrf.mxu0
    %2507 = vdwg.mxu0
    %2508 = vmatpush.bf16.msra.mxu0 %v1894
    %2509 = vmatpush.bf16.msra.mxu0 %v1890
    %2510 = vmatpush.bf16.msra.mxu0 %v1886
    %2511 = vmatpush.bf16.msra.mxu0 %v1882
    %2512 = vmatpush.bf16.msra.mxu0 %v1878
    %2513 = vmatpush.bf16.msra.mxu0 %v1874
    %2514 = vmatpush.bf16.msra.mxu0 %v1870
    %2515 = vmatpush.bf16.msra.mxu0 %v1866
    %2516 = vmatmul.bf16.gmra.mxu0 %v698
    %v2517 = vpop.f32.mrf.mxu0
    %v2518 = vadd.f32 %v2505, %v2517
    %v2519 = vpop.f32.mrf.mxu0
    %2520 = vdwg.mxu0
    %2521 = vmatpush.bf16.msra.mxu0 %v1926
    %2522 = vmatpush.bf16.msra.mxu0 %v1922
    %2523 = vmatpush.bf16.msra.mxu0 %v1918
    %2524 = vmatpush.bf16.msra.mxu0 %v1914
    %2525 = vmatpush.bf16.msra.mxu0 %v1910
    %2526 = vmatpush.bf16.msra.mxu0 %v1906
    %2527 = vmatpush.bf16.msra.mxu0 %v1902
    %2528 = vmatpush.bf16.msra.mxu0 %v1898
    %2529 = vmatmul.bf16.gmra.mxu0 %v699
    %v2530 = vpop.f32.mrf.mxu0
    %v2531 = vadd.f32 %v2518, %v2530
    %v2532 = vpop.f32.mrf.mxu0
    %2533 = vdwg.mxu0
    %2534 = vmatpush.bf16.msra.mxu0 %v1958
    %2535 = vmatpush.bf16.msra.mxu0 %v1954
    %2536 = vmatpush.bf16.msra.mxu0 %v1950
    %2537 = vmatpush.bf16.msra.mxu0 %v1946
    %2538 = vmatpush.bf16.msra.mxu0 %v1942
    %2539 = vmatpush.bf16.msra.mxu0 %v1938
    %2540 = vmatpush.bf16.msra.mxu0 %v1934
    %2541 = vmatpush.bf16.msra.mxu0 %v1930
    %2542 = vmatmul.bf16.gmra.mxu0 %v700
    %v2543 = vpop.f32.mrf.mxu0
    %v2544 = vadd.f32 %v2531, %v2543
    %v2545 = vpop.f32.mrf.mxu0
    %2546 = vdwg.mxu0
    %2547 = vmatpush.bf16.msra.mxu0 %v1990
    %2548 = vmatpush.bf16.msra.mxu0 %v1986
    %2549 = vmatpush.bf16.msra.mxu0 %v1982
    %2550 = vmatpush.bf16.msra.mxu0 %v1978
    %2551 = vmatpush.bf16.msra.mxu0 %v1974
    %2552 = vmatpush.bf16.msra.mxu0 %v1970
    %2553 = vmatpush.bf16.msra.mxu0 %v1966
    %2554 = vmatpush.bf16.msra.mxu0 %v1962
    %2555 = vmatmul.bf16.gmra.mxu0 %v701
    %v2556 = vpop.f32.mrf.mxu0
    %v2557 = vadd.f32 %v2544, %v2556
    %v2558 = vpop.f32.mrf.mxu0
    %2559 = vdwg.mxu0
    %2560 = vmatpush.bf16.msra.mxu0 %v1767
    %2561 = vmatpush.bf16.msra.mxu0 %v1763
    %2562 = vmatpush.bf16.msra.mxu0 %v1759
    %2563 = vmatpush.bf16.msra.mxu0 %v1755
    %2564 = vmatpush.bf16.msra.mxu0 %v1751
    %2565 = vmatpush.bf16.msra.mxu0 %v1747
    %2566 = vmatpush.bf16.msra.mxu0 %v1743
    %2567 = vmatpush.bf16.msra.mxu0 %v1739
    %2568 = vmatmul.bf16.gmra.mxu0 %v694
    %v2569 = vpop.f32.mrf.mxu0
    %v2570 = vadd.f32 %v963, %v2569
    %v2571 = vpop.f32.mrf.mxu0
    %2572 = vdwg.mxu0
    %2573 = vmatpush.bf16.msra.mxu0 %v1799
    %2574 = vmatpush.bf16.msra.mxu0 %v1795
    %2575 = vmatpush.bf16.msra.mxu0 %v1791
    %2576 = vmatpush.bf16.msra.mxu0 %v1787
    %2577 = vmatpush.bf16.msra.mxu0 %v1783
    %2578 = vmatpush.bf16.msra.mxu0 %v1779
    %2579 = vmatpush.bf16.msra.mxu0 %v1775
    %2580 = vmatpush.bf16.msra.mxu0 %v1771
    %2581 = vmatmul.bf16.gmra.mxu0 %v695
    %v2582 = vpop.f32.mrf.mxu0
    %v2583 = vadd.f32 %v2570, %v2582
    %v2584 = vpop.f32.mrf.mxu0
    %2585 = vdwg.mxu0
    %2586 = vmatpush.bf16.msra.mxu0 %v1831
    %2587 = vmatpush.bf16.msra.mxu0 %v1827
    %2588 = vmatpush.bf16.msra.mxu0 %v1823
    %2589 = vmatpush.bf16.msra.mxu0 %v1819
    %2590 = vmatpush.bf16.msra.mxu0 %v1815
    %2591 = vmatpush.bf16.msra.mxu0 %v1811
    %2592 = vmatpush.bf16.msra.mxu0 %v1807
    %2593 = vmatpush.bf16.msra.mxu0 %v1803
    %2594 = vmatmul.bf16.gmra.mxu0 %v696
    %v2595 = vpop.f32.mrf.mxu0
    %v2596 = vadd.f32 %v2583, %v2595
    %v2597 = vpop.f32.mrf.mxu0
    %2598 = vdwg.mxu0
    %2599 = vmatpush.bf16.msra.mxu0 %v1863
    %2600 = vmatpush.bf16.msra.mxu0 %v1859
    %2601 = vmatpush.bf16.msra.mxu0 %v1855
    %2602 = vmatpush.bf16.msra.mxu0 %v1851
    %2603 = vmatpush.bf16.msra.mxu0 %v1847
    %2604 = vmatpush.bf16.msra.mxu0 %v1843
    %2605 = vmatpush.bf16.msra.mxu0 %v1839
    %2606 = vmatpush.bf16.msra.mxu0 %v1835
    %2607 = vmatmul.bf16.gmra.mxu0 %v697
    %v2608 = vpop.f32.mrf.mxu0
    %v2609 = vadd.f32 %v2596, %v2608
    %v2610 = vpop.f32.mrf.mxu0
    %2611 = vdwg.mxu0
    %2612 = vmatpush.bf16.msra.mxu0 %v1895
    %2613 = vmatpush.bf16.msra.mxu0 %v1891
    %2614 = vmatpush.bf16.msra.mxu0 %v1887
    %2615 = vmatpush.bf16.msra.mxu0 %v1883
    %2616 = vmatpush.bf16.msra.mxu0 %v1879
    %2617 = vmatpush.bf16.msra.mxu0 %v1875
    %2618 = vmatpush.bf16.msra.mxu0 %v1871
    %2619 = vmatpush.bf16.msra.mxu0 %v1867
    %2620 = vmatmul.bf16.gmra.mxu0 %v698
    %v2621 = vpop.f32.mrf.mxu0
    %v2622 = vadd.f32 %v2609, %v2621
    %v2623 = vpop.f32.mrf.mxu0
    %2624 = vdwg.mxu0
    %2625 = vmatpush.bf16.msra.mxu0 %v1927
    %2626 = vmatpush.bf16.msra.mxu0 %v1923
    %2627 = vmatpush.bf16.msra.mxu0 %v1919
    %2628 = vmatpush.bf16.msra.mxu0 %v1915
    %2629 = vmatpush.bf16.msra.mxu0 %v1911
    %2630 = vmatpush.bf16.msra.mxu0 %v1907
    %2631 = vmatpush.bf16.msra.mxu0 %v1903
    %2632 = vmatpush.bf16.msra.mxu0 %v1899
    %2633 = vmatmul.bf16.gmra.mxu0 %v699
    %v2634 = vpop.f32.mrf.mxu0
    %v2635 = vadd.f32 %v2622, %v2634
    %v2636 = vpop.f32.mrf.mxu0
    %2637 = vdwg.mxu0
    %2638 = vmatpush.bf16.msra.mxu0 %v1959
    %2639 = vmatpush.bf16.msra.mxu0 %v1955
    %2640 = vmatpush.bf16.msra.mxu0 %v1951
    %2641 = vmatpush.bf16.msra.mxu0 %v1947
    %2642 = vmatpush.bf16.msra.mxu0 %v1943
    %2643 = vmatpush.bf16.msra.mxu0 %v1939
    %2644 = vmatpush.bf16.msra.mxu0 %v1935
    %2645 = vmatpush.bf16.msra.mxu0 %v1931
    %2646 = vmatmul.bf16.gmra.mxu0 %v700
    %v2647 = vpop.f32.mrf.mxu0
    %v2648 = vadd.f32 %v2635, %v2647
    %v2649 = vpop.f32.mrf.mxu0
    %2650 = vdwg.mxu0
    %2651 = vmatpush.bf16.msra.mxu0 %v1991
    %2652 = vmatpush.bf16.msra.mxu0 %v1987
    %2653 = vmatpush.bf16.msra.mxu0 %v1983
    %2654 = vmatpush.bf16.msra.mxu0 %v1979
    %2655 = vmatpush.bf16.msra.mxu0 %v1975
    %2656 = vmatpush.bf16.msra.mxu0 %v1971
    %2657 = vmatpush.bf16.msra.mxu0 %v1967
    %2658 = vmatpush.bf16.msra.mxu0 %v1963
    %2659 = vmatmul.bf16.gmra.mxu0 %v701
    %v2660 = vpop.f32.mrf.mxu0
    %v2661 = vadd.f32 %v2648, %v2660
    %v2662 = vpop.f32.mrf.mxu0
    %2663 = vdwg.mxu0
    %v2664 = vmul.f32 %v2349, 0.2
    %v2665 = vmul.f32 %v2453, 0.2
    %v2666 = vmul.f32 %v2557, 0.2
    %v2667 = vmul.f32 %v2661, 0.2
    %v2668 = vmax.f32 %v2349, %v2664
    %v2669 = vmax.f32 %v2453, %v2665
    %v2670 = vmax.f32 %v2557, %v2666
    %v2671 = vmax.f32 %v2661, %v2667
    %v2672 = vpack.c.bf16 %v2668, %v2668
    %v2673 = vpack.c.bf16 %v2669, %v2669
    %v2674 = vpack.c.bf16 %v2670, %v2670
    %v2675 = vpack.c.bf16 %v2671, %v2671
    %v2676 = vld [vmem:[#allocation11] sm:$0xff]
    %v2677 = vld [vmem:[#allocation11 + $0x8] sm:$0xff]
    %v2678 = vld [vmem:[#allocation11 + $0x10] sm:$0xff]
    %v2679 = vld [vmem:[#allocation11 + $0x18] sm:$0xff]
    %v2680 = vld [vmem:[#allocation11 + $0x20] sm:$0xff]
    %v2681 = vld [vmem:[#allocation11 + $0x28] sm:$0xff]
    %v2682 = vld [vmem:[#allocation11 + $0x30] sm:$0xff]
    %v2683 = vld [vmem:[#allocation11 + $0x38] sm:$0xff]
    %v2684 = vld [vmem:[#allocation11 + $0x40] sm:$0xff]
    %v2685 = vld [vmem:[#allocation11 + $0x48] sm:$0xff]
    %v2686 = vld [vmem:[#allocation11 + $0x50] sm:$0xff]
    %v2687 = vld [vmem:[#allocation11 + $0x58] sm:$0xff]
    %v2688 = vld [vmem:[#allocation11 + $0x60] sm:$0xff]
    %v2689 = vld [vmem:[#allocation11 + $0x68] sm:$0xff]
    %v2690 = vld [vmem:[#allocation11 + $0x70] sm:$0xff]
    %v2691 = vld [vmem:[#allocation11 + $0x78] sm:$0xff]
    %v2692 = vld [vmem:[#allocation11 + $0x80] sm:$0xff]
    %v2693 = vld [vmem:[#allocation11 + $0x88] sm:$0xff]
    %v2694 = vld [vmem:[#allocation11 + $0x90] sm:$0xff]
    %v2695 = vld [vmem:[#allocation11 + $0x98] sm:$0xff]
    %v2696 = vld [vmem:[#allocation11 + $0xa0] sm:$0xff]
    %v2697 = vld [vmem:[#allocation11 + $0xa8] sm:$0xff]
    %v2698 = vld [vmem:[#allocation11 + $0xb0] sm:$0xff]
    %v2699 = vld [vmem:[#allocation11 + $0xb8] sm:$0xff]
    %v2700 = vld [vmem:[#allocation11 + $0xc0] sm:$0xff]
    %v2701 = vld [vmem:[#allocation11 + $0xc8] sm:$0xff]
    %v2702 = vld [vmem:[#allocation11 + $0xd0] sm:$0xff]
    %v2703 = vld [vmem:[#allocation11 + $0xd8] sm:$0xff]
    %v2704 = vld [vmem:[#allocation11 + $0xe0] sm:$0xff]
    %v2705 = vld [vmem:[#allocation11 + $0xe8] sm:$0xff]
    %v2706 = vld [vmem:[#allocation11 + $0xf0] sm:$0xff]
    %v2707 = vld [vmem:[#allocation11 + $0xf8] sm:$0xff]
    %v2708 = vld [vmem:[#allocation11 + $0x100] sm:$0xff]
    %v2709 = vld [vmem:[#allocation11 + $0x108] sm:$0xff]
    %v2710 = vld [vmem:[#allocation11 + $0x110] sm:$0xff]
    %v2711 = vld [vmem:[#allocation11 + $0x118] sm:$0xff]
    %v2712 = vld [vmem:[#allocation11 + $0x120] sm:$0xff]
    %v2713 = vld [vmem:[#allocation11 + $0x128] sm:$0xff]
    %v2714 = vld [vmem:[#allocation11 + $0x130] sm:$0xff]
    %v2715 = vld [vmem:[#allocation11 + $0x138] sm:$0xff]
    %v2716 = vld [vmem:[#allocation11 + $0x140] sm:$0xff]
    %v2717 = vld [vmem:[#allocation11 + $0x148] sm:$0xff]
    %v2718 = vld [vmem:[#allocation11 + $0x150] sm:$0xff]
    %v2719 = vld [vmem:[#allocation11 + $0x158] sm:$0xff]
    %v2720 = vld [vmem:[#allocation11 + $0x160] sm:$0xff]
    %v2721 = vld [vmem:[#allocation11 + $0x168] sm:$0xff]
    %v2722 = vld [vmem:[#allocation11 + $0x170] sm:$0xff]
    %v2723 = vld [vmem:[#allocation11 + $0x178] sm:$0xff]
    %v2724 = vld [vmem:[#allocation11 + $0x180] sm:$0xff]
    %v2725 = vld [vmem:[#allocation11 + $0x188] sm:$0xff]
    %v2726 = vld [vmem:[#allocation11 + $0x190] sm:$0xff]
    %v2727 = vld [vmem:[#allocation11 + $0x198] sm:$0xff]
    %v2728 = vld [vmem:[#allocation11 + $0x1a0] sm:$0xff]
    %v2729 = vld [vmem:[#allocation11 + $0x1a8] sm:$0xff]
    %v2730 = vld [vmem:[#allocation11 + $0x1b0] sm:$0xff]
    %v2731 = vld [vmem:[#allocation11 + $0x1b8] sm:$0xff]
    %v2732 = vld [vmem:[#allocation11 + $0x1c0] sm:$0xff]
    %v2733 = vld [vmem:[#allocation11 + $0x1c8] sm:$0xff]
    %v2734 = vld [vmem:[#allocation11 + $0x1d0] sm:$0xff]
    %v2735 = vld [vmem:[#allocation11 + $0x1d8] sm:$0xff]
    %v2736 = vld [vmem:[#allocation11 + $0x1e0] sm:$0xff]
    %v2737 = vld [vmem:[#allocation11 + $0x1e8] sm:$0xff]
    %v2738 = vld [vmem:[#allocation11 + $0x1f0] sm:$0xff]
    %v2739 = vld [vmem:[#allocation11 + $0x1f8] sm:$0xff]
    %v2740 = vld [vmem:[%s6] sm:$0x3]
    %v2742 = vperm.slane %v2740, 0
    %v2743 = vperm.slane %v2740, 1
    %v2810 = vunpack.c.l.b16 %v2676
    %v2811 = vunpack.c.h.b16 %v2676
    %v2812 = vunpack.c.l.b16 %v2677
    %v2813 = vunpack.c.h.b16 %v2677
    %v2814 = vunpack.c.l.b16 %v2678
    %v2815 = vunpack.c.h.b16 %v2678
    %v2816 = vunpack.c.l.b16 %v2679
    %v2817 = vunpack.c.h.b16 %v2679
    %v2818 = vunpack.c.l.b16 %v2680
    %v2819 = vunpack.c.h.b16 %v2680
    %v2820 = vunpack.c.l.b16 %v2681
    %v2821 = vunpack.c.h.b16 %v2681
    %v2822 = vunpack.c.l.b16 %v2682
    %v2823 = vunpack.c.h.b16 %v2682
    %v2824 = vunpack.c.l.b16 %v2683
    %v2825 = vunpack.c.h.b16 %v2683
    %v2826 = vunpack.c.l.b16 %v2684
    %v2827 = vunpack.c.h.b16 %v2684
    %v2828 = vunpack.c.l.b16 %v2685
    %v2829 = vunpack.c.h.b16 %v2685
    %v2830 = vunpack.c.l.b16 %v2686
    %v2831 = vunpack.c.h.b16 %v2686
    %v2832 = vunpack.c.l.b16 %v2687
    %v2833 = vunpack.c.h.b16 %v2687
    %v2834 = vunpack.c.l.b16 %v2688
    %v2835 = vunpack.c.h.b16 %v2688
    %v2836 = vunpack.c.l.b16 %v2689
    %v2837 = vunpack.c.h.b16 %v2689
    %v2838 = vunpack.c.l.b16 %v2690
    %v2839 = vunpack.c.h.b16 %v2690
    %v2840 = vunpack.c.l.b16 %v2691
    %v2841 = vunpack.c.h.b16 %v2691
    %v2842 = vunpack.c.l.b16 %v2692
    %v2843 = vunpack.c.h.b16 %v2692
    %v2844 = vunpack.c.l.b16 %v2693
    %v2845 = vunpack.c.h.b16 %v2693
    %v2846 = vunpack.c.l.b16 %v2694
    %v2847 = vunpack.c.h.b16 %v2694
    %v2848 = vunpack.c.l.b16 %v2695
    %v2849 = vunpack.c.h.b16 %v2695
    %v2850 = vunpack.c.l.b16 %v2696
    %v2851 = vunpack.c.h.b16 %v2696
    %v2852 = vunpack.c.l.b16 %v2697
    %v2853 = vunpack.c.h.b16 %v2697
    %v2854 = vunpack.c.l.b16 %v2698
    %v2855 = vunpack.c.h.b16 %v2698
    %v2856 = vunpack.c.l.b16 %v2699
    %v2857 = vunpack.c.h.b16 %v2699
    %v2858 = vunpack.c.l.b16 %v2700
    %v2859 = vunpack.c.h.b16 %v2700
    %v2860 = vunpack.c.l.b16 %v2701
    %v2861 = vunpack.c.h.b16 %v2701
    %v2862 = vunpack.c.l.b16 %v2702
    %v2863 = vunpack.c.h.b16 %v2702
    %v2864 = vunpack.c.l.b16 %v2703
    %v2865 = vunpack.c.h.b16 %v2703
    %v2866 = vunpack.c.l.b16 %v2704
    %v2867 = vunpack.c.h.b16 %v2704
    %v2868 = vunpack.c.l.b16 %v2705
    %v2869 = vunpack.c.h.b16 %v2705
    %v2870 = vunpack.c.l.b16 %v2706
    %v2871 = vunpack.c.h.b16 %v2706
    %v2872 = vunpack.c.l.b16 %v2707
    %v2873 = vunpack.c.h.b16 %v2707
    %v2874 = vunpack.c.l.b16 %v2708
    %v2875 = vunpack.c.h.b16 %v2708
    %v2876 = vunpack.c.l.b16 %v2709
    %v2877 = vunpack.c.h.b16 %v2709
    %v2878 = vunpack.c.l.b16 %v2710
    %v2879 = vunpack.c.h.b16 %v2710
    %v2880 = vunpack.c.l.b16 %v2711
    %v2881 = vunpack.c.h.b16 %v2711
    %v2882 = vunpack.c.l.b16 %v2712
    %v2883 = vunpack.c.h.b16 %v2712
    %v2884 = vunpack.c.l.b16 %v2713
    %v2885 = vunpack.c.h.b16 %v2713
    %v2886 = vunpack.c.l.b16 %v2714
    %v2887 = vunpack.c.h.b16 %v2714
    %v2888 = vunpack.c.l.b16 %v2715
    %v2889 = vunpack.c.h.b16 %v2715
    %v2890 = vunpack.c.l.b16 %v2716
    %v2891 = vunpack.c.h.b16 %v2716
    %v2892 = vunpack.c.l.b16 %v2717
    %v2893 = vunpack.c.h.b16 %v2717
    %v2894 = vunpack.c.l.b16 %v2718
    %v2895 = vunpack.c.h.b16 %v2718
    %v2896 = vunpack.c.l.b16 %v2719
    %v2897 = vunpack.c.h.b16 %v2719
    %v2898 = vunpack.c.l.b16 %v2720
    %v2899 = vunpack.c.h.b16 %v2720
    %v2900 = vunpack.c.l.b16 %v2721
    %v2901 = vunpack.c.h.b16 %v2721
    %v2902 = vunpack.c.l.b16 %v2722
    %v2903 = vunpack.c.h.b16 %v2722
    %v2904 = vunpack.c.l.b16 %v2723
    %v2905 = vunpack.c.h.b16 %v2723
    %v2906 = vunpack.c.l.b16 %v2724
    %v2907 = vunpack.c.h.b16 %v2724
    %v2908 = vunpack.c.l.b16 %v2725
    %v2909 = vunpack.c.h.b16 %v2725
    %v2910 = vunpack.c.l.b16 %v2726
    %v2911 = vunpack.c.h.b16 %v2726
    %v2912 = vunpack.c.l.b16 %v2727
    %v2913 = vunpack.c.h.b16 %v2727
    %v2914 = vunpack.c.l.b16 %v2728
    %v2915 = vunpack.c.h.b16 %v2728
    %v2916 = vunpack.c.l.b16 %v2729
    %v2917 = vunpack.c.h.b16 %v2729
    %v2918 = vunpack.c.l.b16 %v2730
    %v2919 = vunpack.c.h.b16 %v2730
    %v2920 = vunpack.c.l.b16 %v2731
    %v2921 = vunpack.c.h.b16 %v2731
    %v2922 = vunpack.c.l.b16 %v2732
    %v2923 = vunpack.c.h.b16 %v2732
    %v2924 = vunpack.c.l.b16 %v2733
    %v2925 = vunpack.c.h.b16 %v2733
    %v2926 = vunpack.c.l.b16 %v2734
    %v2927 = vunpack.c.h.b16 %v2734
    %v2928 = vunpack.c.l.b16 %v2735
    %v2929 = vunpack.c.h.b16 %v2735
    %v2930 = vunpack.c.l.b16 %v2736
    %v2931 = vunpack.c.h.b16 %v2736
    %v2932 = vunpack.c.l.b16 %v2737
    %v2933 = vunpack.c.h.b16 %v2737
    %v2934 = vunpack.c.l.b16 %v2738
    %v2935 = vunpack.c.h.b16 %v2738
    %v2936 = vunpack.c.l.b16 %v2739
    %v2937 = vunpack.c.h.b16 %v2739
    %v2938 = vpack.c.b16 %v2812, %v2810
    %v2939 = vpack.c.b16 %v2813, %v2811
    %v2940 = vpack.c.b16 %v2816, %v2814
    %v2941 = vpack.c.b16 %v2817, %v2815
    %v2942 = vpack.c.b16 %v2820, %v2818
    %v2943 = vpack.c.b16 %v2821, %v2819
    %v2944 = vpack.c.b16 %v2824, %v2822
    %v2945 = vpack.c.b16 %v2825, %v2823
    %v2946 = vpack.c.b16 %v2828, %v2826
    %v2947 = vpack.c.b16 %v2829, %v2827
    %v2948 = vpack.c.b16 %v2832, %v2830
    %v2949 = vpack.c.b16 %v2833, %v2831
    %v2950 = vpack.c.b16 %v2836, %v2834
    %v2951 = vpack.c.b16 %v2837, %v2835
    %v2952 = vpack.c.b16 %v2840, %v2838
    %v2953 = vpack.c.b16 %v2841, %v2839
    %v2954 = vpack.c.b16 %v2844, %v2842
    %v2955 = vpack.c.b16 %v2845, %v2843
    %v2956 = vpack.c.b16 %v2848, %v2846
    %v2957 = vpack.c.b16 %v2849, %v2847
    %v2958 = vpack.c.b16 %v2852, %v2850
    %v2959 = vpack.c.b16 %v2853, %v2851
    %v2960 = vpack.c.b16 %v2856, %v2854
    %v2961 = vpack.c.b16 %v2857, %v2855
    %v2962 = vpack.c.b16 %v2860, %v2858
    %v2963 = vpack.c.b16 %v2861, %v2859
    %v2964 = vpack.c.b16 %v2864, %v2862
    %v2965 = vpack.c.b16 %v2865, %v2863
    %v2966 = vpack.c.b16 %v2868, %v2866
    %v2967 = vpack.c.b16 %v2869, %v2867
    %v2968 = vpack.c.b16 %v2872, %v2870
    %v2969 = vpack.c.b16 %v2873, %v2871
    %v2970 = vpack.c.b16 %v2876, %v2874
    %v2971 = vpack.c.b16 %v2877, %v2875
    %v2972 = vpack.c.b16 %v2880, %v2878
    %v2973 = vpack.c.b16 %v2881, %v2879
    %v2974 = vpack.c.b16 %v2884, %v2882
    %v2975 = vpack.c.b16 %v2885, %v2883
    %v2976 = vpack.c.b16 %v2888, %v2886
    %v2977 = vpack.c.b16 %v2889, %v2887
    %v2978 = vpack.c.b16 %v2892, %v2890
    %v2979 = vpack.c.b16 %v2893, %v2891
    %v2980 = vpack.c.b16 %v2896, %v2894
    %v2981 = vpack.c.b16 %v2897, %v2895
    %v2982 = vpack.c.b16 %v2900, %v2898
    %v2983 = vpack.c.b16 %v2901, %v2899
    %v2984 = vpack.c.b16 %v2904, %v2902
    %v2985 = vpack.c.b16 %v2905, %v2903
    %v2986 = vpack.c.b16 %v2908, %v2906
    %v2987 = vpack.c.b16 %v2909, %v2907
    %v2988 = vpack.c.b16 %v2912, %v2910
    %v2989 = vpack.c.b16 %v2913, %v2911
    %v2990 = vpack.c.b16 %v2916, %v2914
    %v2991 = vpack.c.b16 %v2917, %v2915
    %v2992 = vpack.c.b16 %v2920, %v2918
    %v2993 = vpack.c.b16 %v2921, %v2919
    %v2994 = vpack.c.b16 %v2924, %v2922
    %v2995 = vpack.c.b16 %v2925, %v2923
    %v2996 = vpack.c.b16 %v2928, %v2926
    %v2997 = vpack.c.b16 %v2929, %v2927
    %v2998 = vpack.c.b16 %v2932, %v2930
    %v2999 = vpack.c.b16 %v2933, %v2931
    %v3000 = vpack.c.b16 %v2936, %v2934
    %v3001 = vpack.c.b16 %v2937, %v2935
    %3066 = vmatpush.bf16.msra.mxu0 %v2952
    %3067 = vmatpush.bf16.msra.mxu0 %v2950
    %3068 = vmatpush.bf16.msra.mxu0 %v2948
    %3069 = vmatpush.bf16.msra.mxu0 %v2946
    %3070 = vmatpush.bf16.msra.mxu0 %v2944
    %3071 = vmatpush.bf16.msra.mxu0 %v2942
    %3072 = vmatpush.bf16.msra.mxu0 %v2940
    %3073 = vmatpush.bf16.msra.mxu0 %v2938
    %3074 = vmatmul.bf16.gmra.mxu0 %v2672
    %v3075 = vpop.f32.mrf.mxu0
    %v3076 = vadd.f32 %v2742, %v3075
    %v3077 = vpop.f32.mrf.mxu0
    %3078 = vdwg.mxu0
    %3079 = vmatpush.bf16.msra.mxu0 %v2968
    %3080 = vmatpush.bf16.msra.mxu0 %v2966
    %3081 = vmatpush.bf16.msra.mxu0 %v2964
    %3082 = vmatpush.bf16.msra.mxu0 %v2962
    %3083 = vmatpush.bf16.msra.mxu0 %v2960
    %3084 = vmatpush.bf16.msra.mxu0 %v2958
    %3085 = vmatpush.bf16.msra.mxu0 %v2956
    %3086 = vmatpush.bf16.msra.mxu0 %v2954
    %3087 = vmatmul.bf16.gmra.mxu0 %v2673
    %v3088 = vpop.f32.mrf.mxu0
    %v3089 = vadd.f32 %v3076, %v3088
    %v3090 = vpop.f32.mrf.mxu0
    %3091 = vdwg.mxu0
    %3092 = vmatpush.bf16.msra.mxu0 %v2984
    %3093 = vmatpush.bf16.msra.mxu0 %v2982
    %3094 = vmatpush.bf16.msra.mxu0 %v2980
    %3095 = vmatpush.bf16.msra.mxu0 %v2978
    %3096 = vmatpush.bf16.msra.mxu0 %v2976
    %3097 = vmatpush.bf16.msra.mxu0 %v2974
    %3098 = vmatpush.bf16.msra.mxu0 %v2972
    %3099 = vmatpush.bf16.msra.mxu0 %v2970
    %3100 = vmatmul.bf16.gmra.mxu0 %v2674
    %v3101 = vpop.f32.mrf.mxu0
    %v3102 = vadd.f32 %v3089, %v3101
    %v3103 = vpop.f32.mrf.mxu0
    %3104 = vdwg.mxu0
    %3105 = vmatpush.bf16.msra.mxu0 %v3000
    %3106 = vmatpush.bf16.msra.mxu0 %v2998
    %3107 = vmatpush.bf16.msra.mxu0 %v2996
    %3108 = vmatpush.bf16.msra.mxu0 %v2994
    %3109 = vmatpush.bf16.msra.mxu0 %v2992
    %3110 = vmatpush.bf16.msra.mxu0 %v2990
    %3111 = vmatpush.bf16.msra.mxu0 %v2988
    %3112 = vmatpush.bf16.msra.mxu0 %v2986
    %3113 = vmatmul.bf16.gmra.mxu0 %v2675
    %v3114 = vpop.f32.mrf.mxu0
    %v3115 = vadd.f32 %v3102, %v3114
    %v3116 = vpop.f32.mrf.mxu0
    %3117 = vdwg.mxu0
    %3118 = vmatpush.bf16.msra.mxu0 %v2953
    %3119 = vmatpush.bf16.msra.mxu0 %v2951
    %3120 = vmatpush.bf16.msra.mxu0 %v2949
    %3121 = vmatpush.bf16.msra.mxu0 %v2947
    %3122 = vmatpush.bf16.msra.mxu0 %v2945
    %3123 = vmatpush.bf16.msra.mxu0 %v2943
    %3124 = vmatpush.bf16.msra.mxu0 %v2941
    %3125 = vmatpush.bf16.msra.mxu0 %v2939
    %3126 = vmatmul.bf16.gmra.mxu0 %v2672
    %v3127 = vpop.f32.mrf.mxu0
    %v3128 = vadd.f32 %v2743, %v3127
    %v3129 = vpop.f32.mrf.mxu0
    %3130 = vdwg.mxu0
    %3131 = vmatpush.bf16.msra.mxu0 %v2969
    %3132 = vmatpush.bf16.msra.mxu0 %v2967
    %3133 = vmatpush.bf16.msra.mxu0 %v2965
    %3134 = vmatpush.bf16.msra.mxu0 %v2963
    %3135 = vmatpush.bf16.msra.mxu0 %v2961
    %3136 = vmatpush.bf16.msra.mxu0 %v2959
    %3137 = vmatpush.bf16.msra.mxu0 %v2957
    %3138 = vmatpush.bf16.msra.mxu0 %v2955
    %3139 = vmatmul.bf16.gmra.mxu0 %v2673
    %v3140 = vpop.f32.mrf.mxu0
    %v3141 = vadd.f32 %v3128, %v3140
    %v3142 = vpop.f32.mrf.mxu0
    %3143 = vdwg.mxu0
    %3144 = vmatpush.bf16.msra.mxu0 %v2985
    %3145 = vmatpush.bf16.msra.mxu0 %v2983
    %3146 = vmatpush.bf16.msra.mxu0 %v2981
    %3147 = vmatpush.bf16.msra.mxu0 %v2979
    %3148 = vmatpush.bf16.msra.mxu0 %v2977
    %3149 = vmatpush.bf16.msra.mxu0 %v2975
    %3150 = vmatpush.bf16.msra.mxu0 %v2973
    %3151 = vmatpush.bf16.msra.mxu0 %v2971
    %3152 = vmatmul.bf16.gmra.mxu0 %v2674
    %v3153 = vpop.f32.mrf.mxu0
    %v3154 = vadd.f32 %v3141, %v3153
    %v3155 = vpop.f32.mrf.mxu0
    %3156 = vdwg.mxu0
    %3157 = vmatpush.bf16.msra.mxu0 %v3001
    %3158 = vmatpush.bf16.msra.mxu0 %v2999
    %3159 = vmatpush.bf16.msra.mxu0 %v2997
    %3160 = vmatpush.bf16.msra.mxu0 %v2995
    %3161 = vmatpush.bf16.msra.mxu0 %v2993
    %3162 = vmatpush.bf16.msra.mxu0 %v2991
    %3163 = vmatpush.bf16.msra.mxu0 %v2989
    %3164 = vmatpush.bf16.msra.mxu0 %v2987
    %3165 = vmatmul.bf16.gmra.mxu0 %v2675
    %v3166 = vpop.f32.mrf.mxu0
    %v3167 = vadd.f32 %v3154, %v3166
    %v3168 = vpop.f32.mrf.mxu0
    %3169 = vdwg.mxu0
    %v3170 = vmul.f32 %v3115, 0.2
    %v3171 = vmul.f32 %v3167, 0.2
    %v3172 = vmax.f32 %v3115, %v3170
    %v3173 = vmax.f32 %v3167, %v3171
    %v3174 = vpack.c.bf16 %v3172, %v3172
    %v3175 = vpack.c.bf16 %v3173, %v3173
    %v3176 = vld [vmem:[#allocation13] sm:$0xf]
    %v3177 = vld [vmem:[#allocation13 + $0x4] sm:$0xf]
    %v3178 = vld [vmem:[#allocation13 + $0x8] sm:$0xf]
    %v3179 = vld [vmem:[#allocation13 + $0xc] sm:$0xf]
    %v3180 = vld [vmem:[#allocation13 + $0x10] sm:$0xf]
    %v3181 = vld [vmem:[#allocation13 + $0x14] sm:$0xf]
    %v3182 = vld [vmem:[#allocation13 + $0x18] sm:$0xf]
    %v3183 = vld [vmem:[#allocation13 + $0x1c] sm:$0xf]
    %v3184 = vld [vmem:[#allocation13 + $0x20] sm:$0xf]
    %v3185 = vld [vmem:[#allocation13 + $0x24] sm:$0xf]
    %v3186 = vld [vmem:[#allocation13 + $0x28] sm:$0xf]
    %v3187 = vld [vmem:[#allocation13 + $0x2c] sm:$0xf]
    %v3188 = vld [vmem:[#allocation13 + $0x30] sm:$0xf]
    %v3189 = vld [vmem:[#allocation13 + $0x34] sm:$0xf]
    %v3190 = vld [vmem:[#allocation13 + $0x38] sm:$0xf]
    %v3191 = vld [vmem:[#allocation13 + $0x3c] sm:$0xf]
    %v3192 = vld [vmem:[#allocation13 + $0x40] sm:$0xf]
    %v3193 = vld [vmem:[#allocation13 + $0x44] sm:$0xf]
    %v3194 = vld [vmem:[#allocation13 + $0x48] sm:$0xf]
    %v3195 = vld [vmem:[#allocation13 + $0x4c] sm:$0xf]
    %v3196 = vld [vmem:[#allocation13 + $0x50] sm:$0xf]
    %v3197 = vld [vmem:[#allocation13 + $0x54] sm:$0xf]
    %v3198 = vld [vmem:[#allocation13 + $0x58] sm:$0xf]
    %v3199 = vld [vmem:[#allocation13 + $0x5c] sm:$0xf]
    %v3200 = vld [vmem:[#allocation13 + $0x60] sm:$0xf]
    %v3201 = vld [vmem:[#allocation13 + $0x64] sm:$0xf]
    %v3202 = vld [vmem:[#allocation13 + $0x68] sm:$0xf]
    %v3203 = vld [vmem:[#allocation13 + $0x6c] sm:$0xf]
    %v3204 = vld [vmem:[#allocation13 + $0x70] sm:$0xf]
    %v3205 = vld [vmem:[#allocation13 + $0x74] sm:$0xf]
    %v3206 = vld [vmem:[#allocation13 + $0x78] sm:$0xf]
    %v3207 = vld [vmem:[#allocation13 + $0x7c] sm:$0xf]
    %v3208 = vld [vmem:[%s8] sm:$0x1]
    %v3210 = vperm.slane %v3208, 0
    %v3244 = vunpack.c.l.b16 %v3176
    %v3245 = vunpack.c.l.b16 %v3177
    %v3246 = vunpack.c.l.b16 %v3178
    %v3247 = vunpack.c.l.b16 %v3179
    %v3248 = vunpack.c.l.b16 %v3180
    %v3249 = vunpack.c.l.b16 %v3181
    %v3250 = vunpack.c.l.b16 %v3182
    %v3251 = vunpack.c.l.b16 %v3183
    %v3252 = vunpack.c.l.b16 %v3184
    %v3253 = vunpack.c.l.b16 %v3185
    %v3254 = vunpack.c.l.b16 %v3186
    %v3255 = vunpack.c.l.b16 %v3187
    %v3256 = vunpack.c.l.b16 %v3188
    %v3257 = vunpack.c.l.b16 %v3189
    %v3258 = vunpack.c.l.b16 %v3190
    %v3259 = vunpack.c.l.b16 %v3191
    %v3260 = vunpack.c.l.b16 %v3192
    %v3261 = vunpack.c.l.b16 %v3193
    %v3262 = vunpack.c.l.b16 %v3194
    %v3263 = vunpack.c.l.b16 %v3195
    %v3264 = vunpack.c.l.b16 %v3196
    %v3265 = vunpack.c.l.b16 %v3197
    %v3266 = vunpack.c.l.b16 %v3198
    %v3267 = vunpack.c.l.b16 %v3199
    %v3268 = vunpack.c.l.b16 %v3200
    %v3269 = vunpack.c.l.b16 %v3201
    %v3270 = vunpack.c.l.b16 %v3202
    %v3271 = vunpack.c.l.b16 %v3203
    %v3272 = vunpack.c.l.b16 %v3204
    %v3273 = vunpack.c.l.b16 %v3205
    %v3274 = vunpack.c.l.b16 %v3206
    %v3275 = vunpack.c.l.b16 %v3207
    %v3276 = vpack.c.b16 %v3245, %v3244
    %v3277 = vpack.c.b16 %v3247, %v3246
    %v3278 = vpack.c.b16 %v3249, %v3248
    %v3279 = vpack.c.b16 %v3251, %v3250
    %v3280 = vpack.c.b16 %v3253, %v3252
    %v3281 = vpack.c.b16 %v3255, %v3254
    %v3282 = vpack.c.b16 %v3257, %v3256
    %v3283 = vpack.c.b16 %v3259, %v3258
    %v3284 = vpack.c.b16 %v3261, %v3260
    %v3285 = vpack.c.b16 %v3263, %v3262
    %v3286 = vpack.c.b16 %v3265, %v3264
    %v3287 = vpack.c.b16 %v3267, %v3266
    %v3288 = vpack.c.b16 %v3269, %v3268
    %v3289 = vpack.c.b16 %v3271, %v3270
    %v3290 = vpack.c.b16 %v3273, %v3272
    %v3291 = vpack.c.b16 %v3275, %v3274
    %3308 = vmatpush.bf16.msra.mxu0 %v3283
    %3309 = vmatpush.bf16.msra.mxu0 %v3282
    %3310 = vmatpush.bf16.msra.mxu0 %v3281
    %3311 = vmatpush.bf16.msra.mxu0 %v3280
    %3312 = vmatpush.bf16.msra.mxu0 %v3279
    %3313 = vmatpush.bf16.msra.mxu0 %v3278
    %3314 = vmatpush.bf16.msra.mxu0 %v3277
    %3315 = vmatpush.bf16.msra.mxu0 %v3276
    %3316 = vmatmul.bf16.gmra.mxu0 %v3174
    %v3317 = vpop.f32.mrf.mxu0
    %v3318 = vadd.f32 %v3210, %v3317
    %v3319 = vpop.f32.mrf.mxu0
    %3320 = vdwg.mxu0
    %3321 = vmatpush.bf16.msra.mxu0 %v3291
    %3322 = vmatpush.bf16.msra.mxu0 %v3290
    %3323 = vmatpush.bf16.msra.mxu0 %v3289
    %3324 = vmatpush.bf16.msra.mxu0 %v3288
    %3325 = vmatpush.bf16.msra.mxu0 %v3287
    %3326 = vmatpush.bf16.msra.mxu0 %v3286
    %3327 = vmatpush.bf16.msra.mxu0 %v3285
    %3328 = vmatpush.bf16.msra.mxu0 %v3284
    %3329 = vmatmul.bf16.gmra.mxu0 %v3175
    %v3330 = vpop.f32.mrf.mxu0
    %v3331 = vadd.f32 %v3318, %v3330
    %v3332 = vpop.f32.mrf.mxu0
    %3333 = vdwg.mxu0
    %v3334 = vmul.f32 %v3331, 0.2
    %v3335 = vmax.f32 %v3331, %v3334
    %v3336 = vpack.c.bf16 %v3335, %v3335
    %v3337 = vld [vmem:[#allocation14] sm:$0xff]
    %v3338 = vld [vmem:[#allocation14 + $0x8] sm:$0xff]
    %v3339 = vld [vmem:[#allocation14 + $0x10] sm:$0xff]
    %v3340 = vld [vmem:[#allocation14 + $0x18] sm:$0xff]
    %v3341 = vld [vmem:[#allocation14 + $0x20] sm:$0xff]
    %v3342 = vld [vmem:[#allocation14 + $0x28] sm:$0xff]
    %v3343 = vld [vmem:[#allocation14 + $0x30] sm:$0xff]
    %v3344 = vld [vmem:[#allocation14 + $0x38] sm:$0xff]
    %v3345 = vld [vmem:[#allocation14 + $0x40] sm:$0xff]
    %v3346 = vld [vmem:[#allocation14 + $0x48] sm:$0xff]
    %v3347 = vld [vmem:[#allocation14 + $0x50] sm:$0xff]
    %v3348 = vld [vmem:[#allocation14 + $0x58] sm:$0xff]
    %v3349 = vld [vmem:[#allocation14 + $0x60] sm:$0xff]
    %v3350 = vld [vmem:[#allocation14 + $0x68] sm:$0xff]
    %v3351 = vld [vmem:[#allocation14 + $0x70] sm:$0xff]
    %v3352 = vld [vmem:[#allocation14 + $0x78] sm:$0xff]
    %v3353 = vld [vmem:[#allocation14 + $0x80] sm:$0xff]
    %v3354 = vld [vmem:[#allocation14 + $0x88] sm:$0xff]
    %v3355 = vld [vmem:[#allocation14 + $0x90] sm:$0xff]
    %v3356 = vld [vmem:[#allocation14 + $0x98] sm:$0xff]
    %v3357 = vld [vmem:[#allocation14 + $0xa0] sm:$0xff]
    %v3358 = vld [vmem:[#allocation14 + $0xa8] sm:$0xff]
    %v3359 = vld [vmem:[#allocation14 + $0xb0] sm:$0xff]
    %v3360 = vld [vmem:[#allocation14 + $0xb8] sm:$0xff]
    %v3361 = vld [vmem:[#allocation14 + $0xc0] sm:$0xff]
    %v3362 = vld [vmem:[#allocation14 + $0xc8] sm:$0xff]
    %v3363 = vld [vmem:[#allocation14 + $0xd0] sm:$0xff]
    %v3364 = vld [vmem:[#allocation14 + $0xd8] sm:$0xff]
    %v3365 = vld [vmem:[#allocation14 + $0xe0] sm:$0xff]
    %v3366 = vld [vmem:[#allocation14 + $0xe8] sm:$0xff]
    %v3367 = vld [vmem:[#allocation14 + $0xf0] sm:$0xff]
    %v3368 = vld [vmem:[#allocation14 + $0xf8] sm:$0xff]
    %v3369 = vld [vmem:[#allocation14 + $0x100] sm:$0xff]
    %v3370 = vld [vmem:[#allocation14 + $0x108] sm:$0xff]
    %v3371 = vld [vmem:[#allocation14 + $0x110] sm:$0xff]
    %v3372 = vld [vmem:[#allocation14 + $0x118] sm:$0xff]
    %v3373 = vld [vmem:[#allocation14 + $0x120] sm:$0xff]
    %v3374 = vld [vmem:[#allocation14 + $0x128] sm:$0xff]
    %v3375 = vld [vmem:[#allocation14 + $0x130] sm:$0xff]
    %v3376 = vld [vmem:[#allocation14 + $0x138] sm:$0xff]
    %v3377 = vld [vmem:[#allocation14 + $0x140] sm:$0xff]
    %v3378 = vld [vmem:[#allocation14 + $0x148] sm:$0xff]
    %v3379 = vld [vmem:[#allocation14 + $0x150] sm:$0xff]
    %v3380 = vld [vmem:[#allocation14 + $0x158] sm:$0xff]
    %v3381 = vld [vmem:[#allocation14 + $0x160] sm:$0xff]
    %v3382 = vld [vmem:[#allocation14 + $0x168] sm:$0xff]
    %v3383 = vld [vmem:[#allocation14 + $0x170] sm:$0xff]
    %v3384 = vld [vmem:[#allocation14 + $0x178] sm:$0xff]
    %v3385 = vld [vmem:[#allocation14 + $0x180] sm:$0xff]
    %v3386 = vld [vmem:[#allocation14 + $0x188] sm:$0xff]
    %v3387 = vld [vmem:[#allocation14 + $0x190] sm:$0xff]
    %v3388 = vld [vmem:[#allocation14 + $0x198] sm:$0xff]
    %v3389 = vld [vmem:[#allocation14 + $0x1a0] sm:$0xff]
    %v3390 = vld [vmem:[#allocation14 + $0x1a8] sm:$0xff]
    %v3391 = vld [vmem:[#allocation14 + $0x1b0] sm:$0xff]
    %v3392 = vld [vmem:[#allocation14 + $0x1b8] sm:$0xff]
    %v3393 = vld [vmem:[#allocation14 + $0x1c0] sm:$0xff]
    %v3394 = vld [vmem:[#allocation14 + $0x1c8] sm:$0xff]
    %v3395 = vld [vmem:[#allocation14 + $0x1d0] sm:$0xff]
    %v3396 = vld [vmem:[#allocation14 + $0x1d8] sm:$0xff]
    %v3397 = vld [vmem:[#allocation14 + $0x1e0] sm:$0xff]
    %v3398 = vld [vmem:[#allocation14 + $0x1e8] sm:$0xff]
    %v3399 = vld [vmem:[#allocation14 + $0x1f0] sm:$0xff]
    %v3400 = vld [vmem:[#allocation14 + $0x1f8] sm:$0xff]
    %v3401 = vld [vmem:[#allocation14 + $0x200] sm:$0xff]
    %v3402 = vld [vmem:[#allocation14 + $0x208] sm:$0xff]
    %v3403 = vld [vmem:[#allocation14 + $0x210] sm:$0xff]
    %v3404 = vld [vmem:[#allocation14 + $0x218] sm:$0xff]
    %v3405 = vld [vmem:[#allocation14 + $0x220] sm:$0xff]
    %v3406 = vld [vmem:[#allocation14 + $0x228] sm:$0xff]
    %v3407 = vld [vmem:[#allocation14 + $0x230] sm:$0xff]
    %v3408 = vld [vmem:[#allocation14 + $0x238] sm:$0xff]
    %v3409 = vld [vmem:[#allocation14 + $0x240] sm:$0xff]
    %v3410 = vld [vmem:[#allocation14 + $0x248] sm:$0xff]
    %v3411 = vld [vmem:[#allocation14 + $0x250] sm:$0xff]
    %v3412 = vld [vmem:[#allocation14 + $0x258] sm:$0xff]
    %v3413 = vld [vmem:[#allocation14 + $0x260] sm:$0xff]
    %v3414 = vld [vmem:[#allocation14 + $0x268] sm:$0xff]
    %v3415 = vld [vmem:[#allocation14 + $0x270] sm:$0xff]
    %v3416 = vld [vmem:[#allocation14 + $0x278] sm:$0xff]
    %v3417 = vld [vmem:[#allocation14 + $0x280] sm:$0xff]
    %v3418 = vld [vmem:[#allocation14 + $0x288] sm:$0xff]
    %v3419 = vld [vmem:[#allocation14 + $0x290] sm:$0xff]
    %v3420 = vld [vmem:[#allocation14 + $0x298] sm:$0xff]
    %v3421 = vld [vmem:[#allocation14 + $0x2a0] sm:$0xff]
    %v3422 = vld [vmem:[#allocation14 + $0x2a8] sm:$0xff]
    %v3423 = vld [vmem:[#allocation14 + $0x2b0] sm:$0xff]
    %v3424 = vld [vmem:[#allocation14 + $0x2b8] sm:$0xff]
    %v3425 = vld [vmem:[#allocation14 + $0x2c0] sm:$0xff]
    %v3426 = vld [vmem:[#allocation14 + $0x2c8] sm:$0xff]
    %v3427 = vld [vmem:[#allocation14 + $0x2d0] sm:$0xff]
    %v3428 = vld [vmem:[#allocation14 + $0x2d8] sm:$0xff]
    %v3429 = vld [vmem:[#allocation14 + $0x2e0] sm:$0xff]
    %v3430 = vld [vmem:[#allocation14 + $0x2e8] sm:$0xff]
    %v3431 = vld [vmem:[#allocation14 + $0x2f0] sm:$0xff]
    %v3432 = vld [vmem:[#allocation14 + $0x2f8] sm:$0xff]
    %v3433 = vld [vmem:[#allocation14 + $0x300] sm:$0xff]
    %v3434 = vld [vmem:[#allocation14 + $0x308] sm:$0xff]
    %v3435 = vld [vmem:[#allocation14 + $0x310] sm:$0xff]
    %v3436 = vld [vmem:[#allocation14 + $0x318] sm:$0xff]
    %v3437 = vld [vmem:[#allocation14 + $0x320] sm:$0xff]
    %v3438 = vld [vmem:[#allocation14 + $0x328] sm:$0xff]
    %v3439 = vld [vmem:[#allocation14 + $0x330] sm:$0xff]
    %v3440 = vld [vmem:[#allocation14 + $0x338] sm:$0xff]
    %v3441 = vld [vmem:[#allocation14 + $0x340] sm:$0xff]
    %v3442 = vld [vmem:[#allocation14 + $0x348] sm:$0xff]
    %v3443 = vld [vmem:[#allocation14 + $0x350] sm:$0xff]
    %v3444 = vld [vmem:[#allocation14 + $0x358] sm:$0xff]
    %v3445 = vld [vmem:[#allocation14 + $0x360] sm:$0xff]
    %v3446 = vld [vmem:[#allocation14 + $0x368] sm:$0xff]
    %v3447 = vld [vmem:[#allocation14 + $0x370] sm:$0xff]
    %v3448 = vld [vmem:[#allocation14 + $0x378] sm:$0xff]
    %v3449 = vld [vmem:[#allocation14 + $0x380] sm:$0xff]
    %v3450 = vld [vmem:[#allocation14 + $0x388] sm:$0xff]
    %v3451 = vld [vmem:[#allocation14 + $0x390] sm:$0xff]
    %v3452 = vld [vmem:[#allocation14 + $0x398] sm:$0xff]
    %v3453 = vld [vmem:[#allocation14 + $0x3a0] sm:$0xff]
    %v3454 = vld [vmem:[#allocation14 + $0x3a8] sm:$0xff]
    %v3455 = vld [vmem:[#allocation14 + $0x3b0] sm:$0xff]
    %v3456 = vld [vmem:[#allocation14 + $0x3b8] sm:$0xff]
    %v3457 = vld [vmem:[#allocation14 + $0x3c0] sm:$0xff]
    %v3458 = vld [vmem:[#allocation14 + $0x3c8] sm:$0xff]
    %v3459 = vld [vmem:[#allocation14 + $0x3d0] sm:$0xff]
    %v3460 = vld [vmem:[#allocation14 + $0x3d8] sm:$0xff]
    %v3461 = vld [vmem:[#allocation14 + $0x3e0] sm:$0xff]
    %v3462 = vld [vmem:[#allocation14 + $0x3e8] sm:$0xff]
    %v3463 = vld [vmem:[#allocation14 + $0x3f0] sm:$0xff]
    %v3464 = vld [vmem:[#allocation14 + $0x3f8] sm:$0xff]
    %v3465 = vld [vmem:[#allocation14 + $0x400] sm:$0xff]
    %v3466 = vld [vmem:[#allocation14 + $0x408] sm:$0xff]
    %v3467 = vld [vmem:[#allocation14 + $0x410] sm:$0xff]
    %v3468 = vld [vmem:[#allocation14 + $0x418] sm:$0xff]
    %v3469 = vld [vmem:[#allocation14 + $0x420] sm:$0xff]
    %v3470 = vld [vmem:[#allocation14 + $0x428] sm:$0xff]
    %v3471 = vld [vmem:[#allocation14 + $0x430] sm:$0xff]
    %v3472 = vld [vmem:[#allocation14 + $0x438] sm:$0xff]
    %v3473 = vld [vmem:[#allocation14 + $0x440] sm:$0xff]
    %v3474 = vld [vmem:[#allocation14 + $0x448] sm:$0xff]
    %v3475 = vld [vmem:[#allocation14 + $0x450] sm:$0xff]
    %v3476 = vld [vmem:[#allocation14 + $0x458] sm:$0xff]
    %v3477 = vld [vmem:[#allocation14 + $0x460] sm:$0xff]
    %v3478 = vld [vmem:[#allocation14 + $0x468] sm:$0xff]
    %v3479 = vld [vmem:[#allocation14 + $0x470] sm:$0xff]
    %v3480 = vld [vmem:[#allocation14 + $0x478] sm:$0xff]
    %v3481 = vld [vmem:[#allocation14 + $0x480] sm:$0xff]
    %v3482 = vld [vmem:[#allocation14 + $0x488] sm:$0xff]
    %v3483 = vld [vmem:[#allocation14 + $0x490] sm:$0xff]
    %v3484 = vld [vmem:[#allocation14 + $0x498] sm:$0xff]
    %v3485 = vld [vmem:[#allocation14 + $0x4a0] sm:$0xff]
    %v3486 = vld [vmem:[#allocation14 + $0x4a8] sm:$0xff]
    %v3487 = vld [vmem:[#allocation14 + $0x4b0] sm:$0xff]
    %v3488 = vld [vmem:[#allocation14 + $0x4b8] sm:$0xff]
    %v3489 = vld [vmem:[#allocation14 + $0x4c0] sm:$0xff]
    %v3490 = vld [vmem:[#allocation14 + $0x4c8] sm:$0xff]
    %v3491 = vld [vmem:[#allocation14 + $0x4d0] sm:$0xff]
    %v3492 = vld [vmem:[#allocation14 + $0x4d8] sm:$0xff]
    %v3493 = vld [vmem:[#allocation14 + $0x4e0] sm:$0xff]
    %v3494 = vld [vmem:[#allocation14 + $0x4e8] sm:$0xff]
    %v3495 = vld [vmem:[#allocation14 + $0x4f0] sm:$0xff]
    %v3496 = vld [vmem:[#allocation14 + $0x4f8] sm:$0xff]
    %v3497 = vld [vmem:[#allocation14 + $0x500] sm:$0xff]
    %v3498 = vld [vmem:[#allocation14 + $0x508] sm:$0xff]
    %v3499 = vld [vmem:[#allocation14 + $0x510] sm:$0xff]
    %v3500 = vld [vmem:[#allocation14 + $0x518] sm:$0xff]
    %v3501 = vld [vmem:[#allocation14 + $0x520] sm:$0xff]
    %v3502 = vld [vmem:[#allocation14 + $0x528] sm:$0xff]
    %v3503 = vld [vmem:[#allocation14 + $0x530] sm:$0xff]
    %v3504 = vld [vmem:[#allocation14 + $0x538] sm:$0xff]
    %v3505 = vld [vmem:[#allocation14 + $0x540] sm:$0xff]
    %v3506 = vld [vmem:[#allocation14 + $0x548] sm:$0xff]
    %v3507 = vld [vmem:[#allocation14 + $0x550] sm:$0xff]
    %v3508 = vld [vmem:[#allocation14 + $0x558] sm:$0xff]
    %v3509 = vld [vmem:[#allocation14 + $0x560] sm:$0xff]
    %v3510 = vld [vmem:[#allocation14 + $0x568] sm:$0xff]
    %v3511 = vld [vmem:[#allocation14 + $0x570] sm:$0xff]
    %v3512 = vld [vmem:[#allocation14 + $0x578] sm:$0xff]
    %v3513 = vld [vmem:[#allocation14 + $0x580] sm:$0xff]
    %v3514 = vld [vmem:[#allocation14 + $0x588] sm:$0xff]
    %v3515 = vld [vmem:[#allocation14 + $0x590] sm:$0xff]
    %v3516 = vld [vmem:[#allocation14 + $0x598] sm:$0xff]
    %v3517 = vld [vmem:[#allocation14 + $0x5a0] sm:$0xff]
    %v3518 = vld [vmem:[#allocation14 + $0x5a8] sm:$0xff]
    %v3519 = vld [vmem:[#allocation14 + $0x5b0] sm:$0xff]
    %v3520 = vld [vmem:[#allocation14 + $0x5b8] sm:$0xff]
    %v3521 = vld [vmem:[#allocation14 + $0x5c0] sm:$0xff]
    %v3522 = vld [vmem:[#allocation14 + $0x5c8] sm:$0xff]
    %v3523 = vld [vmem:[#allocation14 + $0x5d0] sm:$0xff]
    %v3524 = vld [vmem:[#allocation14 + $0x5d8] sm:$0xff]
    %v3525 = vld [vmem:[#allocation14 + $0x5e0] sm:$0xff]
    %v3526 = vld [vmem:[#allocation14 + $0x5e8] sm:$0xff]
    %v3527 = vld [vmem:[#allocation14 + $0x5f0] sm:$0xff]
    %v3528 = vld [vmem:[#allocation14 + $0x5f8] sm:$0xff]
    %v3529 = vld [vmem:[#allocation14 + $0x600] sm:$0xff]
    %v3530 = vld [vmem:[#allocation14 + $0x608] sm:$0xff]
    %v3531 = vld [vmem:[#allocation14 + $0x610] sm:$0xff]
    %v3532 = vld [vmem:[#allocation14 + $0x618] sm:$0xff]
    %v3533 = vld [vmem:[#allocation14 + $0x620] sm:$0xff]
    %v3534 = vld [vmem:[#allocation14 + $0x628] sm:$0xff]
    %v3535 = vld [vmem:[#allocation14 + $0x630] sm:$0xff]
    %v3536 = vld [vmem:[#allocation14 + $0x638] sm:$0xff]
    %v3537 = vld [vmem:[#allocation14 + $0x640] sm:$0xff]
    %v3538 = vld [vmem:[#allocation14 + $0x648] sm:$0xff]
    %v3539 = vld [vmem:[#allocation14 + $0x650] sm:$0xff]
    %v3540 = vld [vmem:[#allocation14 + $0x658] sm:$0xff]
    %v3541 = vld [vmem:[#allocation14 + $0x660] sm:$0xff]
    %v3542 = vld [vmem:[#allocation14 + $0x668] sm:$0xff]
    %v3543 = vld [vmem:[#allocation14 + $0x670] sm:$0xff]
    %v3544 = vld [vmem:[#allocation14 + $0x678] sm:$0xff]
    %v3545 = vld [vmem:[#allocation14 + $0x680] sm:$0xff]
    %v3546 = vld [vmem:[#allocation14 + $0x688] sm:$0xff]
    %v3547 = vld [vmem:[#allocation14 + $0x690] sm:$0xff]
    %v3548 = vld [vmem:[#allocation14 + $0x698] sm:$0xff]
    %v3549 = vld [vmem:[#allocation14 + $0x6a0] sm:$0xff]
    %v3550 = vld [vmem:[#allocation14 + $0x6a8] sm:$0xff]
    %v3551 = vld [vmem:[#allocation14 + $0x6b0] sm:$0xff]
    %v3552 = vld [vmem:[#allocation14 + $0x6b8] sm:$0xff]
    %v3553 = vld [vmem:[#allocation14 + $0x6c0] sm:$0xff]
    %v3554 = vld [vmem:[#allocation14 + $0x6c8] sm:$0xff]
    %v3555 = vld [vmem:[#allocation14 + $0x6d0] sm:$0xff]
    %v3556 = vld [vmem:[#allocation14 + $0x6d8] sm:$0xff]
    %v3557 = vld [vmem:[#allocation14 + $0x6e0] sm:$0xff]
    %v3558 = vld [vmem:[#allocation14 + $0x6e8] sm:$0xff]
    %v3559 = vld [vmem:[#allocation14 + $0x6f0] sm:$0xff]
    %v3560 = vld [vmem:[#allocation14 + $0x6f8] sm:$0xff]
    %v3561 = vld [vmem:[#allocation14 + $0x700] sm:$0xff]
    %v3562 = vld [vmem:[#allocation14 + $0x708] sm:$0xff]
    %v3563 = vld [vmem:[#allocation14 + $0x710] sm:$0xff]
    %v3564 = vld [vmem:[#allocation14 + $0x718] sm:$0xff]
    %v3565 = vld [vmem:[#allocation14 + $0x720] sm:$0xff]
    %v3566 = vld [vmem:[#allocation14 + $0x728] sm:$0xff]
    %v3567 = vld [vmem:[#allocation14 + $0x730] sm:$0xff]
    %v3568 = vld [vmem:[#allocation14 + $0x738] sm:$0xff]
    %v3569 = vld [vmem:[#allocation14 + $0x740] sm:$0xff]
    %v3570 = vld [vmem:[#allocation14 + $0x748] sm:$0xff]
    %v3571 = vld [vmem:[#allocation14 + $0x750] sm:$0xff]
    %v3572 = vld [vmem:[#allocation14 + $0x758] sm:$0xff]
    %v3573 = vld [vmem:[#allocation14 + $0x760] sm:$0xff]
    %v3574 = vld [vmem:[#allocation14 + $0x768] sm:$0xff]
    %v3575 = vld [vmem:[#allocation14 + $0x770] sm:$0xff]
    %v3576 = vld [vmem:[#allocation14 + $0x778] sm:$0xff]
    %v3577 = vld [vmem:[#allocation14 + $0x780] sm:$0xff]
    %v3578 = vld [vmem:[#allocation14 + $0x788] sm:$0xff]
    %v3579 = vld [vmem:[#allocation14 + $0x790] sm:$0xff]
    %v3580 = vld [vmem:[#allocation14 + $0x798] sm:$0xff]
    %v3581 = vld [vmem:[#allocation14 + $0x7a0] sm:$0xff]
    %v3582 = vld [vmem:[#allocation14 + $0x7a8] sm:$0xff]
    %v3583 = vld [vmem:[#allocation14 + $0x7b0] sm:$0xff]
    %v3584 = vld [vmem:[#allocation14 + $0x7b8] sm:$0xff]
    %v3585 = vld [vmem:[#allocation14 + $0x7c0] sm:$0xff]
    %v3586 = vld [vmem:[#allocation14 + $0x7c8] sm:$0xff]
    %v3587 = vld [vmem:[#allocation14 + $0x7d0] sm:$0xff]
    %v3588 = vld [vmem:[#allocation14 + $0x7d8] sm:$0xff]
    %v3589 = vld [vmem:[#allocation14 + $0x7e0] sm:$0xff]
    %v3590 = vld [vmem:[#allocation14 + $0x7e8] sm:$0xff]
    %v3591 = vld [vmem:[#allocation14 + $0x7f0] sm:$0xff]
    %v3592 = vld [vmem:[#allocation14 + $0x7f8] sm:$0xff]
    %v3593 = vld [vmem:[#allocation16] sm:$0xff]
    %v3594 = vld [vmem:[#allocation16 + $0x8] sm:$0xff]
    %v3595 = vld [vmem:[#allocation16 + $0x10] sm:$0xff]
    %v3596 = vld [vmem:[#allocation16 + $0x18] sm:$0xff]
    %v3601 = vperm.slane %v3593, 0
    %v3602 = vperm.slane %v3593, 1
    %v3603 = vperm.slane %v3593, 2
    %v3604 = vperm.slane %v3593, 3
    %v3605 = vperm.slane %v3593, 4
    %v3606 = vperm.slane %v3593, 5
    %v3607 = vperm.slane %v3593, 6
    %v3608 = vperm.slane %v3593, 7
    %v3609 = vperm.slane %v3594, 0
    %v3610 = vperm.slane %v3594, 1
    %v3611 = vperm.slane %v3594, 2
    %v3612 = vperm.slane %v3594, 3
    %v3613 = vperm.slane %v3594, 4
    %v3614 = vperm.slane %v3594, 5
    %v3615 = vperm.slane %v3594, 6
    %v3616 = vperm.slane %v3594, 7
    %v3617 = vperm.slane %v3595, 0
    %v3618 = vperm.slane %v3595, 1
    %v3619 = vperm.slane %v3595, 2
    %v3620 = vperm.slane %v3595, 3
    %v3621 = vperm.slane %v3595, 4
    %v3622 = vperm.slane %v3595, 5
    %v3623 = vperm.slane %v3595, 6
    %v3624 = vperm.slane %v3595, 7
    %v3625 = vperm.slane %v3596, 0
    %v3626 = vperm.slane %v3596, 1
    %v3627 = vperm.slane %v3596, 2
    %v3628 = vperm.slane %v3596, 3
    %v3629 = vperm.slane %v3596, 4
    %v3630 = vperm.slane %v3596, 5
    %v3631 = vperm.slane %v3596, 6
    %v3632 = vperm.slane %v3596, 7
    %v3921 = vunpack.c.l.b16 %v3337
    %v3922 = vunpack.c.h.b16 %v3337
    %v3923 = vunpack.c.l.b16 %v3338
    %v3924 = vunpack.c.h.b16 %v3338
    %v3925 = vunpack.c.l.b16 %v3339
    %v3926 = vunpack.c.h.b16 %v3339
    %v3927 = vunpack.c.l.b16 %v3340
    %v3928 = vunpack.c.h.b16 %v3340
    %v3929 = vunpack.c.l.b16 %v3341
    %v3930 = vunpack.c.h.b16 %v3341
    %v3931 = vunpack.c.l.b16 %v3342
    %v3932 = vunpack.c.h.b16 %v3342
    %v3933 = vunpack.c.l.b16 %v3343
    %v3934 = vunpack.c.h.b16 %v3343
    %v3935 = vunpack.c.l.b16 %v3344
    %v3936 = vunpack.c.h.b16 %v3344
    %v3937 = vunpack.c.l.b16 %v3345
    %v3938 = vunpack.c.h.b16 %v3345
    %v3939 = vunpack.c.l.b16 %v3346
    %v3940 = vunpack.c.h.b16 %v3346
    %v3941 = vunpack.c.l.b16 %v3347
    %v3942 = vunpack.c.h.b16 %v3347
    %v3943 = vunpack.c.l.b16 %v3348
    %v3944 = vunpack.c.h.b16 %v3348
    %v3945 = vunpack.c.l.b16 %v3349
    %v3946 = vunpack.c.h.b16 %v3349
    %v3947 = vunpack.c.l.b16 %v3350
    %v3948 = vunpack.c.h.b16 %v3350
    %v3949 = vunpack.c.l.b16 %v3351
    %v3950 = vunpack.c.h.b16 %v3351
    %v3951 = vunpack.c.l.b16 %v3352
    %v3952 = vunpack.c.h.b16 %v3352
    %v3953 = vunpack.c.l.b16 %v3353
    %v3954 = vunpack.c.h.b16 %v3353
    %v3955 = vunpack.c.l.b16 %v3354
    %v3956 = vunpack.c.h.b16 %v3354
    %v3957 = vunpack.c.l.b16 %v3355
    %v3958 = vunpack.c.h.b16 %v3355
    %v3959 = vunpack.c.l.b16 %v3356
    %v3960 = vunpack.c.h.b16 %v3356
    %v3961 = vunpack.c.l.b16 %v3357
    %v3962 = vunpack.c.h.b16 %v3357
    %v3963 = vunpack.c.l.b16 %v3358
    %v3964 = vunpack.c.h.b16 %v3358
    %v3965 = vunpack.c.l.b16 %v3359
    %v3966 = vunpack.c.h.b16 %v3359
    %v3967 = vunpack.c.l.b16 %v3360
    %v3968 = vunpack.c.h.b16 %v3360
    %v3969 = vunpack.c.l.b16 %v3361
    %v3970 = vunpack.c.h.b16 %v3361
    %v3971 = vunpack.c.l.b16 %v3362
    %v3972 = vunpack.c.h.b16 %v3362
    %v3973 = vunpack.c.l.b16 %v3363
    %v3974 = vunpack.c.h.b16 %v3363
    %v3975 = vunpack.c.l.b16 %v3364
    %v3976 = vunpack.c.h.b16 %v3364
    %v3977 = vunpack.c.l.b16 %v3365
    %v3978 = vunpack.c.h.b16 %v3365
    %v3979 = vunpack.c.l.b16 %v3366
    %v3980 = vunpack.c.h.b16 %v3366
    %v3981 = vunpack.c.l.b16 %v3367
    %v3982 = vunpack.c.h.b16 %v3367
    %v3983 = vunpack.c.l.b16 %v3368
    %v3984 = vunpack.c.h.b16 %v3368
    %v3985 = vunpack.c.l.b16 %v3369
    %v3986 = vunpack.c.h.b16 %v3369
    %v3987 = vunpack.c.l.b16 %v3370
    %v3988 = vunpack.c.h.b16 %v3370
    %v3989 = vunpack.c.l.b16 %v3371
    %v3990 = vunpack.c.h.b16 %v3371
    %v3991 = vunpack.c.l.b16 %v3372
    %v3992 = vunpack.c.h.b16 %v3372
    %v3993 = vunpack.c.l.b16 %v3373
    %v3994 = vunpack.c.h.b16 %v3373
    %v3995 = vunpack.c.l.b16 %v3374
    %v3996 = vunpack.c.h.b16 %v3374
    %v3997 = vunpack.c.l.b16 %v3375
    %v3998 = vunpack.c.h.b16 %v3375
    %v3999 = vunpack.c.l.b16 %v3376
    %v4000 = vunpack.c.h.b16 %v3376
    %v4001 = vunpack.c.l.b16 %v3377
    %v4002 = vunpack.c.h.b16 %v3377
    %v4003 = vunpack.c.l.b16 %v3378
    %v4004 = vunpack.c.h.b16 %v3378
    %v4005 = vunpack.c.l.b16 %v3379
    %v4006 = vunpack.c.h.b16 %v3379
    %v4007 = vunpack.c.l.b16 %v3380
    %v4008 = vunpack.c.h.b16 %v3380
    %v4009 = vunpack.c.l.b16 %v3381
    %v4010 = vunpack.c.h.b16 %v3381
    %v4011 = vunpack.c.l.b16 %v3382
    %v4012 = vunpack.c.h.b16 %v3382
    %v4013 = vunpack.c.l.b16 %v3383
    %v4014 = vunpack.c.h.b16 %v3383
    %v4015 = vunpack.c.l.b16 %v3384
    %v4016 = vunpack.c.h.b16 %v3384
    %v4017 = vunpack.c.l.b16 %v3385
    %v4018 = vunpack.c.h.b16 %v3385
    %v4019 = vunpack.c.l.b16 %v3386
    %v4020 = vunpack.c.h.b16 %v3386
    %v4021 = vunpack.c.l.b16 %v3387
    %v4022 = vunpack.c.h.b16 %v3387
    %v4023 = vunpack.c.l.b16 %v3388
    %v4024 = vunpack.c.h.b16 %v3388
    %v4025 = vunpack.c.l.b16 %v3389
    %v4026 = vunpack.c.h.b16 %v3389
    %v4027 = vunpack.c.l.b16 %v3390
    %v4028 = vunpack.c.h.b16 %v3390
    %v4029 = vunpack.c.l.b16 %v3391
    %v4030 = vunpack.c.h.b16 %v3391
    %v4031 = vunpack.c.l.b16 %v3392
    %v4032 = vunpack.c.h.b16 %v3392
    %v4033 = vunpack.c.l.b16 %v3393
    %v4034 = vunpack.c.h.b16 %v3393
    %v4035 = vunpack.c.l.b16 %v3394
    %v4036 = vunpack.c.h.b16 %v3394
    %v4037 = vunpack.c.l.b16 %v3395
    %v4038 = vunpack.c.h.b16 %v3395
    %v4039 = vunpack.c.l.b16 %v3396
    %v4040 = vunpack.c.h.b16 %v3396
    %v4041 = vunpack.c.l.b16 %v3397
    %v4042 = vunpack.c.h.b16 %v3397
    %v4043 = vunpack.c.l.b16 %v3398
    %v4044 = vunpack.c.h.b16 %v3398
    %v4045 = vunpack.c.l.b16 %v3399
    %v4046 = vunpack.c.h.b16 %v3399
    %v4047 = vunpack.c.l.b16 %v3400
    %v4048 = vunpack.c.h.b16 %v3400
    %v4049 = vunpack.c.l.b16 %v3401
    %v4050 = vunpack.c.h.b16 %v3401
    %v4051 = vunpack.c.l.b16 %v3402
    %v4052 = vunpack.c.h.b16 %v3402
    %v4053 = vunpack.c.l.b16 %v3403
    %v4054 = vunpack.c.h.b16 %v3403
    %v4055 = vunpack.c.l.b16 %v3404
    %v4056 = vunpack.c.h.b16 %v3404
    %v4057 = vunpack.c.l.b16 %v3405
    %v4058 = vunpack.c.h.b16 %v3405
    %v4059 = vunpack.c.l.b16 %v3406
    %v4060 = vunpack.c.h.b16 %v3406
    %v4061 = vunpack.c.l.b16 %v3407
    %v4062 = vunpack.c.h.b16 %v3407
    %v4063 = vunpack.c.l.b16 %v3408
    %v4064 = vunpack.c.h.b16 %v3408
    %v4065 = vunpack.c.l.b16 %v3409
    %v4066 = vunpack.c.h.b16 %v3409
    %v4067 = vunpack.c.l.b16 %v3410
    %v4068 = vunpack.c.h.b16 %v3410
    %v4069 = vunpack.c.l.b16 %v3411
    %v4070 = vunpack.c.h.b16 %v3411
    %v4071 = vunpack.c.l.b16 %v3412
    %v4072 = vunpack.c.h.b16 %v3412
    %v4073 = vunpack.c.l.b16 %v3413
    %v4074 = vunpack.c.h.b16 %v3413
    %v4075 = vunpack.c.l.b16 %v3414
    %v4076 = vunpack.c.h.b16 %v3414
    %v4077 = vunpack.c.l.b16 %v3415
    %v4078 = vunpack.c.h.b16 %v3415
    %v4079 = vunpack.c.l.b16 %v3416
    %v4080 = vunpack.c.h.b16 %v3416
    %v4081 = vunpack.c.l.b16 %v3417
    %v4082 = vunpack.c.h.b16 %v3417
    %v4083 = vunpack.c.l.b16 %v3418
    %v4084 = vunpack.c.h.b16 %v3418
    %v4085 = vunpack.c.l.b16 %v3419
    %v4086 = vunpack.c.h.b16 %v3419
    %v4087 = vunpack.c.l.b16 %v3420
    %v4088 = vunpack.c.h.b16 %v3420
    %v4089 = vunpack.c.l.b16 %v3421
    %v4090 = vunpack.c.h.b16 %v3421
    %v4091 = vunpack.c.l.b16 %v3422
    %v4092 = vunpack.c.h.b16 %v3422
    %v4093 = vunpack.c.l.b16 %v3423
    %v4094 = vunpack.c.h.b16 %v3423
    %v4095 = vunpack.c.l.b16 %v3424
    %v4096 = vunpack.c.h.b16 %v3424
    %v4097 = vunpack.c.l.b16 %v3425
    %v4098 = vunpack.c.h.b16 %v3425
    %v4099 = vunpack.c.l.b16 %v3426
    %v4100 = vunpack.c.h.b16 %v3426
    %v4101 = vunpack.c.l.b16 %v3427
    %v4102 = vunpack.c.h.b16 %v3427
    %v4103 = vunpack.c.l.b16 %v3428
    %v4104 = vunpack.c.h.b16 %v3428
    %v4105 = vunpack.c.l.b16 %v3429
    %v4106 = vunpack.c.h.b16 %v3429
    %v4107 = vunpack.c.l.b16 %v3430
    %v4108 = vunpack.c.h.b16 %v3430
    %v4109 = vunpack.c.l.b16 %v3431
    %v4110 = vunpack.c.h.b16 %v3431
    %v4111 = vunpack.c.l.b16 %v3432
    %v4112 = vunpack.c.h.b16 %v3432
    %v4113 = vunpack.c.l.b16 %v3433
    %v4114 = vunpack.c.h.b16 %v3433
    %v4115 = vunpack.c.l.b16 %v3434
    %v4116 = vunpack.c.h.b16 %v3434
    %v4117 = vunpack.c.l.b16 %v3435
    %v4118 = vunpack.c.h.b16 %v3435
    %v4119 = vunpack.c.l.b16 %v3436
    %v4120 = vunpack.c.h.b16 %v3436
    %v4121 = vunpack.c.l.b16 %v3437
    %v4122 = vunpack.c.h.b16 %v3437
    %v4123 = vunpack.c.l.b16 %v3438
    %v4124 = vunpack.c.h.b16 %v3438
    %v4125 = vunpack.c.l.b16 %v3439
    %v4126 = vunpack.c.h.b16 %v3439
    %v4127 = vunpack.c.l.b16 %v3440
    %v4128 = vunpack.c.h.b16 %v3440
    %v4129 = vunpack.c.l.b16 %v3441
    %v4130 = vunpack.c.h.b16 %v3441
    %v4131 = vunpack.c.l.b16 %v3442
    %v4132 = vunpack.c.h.b16 %v3442
    %v4133 = vunpack.c.l.b16 %v3443
    %v4134 = vunpack.c.h.b16 %v3443
    %v4135 = vunpack.c.l.b16 %v3444
    %v4136 = vunpack.c.h.b16 %v3444
    %v4137 = vunpack.c.l.b16 %v3445
    %v4138 = vunpack.c.h.b16 %v3445
    %v4139 = vunpack.c.l.b16 %v3446
    %v4140 = vunpack.c.h.b16 %v3446
    %v4141 = vunpack.c.l.b16 %v3447
    %v4142 = vunpack.c.h.b16 %v3447
    %v4143 = vunpack.c.l.b16 %v3448
    %v4144 = vunpack.c.h.b16 %v3448
    %v4145 = vunpack.c.l.b16 %v3449
    %v4146 = vunpack.c.h.b16 %v3449
    %v4147 = vunpack.c.l.b16 %v3450
    %v4148 = vunpack.c.h.b16 %v3450
    %v4149 = vunpack.c.l.b16 %v3451
    %v4150 = vunpack.c.h.b16 %v3451
    %v4151 = vunpack.c.l.b16 %v3452
    %v4152 = vunpack.c.h.b16 %v3452
    %v4153 = vunpack.c.l.b16 %v3453
    %v4154 = vunpack.c.h.b16 %v3453
    %v4155 = vunpack.c.l.b16 %v3454
    %v4156 = vunpack.c.h.b16 %v3454
    %v4157 = vunpack.c.l.b16 %v3455
    %v4158 = vunpack.c.h.b16 %v3455
    %v4159 = vunpack.c.l.b16 %v3456
    %v4160 = vunpack.c.h.b16 %v3456
    %v4161 = vunpack.c.l.b16 %v3457
    %v4162 = vunpack.c.h.b16 %v3457
    %v4163 = vunpack.c.l.b16 %v3458
    %v4164 = vunpack.c.h.b16 %v3458
    %v4165 = vunpack.c.l.b16 %v3459
    %v4166 = vunpack.c.h.b16 %v3459
    %v4167 = vunpack.c.l.b16 %v3460
    %v4168 = vunpack.c.h.b16 %v3460
    %v4169 = vunpack.c.l.b16 %v3461
    %v4170 = vunpack.c.h.b16 %v3461
    %v4171 = vunpack.c.l.b16 %v3462
    %v4172 = vunpack.c.h.b16 %v3462
    %v4173 = vunpack.c.l.b16 %v3463
    %v4174 = vunpack.c.h.b16 %v3463
    %v4175 = vunpack.c.l.b16 %v3464
    %v4176 = vunpack.c.h.b16 %v3464
    %v4177 = vunpack.c.l.b16 %v3465
    %v4178 = vunpack.c.h.b16 %v3465
    %v4179 = vunpack.c.l.b16 %v3466
    %v4180 = vunpack.c.h.b16 %v3466
    %v4181 = vunpack.c.l.b16 %v3467
    %v4182 = vunpack.c.h.b16 %v3467
    %v4183 = vunpack.c.l.b16 %v3468
    %v4184 = vunpack.c.h.b16 %v3468
    %v4185 = vunpack.c.l.b16 %v3469
    %v4186 = vunpack.c.h.b16 %v3469
    %v4187 = vunpack.c.l.b16 %v3470
    %v4188 = vunpack.c.h.b16 %v3470
    %v4189 = vunpack.c.l.b16 %v3471
    %v4190 = vunpack.c.h.b16 %v3471
    %v4191 = vunpack.c.l.b16 %v3472
    %v4192 = vunpack.c.h.b16 %v3472
    %v4193 = vunpack.c.l.b16 %v3473
    %v4194 = vunpack.c.h.b16 %v3473
    %v4195 = vunpack.c.l.b16 %v3474
    %v4196 = vunpack.c.h.b16 %v3474
    %v4197 = vunpack.c.l.b16 %v3475
    %v4198 = vunpack.c.h.b16 %v3475
    %v4199 = vunpack.c.l.b16 %v3476
    %v4200 = vunpack.c.h.b16 %v3476
    %v4201 = vunpack.c.l.b16 %v3477
    %v4202 = vunpack.c.h.b16 %v3477
    %v4203 = vunpack.c.l.b16 %v3478
    %v4204 = vunpack.c.h.b16 %v3478
    %v4205 = vunpack.c.l.b16 %v3479
    %v4206 = vunpack.c.h.b16 %v3479
    %v4207 = vunpack.c.l.b16 %v3480
    %v4208 = vunpack.c.h.b16 %v3480
    %v4209 = vunpack.c.l.b16 %v3481
    %v4210 = vunpack.c.h.b16 %v3481
    %v4211 = vunpack.c.l.b16 %v3482
    %v4212 = vunpack.c.h.b16 %v3482
    %v4213 = vunpack.c.l.b16 %v3483
    %v4214 = vunpack.c.h.b16 %v3483
    %v4215 = vunpack.c.l.b16 %v3484
    %v4216 = vunpack.c.h.b16 %v3484
    %v4217 = vunpack.c.l.b16 %v3485
    %v4218 = vunpack.c.h.b16 %v3485
    %v4219 = vunpack.c.l.b16 %v3486
    %v4220 = vunpack.c.h.b16 %v3486
    %v4221 = vunpack.c.l.b16 %v3487
    %v4222 = vunpack.c.h.b16 %v3487
    %v4223 = vunpack.c.l.b16 %v3488
    %v4224 = vunpack.c.h.b16 %v3488
    %v4225 = vunpack.c.l.b16 %v3489
    %v4226 = vunpack.c.h.b16 %v3489
    %v4227 = vunpack.c.l.b16 %v3490
    %v4228 = vunpack.c.h.b16 %v3490
    %v4229 = vunpack.c.l.b16 %v3491
    %v4230 = vunpack.c.h.b16 %v3491
    %v4231 = vunpack.c.l.b16 %v3492
    %v4232 = vunpack.c.h.b16 %v3492
    %v4233 = vunpack.c.l.b16 %v3493
    %v4234 = vunpack.c.h.b16 %v3493
    %v4235 = vunpack.c.l.b16 %v3494
    %v4236 = vunpack.c.h.b16 %v3494
    %v4237 = vunpack.c.l.b16 %v3495
    %v4238 = vunpack.c.h.b16 %v3495
    %v4239 = vunpack.c.l.b16 %v3496
    %v4240 = vunpack.c.h.b16 %v3496
    %v4241 = vunpack.c.l.b16 %v3497
    %v4242 = vunpack.c.h.b16 %v3497
    %v4243 = vunpack.c.l.b16 %v3498
    %v4244 = vunpack.c.h.b16 %v3498
    %v4245 = vunpack.c.l.b16 %v3499
    %v4246 = vunpack.c.h.b16 %v3499
    %v4247 = vunpack.c.l.b16 %v3500
    %v4248 = vunpack.c.h.b16 %v3500
    %v4249 = vunpack.c.l.b16 %v3501
    %v4250 = vunpack.c.h.b16 %v3501
    %v4251 = vunpack.c.l.b16 %v3502
    %v4252 = vunpack.c.h.b16 %v3502
    %v4253 = vunpack.c.l.b16 %v3503
    %v4254 = vunpack.c.h.b16 %v3503
    %v4255 = vunpack.c.l.b16 %v3504
    %v4256 = vunpack.c.h.b16 %v3504
    %v4257 = vunpack.c.l.b16 %v3505
    %v4258 = vunpack.c.h.b16 %v3505
    %v4259 = vunpack.c.l.b16 %v3506
    %v4260 = vunpack.c.h.b16 %v3506
    %v4261 = vunpack.c.l.b16 %v3507
    %v4262 = vunpack.c.h.b16 %v3507
    %v4263 = vunpack.c.l.b16 %v3508
    %v4264 = vunpack.c.h.b16 %v3508
    %v4265 = vunpack.c.l.b16 %v3509
    %v4266 = vunpack.c.h.b16 %v3509
    %v4267 = vunpack.c.l.b16 %v3510
    %v4268 = vunpack.c.h.b16 %v3510
    %v4269 = vunpack.c.l.b16 %v3511
    %v4270 = vunpack.c.h.b16 %v3511
    %v4271 = vunpack.c.l.b16 %v3512
    %v4272 = vunpack.c.h.b16 %v3512
    %v4273 = vunpack.c.l.b16 %v3513
    %v4274 = vunpack.c.h.b16 %v3513
    %v4275 = vunpack.c.l.b16 %v3514
    %v4276 = vunpack.c.h.b16 %v3514
    %v4277 = vunpack.c.l.b16 %v3515
    %v4278 = vunpack.c.h.b16 %v3515
    %v4279 = vunpack.c.l.b16 %v3516
    %v4280 = vunpack.c.h.b16 %v3516
    %v4281 = vunpack.c.l.b16 %v3517
    %v4282 = vunpack.c.h.b16 %v3517
    %v4283 = vunpack.c.l.b16 %v3518
    %v4284 = vunpack.c.h.b16 %v3518
    %v4285 = vunpack.c.l.b16 %v3519
    %v4286 = vunpack.c.h.b16 %v3519
    %v4287 = vunpack.c.l.b16 %v3520
    %v4288 = vunpack.c.h.b16 %v3520
    %v4289 = vunpack.c.l.b16 %v3521
    %v4290 = vunpack.c.h.b16 %v3521
    %v4291 = vunpack.c.l.b16 %v3522
    %v4292 = vunpack.c.h.b16 %v3522
    %v4293 = vunpack.c.l.b16 %v3523
    %v4294 = vunpack.c.h.b16 %v3523
    %v4295 = vunpack.c.l.b16 %v3524
    %v4296 = vunpack.c.h.b16 %v3524
    %v4297 = vunpack.c.l.b16 %v3525
    %v4298 = vunpack.c.h.b16 %v3525
    %v4299 = vunpack.c.l.b16 %v3526
    %v4300 = vunpack.c.h.b16 %v3526
    %v4301 = vunpack.c.l.b16 %v3527
    %v4302 = vunpack.c.h.b16 %v3527
    %v4303 = vunpack.c.l.b16 %v3528
    %v4304 = vunpack.c.h.b16 %v3528
    %v4305 = vunpack.c.l.b16 %v3529
    %v4306 = vunpack.c.h.b16 %v3529
    %v4307 = vunpack.c.l.b16 %v3530
    %v4308 = vunpack.c.h.b16 %v3530
    %v4309 = vunpack.c.l.b16 %v3531
    %v4310 = vunpack.c.h.b16 %v3531
    %v4311 = vunpack.c.l.b16 %v3532
    %v4312 = vunpack.c.h.b16 %v3532
    %v4313 = vunpack.c.l.b16 %v3533
    %v4314 = vunpack.c.h.b16 %v3533
    %v4315 = vunpack.c.l.b16 %v3534
    %v4316 = vunpack.c.h.b16 %v3534
    %v4317 = vunpack.c.l.b16 %v3535
    %v4318 = vunpack.c.h.b16 %v3535
    %v4319 = vunpack.c.l.b16 %v3536
    %v4320 = vunpack.c.h.b16 %v3536
    %v4321 = vunpack.c.l.b16 %v3537
    %v4322 = vunpack.c.h.b16 %v3537
    %v4323 = vunpack.c.l.b16 %v3538
    %v4324 = vunpack.c.h.b16 %v3538
    %v4325 = vunpack.c.l.b16 %v3539
    %v4326 = vunpack.c.h.b16 %v3539
    %v4327 = vunpack.c.l.b16 %v3540
    %v4328 = vunpack.c.h.b16 %v3540
    %v4329 = vunpack.c.l.b16 %v3541
    %v4330 = vunpack.c.h.b16 %v3541
    %v4331 = vunpack.c.l.b16 %v3542
    %v4332 = vunpack.c.h.b16 %v3542
    %v4333 = vunpack.c.l.b16 %v3543
    %v4334 = vunpack.c.h.b16 %v3543
    %v4335 = vunpack.c.l.b16 %v3544
    %v4336 = vunpack.c.h.b16 %v3544
    %v4337 = vunpack.c.l.b16 %v3545
    %v4338 = vunpack.c.h.b16 %v3545
    %v4339 = vunpack.c.l.b16 %v3546
    %v4340 = vunpack.c.h.b16 %v3546
    %v4341 = vunpack.c.l.b16 %v3547
    %v4342 = vunpack.c.h.b16 %v3547
    %v4343 = vunpack.c.l.b16 %v3548
    %v4344 = vunpack.c.h.b16 %v3548
    %v4345 = vunpack.c.l.b16 %v3549
    %v4346 = vunpack.c.h.b16 %v3549
    %v4347 = vunpack.c.l.b16 %v3550
    %v4348 = vunpack.c.h.b16 %v3550
    %v4349 = vunpack.c.l.b16 %v3551
    %v4350 = vunpack.c.h.b16 %v3551
    %v4351 = vunpack.c.l.b16 %v3552
    %v4352 = vunpack.c.h.b16 %v3552
    %v4353 = vunpack.c.l.b16 %v3553
    %v4354 = vunpack.c.h.b16 %v3553
    %v4355 = vunpack.c.l.b16 %v3554
    %v4356 = vunpack.c.h.b16 %v3554
    %v4357 = vunpack.c.l.b16 %v3555
    %v4358 = vunpack.c.h.b16 %v3555
    %v4359 = vunpack.c.l.b16 %v3556
    %v4360 = vunpack.c.h.b16 %v3556
    %v4361 = vunpack.c.l.b16 %v3557
    %v4362 = vunpack.c.h.b16 %v3557
    %v4363 = vunpack.c.l.b16 %v3558
    %v4364 = vunpack.c.h.b16 %v3558
    %v4365 = vunpack.c.l.b16 %v3559
    %v4366 = vunpack.c.h.b16 %v3559
    %v4367 = vunpack.c.l.b16 %v3560
    %v4368 = vunpack.c.h.b16 %v3560
    %v4369 = vunpack.c.l.b16 %v3561
    %v4370 = vunpack.c.h.b16 %v3561
    %v4371 = vunpack.c.l.b16 %v3562
    %v4372 = vunpack.c.h.b16 %v3562
    %v4373 = vunpack.c.l.b16 %v3563
    %v4374 = vunpack.c.h.b16 %v3563
    %v4375 = vunpack.c.l.b16 %v3564
    %v4376 = vunpack.c.h.b16 %v3564
    %v4377 = vunpack.c.l.b16 %v3565
    %v4378 = vunpack.c.h.b16 %v3565
    %v4379 = vunpack.c.l.b16 %v3566
    %v4380 = vunpack.c.h.b16 %v3566
    %v4381 = vunpack.c.l.b16 %v3567
    %v4382 = vunpack.c.h.b16 %v3567
    %v4383 = vunpack.c.l.b16 %v3568
    %v4384 = vunpack.c.h.b16 %v3568
    %v4385 = vunpack.c.l.b16 %v3569
    %v4386 = vunpack.c.h.b16 %v3569
    %v4387 = vunpack.c.l.b16 %v3570
    %v4388 = vunpack.c.h.b16 %v3570
    %v4389 = vunpack.c.l.b16 %v3571
    %v4390 = vunpack.c.h.b16 %v3571
    %v4391 = vunpack.c.l.b16 %v3572
    %v4392 = vunpack.c.h.b16 %v3572
    %v4393 = vunpack.c.l.b16 %v3573
    %v4394 = vunpack.c.h.b16 %v3573
    %v4395 = vunpack.c.l.b16 %v3574
    %v4396 = vunpack.c.h.b16 %v3574
    %v4397 = vunpack.c.l.b16 %v3575
    %v4398 = vunpack.c.h.b16 %v3575
    %v4399 = vunpack.c.l.b16 %v3576
    %v4400 = vunpack.c.h.b16 %v3576
    %v4401 = vunpack.c.l.b16 %v3577
    %v4402 = vunpack.c.h.b16 %v3577
    %v4403 = vunpack.c.l.b16 %v3578
    %v4404 = vunpack.c.h.b16 %v3578
    %v4405 = vunpack.c.l.b16 %v3579
    %v4406 = vunpack.c.h.b16 %v3579
    %v4407 = vunpack.c.l.b16 %v3580
    %v4408 = vunpack.c.h.b16 %v3580
    %v4409 = vunpack.c.l.b16 %v3581
    %v4410 = vunpack.c.h.b16 %v3581
    %v4411 = vunpack.c.l.b16 %v3582
    %v4412 = vunpack.c.h.b16 %v3582
    %v4413 = vunpack.c.l.b16 %v3583
    %v4414 = vunpack.c.h.b16 %v3583
    %v4415 = vunpack.c.l.b16 %v3584
    %v4416 = vunpack.c.h.b16 %v3584
    %v4417 = vunpack.c.l.b16 %v3585
    %v4418 = vunpack.c.h.b16 %v3585
    %v4419 = vunpack.c.l.b16 %v3586
    %v4420 = vunpack.c.h.b16 %v3586
    %v4421 = vunpack.c.l.b16 %v3587
    %v4422 = vunpack.c.h.b16 %v3587
    %v4423 = vunpack.c.l.b16 %v3588
    %v4424 = vunpack.c.h.b16 %v3588
    %v4425 = vunpack.c.l.b16 %v3589
    %v4426 = vunpack.c.h.b16 %v3589
    %v4427 = vunpack.c.l.b16 %v3590
    %v4428 = vunpack.c.h.b16 %v3590
    %v4429 = vunpack.c.l.b16 %v3591
    %v4430 = vunpack.c.h.b16 %v3591
    %v4431 = vunpack.c.l.b16 %v3592
    %v4432 = vunpack.c.h.b16 %v3592
    %v4433 = vpack.c.b16 %v3953, %v3921
    %v4434 = vpack.c.b16 %v3954, %v3922
    %v4435 = vpack.c.b16 %v3955, %v3923
    %v4436 = vpack.c.b16 %v3956, %v3924
    %v4437 = vpack.c.b16 %v3957, %v3925
    %v4438 = vpack.c.b16 %v3958, %v3926
    %v4439 = vpack.c.b16 %v3959, %v3927
    %v4440 = vpack.c.b16 %v3960, %v3928
    %v4441 = vpack.c.b16 %v3961, %v3929
    %v4442 = vpack.c.b16 %v3962, %v3930
    %v4443 = vpack.c.b16 %v3963, %v3931
    %v4444 = vpack.c.b16 %v3964, %v3932
    %v4445 = vpack.c.b16 %v3965, %v3933
    %v4446 = vpack.c.b16 %v3966, %v3934
    %v4447 = vpack.c.b16 %v3967, %v3935
    %v4448 = vpack.c.b16 %v3968, %v3936
    %v4449 = vpack.c.b16 %v3969, %v3937
    %v4450 = vpack.c.b16 %v3970, %v3938
    %v4451 = vpack.c.b16 %v3971, %v3939
    %v4452 = vpack.c.b16 %v3972, %v3940
    %v4453 = vpack.c.b16 %v3973, %v3941
    %v4454 = vpack.c.b16 %v3974, %v3942
    %v4455 = vpack.c.b16 %v3975, %v3943
    %v4456 = vpack.c.b16 %v3976, %v3944
    %v4457 = vpack.c.b16 %v3977, %v3945
    %v4458 = vpack.c.b16 %v3978, %v3946
    %v4459 = vpack.c.b16 %v3979, %v3947
    %v4460 = vpack.c.b16 %v3980, %v3948
    %v4461 = vpack.c.b16 %v3981, %v3949
    %v4462 = vpack.c.b16 %v3982, %v3950
    %v4463 = vpack.c.b16 %v3983, %v3951
    %v4464 = vpack.c.b16 %v3984, %v3952
    %v4465 = vpack.c.b16 %v4017, %v3985
    %v4466 = vpack.c.b16 %v4018, %v3986
    %v4467 = vpack.c.b16 %v4019, %v3987
    %v4468 = vpack.c.b16 %v4020, %v3988
    %v4469 = vpack.c.b16 %v4021, %v3989
    %v4470 = vpack.c.b16 %v4022, %v3990
    %v4471 = vpack.c.b16 %v4023, %v3991
    %v4472 = vpack.c.b16 %v4024, %v3992
    %v4473 = vpack.c.b16 %v4025, %v3993
    %v4474 = vpack.c.b16 %v4026, %v3994
    %v4475 = vpack.c.b16 %v4027, %v3995
    %v4476 = vpack.c.b16 %v4028, %v3996
    %v4477 = vpack.c.b16 %v4029, %v3997
    %v4478 = vpack.c.b16 %v4030, %v3998
    %v4479 = vpack.c.b16 %v4031, %v3999
    %v4480 = vpack.c.b16 %v4032, %v4000
    %v4481 = vpack.c.b16 %v4033, %v4001
    %v4482 = vpack.c.b16 %v4034, %v4002
    %v4483 = vpack.c.b16 %v4035, %v4003
    %v4484 = vpack.c.b16 %v4036, %v4004
    %v4485 = vpack.c.b16 %v4037, %v4005
    %v4486 = vpack.c.b16 %v4038, %v4006
    %v4487 = vpack.c.b16 %v4039, %v4007
    %v4488 = vpack.c.b16 %v4040, %v4008
    %v4489 = vpack.c.b16 %v4041, %v4009
    %v4490 = vpack.c.b16 %v4042, %v4010
    %v4491 = vpack.c.b16 %v4043, %v4011
    %v4492 = vpack.c.b16 %v4044, %v4012
    %v4493 = vpack.c.b16 %v4045, %v4013
    %v4494 = vpack.c.b16 %v4046, %v4014
    %v4495 = vpack.c.b16 %v4047, %v4015
    %v4496 = vpack.c.b16 %v4048, %v4016
    %v4497 = vpack.c.b16 %v4081, %v4049
    %v4498 = vpack.c.b16 %v4082, %v4050
    %v4499 = vpack.c.b16 %v4083, %v4051
    %v4500 = vpack.c.b16 %v4084, %v4052
    %v4501 = vpack.c.b16 %v4085, %v4053
    %v4502 = vpack.c.b16 %v4086, %v4054
    %v4503 = vpack.c.b16 %v4087, %v4055
    %v4504 = vpack.c.b16 %v4088, %v4056
    %v4505 = vpack.c.b16 %v4089, %v4057
    %v4506 = vpack.c.b16 %v4090, %v4058
    %v4507 = vpack.c.b16 %v4091, %v4059
    %v4508 = vpack.c.b16 %v4092, %v4060
    %v4509 = vpack.c.b16 %v4093, %v4061
    %v4510 = vpack.c.b16 %v4094, %v4062
    %v4511 = vpack.c.b16 %v4095, %v4063
    %v4512 = vpack.c.b16 %v4096, %v4064
    %v4513 = vpack.c.b16 %v4097, %v4065
    %v4514 = vpack.c.b16 %v4098, %v4066
    %v4515 = vpack.c.b16 %v4099, %v4067
    %v4516 = vpack.c.b16 %v4100, %v4068
    %v4517 = vpack.c.b16 %v4101, %v4069
    %v4518 = vpack.c.b16 %v4102, %v4070
    %v4519 = vpack.c.b16 %v4103, %v4071
    %v4520 = vpack.c.b16 %v4104, %v4072
    %v4521 = vpack.c.b16 %v4105, %v4073
    %v4522 = vpack.c.b16 %v4106, %v4074
    %v4523 = vpack.c.b16 %v4107, %v4075
    %v4524 = vpack.c.b16 %v4108, %v4076
    %v4525 = vpack.c.b16 %v4109, %v4077
    %v4526 = vpack.c.b16 %v4110, %v4078
    %v4527 = vpack.c.b16 %v4111, %v4079
    %v4528 = vpack.c.b16 %v4112, %v4080
    %v4529 = vpack.c.b16 %v4145, %v4113
    %v4530 = vpack.c.b16 %v4146, %v4114
    %v4531 = vpack.c.b16 %v4147, %v4115
    %v4532 = vpack.c.b16 %v4148, %v4116
    %v4533 = vpack.c.b16 %v4149, %v4117
    %v4534 = vpack.c.b16 %v4150, %v4118
    %v4535 = vpack.c.b16 %v4151, %v4119
    %v4536 = vpack.c.b16 %v4152, %v4120
    %v4537 = vpack.c.b16 %v4153, %v4121
    %v4538 = vpack.c.b16 %v4154, %v4122
    %v4539 = vpack.c.b16 %v4155, %v4123
    %v4540 = vpack.c.b16 %v4156, %v4124
    %v4541 = vpack.c.b16 %v4157, %v4125
    %v4542 = vpack.c.b16 %v4158, %v4126
    %v4543 = vpack.c.b16 %v4159, %v4127
    %v4544 = vpack.c.b16 %v4160, %v4128
    %v4545 = vpack.c.b16 %v4161, %v4129
    %v4546 = vpack.c.b16 %v4162, %v4130
    %v4547 = vpack.c.b16 %v4163, %v4131
    %v4548 = vpack.c.b16 %v4164, %v4132
    %v4549 = vpack.c.b16 %v4165, %v4133
    %v4550 = vpack.c.b16 %v4166, %v4134
    %v4551 = vpack.c.b16 %v4167, %v4135
    %v4552 = vpack.c.b16 %v4168, %v4136
    %v4553 = vpack.c.b16 %v4169, %v4137
    %v4554 = vpack.c.b16 %v4170, %v4138
    %v4555 = vpack.c.b16 %v4171, %v4139
    %v4556 = vpack.c.b16 %v4172, %v4140
    %v4557 = vpack.c.b16 %v4173, %v4141
    %v4558 = vpack.c.b16 %v4174, %v4142
    %v4559 = vpack.c.b16 %v4175, %v4143
    %v4560 = vpack.c.b16 %v4176, %v4144
    %v4561 = vpack.c.b16 %v4209, %v4177
    %v4562 = vpack.c.b16 %v4210, %v4178
    %v4563 = vpack.c.b16 %v4211, %v4179
    %v4564 = vpack.c.b16 %v4212, %v4180
    %v4565 = vpack.c.b16 %v4213, %v4181
    %v4566 = vpack.c.b16 %v4214, %v4182
    %v4567 = vpack.c.b16 %v4215, %v4183
    %v4568 = vpack.c.b16 %v4216, %v4184
    %v4569 = vpack.c.b16 %v4217, %v4185
    %v4570 = vpack.c.b16 %v4218, %v4186
    %v4571 = vpack.c.b16 %v4219, %v4187
    %v4572 = vpack.c.b16 %v4220, %v4188
    %v4573 = vpack.c.b16 %v4221, %v4189
    %v4574 = vpack.c.b16 %v4222, %v4190
    %v4575 = vpack.c.b16 %v4223, %v4191
    %v4576 = vpack.c.b16 %v4224, %v4192
    %v4577 = vpack.c.b16 %v4225, %v4193
    %v4578 = vpack.c.b16 %v4226, %v4194
    %v4579 = vpack.c.b16 %v4227, %v4195
    %v4580 = vpack.c.b16 %v4228, %v4196
    %v4581 = vpack.c.b16 %v4229, %v4197
    %v4582 = vpack.c.b16 %v4230, %v4198
    %v4583 = vpack.c.b16 %v4231, %v4199
    %v4584 = vpack.c.b16 %v4232, %v4200
    %v4585 = vpack.c.b16 %v4233, %v4201
    %v4586 = vpack.c.b16 %v4234, %v4202
    %v4587 = vpack.c.b16 %v4235, %v4203
    %v4588 = vpack.c.b16 %v4236, %v4204
    %v4589 = vpack.c.b16 %v4237, %v4205
    %v4590 = vpack.c.b16 %v4238, %v4206
    %v4591 = vpack.c.b16 %v4239, %v4207
    %v4592 = vpack.c.b16 %v4240, %v4208
    %v4593 = vpack.c.b16 %v4273, %v4241
    %v4594 = vpack.c.b16 %v4274, %v4242
    %v4595 = vpack.c.b16 %v4275, %v4243
    %v4596 = vpack.c.b16 %v4276, %v4244
    %v4597 = vpack.c.b16 %v4277, %v4245
    %v4598 = vpack.c.b16 %v4278, %v4246
    %v4599 = vpack.c.b16 %v4279, %v4247
    %v4600 = vpack.c.b16 %v4280, %v4248
    %v4601 = vpack.c.b16 %v4281, %v4249
    %v4602 = vpack.c.b16 %v4282, %v4250
    %v4603 = vpack.c.b16 %v4283, %v4251
    %v4604 = vpack.c.b16 %v4284, %v4252
    %v4605 = vpack.c.b16 %v4285, %v4253
    %v4606 = vpack.c.b16 %v4286, %v4254
    %v4607 = vpack.c.b16 %v4287, %v4255
    %v4608 = vpack.c.b16 %v4288, %v4256
    %v4609 = vpack.c.b16 %v4289, %v4257
    %v4610 = vpack.c.b16 %v4290, %v4258
    %v4611 = vpack.c.b16 %v4291, %v4259
    %v4612 = vpack.c.b16 %v4292, %v4260
    %v4613 = vpack.c.b16 %v4293, %v4261
    %v4614 = vpack.c.b16 %v4294, %v4262
    %v4615 = vpack.c.b16 %v4295, %v4263
    %v4616 = vpack.c.b16 %v4296, %v4264
    %v4617 = vpack.c.b16 %v4297, %v4265
    %v4618 = vpack.c.b16 %v4298, %v4266
    %v4619 = vpack.c.b16 %v4299, %v4267
    %v4620 = vpack.c.b16 %v4300, %v4268
    %v4621 = vpack.c.b16 %v4301, %v4269
    %v4622 = vpack.c.b16 %v4302, %v4270
    %v4623 = vpack.c.b16 %v4303, %v4271
    %v4624 = vpack.c.b16 %v4304, %v4272
    %v4625 = vpack.c.b16 %v4337, %v4305
    %v4626 = vpack.c.b16 %v4338, %v4306
    %v4627 = vpack.c.b16 %v4339, %v4307
    %v4628 = vpack.c.b16 %v4340, %v4308
    %v4629 = vpack.c.b16 %v4341, %v4309
    %v4630 = vpack.c.b16 %v4342, %v4310
    %v4631 = vpack.c.b16 %v4343, %v4311
    %v4632 = vpack.c.b16 %v4344, %v4312
    %v4633 = vpack.c.b16 %v4345, %v4313
    %v4634 = vpack.c.b16 %v4346, %v4314
    %v4635 = vpack.c.b16 %v4347, %v4315
    %v4636 = vpack.c.b16 %v4348, %v4316
    %v4637 = vpack.c.b16 %v4349, %v4317
    %v4638 = vpack.c.b16 %v4350, %v4318
    %v4639 = vpack.c.b16 %v4351, %v4319
    %v4640 = vpack.c.b16 %v4352, %v4320
    %v4641 = vpack.c.b16 %v4353, %v4321
    %v4642 = vpack.c.b16 %v4354, %v4322
    %v4643 = vpack.c.b16 %v4355, %v4323
    %v4644 = vpack.c.b16 %v4356, %v4324
    %v4645 = vpack.c.b16 %v4357, %v4325
    %v4646 = vpack.c.b16 %v4358, %v4326
    %v4647 = vpack.c.b16 %v4359, %v4327
    %v4648 = vpack.c.b16 %v4360, %v4328
    %v4649 = vpack.c.b16 %v4361, %v4329
    %v4650 = vpack.c.b16 %v4362, %v4330
    %v4651 = vpack.c.b16 %v4363, %v4331
    %v4652 = vpack.c.b16 %v4364, %v4332
    %v4653 = vpack.c.b16 %v4365, %v4333
    %v4654 = vpack.c.b16 %v4366, %v4334
    %v4655 = vpack.c.b16 %v4367, %v4335
    %v4656 = vpack.c.b16 %v4368, %v4336
    %v4657 = vpack.c.b16 %v4401, %v4369
    %v4658 = vpack.c.b16 %v4402, %v4370
    %v4659 = vpack.c.b16 %v4403, %v4371
    %v4660 = vpack.c.b16 %v4404, %v4372
    %v4661 = vpack.c.b16 %v4405, %v4373
    %v4662 = vpack.c.b16 %v4406, %v4374
    %v4663 = vpack.c.b16 %v4407, %v4375
    %v4664 = vpack.c.b16 %v4408, %v4376
    %v4665 = vpack.c.b16 %v4409, %v4377
    %v4666 = vpack.c.b16 %v4410, %v4378
    %v4667 = vpack.c.b16 %v4411, %v4379
    %v4668 = vpack.c.b16 %v4412, %v4380
    %v4669 = vpack.c.b16 %v4413, %v4381
    %v4670 = vpack.c.b16 %v4414, %v4382
    %v4671 = vpack.c.b16 %v4415, %v4383
    %v4672 = vpack.c.b16 %v4416, %v4384
    %v4673 = vpack.c.b16 %v4417, %v4385
    %v4674 = vpack.c.b16 %v4418, %v4386
    %v4675 = vpack.c.b16 %v4419, %v4387
    %v4676 = vpack.c.b16 %v4420, %v4388
    %v4677 = vpack.c.b16 %v4421, %v4389
    %v4678 = vpack.c.b16 %v4422, %v4390
    %v4679 = vpack.c.b16 %v4423, %v4391
    %v4680 = vpack.c.b16 %v4424, %v4392
    %v4681 = vpack.c.b16 %v4425, %v4393
    %v4682 = vpack.c.b16 %v4426, %v4394
    %v4683 = vpack.c.b16 %v4427, %v4395
    %v4684 = vpack.c.b16 %v4428, %v4396
    %v4685 = vpack.c.b16 %v4429, %v4397
    %v4686 = vpack.c.b16 %v4430, %v4398
    %v4687 = vpack.c.b16 %v4431, %v4399
    %v4688 = vpack.c.b16 %v4432, %v4400
    %4945 = vmatpush.bf16.msra.mxu0 %v4657
    %4946 = vmatpush.bf16.msra.mxu0 %v4625
    %4947 = vmatpush.bf16.msra.mxu0 %v4593
    %4948 = vmatpush.bf16.msra.mxu0 %v4561
    %4949 = vmatpush.bf16.msra.mxu0 %v4529
    %4950 = vmatpush.bf16.msra.mxu0 %v4497
    %4951 = vmatpush.bf16.msra.mxu0 %v4465
    %4952 = vmatpush.bf16.msra.mxu0 %v4433
    %4953 = vmatmul.bf16.gmra.mxu0 %v3336
    %v4954 = vpop.f32.mrf.mxu0
    %v4955 = vadd.f32 %v3601, %v4954
    %v4956 = vpop.f32.mrf.mxu0
    %4957 = vdwg.mxu0
    %4958 = vmatpush.bf16.msra.mxu0 %v4658
    %4959 = vmatpush.bf16.msra.mxu0 %v4626
    %4960 = vmatpush.bf16.msra.mxu0 %v4594
    %4961 = vmatpush.bf16.msra.mxu0 %v4562
    %4962 = vmatpush.bf16.msra.mxu0 %v4530
    %4963 = vmatpush.bf16.msra.mxu0 %v4498
    %4964 = vmatpush.bf16.msra.mxu0 %v4466
    %4965 = vmatpush.bf16.msra.mxu0 %v4434
    %4966 = vmatmul.bf16.gmra.mxu0 %v3336
    %v4967 = vpop.f32.mrf.mxu0
    %v4968 = vadd.f32 %v3602, %v4967
    %v4969 = vpop.f32.mrf.mxu0
    %4970 = vdwg.mxu0
    %4971 = vmatpush.bf16.msra.mxu0 %v4659
    %4972 = vmatpush.bf16.msra.mxu0 %v4627
    %4973 = vmatpush.bf16.msra.mxu0 %v4595
    %4974 = vmatpush.bf16.msra.mxu0 %v4563
    %4975 = vmatpush.bf16.msra.mxu0 %v4531
    %4976 = vmatpush.bf16.msra.mxu0 %v4499
    %4977 = vmatpush.bf16.msra.mxu0 %v4467
    %4978 = vmatpush.bf16.msra.mxu0 %v4435
    %4979 = vmatmul.bf16.gmra.mxu0 %v3336
    %v4980 = vpop.f32.mrf.mxu0
    %v4981 = vadd.f32 %v3603, %v4980
    %v4982 = vpop.f32.mrf.mxu0
    %4983 = vdwg.mxu0
    %4984 = vmatpush.bf16.msra.mxu0 %v4660
    %4985 = vmatpush.bf16.msra.mxu0 %v4628
    %4986 = vmatpush.bf16.msra.mxu0 %v4596
    %4987 = vmatpush.bf16.msra.mxu0 %v4564
    %4988 = vmatpush.bf16.msra.mxu0 %v4532
    %4989 = vmatpush.bf16.msra.mxu0 %v4500
    %4990 = vmatpush.bf16.msra.mxu0 %v4468
    %4991 = vmatpush.bf16.msra.mxu0 %v4436
    %4992 = vmatmul.bf16.gmra.mxu0 %v3336
    %v4993 = vpop.f32.mrf.mxu0
    %v4994 = vadd.f32 %v3604, %v4993
    %v4995 = vpop.f32.mrf.mxu0
    %4996 = vdwg.mxu0
    %4997 = vmatpush.bf16.msra.mxu0 %v4661
    %4998 = vmatpush.bf16.msra.mxu0 %v4629
    %4999 = vmatpush.bf16.msra.mxu0 %v4597
    %5000 = vmatpush.bf16.msra.mxu0 %v4565
    %5001 = vmatpush.bf16.msra.mxu0 %v4533
    %5002 = vmatpush.bf16.msra.mxu0 %v4501
    %5003 = vmatpush.bf16.msra.mxu0 %v4469
    %5004 = vmatpush.bf16.msra.mxu0 %v4437
    %5005 = vmatmul.bf16.gmra.mxu0 %v3336
    %v5006 = vpop.f32.mrf.mxu0
    %v5007 = vadd.f32 %v3605, %v5006
    %v5008 = vpop.f32.mrf.mxu0
    %5009 = vdwg.mxu0
    %5010 = vmatpush.bf16.msra.mxu0 %v4662
    %5011 = vmatpush.bf16.msra.mxu0 %v4630
    %5012 = vmatpush.bf16.msra.mxu0 %v4598
    %5013 = vmatpush.bf16.msra.mxu0 %v4566
    %5014 = vmatpush.bf16.msra.mxu0 %v4534
    %5015 = vmatpush.bf16.msra.mxu0 %v4502
    %5016 = vmatpush.bf16.msra.mxu0 %v4470
    %5017 = vmatpush.bf16.msra.mxu0 %v4438
    %5018 = vmatmul.bf16.gmra.mxu0 %v3336
    %v5019 = vpop.f32.mrf.mxu0
    %v5020 = vadd.f32 %v3606, %v5019
    %v5021 = vpop.f32.mrf.mxu0
    %5022 = vdwg.mxu0
    %5023 = vmatpush.bf16.msra.mxu0 %v4663
    %5024 = vmatpush.bf16.msra.mxu0 %v4631
    %5025 = vmatpush.bf16.msra.mxu0 %v4599
    %5026 = vmatpush.bf16.msra.mxu0 %v4567
    %5027 = vmatpush.bf16.msra.mxu0 %v4535
    %5028 = vmatpush.bf16.msra.mxu0 %v4503
    %5029 = vmatpush.bf16.msra.mxu0 %v4471
    %5030 = vmatpush.bf16.msra.mxu0 %v4439
    %5031 = vmatmul.bf16.gmra.mxu0 %v3336
    %v5032 = vpop.f32.mrf.mxu0
    %v5033 = vadd.f32 %v3607, %v5032
    %v5034 = vpop.f32.mrf.mxu0
    %5035 = vdwg.mxu0
    %5036 = vmatpush.bf16.msra.mxu0 %v4664
    %5037 = vmatpush.bf16.msra.mxu0 %v4632
    %5038 = vmatpush.bf16.msra.mxu0 %v4600
    %5039 = vmatpush.bf16.msra.mxu0 %v4568
    %5040 = vmatpush.bf16.msra.mxu0 %v4536
    %5041 = vmatpush.bf16.msra.mxu0 %v4504
    %5042 = vmatpush.bf16.msra.mxu0 %v4472
    %5043 = vmatpush.bf16.msra.mxu0 %v4440
    %5044 = vmatmul.bf16.gmra.mxu0 %v3336
    %v5045 = vpop.f32.mrf.mxu0
    %v5046 = vadd.f32 %v3608, %v5045
    %v5047 = vpop.f32.mrf.mxu0
    %5048 = vdwg.mxu0
    %5049 = vmatpush.bf16.msra.mxu0 %v4665
    %5050 = vmatpush.bf16.msra.mxu0 %v4633
    %5051 = vmatpush.bf16.msra.mxu0 %v4601
    %5052 = vmatpush.bf16.msra.mxu0 %v4569
    %5053 = vmatpush.bf16.msra.mxu0 %v4537
    %5054 = vmatpush.bf16.msra.mxu0 %v4505
    %5055 = vmatpush.bf16.msra.mxu0 %v4473
    %5056 = vmatpush.bf16.msra.mxu0 %v4441
    %5057 = vmatmul.bf16.gmra.mxu0 %v3336
    %v5058 = vpop.f32.mrf.mxu0
    %v5059 = vadd.f32 %v3609, %v5058
    %v5060 = vpop.f32.mrf.mxu0
    %5061 = vdwg.mxu0
    %5062 = vmatpush.bf16.msra.mxu0 %v4666
    %5063 = vmatpush.bf16.msra.mxu0 %v4634
    %5064 = vmatpush.bf16.msra.mxu0 %v4602
    %5065 = vmatpush.bf16.msra.mxu0 %v4570
    %5066 = vmatpush.bf16.msra.mxu0 %v4538
    %5067 = vmatpush.bf16.msra.mxu0 %v4506
    %5068 = vmatpush.bf16.msra.mxu0 %v4474
    %5069 = vmatpush.bf16.msra.mxu0 %v4442
    %5070 = vmatmul.bf16.gmra.mxu0 %v3336
    %v5071 = vpop.f32.mrf.mxu0
    %v5072 = vadd.f32 %v3610, %v5071
    %v5073 = vpop.f32.mrf.mxu0
    %5074 = vdwg.mxu0
    %5075 = vmatpush.bf16.msra.mxu0 %v4667
    %5076 = vmatpush.bf16.msra.mxu0 %v4635
    %5077 = vmatpush.bf16.msra.mxu0 %v4603
    %5078 = vmatpush.bf16.msra.mxu0 %v4571
    %5079 = vmatpush.bf16.msra.mxu0 %v4539
    %5080 = vmatpush.bf16.msra.mxu0 %v4507
    %5081 = vmatpush.bf16.msra.mxu0 %v4475
    %5082 = vmatpush.bf16.msra.mxu0 %v4443
    %5083 = vmatmul.bf16.gmra.mxu0 %v3336
    %v5084 = vpop.f32.mrf.mxu0
    %v5085 = vadd.f32 %v3611, %v5084
    %v5086 = vpop.f32.mrf.mxu0
    %5087 = vdwg.mxu0
    %5088 = vmatpush.bf16.msra.mxu0 %v4668
    %5089 = vmatpush.bf16.msra.mxu0 %v4636
    %5090 = vmatpush.bf16.msra.mxu0 %v4604
    %5091 = vmatpush.bf16.msra.mxu0 %v4572
    %5092 = vmatpush.bf16.msra.mxu0 %v4540
    %5093 = vmatpush.bf16.msra.mxu0 %v4508
    %5094 = vmatpush.bf16.msra.mxu0 %v4476
    %5095 = vmatpush.bf16.msra.mxu0 %v4444
    %5096 = vmatmul.bf16.gmra.mxu0 %v3336
    %v5097 = vpop.f32.mrf.mxu0
    %v5098 = vadd.f32 %v3612, %v5097
    %v5099 = vpop.f32.mrf.mxu0
    %5100 = vdwg.mxu0
    %5101 = vmatpush.bf16.msra.mxu0 %v4669
    %5102 = vmatpush.bf16.msra.mxu0 %v4637
    %5103 = vmatpush.bf16.msra.mxu0 %v4605
    %5104 = vmatpush.bf16.msra.mxu0 %v4573
    %5105 = vmatpush.bf16.msra.mxu0 %v4541
    %5106 = vmatpush.bf16.msra.mxu0 %v4509
    %5107 = vmatpush.bf16.msra.mxu0 %v4477
    %5108 = vmatpush.bf16.msra.mxu0 %v4445
    %5109 = vmatmul.bf16.gmra.mxu0 %v3336
    %v5110 = vpop.f32.mrf.mxu0
    %v5111 = vadd.f32 %v3613, %v5110
    %v5112 = vpop.f32.mrf.mxu0
    %5113 = vdwg.mxu0
    %5114 = vmatpush.bf16.msra.mxu0 %v4670
    %5115 = vmatpush.bf16.msra.mxu0 %v4638
    %5116 = vmatpush.bf16.msra.mxu0 %v4606
    %5117 = vmatpush.bf16.msra.mxu0 %v4574
    %5118 = vmatpush.bf16.msra.mxu0 %v4542
    %5119 = vmatpush.bf16.msra.mxu0 %v4510
    %5120 = vmatpush.bf16.msra.mxu0 %v4478
    %5121 = vmatpush.bf16.msra.mxu0 %v4446
    %5122 = vmatmul.bf16.gmra.mxu0 %v3336
    %v5123 = vpop.f32.mrf.mxu0
    %v5124 = vadd.f32 %v3614, %v5123
    %v5125 = vpop.f32.mrf.mxu0
    %5126 = vdwg.mxu0
    %5127 = vmatpush.bf16.msra.mxu0 %v4671
    %5128 = vmatpush.bf16.msra.mxu0 %v4639
    %5129 = vmatpush.bf16.msra.mxu0 %v4607
    %5130 = vmatpush.bf16.msra.mxu0 %v4575
    %5131 = vmatpush.bf16.msra.mxu0 %v4543
    %5132 = vmatpush.bf16.msra.mxu0 %v4511
    %5133 = vmatpush.bf16.msra.mxu0 %v4479
    %5134 = vmatpush.bf16.msra.mxu0 %v4447
    %5135 = vmatmul.bf16.gmra.mxu0 %v3336
    %v5136 = vpop.f32.mrf.mxu0
    %v5137 = vadd.f32 %v3615, %v5136
    %v5138 = vpop.f32.mrf.mxu0
    %5139 = vdwg.mxu0
    %5140 = vmatpush.bf16.msra.mxu0 %v4672
    %5141 = vmatpush.bf16.msra.mxu0 %v4640
    %5142 = vmatpush.bf16.msra.mxu0 %v4608
    %5143 = vmatpush.bf16.msra.mxu0 %v4576
    %5144 = vmatpush.bf16.msra.mxu0 %v4544
    %5145 = vmatpush.bf16.msra.mxu0 %v4512
    %5146 = vmatpush.bf16.msra.mxu0 %v4480
    %5147 = vmatpush.bf16.msra.mxu0 %v4448
    %5148 = vmatmul.bf16.gmra.mxu0 %v3336
    %v5149 = vpop.f32.mrf.mxu0
    %v5150 = vadd.f32 %v3616, %v5149
    %v5151 = vpop.f32.mrf.mxu0
    %5152 = vdwg.mxu0
    %5153 = vmatpush.bf16.msra.mxu0 %v4673
    %5154 = vmatpush.bf16.msra.mxu0 %v4641
    %5155 = vmatpush.bf16.msra.mxu0 %v4609
    %5156 = vmatpush.bf16.msra.mxu0 %v4577
    %5157 = vmatpush.bf16.msra.mxu0 %v4545
    %5158 = vmatpush.bf16.msra.mxu0 %v4513
    %5159 = vmatpush.bf16.msra.mxu0 %v4481
    %5160 = vmatpush.bf16.msra.mxu0 %v4449
    %5161 = vmatmul.bf16.gmra.mxu0 %v3336
    %v5162 = vpop.f32.mrf.mxu0
    %v5163 = vadd.f32 %v3617, %v5162
    %v5164 = vpop.f32.mrf.mxu0
    %5165 = vdwg.mxu0
    %5166 = vmatpush.bf16.msra.mxu0 %v4674
    %5167 = vmatpush.bf16.msra.mxu0 %v4642
    %5168 = vmatpush.bf16.msra.mxu0 %v4610
    %5169 = vmatpush.bf16.msra.mxu0 %v4578
    %5170 = vmatpush.bf16.msra.mxu0 %v4546
    %5171 = vmatpush.bf16.msra.mxu0 %v4514
    %5172 = vmatpush.bf16.msra.mxu0 %v4482
    %5173 = vmatpush.bf16.msra.mxu0 %v4450
    %5174 = vmatmul.bf16.gmra.mxu0 %v3336
    %v5175 = vpop.f32.mrf.mxu0
    %v5176 = vadd.f32 %v3618, %v5175
    %v5177 = vpop.f32.mrf.mxu0
    %5178 = vdwg.mxu0
    %5179 = vmatpush.bf16.msra.mxu0 %v4675
    %5180 = vmatpush.bf16.msra.mxu0 %v4643
    %5181 = vmatpush.bf16.msra.mxu0 %v4611
    %5182 = vmatpush.bf16.msra.mxu0 %v4579
    %5183 = vmatpush.bf16.msra.mxu0 %v4547
    %5184 = vmatpush.bf16.msra.mxu0 %v4515
    %5185 = vmatpush.bf16.msra.mxu0 %v4483
    %5186 = vmatpush.bf16.msra.mxu0 %v4451
    %5187 = vmatmul.bf16.gmra.mxu0 %v3336
    %v5188 = vpop.f32.mrf.mxu0
    %v5189 = vadd.f32 %v3619, %v5188
    %v5190 = vpop.f32.mrf.mxu0
    %5191 = vdwg.mxu0
    %5192 = vmatpush.bf16.msra.mxu0 %v4676
    %5193 = vmatpush.bf16.msra.mxu0 %v4644
    %5194 = vmatpush.bf16.msra.mxu0 %v4612
    %5195 = vmatpush.bf16.msra.mxu0 %v4580
    %5196 = vmatpush.bf16.msra.mxu0 %v4548
    %5197 = vmatpush.bf16.msra.mxu0 %v4516
    %5198 = vmatpush.bf16.msra.mxu0 %v4484
    %5199 = vmatpush.bf16.msra.mxu0 %v4452
    %5200 = vmatmul.bf16.gmra.mxu0 %v3336
    %v5201 = vpop.f32.mrf.mxu0
    %v5202 = vadd.f32 %v3620, %v5201
    %v5203 = vpop.f32.mrf.mxu0
    %5204 = vdwg.mxu0
    %5205 = vmatpush.bf16.msra.mxu0 %v4677
    %5206 = vmatpush.bf16.msra.mxu0 %v4645
    %5207 = vmatpush.bf16.msra.mxu0 %v4613
    %5208 = vmatpush.bf16.msra.mxu0 %v4581
    %5209 = vmatpush.bf16.msra.mxu0 %v4549
    %5210 = vmatpush.bf16.msra.mxu0 %v4517
    %5211 = vmatpush.bf16.msra.mxu0 %v4485
    %5212 = vmatpush.bf16.msra.mxu0 %v4453
    %5213 = vmatmul.bf16.gmra.mxu0 %v3336
    %v5214 = vpop.f32.mrf.mxu0
    %v5215 = vadd.f32 %v3621, %v5214
    %v5216 = vpop.f32.mrf.mxu0
    %5217 = vdwg.mxu0
    %5218 = vmatpush.bf16.msra.mxu0 %v4678
    %5219 = vmatpush.bf16.msra.mxu0 %v4646
    %5220 = vmatpush.bf16.msra.mxu0 %v4614
    %5221 = vmatpush.bf16.msra.mxu0 %v4582
    %5222 = vmatpush.bf16.msra.mxu0 %v4550
    %5223 = vmatpush.bf16.msra.mxu0 %v4518
    %5224 = vmatpush.bf16.msra.mxu0 %v4486
    %5225 = vmatpush.bf16.msra.mxu0 %v4454
    %5226 = vmatmul.bf16.gmra.mxu0 %v3336
    %v5227 = vpop.f32.mrf.mxu0
    %v5228 = vadd.f32 %v3622, %v5227
    %v5229 = vpop.f32.mrf.mxu0
    %5230 = vdwg.mxu0
    %5231 = vmatpush.bf16.msra.mxu0 %v4679
    %5232 = vmatpush.bf16.msra.mxu0 %v4647
    %5233 = vmatpush.bf16.msra.mxu0 %v4615
    %5234 = vmatpush.bf16.msra.mxu0 %v4583
    %5235 = vmatpush.bf16.msra.mxu0 %v4551
    %5236 = vmatpush.bf16.msra.mxu0 %v4519
    %5237 = vmatpush.bf16.msra.mxu0 %v4487
    %5238 = vmatpush.bf16.msra.mxu0 %v4455
    %5239 = vmatmul.bf16.gmra.mxu0 %v3336
    %v5240 = vpop.f32.mrf.mxu0
    %v5241 = vadd.f32 %v3623, %v5240
    %v5242 = vpop.f32.mrf.mxu0
    %5243 = vdwg.mxu0
    %5244 = vmatpush.bf16.msra.mxu0 %v4680
    %5245 = vmatpush.bf16.msra.mxu0 %v4648
    %5246 = vmatpush.bf16.msra.mxu0 %v4616
    %5247 = vmatpush.bf16.msra.mxu0 %v4584
    %5248 = vmatpush.bf16.msra.mxu0 %v4552
    %5249 = vmatpush.bf16.msra.mxu0 %v4520
    %5250 = vmatpush.bf16.msra.mxu0 %v4488
    %5251 = vmatpush.bf16.msra.mxu0 %v4456
    %5252 = vmatmul.bf16.gmra.mxu0 %v3336
    %v5253 = vpop.f32.mrf.mxu0
    %v5254 = vadd.f32 %v3624, %v5253
    %v5255 = vpop.f32.mrf.mxu0
    %5256 = vdwg.mxu0
    %5257 = vmatpush.bf16.msra.mxu0 %v4681
    %5258 = vmatpush.bf16.msra.mxu0 %v4649
    %5259 = vmatpush.bf16.msra.mxu0 %v4617
    %5260 = vmatpush.bf16.msra.mxu0 %v4585
    %5261 = vmatpush.bf16.msra.mxu0 %v4553
    %5262 = vmatpush.bf16.msra.mxu0 %v4521
    %5263 = vmatpush.bf16.msra.mxu0 %v4489
    %5264 = vmatpush.bf16.msra.mxu0 %v4457
    %5265 = vmatmul.bf16.gmra.mxu0 %v3336
    %v5266 = vpop.f32.mrf.mxu0
    %v5267 = vadd.f32 %v3625, %v5266
    %v5268 = vpop.f32.mrf.mxu0
    %5269 = vdwg.mxu0
    %5270 = vmatpush.bf16.msra.mxu0 %v4682
    %5271 = vmatpush.bf16.msra.mxu0 %v4650
    %5272 = vmatpush.bf16.msra.mxu0 %v4618
    %5273 = vmatpush.bf16.msra.mxu0 %v4586
    %5274 = vmatpush.bf16.msra.mxu0 %v4554
    %5275 = vmatpush.bf16.msra.mxu0 %v4522
    %5276 = vmatpush.bf16.msra.mxu0 %v4490
    %5277 = vmatpush.bf16.msra.mxu0 %v4458
    %5278 = vmatmul.bf16.gmra.mxu0 %v3336
    %v5279 = vpop.f32.mrf.mxu0
    %v5280 = vadd.f32 %v3626, %v5279
    %v5281 = vpop.f32.mrf.mxu0
    %5282 = vdwg.mxu0
    %5283 = vmatpush.bf16.msra.mxu0 %v4683
    %5284 = vmatpush.bf16.msra.mxu0 %v4651
    %5285 = vmatpush.bf16.msra.mxu0 %v4619
    %5286 = vmatpush.bf16.msra.mxu0 %v4587
    %5287 = vmatpush.bf16.msra.mxu0 %v4555
    %5288 = vmatpush.bf16.msra.mxu0 %v4523
    %5289 = vmatpush.bf16.msra.mxu0 %v4491
    %5290 = vmatpush.bf16.msra.mxu0 %v4459
    %5291 = vmatmul.bf16.gmra.mxu0 %v3336
    %v5292 = vpop.f32.mrf.mxu0
    %v5293 = vadd.f32 %v3627, %v5292
    %v5294 = vpop.f32.mrf.mxu0
    %5295 = vdwg.mxu0
    %5296 = vmatpush.bf16.msra.mxu0 %v4684
    %5297 = vmatpush.bf16.msra.mxu0 %v4652
    %5298 = vmatpush.bf16.msra.mxu0 %v4620
    %5299 = vmatpush.bf16.msra.mxu0 %v4588
    %5300 = vmatpush.bf16.msra.mxu0 %v4556
    %5301 = vmatpush.bf16.msra.mxu0 %v4524
    %5302 = vmatpush.bf16.msra.mxu0 %v4492
    %5303 = vmatpush.bf16.msra.mxu0 %v4460
    %5304 = vmatmul.bf16.gmra.mxu0 %v3336
    %v5305 = vpop.f32.mrf.mxu0
    %v5306 = vadd.f32 %v3628, %v5305
    %v5307 = vpop.f32.mrf.mxu0
    %5308 = vdwg.mxu0
    %5309 = vmatpush.bf16.msra.mxu0 %v4685
    %5310 = vmatpush.bf16.msra.mxu0 %v4653
    %5311 = vmatpush.bf16.msra.mxu0 %v4621
    %5312 = vmatpush.bf16.msra.mxu0 %v4589
    %5313 = vmatpush.bf16.msra.mxu0 %v4557
    %5314 = vmatpush.bf16.msra.mxu0 %v4525
    %5315 = vmatpush.bf16.msra.mxu0 %v4493
    %5316 = vmatpush.bf16.msra.mxu0 %v4461
    %5317 = vmatmul.bf16.gmra.mxu0 %v3336
    %v5318 = vpop.f32.mrf.mxu0
    %v5319 = vadd.f32 %v3629, %v5318
    %v5320 = vpop.f32.mrf.mxu0
    %5321 = vdwg.mxu0
    %5322 = vmatpush.bf16.msra.mxu0 %v4686
    %5323 = vmatpush.bf16.msra.mxu0 %v4654
    %5324 = vmatpush.bf16.msra.mxu0 %v4622
    %5325 = vmatpush.bf16.msra.mxu0 %v4590
    %5326 = vmatpush.bf16.msra.mxu0 %v4558
    %5327 = vmatpush.bf16.msra.mxu0 %v4526
    %5328 = vmatpush.bf16.msra.mxu0 %v4494
    %5329 = vmatpush.bf16.msra.mxu0 %v4462
    %5330 = vmatmul.bf16.gmra.mxu0 %v3336
    %v5331 = vpop.f32.mrf.mxu0
    %v5332 = vadd.f32 %v3630, %v5331
    %v5333 = vpop.f32.mrf.mxu0
    %5334 = vdwg.mxu0
    %5335 = vmatpush.bf16.msra.mxu0 %v4687
    %5336 = vmatpush.bf16.msra.mxu0 %v4655
    %5337 = vmatpush.bf16.msra.mxu0 %v4623
    %5338 = vmatpush.bf16.msra.mxu0 %v4591
    %5339 = vmatpush.bf16.msra.mxu0 %v4559
    %5340 = vmatpush.bf16.msra.mxu0 %v4527
    %5341 = vmatpush.bf16.msra.mxu0 %v4495
    %5342 = vmatpush.bf16.msra.mxu0 %v4463
    %5343 = vmatmul.bf16.gmra.mxu0 %v3336
    %v5344 = vpop.f32.mrf.mxu0
    %v5345 = vadd.f32 %v3631, %v5344
    %v5346 = vpop.f32.mrf.mxu0
    %5347 = vdwg.mxu0
    %5348 = vmatpush.bf16.msra.mxu0 %v4688
    %5349 = vmatpush.bf16.msra.mxu0 %v4656
    %5350 = vmatpush.bf16.msra.mxu0 %v4624
    %5351 = vmatpush.bf16.msra.mxu0 %v4592
    %5352 = vmatpush.bf16.msra.mxu0 %v4560
    %5353 = vmatpush.bf16.msra.mxu0 %v4528
    %5354 = vmatpush.bf16.msra.mxu0 %v4496
    %5355 = vmatpush.bf16.msra.mxu0 %v4464
    %5356 = vmatmul.bf16.gmra.mxu0 %v3336
    %v5357 = vpop.f32.mrf.mxu0
    %v5358 = vadd.f32 %v3632, %v5357
    %v5359 = vpop.f32.mrf.mxu0
    %5360 = vdwg.mxu0
    %v5361 = vpack.c.bf16 %v4968, %v4955
    %v5362 = vpack.c.bf16 %v4994, %v4981
    %v5363 = vpack.c.bf16 %v5020, %v5007
    %v5364 = vpack.c.bf16 %v5046, %v5033
    %v5365 = vpack.c.bf16 %v5072, %v5059
    %v5366 = vpack.c.bf16 %v5098, %v5085
    %v5367 = vpack.c.bf16 %v5124, %v5111
    %v5368 = vpack.c.bf16 %v5150, %v5137
    %v5369 = vpack.c.bf16 %v5176, %v5163
    %v5370 = vpack.c.bf16 %v5202, %v5189
    %v5371 = vpack.c.bf16 %v5228, %v5215
    %v5372 = vpack.c.bf16 %v5254, %v5241
    %v5373 = vpack.c.bf16 %v5280, %v5267
    %v5374 = vpack.c.bf16 %v5306, %v5293
    %v5375 = vpack.c.bf16 %v5332, %v5319
    %v5376 = vpack.c.bf16 %v5358, %v5345
    %v5377 = vunpack.c.l.bf16 %v5361
    %v5378 = vunpack.c.h.bf16 %v5361
    %v5379 = vunpack.c.l.bf16 %v5362
    %v5380 = vunpack.c.h.bf16 %v5362
    %v5381 = vunpack.c.l.bf16 %v5363
    %v5382 = vunpack.c.h.bf16 %v5363
    %v5383 = vunpack.c.l.bf16 %v5364
    %v5384 = vunpack.c.h.bf16 %v5364
    %v5385 = vunpack.c.l.bf16 %v5365
    %v5386 = vunpack.c.h.bf16 %v5365
    %v5387 = vunpack.c.l.bf16 %v5366
    %v5388 = vunpack.c.h.bf16 %v5366
    %v5389 = vunpack.c.l.bf16 %v5367
    %v5390 = vunpack.c.h.bf16 %v5367
    %v5391 = vunpack.c.l.bf16 %v5368
    %v5392 = vunpack.c.h.bf16 %v5368
    %v5393 = vunpack.c.l.bf16 %v5369
    %v5394 = vunpack.c.h.bf16 %v5369
    %v5395 = vunpack.c.l.bf16 %v5370
    %v5396 = vunpack.c.h.bf16 %v5370
    %v5397 = vunpack.c.l.bf16 %v5371
    %v5398 = vunpack.c.h.bf16 %v5371
    %v5399 = vunpack.c.l.bf16 %v5372
    %v5400 = vunpack.c.h.bf16 %v5372
    %v5401 = vunpack.c.l.bf16 %v5373
    %v5402 = vunpack.c.h.bf16 %v5373
    %v5403 = vunpack.c.l.bf16 %v5374
    %v5404 = vunpack.c.h.bf16 %v5374
    %v5405 = vunpack.c.l.bf16 %v5375
    %v5406 = vunpack.c.h.bf16 %v5375
    %v5407 = vunpack.c.l.bf16 %v5376
    %v5408 = vunpack.c.h.bf16 %v5376
    %v5409 = vtanh.pop %v5377
    %v5410 = vtanh.pop %v5378
    %v5411 = vtanh.pop %v5379
    %v5412 = vtanh.pop %v5380
    %v5413 = vtanh.pop %v5381
    %v5414 = vtanh.pop %v5382
    %v5415 = vtanh.pop %v5383
    %v5416 = vtanh.pop %v5384
    %v5417 = vtanh.pop %v5385
    %v5418 = vtanh.pop %v5386
    %v5419 = vtanh.pop %v5387
    %v5420 = vtanh.pop %v5388
    %v5421 = vtanh.pop %v5389
    %v5422 = vtanh.pop %v5390
    %v5423 = vtanh.pop %v5391
    %v5424 = vtanh.pop %v5392
    %v5425 = vtanh.pop %v5393
    %v5426 = vtanh.pop %v5394
    %v5427 = vtanh.pop %v5395
    %v5428 = vtanh.pop %v5396
    %v5429 = vtanh.pop %v5397
    %v5430 = vtanh.pop %v5398
    %v5431 = vtanh.pop %v5399
    %v5432 = vtanh.pop %v5400
    %v5433 = vtanh.pop %v5401
    %v5434 = vtanh.pop %v5402
    %v5435 = vtanh.pop %v5403
    %v5436 = vtanh.pop %v5404
    %v5437 = vtanh.pop %v5405
    %v5438 = vtanh.pop %v5406
    %v5439 = vtanh.pop %v5407
    %v5440 = vtanh.pop %v5408
    %v5441 = vpack.c.bf16 %v5410, %v5409
    %v5442 = vpack.c.bf16 %v5412, %v5411
    %v5443 = vpack.c.bf16 %v5414, %v5413
    %v5444 = vpack.c.bf16 %v5416, %v5415
    %v5445 = vpack.c.bf16 %v5418, %v5417
    %v5446 = vpack.c.bf16 %v5420, %v5419
    %v5447 = vpack.c.bf16 %v5422, %v5421
    %v5448 = vpack.c.bf16 %v5424, %v5423
    %v5449 = vpack.c.bf16 %v5426, %v5425
    %v5450 = vpack.c.bf16 %v5428, %v5427
    %v5451 = vpack.c.bf16 %v5430, %v5429
    %v5452 = vpack.c.bf16 %v5432, %v5431
    %v5453 = vpack.c.bf16 %v5434, %v5433
    %v5454 = vpack.c.bf16 %v5436, %v5435
    %v5455 = vpack.c.bf16 %v5438, %v5437
    %v5456 = vpack.c.bf16 %v5440, %v5439
    %5457 = vst [vmem:[#allocation17] sm:$0xff] %v5441
    %5458 = vst [vmem:[#allocation17 + $0x8] sm:$0xff] %v5442
    %5459 = vst [vmem:[#allocation17 + $0x10] sm:$0xff] %v5443
    %5460 = vst [vmem:[#allocation17 + $0x18] sm:$0xff] %v5444
    %5461 = vst [vmem:[#allocation17 + $0x20] sm:$0xff] %v5445
    %5462 = vst [vmem:[#allocation17 + $0x28] sm:$0xff] %v5446
    %5463 = vst [vmem:[#allocation17 + $0x30] sm:$0xff] %v5447
    %5464 = vst [vmem:[#allocation17 + $0x38] sm:$0xff] %v5448
    %5465 = vst [vmem:[#allocation17 + $0x40] sm:$0xff] %v5449
    %5466 = vst [vmem:[#allocation17 + $0x48] sm:$0xff] %v5450
    %5467 = vst [vmem:[#allocation17 + $0x50] sm:$0xff] %v5451
    %5468 = vst [vmem:[#allocation17 + $0x58] sm:$0xff] %v5452
    %5469 = vst [vmem:[#allocation17 + $0x60] sm:$0xff] %v5453
    %5470 = vst [vmem:[#allocation17 + $0x68] sm:$0xff] %v5454
    %5471 = vst [vmem:[#allocation17 + $0x70] sm:$0xff] %v5455
    %5472 = vst [vmem:[#allocation17 + $0x78] sm:$0xff] %v5456
    // Predicated region
    $region82: #{tpu_custom_call.1} parent=1 // pred_check
      _
    $region83: #{tpu_custom_call.1} parent=1 // pred_check_branch
      %5474 = sbr.rel (0) target = $region85
    $region84: #{tpu_custom_call.1} parent=1 // pred_region
      %5476 = vsyncadd [#allocation4], 0
      %s5478 = sshll.u32 [#allocation17], 4
      %s5479 = int_to_ptr.vmem [resolvable:$true] %s5478
      %s5480 = sshll.u32 %s11, 4
      %s5481 = int_to_ptr.hbm [resolvable:$true] %s5480
      %5483 = dma.vmem_to_hbm [thread:$0]  %s5479, 2048, %s5481, [#allocation4]
    $region85: #{tpu_custom_call.1} parent=1 // pred_fallthru
      _
    // Predicated region
    $region86: #{tpu_custom_call.1} parent=1 // pred_check
      _
    $region87: #{tpu_custom_call.1} parent=1 // pred_check_branch
      %5485 = sbr.rel (0) target = $region89
    $region88: #{tpu_custom_call.1} parent=1 // pred_region
      %5487 = dma.done [#allocation4], 2048
    $region89: #{tpu_custom_call.1} parent=1 // pred_fallthru
      _
    %5488 = vsyncpa [#allocation3], 1
    %5489 = vsyncpa [#allocation6], 1
    %5490 = vsyncpa [#allocation9], 1
    %5491 = vsyncpa [#allocation12], 1
    %5492 = vsyncpa [#allocation15], 1
    %5493 = vsyncpa [#allocation4], 1

</llo_original>
